<compile_context>
chip_gen: v7x
topology: tpu7x:2x2x1
jax: 0.10.0
libtpu: 0.0.40
codegen_flags: <defaults>
</compile_context>

<pallas_src>
import functools

import numpy as np
import jax
import jax.numpy as jnp
from jax.experimental import pallas as pl
from jax.experimental.pallas import tpu as pltpu


# ----------------------------- Pallas kernels --------------------------------

def _node_path_kernel(edge_ref, feat_ref,
                      w1_ref, a1s_ref, a1d_ref, b1_ref,
                      w2_ref, a2s_ref, a2d_ref, b2_ref,
                      lng_ref, lnb_ref,
                      linw_ref, linb_ref,
                      ct1w_ref, ct1b_ref,
                      ct2w_ref, ct2b_ref,
                      o_ref):
    """GATConv x2 + LayerNorm + projector (all matmuls), fused in one kernel.

    edge_ref: (2, E) int32 in SMEM. adj[i, j] == 1 iff edge j -> i (+ self loops).
    Output: (N, C*D*H*W) float32, CDHW-ordered per node, lane-dense.
    """
    n = feat_ref.shape[0]

    # --- dense adjacency from the SMEM edge list (with self loops, PyG default)
    row = jax.lax.broadcasted_iota(jnp.int32, (n, n), 0)
    col = jax.lax.broadcasted_iota(jnp.int32, (n, n), 1)
    adj = (row == col).astype(jnp.float32)
    for k in range(edge_ref.shape[1]):
        src = edge_ref[0, k]
        dst = edge_ref[1, k]
        adj = jnp.maximum(adj, jnp.where((row == dst) & (col == src), 1.0, 0.0))

    def gat(x, w_ref_, asrc_ref_, adst_ref_):
        """GATConv with dense adjacency.  Attention coeffs batched over heads."""
        xt = jnp.dot(x, w_ref_[...], preferred_element_type=jnp.float32)  # (N, H*C)
        nheads = asrc_ref_.shape[1]
        ch = w_ref_.shape[1] // nheads
        # alpha for all heads at once (block attention matrices built on host).
        a_dst = jnp.dot(xt, adst_ref_[...], preferred_element_type=jnp.float32)  # (N, H)
        a_src = jnp.dot(xt, asrc_ref_[...], preferred_element_type=jnp.float32)  # (N, H)
        a_src_t = jnp.transpose(a_src)                                           # (H, N)
        outs = []
        for h in range(nheads):
            logits = a_dst[:, h:h + 1] + a_src_t[h:h + 1, :]     # e[i,j]=ad[i]+as[j]
            logits = jnp.where(logits > 0, logits, 0.2 * logits)  # LeakyReLU(0.2)
            logits = jnp.where(adj > 0, logits, -1e30)            # mask non-edges
            logits = logits - jnp.max(logits, axis=1, keepdims=True)
            p_un = jnp.exp(logits) * adj
            attn = p_un / jnp.sum(p_un, axis=1, keepdims=True)
            outs.append(jnp.dot(attn, xt[:, h * ch:(h + 1) * ch],
                                preferred_element_type=jnp.float32))
        return outs

    # GNN1 (concat heads) + bias + ReLU
    outs1 = gat(feat_ref[...], w1_ref, a1s_ref, a1d_ref)
    x1 = jnp.maximum(jnp.concatenate(outs1, axis=1) + b1_ref[...], 0.0)

    # GNN2 (heads=1, concat=False -> mean) + bias
    outs2 = gat(x1, w2_ref, a2s_ref, a2d_ref)
    x2 = sum(outs2) / float(len(outs2)) + b2_ref[...]

    # LayerNorm (eps = 1e-5)
    mu = jnp.mean(x2, axis=1, keepdims=True)
    xc = x2 - mu
    var = jnp.mean(xc * xc, axis=1, keepdims=True)
    x3 = xc * jax.lax.rsqrt(var + 1e-5) * lng_ref[...] + lnb_ref[...]

    # Projector: Linear + ReLU, ConvTranspose1 (as matmul) + ReLU,
    # ConvTranspose2 folded with the trilinear upsample (single matmul).
    p1 = jnp.maximum(jnp.dot(x3, linw_ref[...],
                             preferred_element_type=jnp.float32) + linb_ref[...], 0.0)
    p2 = jnp.maximum(jnp.dot(p1, ct1w_ref[...],
                             preferred_element_type=jnp.float32) + ct1b_ref[...], 0.0)
    o_ref[...] = jnp.dot(p2, ct2w_ref[...],
                         preferred_element_type=jnp.float32) + ct2b_ref[...]


def _fusion_conv_kernel(vol_ref, proj_ref, w_ref, b_ref, mask_ref, o_ref, *, D, H, W):
    """3x3x3 'same' Conv3d + ReLU on concat([volumes, proj]) for one object.

    Channels-first flat layout (C, D*H*W).  im2col is built with static flat
    shifts + precomputed boundary masks; one MXU matmul per object.
    """
    dhw = D * H * W
    x = jnp.concatenate([vol_ref[0], proj_ref[0]], axis=0)        # (2C, DHW)
    cin2 = x.shape[0]
    cols = []
    t = 0
    for kd in range(3):
        for kh in range(3):
            for kw in range(3):
                s = (kd - 1) * H * W + (kh - 1) * W + (kw - 1)    # static flat shift
                if s > 0:
                    sh = jnp.concatenate(
                        [x[:, s:], jnp.zeros((cin2, s), jnp.float32)], axis=1)
                elif s < 0:
                    sh = jnp.concatenate(
                        [jnp.zeros((cin2, -s), jnp.float32), x[:, :dhw + s]], axis=1)
                else:
                    sh = x
                cols.append(sh * mask_ref[t:t + 1, :])            # zero out-of-bounds taps
                t += 1
    patches = jnp.concatenate(cols, axis=0)                       # (27*2C, DHW)
    acc = jnp.dot(w_ref[...], patches,
                  preferred_element_type=jnp.float32)             # (Cout, DHW)
    o_ref[0] = jnp.maximum(acc + b_ref[...], 0.0)                 # lane-dense store


# ---------------------- host-side operator-matrix builders --------------------

def convtranspose3d_as_matrix(w, in_spatial, stride=2, pad=1):
    """Dense matrix T so that flat(ConvTranspose3d(x)) = flat(x) @ T (channel-major)."""
    cin, cout, k, _, _ = w.shape
    si = in_spatial
    so = (si - 1) * stride - 2 * pad + k
    T = np.zeros((cin * si * si * si, cout * so * so * so), np.float32)
    for ic in range(cin):
        for idd in range(si):
            for ih in range(si):
                for iw in range(si):
                    rw = ((ic * si + idd) * si + ih) * si + iw
                    for kd in range(k):
                        od = idd * stride - pad + kd
                        if od < 0 or od >= so:
                            continue
                        for kh in range(k):
                            oh = ih * stride - pad + kh
                            if oh < 0 or oh >= so:
                                continue
                            for kw in range(k):
                                ow = iw * stride - pad + kw
                                if ow < 0 or ow >= so:
                                    continue
                                for oc in range(cout):
                                    cl = ((oc * so + od) * so + oh) * so + ow
                                    T[rw, cl] = w[ic, oc, kd, kh, kw]
    return T, so


def linear_interp_matrix(in_size, out_size):
    """1-D linear interpolation matrix, align_corners=False (PyTorch semantics)."""
    m = np.zeros((out_size, in_size), np.float32)
    scale = in_size / out_size
    for o in range(out_size):
        src = (o + 0.5) * scale - 0.5
        if src < 0:
            src = 0.0
        i0 = min(int(np.floor(src)), in_size - 1)
        i1 = min(i0 + 1, in_size - 1)
        l1 = src - i0
        m[o, i0] += 1.0 - l1
        m[o, i1] += l1
    return m


def _head_attn_matrix(a):
    """(heads, ch) attention vectors -> block matrix (heads*ch, heads)."""
    heads, ch = a.shape
    m = np.zeros((heads * ch, heads), np.float32)
    for h in range(heads):
        m[h * ch:(h + 1) * ch, h] = a[h]
    return m


def build_conv_masks(D, H, W):
    """(27, D*H*W) float mask: 1 where the 3x3x3 tap stays inside the volume."""
    m = np.zeros((27, D * H * W), np.float32)
    for kd in range(3):
        for kh in range(3):
            for kw in range(3):
                t = (kd * 3 + kh) * 3 + kw
                for d in range(D):
                    for h in range(H):
                        for w in range(W):
                            dd, hh, ww = d + kd - 1, h + kh - 1, w + kw - 1
                            if 0 <= dd < D and 0 <= hh < H and 0 <= ww < W:
                                m[t, d * H * W + h * W + w] = 1.0
    return m


# --------------------------------- model --------------------------------------

def build_params(key, input_dim=9, hidden_dim=8, output_dim=9, heads=4,
                 vol_shape=(8, 8, 8)):
    ks = jax.random.split(key, 16)
    s = 0.1
    D, H, W = vol_shape
    p = {}

    # GAT layer 1 (heads, concat=True)
    g1_asrc = s * np.asarray(jax.random.normal(ks[1], (heads, hidden_dim), jnp.float32))
    g1_adst = s * np.asarray(jax.random.normal(ks[2], (heads, hidden_dim), jnp.float32))
    p['g1_w'] = s * jax.random.normal(ks[0], (input_dim, heads * hidden_dim), jnp.float32)
    p['g1_amat_src'] = jnp.asarray(_head_attn_matrix(g1_asrc))       # (H*C, H)
    p['g1_amat_dst'] = jnp.asarray(_head_attn_matrix(g1_adst))
    p['g1_b'] = jnp.zeros((1, heads * hidden_dim), jnp.float32)

    # GAT layer 2 (1 head, concat=False)
    g2_asrc = s * np.asarray(jax.random.normal(ks[4], (1, output_dim), jnp.float32))
    g2_adst = s * np.asarray(jax.random.normal(ks[5], (1, output_dim), jnp.float32))
    p['g2_w'] = s * jax.random.normal(ks[3], (heads * hidden_dim, output_dim), jnp.float32)
    p['g2_amat_src'] = jnp.asarray(_head_attn_matrix(g2_asrc))       # (C, 1)
    p['g2_amat_dst'] = jnp.asarray(_head_attn_matrix(g2_adst))
    p['g2_b'] = jnp.zeros((1, output_dim), jnp.float32)

    # LayerNorm
    p['ln_g'] = jnp.ones((1, output_dim), jnp.float32)
    p['ln_b'] = jnp.zeros((1, output_dim), jnp.float32)

    # Projector: Linear(9->32), ConvT(32->16, 1->2), ConvT(16->9, 2->4), upsample->8
    p['lin_w'] = s * jax.random.normal(ks[6], (output_dim, 32), jnp.float32)
    p['lin_b'] = s * jax.random.normal(ks[7], (1, 32), jnp.float32)
    w_ct1 = s * np.asarray(jax.random.normal(ks[8], (32, 16, 4, 4, 4), jnp.float32))
    b_ct1 = s * np.asarray(jax.random.normal(ks[9], (16,), jnp.float32))
    w_ct2 = s * np.asarray(jax.random.normal(ks[10], (16, output_dim, 4, 4, 4), jnp.float32))
    b_ct2 = s * np.asarray(jax.random.normal(ks[11], (output_dim,), jnp.float32))
    T1, sp1 = convtranspose3d_as_matrix(w_ct1, 1)
    T2, sp2 = convtranspose3d_as_matrix(w_ct2, sp1)
    p['ct1_T'] = jnp.asarray(T1)                                     # (32, 16*sp1^3)
    p['ct1_b'] = jnp.asarray(np.repeat(b_ct1, sp1 ** 3)[None, :])    # (1, 128)

    # Fold ConvTranspose2 + trilinear upsample (align_corners=False) into one
    # (128, C*D*H*W) matrix: no nonlinearity sits between them.
    md = linear_interp_matrix(sp2, D)
    mh = linear_interp_matrix(sp2, H)
    mw = linear_interp_matrix(sp2, W)
    M = np.kron(md, np.kron(mh, mw)).astype(np.float32)              # (DHW, sp2^3)
    Kup = np.kron(np.eye(output_dim, dtype=np.float32), M.T)         # (C*sp2^3, C*DHW)
    b2_rep = np.repeat(b_ct2, sp2 ** 3).astype(np.float32)
    p['ct2_T'] = jnp.asarray((T2 @ Kup).astype(np.float32))          # (128, C*DHW)
    p['ct2_b'] = jnp.asarray((b2_rep @ Kup)[None, :].astype(np.float32))

    # Fusion Conv3d(2C -> C, k=3, pad=1): weight as (Cout, 27*2C), im2col order.
    w_fuse = s * np.asarray(jax.random.normal(
        ks[12], (output_dim, 2 * output_dim, 3, 3, 3), jnp.float32))
    b_fuse = s * np.asarray(jax.random.normal(ks[13], (output_dim,), jnp.float32))
    p['fuse_w'] = jnp.asarray(
        np.transpose(w_fuse, (0, 2, 3, 4, 1)).reshape(output_dim, 27 * 2 * output_dim))
    p['fuse_b'] = jnp.asarray(b_fuse[:, None])                       # (Cout, 1)
    p['conv_mask'] = jnp.asarray(build_conv_masks(D, H, W))          # (27, DHW)
    return p


def scene_graph_refiner_forward(params, obj_feats, edge_index, volumes):
    n = obj_feats.shape[0]
    c, d, h, w = volumes.shape[1], volumes.shape[2], volumes.shape[3], volumes.shape[4]
    dhw = d * h * w
    out_dim = params['g2_w'].shape[1]
    assert c == out_dim, (c, out_dim)

    # ------- kernel 1: adjacency + GAT x2 + LayerNorm + projector + upsample --
    node_inputs = (edge_index.astype(jnp.int32), obj_feats,
                   params['g1_w'], params['g1_amat_src'], params['g1_amat_dst'], params['g1_b'],
                   params['g2_w'], params['g2_amat_src'], params['g2_amat_dst'], params['g2_b'],
                   params['ln_g'], params['ln_b'],
                   params['lin_w'], params['lin_b'],
                   params['ct1_T'], params['ct1_b'],
                   params['ct2_T'], params['ct2_b'])
    node_bytes = sum(int(np.prod(a.shape)) * 4 for a in node_inputs[1:]) \
        + n * out_dim * dhw * 4
    proj_flat = pl.pallas_call(
        _node_path_kernel,
        out_shape=jax.ShapeDtypeStruct((n, out_dim * dhw), jnp.float32),
        in_specs=[pl.BlockSpec(memory_space=pltpu.MemorySpace.SMEM)]
        + [pl.BlockSpec(memory_space=pltpu.MemorySpace.VMEM)] * (len(node_inputs) - 1),
        out_specs=pl.BlockSpec(memory_space=pltpu.MemorySpace.VMEM),
        cost_estimate=pl.CostEstimate(
            flops=2 * n * params['ct2_T'].shape[0] * params['ct2_T'].shape[1] + 200_000,
            transcendentals=(params['g1_amat_src'].shape[1] + 1) * n * n,
            bytes_accessed=node_bytes),
    )(*node_inputs)

    # ------- kernel 2: fused concat + 3x3x3 Conv3d + ReLU, gridded over objects
    vol2 = volumes.reshape(n, c, dhw)                  # free reshape, no transpose
    proj2 = proj_flat.reshape(n, out_dim, dhw)         # already CDHW-ordered
    cin2 = 2 * c
    conv_flops = 2 * n * out_dim * 27 * cin2 * dhw
    conv_bytes = 4 * (n * (cin2 + out_dim) * dhw + out_dim * 27 * cin2 + 27 * dhw)
    out = pl.pallas_call(
        functools.partial(_fusion_conv_kernel, D=d, H=h, W=w),
        out_shape=jax.ShapeDtypeStruct((n, out_dim, dhw), jnp.float32),
        grid=(n,),
        in_specs=[
            pl.BlockSpec((1, c, dhw), lambda i: (i, 0, 0)),
            pl.BlockSpec((1, out_dim, dhw), lambda i: (i, 0, 0)),
            pl.BlockSpec((out_dim, 27 * cin2), lambda i: (0, 0)),
            pl.BlockSpec((out_dim, 1), lambda i: (0, 0)),
            pl.BlockSpec((27, dhw), lambda i: (0, 0)),
        ],
        out_specs=pl.BlockSpec((1, out_dim, dhw), lambda i: (i, 0, 0)),
        compiler_params=pltpu.CompilerParams(dimension_semantics=("parallel",)),
        cost_estimate=pl.CostEstimate(flops=conv_flops, transcendentals=0,
                                      bytes_accessed=conv_bytes),
    )(vol2, proj2, params['fuse_w'], params['fuse_b'], params['conv_mask'])

    return out.reshape(n, out_dim, d, h, w)


# ----------------------------------- main --------------------------------------

if __name__ == "__main__":
    key = jax.random.PRNGKey(0)
    kp, kx, kv = jax.random.split(key, 3)

    N, INPUT_DIM, HIDDEN_DIM, OUTPUT_DIM, HEADS = 8, 9, 8, 9, 4
    D = H = W = 8

    params = build_params(kp, input_dim=INPUT_DIM, hidden_dim=HIDDEN_DIM,
                          output_dim=OUTPUT_DIM, heads=HEADS, vol_shape=(D, H, W))

    obj_feats = jax.random.normal(kx, (N, INPUT_DIM), jnp.float32)
    idx = np.arange(N)
    edge_src = np.concatenate([idx, (idx + 1) % N])
    edge_dst = np.concatenate([(idx + 1) % N, idx])
    edge_index = jnp.asarray(np.stack([edge_src, edge_dst]).astype(np.int32))  # (2, 16)
    volumes = 0.1 * jax.random.normal(kv, (N, OUTPUT_DIM, D, H, W), jnp.float32)

    fwd = jax.jit(scene_graph_refiner_forward)
    fused = jax.block_until_ready(fwd(params, obj_feats, edge_index, volumes))

    assert fused.shape == (N, OUTPUT_DIM, D, H, W), fused.shape
    assert bool(jnp.all(jnp.isfinite(fused)))
    print("KERNEL_OK")
</pallas_src>

<mosaic_0001>
module attributes {stable_mosaic.version = 11 : i64} {
  func.func @_node_path_kernel(%arg0: memref<2x16xi32, #tpu.memory_space<smem>>, %arg1: memref<8x9xf32, #tpu.memory_space<vmem>>, %arg2: memref<9x32xf32, #tpu.memory_space<vmem>>, %arg3: memref<32x4xf32, #tpu.memory_space<vmem>>, %arg4: memref<32x4xf32, #tpu.memory_space<vmem>>, %arg5: memref<1x32xf32, #tpu.memory_space<vmem>>, %arg6: memref<32x9xf32, #tpu.memory_space<vmem>>, %arg7: memref<9x1xf32, #tpu.memory_space<vmem>>, %arg8: memref<9x1xf32, #tpu.memory_space<vmem>>, %arg9: memref<1x9xf32, #tpu.memory_space<vmem>>, %arg10: memref<1x9xf32, #tpu.memory_space<vmem>>, %arg11: memref<1x9xf32, #tpu.memory_space<vmem>>, %arg12: memref<9x32xf32, #tpu.memory_space<vmem>>, %arg13: memref<1x32xf32, #tpu.memory_space<vmem>>, %arg14: memref<32x128xf32, #tpu.memory_space<vmem>>, %arg15: memref<1x128xf32, #tpu.memory_space<vmem>>, %arg16: memref<128x4608xf32, #tpu.memory_space<vmem>>, %arg17: memref<1x4608xf32, #tpu.memory_space<vmem>>, %arg18: memref<8x4608xf32, #tpu.memory_space<vmem>>) attributes {dimension_semantics = [], scalar_prefetch = 0 : i64, scratch_operands = 0 : i64, tpu.core_type = #tpu.core_type<tc>} {
    %0 = tpu.iota {dimensions = array<i32: 0>} : vector<8x8xi32>
    %1 = tpu.iota {dimensions = array<i32: 1>} : vector<8x8xi32>
    %2 = arith.cmpi eq, %0, %1 : vector<8x8xi32>
    %3 = arith.extui %2 : vector<8x8xi1> to vector<8x8xi32>
    %4 = arith.sitofp %3 : vector<8x8xi32> to vector<8x8xf32>
    %c0 = arith.constant 0 : index
    %c0_0 = arith.constant 0 : index
    %5 = memref.load %arg0[%c0, %c0_0] : memref<2x16xi32, #tpu.memory_space<smem>>
    %c1 = arith.constant 1 : index
    %c0_1 = arith.constant 0 : index
    %6 = memref.load %arg0[%c1, %c0_1] : memref<2x16xi32, #tpu.memory_space<smem>>
    %7 = vector.broadcast %6 : i32 to vector<8x8xi32>
    %8 = arith.cmpi eq, %0, %7 : vector<8x8xi32>
    %9 = vector.broadcast %5 : i32 to vector<8x8xi32>
    %10 = arith.cmpi eq, %1, %9 : vector<8x8xi32>
    %11 = arith.andi %8, %10 : vector<8x8xi1>
    %cst = arith.constant 1.000000e+00 : f32
    %cst_2 = arith.constant 0.000000e+00 : f32
    %12 = vector.broadcast %cst : f32 to vector<8x8xf32>
    %13 = vector.broadcast %cst_2 : f32 to vector<8x8xf32>
    %14 = arith.select %11, %12, %13 : vector<8x8xi1>, vector<8x8xf32>
    %15 = arith.maximumf %4, %14 : vector<8x8xf32>
    %c0_3 = arith.constant 0 : index
    %c1_4 = arith.constant 1 : index
    %16 = memref.load %arg0[%c0_3, %c1_4] : memref<2x16xi32, #tpu.memory_space<smem>>
    %c1_5 = arith.constant 1 : index
    %c1_6 = arith.constant 1 : index
    %17 = memref.load %arg0[%c1_5, %c1_6] : memref<2x16xi32, #tpu.memory_space<smem>>
    %18 = vector.broadcast %17 : i32 to vector<8x8xi32>
    %19 = arith.cmpi eq, %0, %18 : vector<8x8xi32>
    %20 = vector.broadcast %16 : i32 to vector<8x8xi32>
    %21 = arith.cmpi eq, %1, %20 : vector<8x8xi32>
    %22 = arith.andi %19, %21 : vector<8x8xi1>
    %cst_7 = arith.constant 1.000000e+00 : f32
    %cst_8 = arith.constant 0.000000e+00 : f32
    %23 = vector.broadcast %cst_7 : f32 to vector<8x8xf32>
    %24 = vector.broadcast %cst_8 : f32 to vector<8x8xf32>
    %25 = arith.select %22, %23, %24 : vector<8x8xi1>, vector<8x8xf32>
    %26 = arith.maximumf %15, %25 : vector<8x8xf32>
    %c0_9 = arith.constant 0 : index
    %c2 = arith.constant 2 : index
    %27 = memref.load %arg0[%c0_9, %c2] : memref<2x16xi32, #tpu.memory_space<smem>>
    %c1_10 = arith.constant 1 : index
    %c2_11 = arith.constant 2 : index
    %28 = memref.load %arg0[%c1_10, %c2_11] : memref<2x16xi32, #tpu.memory_space<smem>>
    %29 = vector.broadcast %28 : i32 to vector<8x8xi32>
    %30 = arith.cmpi eq, %0, %29 : vector<8x8xi32>
    %31 = vector.broadcast %27 : i32 to vector<8x8xi32>
    %32 = arith.cmpi eq, %1, %31 : vector<8x8xi32>
    %33 = arith.andi %30, %32 : vector<8x8xi1>
    %cst_12 = arith.constant 1.000000e+00 : f32
    %cst_13 = arith.constant 0.000000e+00 : f32
    %34 = vector.broadcast %cst_12 : f32 to vector<8x8xf32>
    %35 = vector.broadcast %cst_13 : f32 to vector<8x8xf32>
    %36 = arith.select %33, %34, %35 : vector<8x8xi1>, vector<8x8xf32>
    %37 = arith.maximumf %26, %36 : vector<8x8xf32>
    %c0_14 = arith.constant 0 : index
    %c3 = arith.constant 3 : index
    %38 = memref.load %arg0[%c0_14, %c3] : memref<2x16xi32, #tpu.memory_space<smem>>
    %c1_15 = arith.constant 1 : index
    %c3_16 = arith.constant 3 : index
    %39 = memref.load %arg0[%c1_15, %c3_16] : memref<2x16xi32, #tpu.memory_space<smem>>
    %40 = vector.broadcast %39 : i32 to vector<8x8xi32>
    %41 = arith.cmpi eq, %0, %40 : vector<8x8xi32>
    %42 = vector.broadcast %38 : i32 to vector<8x8xi32>
    %43 = arith.cmpi eq, %1, %42 : vector<8x8xi32>
    %44 = arith.andi %41, %43 : vector<8x8xi1>
    %cst_17 = arith.constant 1.000000e+00 : f32
    %cst_18 = arith.constant 0.000000e+00 : f32
    %45 = vector.broadcast %cst_17 : f32 to vector<8x8xf32>
    %46 = vector.broadcast %cst_18 : f32 to vector<8x8xf32>
    %47 = arith.select %44, %45, %46 : vector<8x8xi1>, vector<8x8xf32>
    %48 = arith.maximumf %37, %47 : vector<8x8xf32>
    %c0_19 = arith.constant 0 : index
    %c4 = arith.constant 4 : index
    %49 = memref.load %arg0[%c0_19, %c4] : memref<2x16xi32, #tpu.memory_space<smem>>
    %c1_20 = arith.constant 1 : index
    %c4_21 = arith.constant 4 : index
    %50 = memref.load %arg0[%c1_20, %c4_21] : memref<2x16xi32, #tpu.memory_space<smem>>
    %51 = vector.broadcast %50 : i32 to vector<8x8xi32>
    %52 = arith.cmpi eq, %0, %51 : vector<8x8xi32>
    %53 = vector.broadcast %49 : i32 to vector<8x8xi32>
    %54 = arith.cmpi eq, %1, %53 : vector<8x8xi32>
    %55 = arith.andi %52, %54 : vector<8x8xi1>
    %cst_22 = arith.constant 1.000000e+00 : f32
    %cst_23 = arith.constant 0.000000e+00 : f32
    %56 = vector.broadcast %cst_22 : f32 to vector<8x8xf32>
    %57 = vector.broadcast %cst_23 : f32 to vector<8x8xf32>
    %58 = arith.select %55, %56, %57 : vector<8x8xi1>, vector<8x8xf32>
    %59 = arith.maximumf %48, %58 : vector<8x8xf32>
    %c0_24 = arith.constant 0 : index
    %c5 = arith.constant 5 : index
    %60 = memref.load %arg0[%c0_24, %c5] : memref<2x16xi32, #tpu.memory_space<smem>>
    %c1_25 = arith.constant 1 : index
    %c5_26 = arith.constant 5 : index
    %61 = memref.load %arg0[%c1_25, %c5_26] : memref<2x16xi32, #tpu.memory_space<smem>>
    %62 = vector.broadcast %61 : i32 to vector<8x8xi32>
    %63 = arith.cmpi eq, %0, %62 : vector<8x8xi32>
    %64 = vector.broadcast %60 : i32 to vector<8x8xi32>
    %65 = arith.cmpi eq, %1, %64 : vector<8x8xi32>
    %66 = arith.andi %63, %65 : vector<8x8xi1>
    %cst_27 = arith.constant 1.000000e+00 : f32
    %cst_28 = arith.constant 0.000000e+00 : f32
    %67 = vector.broadcast %cst_27 : f32 to vector<8x8xf32>
    %68 = vector.broadcast %cst_28 : f32 to vector<8x8xf32>
    %69 = arith.select %66, %67, %68 : vector<8x8xi1>, vector<8x8xf32>
    %70 = arith.maximumf %59, %69 : vector<8x8xf32>
    %c0_29 = arith.constant 0 : index
    %c6 = arith.constant 6 : index
    %71 = memref.load %arg0[%c0_29, %c6] : memref<2x16xi32, #tpu.memory_space<smem>>
    %c1_30 = arith.constant 1 : index
    %c6_31 = arith.constant 6 : index
    %72 = memref.load %arg0[%c1_30, %c6_31] : memref<2x16xi32, #tpu.memory_space<smem>>
    %73 = vector.broadcast %72 : i32 to vector<8x8xi32>
    %74 = arith.cmpi eq, %0, %73 : vector<8x8xi32>
    %75 = vector.broadcast %71 : i32 to vector<8x8xi32>
    %76 = arith.cmpi eq, %1, %75 : vector<8x8xi32>
    %77 = arith.andi %74, %76 : vector<8x8xi1>
    %cst_32 = arith.constant 1.000000e+00 : f32
    %cst_33 = arith.constant 0.000000e+00 : f32
    %78 = vector.broadcast %cst_32 : f32 to vector<8x8xf32>
    %79 = vector.broadcast %cst_33 : f32 to vector<8x8xf32>
    %80 = arith.select %77, %78, %79 : vector<8x8xi1>, vector<8x8xf32>
    %81 = arith.maximumf %70, %80 : vector<8x8xf32>
    %c0_34 = arith.constant 0 : index
    %c7 = arith.constant 7 : index
    %82 = memref.load %arg0[%c0_34, %c7] : memref<2x16xi32, #tpu.memory_space<smem>>
    %c1_35 = arith.constant 1 : index
    %c7_36 = arith.constant 7 : index
    %83 = memref.load %arg0[%c1_35, %c7_36] : memref<2x16xi32, #tpu.memory_space<smem>>
    %84 = vector.broadcast %83 : i32 to vector<8x8xi32>
    %85 = arith.cmpi eq, %0, %84 : vector<8x8xi32>
    %86 = vector.broadcast %82 : i32 to vector<8x8xi32>
    %87 = arith.cmpi eq, %1, %86 : vector<8x8xi32>
    %88 = arith.andi %85, %87 : vector<8x8xi1>
    %cst_37 = arith.constant 1.000000e+00 : f32
    %cst_38 = arith.constant 0.000000e+00 : f32
    %89 = vector.broadcast %cst_37 : f32 to vector<8x8xf32>
    %90 = vector.broadcast %cst_38 : f32 to vector<8x8xf32>
    %91 = arith.select %88, %89, %90 : vector<8x8xi1>, vector<8x8xf32>
    %92 = arith.maximumf %81, %91 : vector<8x8xf32>
    %c0_39 = arith.constant 0 : index
    %c8 = arith.constant 8 : index
    %93 = memref.load %arg0[%c0_39, %c8] : memref<2x16xi32, #tpu.memory_space<smem>>
    %c1_40 = arith.constant 1 : index
    %c8_41 = arith.constant 8 : index
    %94 = memref.load %arg0[%c1_40, %c8_41] : memref<2x16xi32, #tpu.memory_space<smem>>
    %95 = vector.broadcast %94 : i32 to vector<8x8xi32>
    %96 = arith.cmpi eq, %0, %95 : vector<8x8xi32>
    %97 = vector.broadcast %93 : i32 to vector<8x8xi32>
    %98 = arith.cmpi eq, %1, %97 : vector<8x8xi32>
    %99 = arith.andi %96, %98 : vector<8x8xi1>
    %cst_42 = arith.constant 1.000000e+00 : f32
    %cst_43 = arith.constant 0.000000e+00 : f32
    %100 = vector.broadcast %cst_42 : f32 to vector<8x8xf32>
    %101 = vector.broadcast %cst_43 : f32 to vector<8x8xf32>
    %102 = arith.select %99, %100, %101 : vector<8x8xi1>, vector<8x8xf32>
    %103 = arith.maximumf %92, %102 : vector<8x8xf32>
    %c0_44 = arith.constant 0 : index
    %c9 = arith.constant 9 : index
    %104 = memref.load %arg0[%c0_44, %c9] : memref<2x16xi32, #tpu.memory_space<smem>>
    %c1_45 = arith.constant 1 : index
    %c9_46 = arith.constant 9 : index
    %105 = memref.load %arg0[%c1_45, %c9_46] : memref<2x16xi32, #tpu.memory_space<smem>>
    %106 = vector.broadcast %105 : i32 to vector<8x8xi32>
    %107 = arith.cmpi eq, %0, %106 : vector<8x8xi32>
    %108 = vector.broadcast %104 : i32 to vector<8x8xi32>
    %109 = arith.cmpi eq, %1, %108 : vector<8x8xi32>
    %110 = arith.andi %107, %109 : vector<8x8xi1>
    %cst_47 = arith.constant 1.000000e+00 : f32
    %cst_48 = arith.constant 0.000000e+00 : f32
    %111 = vector.broadcast %cst_47 : f32 to vector<8x8xf32>
    %112 = vector.broadcast %cst_48 : f32 to vector<8x8xf32>
    %113 = arith.select %110, %111, %112 : vector<8x8xi1>, vector<8x8xf32>
    %114 = arith.maximumf %103, %113 : vector<8x8xf32>
    %c0_49 = arith.constant 0 : index
    %c10 = arith.constant 10 : index
    %115 = memref.load %arg0[%c0_49, %c10] : memref<2x16xi32, #tpu.memory_space<smem>>
    %c1_50 = arith.constant 1 : index
    %c10_51 = arith.constant 10 : index
    %116 = memref.load %arg0[%c1_50, %c10_51] : memref<2x16xi32, #tpu.memory_space<smem>>
    %117 = vector.broadcast %116 : i32 to vector<8x8xi32>
    %118 = arith.cmpi eq, %0, %117 : vector<8x8xi32>
    %119 = vector.broadcast %115 : i32 to vector<8x8xi32>
    %120 = arith.cmpi eq, %1, %119 : vector<8x8xi32>
    %121 = arith.andi %118, %120 : vector<8x8xi1>
    %cst_52 = arith.constant 1.000000e+00 : f32
    %cst_53 = arith.constant 0.000000e+00 : f32
    %122 = vector.broadcast %cst_52 : f32 to vector<8x8xf32>
    %123 = vector.broadcast %cst_53 : f32 to vector<8x8xf32>
    %124 = arith.select %121, %122, %123 : vector<8x8xi1>, vector<8x8xf32>
    %125 = arith.maximumf %114, %124 : vector<8x8xf32>
    %c0_54 = arith.constant 0 : index
    %c11 = arith.constant 11 : index
    %126 = memref.load %arg0[%c0_54, %c11] : memref<2x16xi32, #tpu.memory_space<smem>>
    %c1_55 = arith.constant 1 : index
    %c11_56 = arith.constant 11 : index
    %127 = memref.load %arg0[%c1_55, %c11_56] : memref<2x16xi32, #tpu.memory_space<smem>>
    %128 = vector.broadcast %127 : i32 to vector<8x8xi32>
    %129 = arith.cmpi eq, %0, %128 : vector<8x8xi32>
    %130 = vector.broadcast %126 : i32 to vector<8x8xi32>
    %131 = arith.cmpi eq, %1, %130 : vector<8x8xi32>
    %132 = arith.andi %129, %131 : vector<8x8xi1>
    %cst_57 = arith.constant 1.000000e+00 : f32
    %cst_58 = arith.constant 0.000000e+00 : f32
    %133 = vector.broadcast %cst_57 : f32 to vector<8x8xf32>
    %134 = vector.broadcast %cst_58 : f32 to vector<8x8xf32>
    %135 = arith.select %132, %133, %134 : vector<8x8xi1>, vector<8x8xf32>
    %136 = arith.maximumf %125, %135 : vector<8x8xf32>
    %c0_59 = arith.constant 0 : index
    %c12 = arith.constant 12 : index
    %137 = memref.load %arg0[%c0_59, %c12] : memref<2x16xi32, #tpu.memory_space<smem>>
    %c1_60 = arith.constant 1 : index
    %c12_61 = arith.constant 12 : index
    %138 = memref.load %arg0[%c1_60, %c12_61] : memref<2x16xi32, #tpu.memory_space<smem>>
    %139 = vector.broadcast %138 : i32 to vector<8x8xi32>
    %140 = arith.cmpi eq, %0, %139 : vector<8x8xi32>
    %141 = vector.broadcast %137 : i32 to vector<8x8xi32>
    %142 = arith.cmpi eq, %1, %141 : vector<8x8xi32>
    %143 = arith.andi %140, %142 : vector<8x8xi1>
    %cst_62 = arith.constant 1.000000e+00 : f32
    %cst_63 = arith.constant 0.000000e+00 : f32
    %144 = vector.broadcast %cst_62 : f32 to vector<8x8xf32>
    %145 = vector.broadcast %cst_63 : f32 to vector<8x8xf32>
    %146 = arith.select %143, %144, %145 : vector<8x8xi1>, vector<8x8xf32>
    %147 = arith.maximumf %136, %146 : vector<8x8xf32>
    %c0_64 = arith.constant 0 : index
    %c13 = arith.constant 13 : index
    %148 = memref.load %arg0[%c0_64, %c13] : memref<2x16xi32, #tpu.memory_space<smem>>
    %c1_65 = arith.constant 1 : index
    %c13_66 = arith.constant 13 : index
    %149 = memref.load %arg0[%c1_65, %c13_66] : memref<2x16xi32, #tpu.memory_space<smem>>
    %150 = vector.broadcast %149 : i32 to vector<8x8xi32>
    %151 = arith.cmpi eq, %0, %150 : vector<8x8xi32>
    %152 = vector.broadcast %148 : i32 to vector<8x8xi32>
    %153 = arith.cmpi eq, %1, %152 : vector<8x8xi32>
    %154 = arith.andi %151, %153 : vector<8x8xi1>
    %cst_67 = arith.constant 1.000000e+00 : f32
    %cst_68 = arith.constant 0.000000e+00 : f32
    %155 = vector.broadcast %cst_67 : f32 to vector<8x8xf32>
    %156 = vector.broadcast %cst_68 : f32 to vector<8x8xf32>
    %157 = arith.select %154, %155, %156 : vector<8x8xi1>, vector<8x8xf32>
    %158 = arith.maximumf %147, %157 : vector<8x8xf32>
    %c0_69 = arith.constant 0 : index
    %c14 = arith.constant 14 : index
    %159 = memref.load %arg0[%c0_69, %c14] : memref<2x16xi32, #tpu.memory_space<smem>>
    %c1_70 = arith.constant 1 : index
    %c14_71 = arith.constant 14 : index
    %160 = memref.load %arg0[%c1_70, %c14_71] : memref<2x16xi32, #tpu.memory_space<smem>>
    %161 = vector.broadcast %160 : i32 to vector<8x8xi32>
    %162 = arith.cmpi eq, %0, %161 : vector<8x8xi32>
    %163 = vector.broadcast %159 : i32 to vector<8x8xi32>
    %164 = arith.cmpi eq, %1, %163 : vector<8x8xi32>
    %165 = arith.andi %162, %164 : vector<8x8xi1>
    %cst_72 = arith.constant 1.000000e+00 : f32
    %cst_73 = arith.constant 0.000000e+00 : f32
    %166 = vector.broadcast %cst_72 : f32 to vector<8x8xf32>
    %167 = vector.broadcast %cst_73 : f32 to vector<8x8xf32>
    %168 = arith.select %165, %166, %167 : vector<8x8xi1>, vector<8x8xf32>
    %169 = arith.maximumf %158, %168 : vector<8x8xf32>
    %c0_74 = arith.constant 0 : index
    %c15 = arith.constant 15 : index
    %170 = memref.load %arg0[%c0_74, %c15] : memref<2x16xi32, #tpu.memory_space<smem>>
    %c1_75 = arith.constant 1 : index
    %c15_76 = arith.constant 15 : index
    %171 = memref.load %arg0[%c1_75, %c15_76] : memref<2x16xi32, #tpu.memory_space<smem>>
    %172 = vector.broadcast %171 : i32 to vector<8x8xi32>
    %173 = arith.cmpi eq, %0, %172 : vector<8x8xi32>
    %174 = vector.broadcast %170 : i32 to vector<8x8xi32>
    %175 = arith.cmpi eq, %1, %174 : vector<8x8xi32>
    %176 = arith.andi %173, %175 : vector<8x8xi1>
    %cst_77 = arith.constant 1.000000e+00 : f32
    %cst_78 = arith.constant 0.000000e+00 : f32
    %177 = vector.broadcast %cst_77 : f32 to vector<8x8xf32>
    %178 = vector.broadcast %cst_78 : f32 to vector<8x8xf32>
    %179 = arith.select %176, %177, %178 : vector<8x8xi1>, vector<8x8xf32>
    %180 = arith.maximumf %169, %179 : vector<8x8xf32>
    %c0_79 = arith.constant 0 : index
    %c0_80 = arith.constant 0 : index
    %181 = vector.load %arg1[%c0_79, %c0_80] : memref<8x9xf32, #tpu.memory_space<vmem>>, vector<8x9xf32>
    %c0_81 = arith.constant 0 : index
    %c0_82 = arith.constant 0 : index
    %182 = vector.load %arg2[%c0_81, %c0_82] : memref<9x32xf32, #tpu.memory_space<vmem>>, vector<9x32xf32>
    %cst_83 = arith.constant dense<0.000000e+00> : vector<8x32xf32>
    %183 = tpu.matmul %181, %182, %cst_83 {dimension_numbers = #tpu.dot_dimension_numbers<[1], [0], [0], [1], [0, 0, 1, 1], [], []>} : vector<8x9xf32>, vector<9x32xf32>, vector<8x32xf32> -> vector<8x32xf32>
    %c0_84 = arith.constant 0 : index
    %c0_85 = arith.constant 0 : index
    %184 = vector.load %arg4[%c0_84, %c0_85] : memref<32x4xf32, #tpu.memory_space<vmem>>, vector<32x4xf32>
    %cst_86 = arith.constant dense<0.000000e+00> : vector<8x4xf32>
    %185 = tpu.matmul %183, %184, %cst_86 {dimension_numbers = #tpu.dot_dimension_numbers<[1], [0], [0], [1], [0, 0, 1, 1], [], []>} : vector<8x32xf32>, vector<32x4xf32>, vector<8x4xf32> -> vector<8x4xf32>
    %c0_87 = arith.constant 0 : index
    %c0_88 = arith.constant 0 : index
    %186 = vector.load %arg3[%c0_87, %c0_88] : memref<32x4xf32, #tpu.memory_space<vmem>>, vector<32x4xf32>
    %cst_89 = arith.constant dense<0.000000e+00> : vector<8x4xf32>
    %187 = tpu.matmul %183, %186, %cst_89 {dimension_numbers = #tpu.dot_dimension_numbers<[1], [0], [0], [1], [0, 0, 1, 1], [], []>} : vector<8x32xf32>, vector<32x4xf32>, vector<8x4xf32> -> vector<8x4xf32>
    %188 = tpu.transpose %187, [1, 0] : vector<8x4xf32> -> vector<4x8xf32>
    %189 = vector.extract_strided_slice %185 {offsets = [0, 0], sizes = [8, 1], strides = [1, 1]} : vector<8x4xf32> to vector<8x1xf32>
    %190 = vector.extract_strided_slice %188 {offsets = [0, 0], sizes = [1, 8], strides = [1, 1]} : vector<4x8xf32> to vector<1x8xf32>
    %191 = vector.broadcast %189 : vector<8x1xf32> to vector<8x8xf32>
    %192 = vector.broadcast %190 : vector<1x8xf32> to vector<8x8xf32>
    %193 = arith.addf %191, %192 : vector<8x8xf32>
    %cst_90 = arith.constant 0.000000e+00 : f32
    %194 = vector.broadcast %cst_90 : f32 to vector<8x8xf32>
    %195 = arith.cmpf ogt, %193, %194 : vector<8x8xf32>
    %cst_91 = arith.constant 2.000000e-01 : f32
    %196 = vector.broadcast %cst_91 : f32 to vector<8x8xf32>
    %197 = arith.mulf %196, %193 : vector<8x8xf32>
    %198 = arith.select %195, %193, %197 : vector<8x8xi1>, vector<8x8xf32>
    %cst_92 = arith.constant 0.000000e+00 : f32
    %199 = vector.broadcast %cst_92 : f32 to vector<8x8xf32>
    %200 = arith.cmpf ogt, %180, %199 : vector<8x8xf32>
    %cst_93 = arith.constant -1.000000e+30 : f32
    %201 = vector.broadcast %cst_93 : f32 to vector<8x8xf32>
    %202 = arith.select %200, %198, %201 : vector<8x8xi1>, vector<8x8xf32>
    %cst_94 = arith.constant dense<0xFF800000> : vector<8xf32>
    %203 = vector.multi_reduction <maximumf>, %202, %cst_94 [1] : vector<8x8xf32> to vector<8xf32>
    %204 = vector.shape_cast %203 : vector<8xf32> to vector<8x1xf32>
    %205 = vector.broadcast %204 : vector<8x1xf32> to vector<8x8xf32>
    %206 = arith.subf %202, %205 : vector<8x8xf32>
    %207 = math.exp %206 : vector<8x8xf32>
    %208 = arith.mulf %207, %180 : vector<8x8xf32>
    %cst_95 = arith.constant dense<0.000000e+00> : vector<8xf32>
    %209 = vector.multi_reduction <add>, %208, %cst_95 [1] : vector<8x8xf32> to vector<8xf32>
    %210 = vector.shape_cast %209 : vector<8xf32> to vector<8x1xf32>
    %211 = vector.broadcast %210 : vector<8x1xf32> to vector<8x8xf32>
    %212 = arith.divf %208, %211 : vector<8x8xf32>
    %213 = vector.extract_strided_slice %183 {offsets = [0, 0], sizes = [8, 8], strides = [1, 1]} : vector<8x32xf32> to vector<8x8xf32>
    %cst_96 = arith.constant dense<0.000000e+00> : vector<8x8xf32>
    %214 = tpu.matmul %212, %213, %cst_96 {dimension_numbers = #tpu.dot_dimension_numbers<[1], [0], [0], [1], [0, 0, 1, 1], [], []>} : vector<8x8xf32>, vector<8x8xf32>, vector<8x8xf32> -> vector<8x8xf32>
    %215 = vector.extract_strided_slice %185 {offsets = [0, 1], sizes = [8, 1], strides = [1, 1]} : vector<8x4xf32> to vector<8x1xf32>
    %216 = vector.extract_strided_slice %188 {offsets = [1, 0], sizes = [1, 8], strides = [1, 1]} : vector<4x8xf32> to vector<1x8xf32>
    %217 = vector.broadcast %215 : vector<8x1xf32> to vector<8x8xf32>
    %218 = vector.broadcast %216 : vector<1x8xf32> to vector<8x8xf32>
    %219 = arith.addf %217, %218 : vector<8x8xf32>
    %cst_97 = arith.constant 0.000000e+00 : f32
    %220 = vector.broadcast %cst_97 : f32 to vector<8x8xf32>
    %221 = arith.cmpf ogt, %219, %220 : vector<8x8xf32>
    %cst_98 = arith.constant 2.000000e-01 : f32
    %222 = vector.broadcast %cst_98 : f32 to vector<8x8xf32>
    %223 = arith.mulf %222, %219 : vector<8x8xf32>
    %224 = arith.select %221, %219, %223 : vector<8x8xi1>, vector<8x8xf32>
    %cst_99 = arith.constant 0.000000e+00 : f32
    %225 = vector.broadcast %cst_99 : f32 to vector<8x8xf32>
    %226 = arith.cmpf ogt, %180, %225 : vector<8x8xf32>
    %cst_100 = arith.constant -1.000000e+30 : f32
    %227 = vector.broadcast %cst_100 : f32 to vector<8x8xf32>
    %228 = arith.select %226, %224, %227 : vector<8x8xi1>, vector<8x8xf32>
    %cst_101 = arith.constant dense<0xFF800000> : vector<8xf32>
    %229 = vector.multi_reduction <maximumf>, %228, %cst_101 [1] : vector<8x8xf32> to vector<8xf32>
    %230 = vector.shape_cast %229 : vector<8xf32> to vector<8x1xf32>
    %231 = vector.broadcast %230 : vector<8x1xf32> to vector<8x8xf32>
    %232 = arith.subf %228, %231 : vector<8x8xf32>
    %233 = math.exp %232 : vector<8x8xf32>
    %234 = arith.mulf %233, %180 : vector<8x8xf32>
    %cst_102 = arith.constant dense<0.000000e+00> : vector<8xf32>
    %235 = vector.multi_reduction <add>, %234, %cst_102 [1] : vector<8x8xf32> to vector<8xf32>
    %236 = vector.shape_cast %235 : vector<8xf32> to vector<8x1xf32>
    %237 = vector.broadcast %236 : vector<8x1xf32> to vector<8x8xf32>
    %238 = arith.divf %234, %237 : vector<8x8xf32>
    %239 = vector.extract_strided_slice %183 {offsets = [0, 8], sizes = [8, 8], strides = [1, 1]} : vector<8x32xf32> to vector<8x8xf32>
    %cst_103 = arith.constant dense<0.000000e+00> : vector<8x8xf32>
    %240 = tpu.matmul %238, %239, %cst_103 {dimension_numbers = #tpu.dot_dimension_numbers<[1], [0], [0], [1], [0, 0, 1, 1], [], []>} : vector<8x8xf32>, vector<8x8xf32>, vector<8x8xf32> -> vector<8x8xf32>
    %241 = vector.extract_strided_slice %185 {offsets = [0, 2], sizes = [8, 1], strides = [1, 1]} : vector<8x4xf32> to vector<8x1xf32>
    %242 = vector.extract_strided_slice %188 {offsets = [2, 0], sizes = [1, 8], strides = [1, 1]} : vector<4x8xf32> to vector<1x8xf32>
    %243 = vector.broadcast %241 : vector<8x1xf32> to vector<8x8xf32>
    %244 = vector.broadcast %242 : vector<1x8xf32> to vector<8x8xf32>
    %245 = arith.addf %243, %244 : vector<8x8xf32>
    %cst_104 = arith.constant 0.000000e+00 : f32
    %246 = vector.broadcast %cst_104 : f32 to vector<8x8xf32>
    %247 = arith.cmpf ogt, %245, %246 : vector<8x8xf32>
    %cst_105 = arith.constant 2.000000e-01 : f32
    %248 = vector.broadcast %cst_105 : f32 to vector<8x8xf32>
    %249 = arith.mulf %248, %245 : vector<8x8xf32>
    %250 = arith.select %247, %245, %249 : vector<8x8xi1>, vector<8x8xf32>
    %cst_106 = arith.constant 0.000000e+00 : f32
    %251 = vector.broadcast %cst_106 : f32 to vector<8x8xf32>
    %252 = arith.cmpf ogt, %180, %251 : vector<8x8xf32>
    %cst_107 = arith.constant -1.000000e+30 : f32
    %253 = vector.broadcast %cst_107 : f32 to vector<8x8xf32>
    %254 = arith.select %252, %250, %253 : vector<8x8xi1>, vector<8x8xf32>
    %cst_108 = arith.constant dense<0xFF800000> : vector<8xf32>
    %255 = vector.multi_reduction <maximumf>, %254, %cst_108 [1] : vector<8x8xf32> to vector<8xf32>
    %256 = vector.shape_cast %255 : vector<8xf32> to vector<8x1xf32>
    %257 = vector.broadcast %256 : vector<8x1xf32> to vector<8x8xf32>
    %258 = arith.subf %254, %257 : vector<8x8xf32>
    %259 = math.exp %258 : vector<8x8xf32>
    %260 = arith.mulf %259, %180 : vector<8x8xf32>
    %cst_109 = arith.constant dense<0.000000e+00> : vector<8xf32>
    %261 = vector.multi_reduction <add>, %260, %cst_109 [1] : vector<8x8xf32> to vector<8xf32>
    %262 = vector.shape_cast %261 : vector<8xf32> to vector<8x1xf32>
    %263 = vector.broadcast %262 : vector<8x1xf32> to vector<8x8xf32>
    %264 = arith.divf %260, %263 : vector<8x8xf32>
    %265 = vector.extract_strided_slice %183 {offsets = [0, 16], sizes = [8, 8], strides = [1, 1]} : vector<8x32xf32> to vector<8x8xf32>
    %cst_110 = arith.constant dense<0.000000e+00> : vector<8x8xf32>
    %266 = tpu.matmul %264, %265, %cst_110 {dimension_numbers = #tpu.dot_dimension_numbers<[1], [0], [0], [1], [0, 0, 1, 1], [], []>} : vector<8x8xf32>, vector<8x8xf32>, vector<8x8xf32> -> vector<8x8xf32>
    %267 = vector.extract_strided_slice %185 {offsets = [0, 3], sizes = [8, 1], strides = [1, 1]} : vector<8x4xf32> to vector<8x1xf32>
    %268 = vector.extract_strided_slice %188 {offsets = [3, 0], sizes = [1, 8], strides = [1, 1]} : vector<4x8xf32> to vector<1x8xf32>
    %269 = vector.broadcast %267 : vector<8x1xf32> to vector<8x8xf32>
    %270 = vector.broadcast %268 : vector<1x8xf32> to vector<8x8xf32>
    %271 = arith.addf %269, %270 : vector<8x8xf32>
    %cst_111 = arith.constant 0.000000e+00 : f32
    %272 = vector.broadcast %cst_111 : f32 to vector<8x8xf32>
    %273 = arith.cmpf ogt, %271, %272 : vector<8x8xf32>
    %cst_112 = arith.constant 2.000000e-01 : f32
    %274 = vector.broadcast %cst_112 : f32 to vector<8x8xf32>
    %275 = arith.mulf %274, %271 : vector<8x8xf32>
    %276 = arith.select %273, %271, %275 : vector<8x8xi1>, vector<8x8xf32>
    %cst_113 = arith.constant 0.000000e+00 : f32
    %277 = vector.broadcast %cst_113 : f32 to vector<8x8xf32>
    %278 = arith.cmpf ogt, %180, %277 : vector<8x8xf32>
    %cst_114 = arith.constant -1.000000e+30 : f32
    %279 = vector.broadcast %cst_114 : f32 to vector<8x8xf32>
    %280 = arith.select %278, %276, %279 : vector<8x8xi1>, vector<8x8xf32>
    %cst_115 = arith.constant dense<0xFF800000> : vector<8xf32>
    %281 = vector.multi_reduction <maximumf>, %280, %cst_115 [1] : vector<8x8xf32> to vector<8xf32>
    %282 = vector.shape_cast %281 : vector<8xf32> to vector<8x1xf32>
    %283 = vector.broadcast %282 : vector<8x1xf32> to vector<8x8xf32>
    %284 = arith.subf %280, %283 : vector<8x8xf32>
    %285 = math.exp %284 : vector<8x8xf32>
    %286 = arith.mulf %285, %180 : vector<8x8xf32>
    %cst_116 = arith.constant dense<0.000000e+00> : vector<8xf32>
    %287 = vector.multi_reduction <add>, %286, %cst_116 [1] : vector<8x8xf32> to vector<8xf32>
    %288 = vector.shape_cast %287 : vector<8xf32> to vector<8x1xf32>
    %289 = vector.broadcast %288 : vector<8x1xf32> to vector<8x8xf32>
    %290 = arith.divf %286, %289 : vector<8x8xf32>
    %291 = vector.extract_strided_slice %183 {offsets = [0, 24], sizes = [8, 8], strides = [1, 1]} : vector<8x32xf32> to vector<8x8xf32>
    %cst_117 = arith.constant dense<0.000000e+00> : vector<8x8xf32>
    %292 = tpu.matmul %290, %291, %cst_117 {dimension_numbers = #tpu.dot_dimension_numbers<[1], [0], [0], [1], [0, 0, 1, 1], [], []>} : vector<8x8xf32>, vector<8x8xf32>, vector<8x8xf32> -> vector<8x8xf32>
    %293 = tpu.concatenate %214, %240, %266, %292 in 1 : vector<8x8xf32>, vector<8x8xf32>, vector<8x8xf32>, vector<8x8xf32> -> vector<8x32xf32>
    %c0_118 = arith.constant 0 : index
    %c0_119 = arith.constant 0 : index
    %294 = vector.load %arg5[%c0_118, %c0_119] : memref<1x32xf32, #tpu.memory_space<vmem>>, vector<1x32xf32>
    %295 = vector.broadcast %294 : vector<1x32xf32> to vector<8x32xf32>
    %296 = arith.addf %293, %295 : vector<8x32xf32>
    %cst_120 = arith.constant 0.000000e+00 : f32
    %297 = vector.broadcast %cst_120 : f32 to vector<8x32xf32>
    %298 = arith.maximumf %296, %297 : vector<8x32xf32>
    %c0_121 = arith.constant 0 : index
    %c0_122 = arith.constant 0 : index
    %299 = vector.load %arg6[%c0_121, %c0_122] : memref<32x9xf32, #tpu.memory_space<vmem>>, vector<32x9xf32>
    %cst_123 = arith.constant dense<0.000000e+00> : vector<8x9xf32>
    %300 = tpu.matmul %298, %299, %cst_123 {dimension_numbers = #tpu.dot_dimension_numbers<[1], [0], [0], [1], [0, 0, 1, 1], [], []>} : vector<8x32xf32>, vector<32x9xf32>, vector<8x9xf32> -> vector<8x9xf32>
    %c0_124 = arith.constant 0 : index
    %c0_125 = arith.constant 0 : index
    %301 = vector.load %arg8[%c0_124, %c0_125] : memref<9x1xf32, #tpu.memory_space<vmem>>, vector<9x1xf32>
    %cst_126 = arith.constant dense<0.000000e+00> : vector<8x1xf32>
    %302 = tpu.matmul %300, %301, %cst_126 {dimension_numbers = #tpu.dot_dimension_numbers<[1], [0], [0], [1], [0, 0, 1, 1], [], []>} : vector<8x9xf32>, vector<9x1xf32>, vector<8x1xf32> -> vector<8x1xf32>
    %c0_127 = arith.constant 0 : index
    %c0_128 = arith.constant 0 : index
    %303 = vector.load %arg7[%c0_127, %c0_128] : memref<9x1xf32, #tpu.memory_space<vmem>>, vector<9x1xf32>
    %cst_129 = arith.constant dense<0.000000e+00> : vector<8x1xf32>
    %304 = tpu.matmul %300, %303, %cst_129 {dimension_numbers = #tpu.dot_dimension_numbers<[1], [0], [0], [1], [0, 0, 1, 1], [], []>} : vector<8x9xf32>, vector<9x1xf32>, vector<8x1xf32> -> vector<8x1xf32>
    %305 = tpu.transpose %304, [1, 0] : vector<8x1xf32> -> vector<1x8xf32>
    %306 = vector.broadcast %302 : vector<8x1xf32> to vector<8x8xf32>
    %307 = vector.broadcast %305 : vector<1x8xf32> to vector<8x8xf32>
    %308 = arith.addf %306, %307 : vector<8x8xf32>
    %cst_130 = arith.constant 0.000000e+00 : f32
    %309 = vector.broadcast %cst_130 : f32 to vector<8x8xf32>
    %310 = arith.cmpf ogt, %308, %309 : vector<8x8xf32>
    %cst_131 = arith.constant 2.000000e-01 : f32
    %311 = vector.broadcast %cst_131 : f32 to vector<8x8xf32>
    %312 = arith.mulf %311, %308 : vector<8x8xf32>
    %313 = arith.select %310, %308, %312 : vector<8x8xi1>, vector<8x8xf32>
    %cst_132 = arith.constant 0.000000e+00 : f32
    %314 = vector.broadcast %cst_132 : f32 to vector<8x8xf32>
    %315 = arith.cmpf ogt, %180, %314 : vector<8x8xf32>
    %cst_133 = arith.constant -1.000000e+30 : f32
    %316 = vector.broadcast %cst_133 : f32 to vector<8x8xf32>
    %317 = arith.select %315, %313, %316 : vector<8x8xi1>, vector<8x8xf32>
    %cst_134 = arith.constant dense<0xFF800000> : vector<8xf32>
    %318 = vector.multi_reduction <maximumf>, %317, %cst_134 [1] : vector<8x8xf32> to vector<8xf32>
    %319 = vector.shape_cast %318 : vector<8xf32> to vector<8x1xf32>
    %320 = vector.broadcast %319 : vector<8x1xf32> to vector<8x8xf32>
    %321 = arith.subf %317, %320 : vector<8x8xf32>
    %322 = math.exp %321 : vector<8x8xf32>
    %323 = arith.mulf %322, %180 : vector<8x8xf32>
    %cst_135 = arith.constant dense<0.000000e+00> : vector<8xf32>
    %324 = vector.multi_reduction <add>, %323, %cst_135 [1] : vector<8x8xf32> to vector<8xf32>
    %325 = vector.shape_cast %324 : vector<8xf32> to vector<8x1xf32>
    %326 = vector.broadcast %325 : vector<8x1xf32> to vector<8x8xf32>
    %327 = arith.divf %323, %326 : vector<8x8xf32>
    %cst_136 = arith.constant dense<0.000000e+00> : vector<8x9xf32>
    %328 = tpu.matmul %327, %300, %cst_136 {dimension_numbers = #tpu.dot_dimension_numbers<[1], [0], [0], [1], [0, 0, 1, 1], [], []>} : vector<8x8xf32>, vector<8x9xf32>, vector<8x9xf32> -> vector<8x9xf32>
    %cst_137 = arith.constant 0.000000e+00 : f32
    %329 = vector.broadcast %cst_137 : f32 to vector<8x9xf32>
    %330 = arith.addf %329, %328 : vector<8x9xf32>
    %cst_138 = arith.constant 1.000000e+00 : f32
    %331 = vector.broadcast %cst_138 : f32 to vector<8x9xf32>
    %332 = arith.divf %330, %331 : vector<8x9xf32>
    %c0_139 = arith.constant 0 : index
    %c0_140 = arith.constant 0 : index
    %333 = vector.load %arg9[%c0_139, %c0_140] : memref<1x9xf32, #tpu.memory_space<vmem>>, vector<1x9xf32>
    %334 = vector.broadcast %333 : vector<1x9xf32> to vector<8x9xf32>
    %335 = arith.addf %332, %334 : vector<8x9xf32>
    %cst_141 = arith.constant dense<0.000000e+00> : vector<8xf32>
    %336 = vector.multi_reduction <add>, %335, %cst_141 [1] : vector<8x9xf32> to vector<8xf32>
    %337 = vector.shape_cast %336 : vector<8xf32> to vector<8x1xf32>
    %cst_142 = arith.constant 9.000000e+00 : f32
    %338 = vector.broadcast %cst_142 : f32 to vector<8x1xf32>
    %339 = arith.divf %337, %338 : vector<8x1xf32>
    %340 = vector.broadcast %339 : vector<8x1xf32> to vector<8x9xf32>
    %341 = arith.subf %335, %340 : vector<8x9xf32>
    %342 = arith.mulf %341, %341 : vector<8x9xf32>
    %cst_143 = arith.constant dense<0.000000e+00> : vector<8xf32>
    %343 = vector.multi_reduction <add>, %342, %cst_143 [1] : vector<8x9xf32> to vector<8xf32>
    %344 = vector.shape_cast %343 : vector<8xf32> to vector<8x1xf32>
    %cst_144 = arith.constant 9.000000e+00 : f32
    %345 = vector.broadcast %cst_144 : f32 to vector<8x1xf32>
    %346 = arith.divf %344, %345 : vector<8x1xf32>
    %cst_145 = arith.constant 9.99999974E-6 : f32
    %347 = vector.broadcast %cst_145 : f32 to vector<8x1xf32>
    %348 = arith.addf %346, %347 : vector<8x1xf32>
    %349 = math.rsqrt %348 : vector<8x1xf32>
    %350 = vector.broadcast %349 : vector<8x1xf32> to vector<8x9xf32>
    %351 = arith.mulf %341, %350 : vector<8x9xf32>
    %c0_146 = arith.constant 0 : index
    %c0_147 = arith.constant 0 : index
    %352 = vector.load %arg10[%c0_146, %c0_147] : memref<1x9xf32, #tpu.memory_space<vmem>>, vector<1x9xf32>
    %353 = vector.broadcast %352 : vector<1x9xf32> to vector<8x9xf32>
    %354 = arith.mulf %351, %353 : vector<8x9xf32>
    %c0_148 = arith.constant 0 : index
    %c0_149 = arith.constant 0 : index
    %355 = vector.load %arg11[%c0_148, %c0_149] : memref<1x9xf32, #tpu.memory_space<vmem>>, vector<1x9xf32>
    %356 = vector.broadcast %355 : vector<1x9xf32> to vector<8x9xf32>
    %357 = arith.addf %354, %356 : vector<8x9xf32>
    %c0_150 = arith.constant 0 : index
    %c0_151 = arith.constant 0 : index
    %358 = vector.load %arg12[%c0_150, %c0_151] : memref<9x32xf32, #tpu.memory_space<vmem>>, vector<9x32xf32>
    %cst_152 = arith.constant dense<0.000000e+00> : vector<8x32xf32>
    %359 = tpu.matmul %357, %358, %cst_152 {dimension_numbers = #tpu.dot_dimension_numbers<[1], [0], [0], [1], [0, 0, 1, 1], [], []>} : vector<8x9xf32>, vector<9x32xf32>, vector<8x32xf32> -> vector<8x32xf32>
    %c0_153 = arith.constant 0 : index
    %c0_154 = arith.constant 0 : index
    %360 = vector.load %arg13[%c0_153, %c0_154] : memref<1x32xf32, #tpu.memory_space<vmem>>, vector<1x32xf32>
    %361 = vector.broadcast %360 : vector<1x32xf32> to vector<8x32xf32>
    %362 = arith.addf %359, %361 : vector<8x32xf32>
    %cst_155 = arith.constant 0.000000e+00 : f32
    %363 = vector.broadcast %cst_155 : f32 to vector<8x32xf32>
    %364 = arith.maximumf %362, %363 : vector<8x32xf32>
    %c0_156 = arith.constant 0 : index
    %c0_157 = arith.constant 0 : index
    %365 = vector.load %arg14[%c0_156, %c0_157] : memref<32x128xf32, #tpu.memory_space<vmem>>, vector<32x128xf32>
    %cst_158 = arith.constant dense<0.000000e+00> : vector<8x128xf32>
    %366 = tpu.matmul %364, %365, %cst_158 {dimension_numbers = #tpu.dot_dimension_numbers<[1], [0], [0], [1], [0, 0, 1, 1], [], []>} : vector<8x32xf32>, vector<32x128xf32>, vector<8x128xf32> -> vector<8x128xf32>
    %c0_159 = arith.constant 0 : index
    %c0_160 = arith.constant 0 : index
    %367 = vector.load %arg15[%c0_159, %c0_160] : memref<1x128xf32, #tpu.memory_space<vmem>>, vector<1x128xf32>
    %368 = vector.broadcast %367 : vector<1x128xf32> to vector<8x128xf32>
    %369 = arith.addf %366, %368 : vector<8x128xf32>
    %cst_161 = arith.constant 0.000000e+00 : f32
    %370 = vector.broadcast %cst_161 : f32 to vector<8x128xf32>
    %371 = arith.maximumf %369, %370 : vector<8x128xf32>
    %c0_162 = arith.constant 0 : index
    %c0_163 = arith.constant 0 : index
    %372 = vector.load %arg16[%c0_162, %c0_163] : memref<128x4608xf32, #tpu.memory_space<vmem>>, vector<128x4608xf32>
    %cst_164 = arith.constant dense<0.000000e+00> : vector<8x4608xf32>
    %373 = tpu.matmul %371, %372, %cst_164 {dimension_numbers = #tpu.dot_dimension_numbers<[1], [0], [0], [1], [0, 0, 1, 1], [], []>} : vector<8x128xf32>, vector<128x4608xf32>, vector<8x4608xf32> -> vector<8x4608xf32>
    %c0_165 = arith.constant 0 : index
    %c0_166 = arith.constant 0 : index
    %374 = vector.load %arg17[%c0_165, %c0_166] : memref<1x4608xf32, #tpu.memory_space<vmem>>, vector<1x4608xf32>
    %375 = vector.broadcast %374 : vector<1x4608xf32> to vector<8x4608xf32>
    %376 = arith.addf %373, %375 : vector<8x4608xf32>
    %c0_167 = arith.constant 0 : index
    %c0_168 = arith.constant 0 : index
    %377 = vector.load %arg18[%c0_167, %c0_168] : memref<8x4608xf32, #tpu.memory_space<vmem>>, vector<8x4608xf32>
    tpu.vector_store %arg18[%c0_167, %c0_168], %376 {strides = array<i32>} : memref<8x4608xf32, #tpu.memory_space<vmem>>, vector<8x4608xf32>,
    return
  }
}

module attributes {stable_mosaic.version = 11 : i64} {
  func.func @_fusion_conv_kernel(%arg0: i32, %arg1: memref<1x9x512xf32, #tpu.memory_space<vmem>>, %arg2: memref<1x9x512xf32, #tpu.memory_space<vmem>>, %arg3: memref<9x486xf32, #tpu.memory_space<vmem>>, %arg4: memref<9x1xf32, #tpu.memory_space<vmem>>, %arg5: memref<27x512xf32, #tpu.memory_space<vmem>>, %arg6: memref<1x9x512xf32, #tpu.memory_space<vmem>>) attributes {dimension_semantics = [#tpu.dimension_semantics<parallel>], iteration_bounds = array<i64: 8>, scalar_prefetch = 0 : i64, scratch_operands = 0 : i64, tpu.core_type = #tpu.core_type<tc>, window_params = [{transform_indices = @transform_0, window_bounds = array<i64: 1, 9, 512>}, {transform_indices = @transform_1, window_bounds = array<i64: 1, 9, 512>}, {pipeline_mode = #tpu.pipeline_mode<synchronous>, transform_indices = @transform_2, window_bounds = array<i64: 9, 486>}, {pipeline_mode = #tpu.pipeline_mode<synchronous>, transform_indices = @transform_3, window_bounds = array<i64: 9, 1>}, {pipeline_mode = #tpu.pipeline_mode<synchronous>, transform_indices = @transform_4, window_bounds = array<i64: 27, 512>}, {transform_indices = @transform_5, window_bounds = array<i64: 1, 9, 512>}]} {
    %c0 = arith.constant 0 : index
    %c0_0 = arith.constant 0 : index
    %c0_1 = arith.constant 0 : index
    %0 = vector.load %arg1[%c0, %c0_0, %c0_1] : memref<1x9x512xf32, #tpu.memory_space<vmem>>, vector<1x9x512xf32>
    %1 = vector.shape_cast %0 : vector<1x9x512xf32> to vector<9x512xf32>
    %c0_2 = arith.constant 0 : index
    %c0_3 = arith.constant 0 : index
    %c0_4 = arith.constant 0 : index
    %2 = vector.load %arg2[%c0_2, %c0_3, %c0_4] : memref<1x9x512xf32, #tpu.memory_space<vmem>>, vector<1x9x512xf32>
    %3 = vector.shape_cast %2 : vector<1x9x512xf32> to vector<9x512xf32>
    %4 = tpu.concatenate %1, %3 in 0 : vector<9x512xf32>, vector<9x512xf32> -> vector<18x512xf32>
    %cst = arith.constant 0.000000e+00 : f32
    %5 = vector.broadcast %cst : f32 to vector<18x73xf32>
    %6 = vector.extract_strided_slice %4 {offsets = [0, 0], sizes = [18, 439], strides = [1, 1]} : vector<18x512xf32> to vector<18x439xf32>
    %7 = tpu.concatenate %5, %6 in 1 : vector<18x73xf32>, vector<18x439xf32> -> vector<18x512xf32>
    %c0_5 = arith.constant 0 : index
    %c0_6 = arith.constant 0 : index
    %8 = vector.load %arg5[%c0_5, %c0_6] : memref<27x512xf32, #tpu.memory_space<vmem>>, vector<1x512xf32>
    %9 = vector.broadcast %8 : vector<1x512xf32> to vector<18x512xf32>
    %10 = arith.mulf %7, %9 : vector<18x512xf32>
    %cst_7 = arith.constant 0.000000e+00 : f32
    %11 = vector.broadcast %cst_7 : f32 to vector<18x72xf32>
    %12 = vector.extract_strided_slice %4 {offsets = [0, 0], sizes = [18, 440], strides = [1, 1]} : vector<18x512xf32> to vector<18x440xf32>
    %13 = tpu.concatenate %11, %12 in 1 : vector<18x72xf32>, vector<18x440xf32> -> vector<18x512xf32>
    %c1 = arith.constant 1 : index
    %c0_8 = arith.constant 0 : index
    %14 = vector.load %arg5[%c1, %c0_8] : memref<27x512xf32, #tpu.memory_space<vmem>>, vector<1x512xf32>
    %15 = vector.broadcast %14 : vector<1x512xf32> to vector<18x512xf32>
    %16 = arith.mulf %13, %15 : vector<18x512xf32>
    %cst_9 = arith.constant 0.000000e+00 : f32
    %17 = vector.broadcast %cst_9 : f32 to vector<18x71xf32>
    %18 = vector.extract_strided_slice %4 {offsets = [0, 0], sizes = [18, 441], strides = [1, 1]} : vector<18x512xf32> to vector<18x441xf32>
    %19 = tpu.concatenate %17, %18 in 1 : vector<18x71xf32>, vector<18x441xf32> -> vector<18x512xf32>
    %c2 = arith.constant 2 : index
    %c0_10 = arith.constant 0 : index
    %20 = vector.load %arg5[%c2, %c0_10] : memref<27x512xf32, #tpu.memory_space<vmem>>, vector<1x512xf32>
    %21 = vector.broadcast %20 : vector<1x512xf32> to vector<18x512xf32>
    %22 = arith.mulf %19, %21 : vector<18x512xf32>
    %cst_11 = arith.constant 0.000000e+00 : f32
    %23 = vector.broadcast %cst_11 : f32 to vector<18x65xf32>
    %24 = vector.extract_strided_slice %4 {offsets = [0, 0], sizes = [18, 447], strides = [1, 1]} : vector<18x512xf32> to vector<18x447xf32>
    %25 = tpu.concatenate %23, %24 in 1 : vector<18x65xf32>, vector<18x447xf32> -> vector<18x512xf32>
    %c3 = arith.constant 3 : index
    %c0_12 = arith.constant 0 : index
    %26 = vector.load %arg5[%c3, %c0_12] : memref<27x512xf32, #tpu.memory_space<vmem>>, vector<1x512xf32>
    %27 = vector.broadcast %26 : vector<1x512xf32> to vector<18x512xf32>
    %28 = arith.mulf %25, %27 : vector<18x512xf32>
    %cst_13 = arith.constant 0.000000e+00 : f32
    %29 = vector.broadcast %cst_13 : f32 to vector<18x64xf32>
    %30 = vector.extract_strided_slice %4 {offsets = [0, 0], sizes = [18, 448], strides = [1, 1]} : vector<18x512xf32> to vector<18x448xf32>
    %31 = tpu.concatenate %29, %30 in 1 : vector<18x64xf32>, vector<18x448xf32> -> vector<18x512xf32>
    %c4 = arith.constant 4 : index
    %c0_14 = arith.constant 0 : index
    %32 = vector.load %arg5[%c4, %c0_14] : memref<27x512xf32, #tpu.memory_space<vmem>>, vector<1x512xf32>
    %33 = vector.broadcast %32 : vector<1x512xf32> to vector<18x512xf32>
    %34 = arith.mulf %31, %33 : vector<18x512xf32>
    %cst_15 = arith.constant 0.000000e+00 : f32
    %35 = vector.broadcast %cst_15 : f32 to vector<18x63xf32>
    %36 = vector.extract_strided_slice %4 {offsets = [0, 0], sizes = [18, 449], strides = [1, 1]} : vector<18x512xf32> to vector<18x449xf32>
    %37 = tpu.concatenate %35, %36 in 1 : vector<18x63xf32>, vector<18x449xf32> -> vector<18x512xf32>
    %c5 = arith.constant 5 : index
    %c0_16 = arith.constant 0 : index
    %38 = vector.load %arg5[%c5, %c0_16] : memref<27x512xf32, #tpu.memory_space<vmem>>, vector<1x512xf32>
    %39 = vector.broadcast %38 : vector<1x512xf32> to vector<18x512xf32>
    %40 = arith.mulf %37, %39 : vector<18x512xf32>
    %cst_17 = arith.constant 0.000000e+00 : f32
    %41 = vector.broadcast %cst_17 : f32 to vector<18x57xf32>
    %42 = vector.extract_strided_slice %4 {offsets = [0, 0], sizes = [18, 455], strides = [1, 1]} : vector<18x512xf32> to vector<18x455xf32>
    %43 = tpu.concatenate %41, %42 in 1 : vector<18x57xf32>, vector<18x455xf32> -> vector<18x512xf32>
    %c6 = arith.constant 6 : index
    %c0_18 = arith.constant 0 : index
    %44 = vector.load %arg5[%c6, %c0_18] : memref<27x512xf32, #tpu.memory_space<vmem>>, vector<1x512xf32>
    %45 = vector.broadcast %44 : vector<1x512xf32> to vector<18x512xf32>
    %46 = arith.mulf %43, %45 : vector<18x512xf32>
    %cst_19 = arith.constant 0.000000e+00 : f32
    %47 = vector.broadcast %cst_19 : f32 to vector<18x56xf32>
    %48 = vector.extract_strided_slice %4 {offsets = [0, 0], sizes = [18, 456], strides = [1, 1]} : vector<18x512xf32> to vector<18x456xf32>
    %49 = tpu.concatenate %47, %48 in 1 : vector<18x56xf32>, vector<18x456xf32> -> vector<18x512xf32>
    %c7 = arith.constant 7 : index
    %c0_20 = arith.constant 0 : index
    %50 = vector.load %arg5[%c7, %c0_20] : memref<27x512xf32, #tpu.memory_space<vmem>>, vector<1x512xf32>
    %51 = vector.broadcast %50 : vector<1x512xf32> to vector<18x512xf32>
    %52 = arith.mulf %49, %51 : vector<18x512xf32>
    %cst_21 = arith.constant 0.000000e+00 : f32
    %53 = vector.broadcast %cst_21 : f32 to vector<18x55xf32>
    %54 = vector.extract_strided_slice %4 {offsets = [0, 0], sizes = [18, 457], strides = [1, 1]} : vector<18x512xf32> to vector<18x457xf32>
    %55 = tpu.concatenate %53, %54 in 1 : vector<18x55xf32>, vector<18x457xf32> -> vector<18x512xf32>
    %c8 = arith.constant 8 : index
    %c0_22 = arith.constant 0 : index
    %56 = vector.load %arg5[%c8, %c0_22] : memref<27x512xf32, #tpu.memory_space<vmem>>, vector<1x512xf32>
    %57 = vector.broadcast %56 : vector<1x512xf32> to vector<18x512xf32>
    %58 = arith.mulf %55, %57 : vector<18x512xf32>
    %cst_23 = arith.constant 0.000000e+00 : f32
    %59 = vector.broadcast %cst_23 : f32 to vector<18x9xf32>
    %60 = vector.extract_strided_slice %4 {offsets = [0, 0], sizes = [18, 503], strides = [1, 1]} : vector<18x512xf32> to vector<18x503xf32>
    %61 = tpu.concatenate %59, %60 in 1 : vector<18x9xf32>, vector<18x503xf32> -> vector<18x512xf32>
    %c9 = arith.constant 9 : index
    %c0_24 = arith.constant 0 : index
    %62 = vector.load %arg5[%c9, %c0_24] : memref<27x512xf32, #tpu.memory_space<vmem>>, vector<1x512xf32>
    %63 = vector.broadcast %62 : vector<1x512xf32> to vector<18x512xf32>
    %64 = arith.mulf %61, %63 : vector<18x512xf32>
    %cst_25 = arith.constant 0.000000e+00 : f32
    %65 = vector.broadcast %cst_25 : f32 to vector<18x8xf32>
    %66 = vector.extract_strided_slice %4 {offsets = [0, 0], sizes = [18, 504], strides = [1, 1]} : vector<18x512xf32> to vector<18x504xf32>
    %67 = tpu.concatenate %65, %66 in 1 : vector<18x8xf32>, vector<18x504xf32> -> vector<18x512xf32>
    %c10 = arith.constant 10 : index
    %c0_26 = arith.constant 0 : index
    %68 = vector.load %arg5[%c10, %c0_26] : memref<27x512xf32, #tpu.memory_space<vmem>>, vector<1x512xf32>
    %69 = vector.broadcast %68 : vector<1x512xf32> to vector<18x512xf32>
    %70 = arith.mulf %67, %69 : vector<18x512xf32>
    %cst_27 = arith.constant 0.000000e+00 : f32
    %71 = vector.broadcast %cst_27 : f32 to vector<18x7xf32>
    %72 = vector.extract_strided_slice %4 {offsets = [0, 0], sizes = [18, 505], strides = [1, 1]} : vector<18x512xf32> to vector<18x505xf32>
    %73 = tpu.concatenate %71, %72 in 1 : vector<18x7xf32>, vector<18x505xf32> -> vector<18x512xf32>
    %c11 = arith.constant 11 : index
    %c0_28 = arith.constant 0 : index
    %74 = vector.load %arg5[%c11, %c0_28] : memref<27x512xf32, #tpu.memory_space<vmem>>, vector<1x512xf32>
    %75 = vector.broadcast %74 : vector<1x512xf32> to vector<18x512xf32>
    %76 = arith.mulf %73, %75 : vector<18x512xf32>
    %cst_29 = arith.constant 0.000000e+00 : f32
    %77 = vector.broadcast %cst_29 : f32 to vector<18x1xf32>
    %78 = vector.extract_strided_slice %4 {offsets = [0, 0], sizes = [18, 511], strides = [1, 1]} : vector<18x512xf32> to vector<18x511xf32>
    %79 = tpu.concatenate %77, %78 in 1 : vector<18x1xf32>, vector<18x511xf32> -> vector<18x512xf32>
    %c12 = arith.constant 12 : index
    %c0_30 = arith.constant 0 : index
    %80 = vector.load %arg5[%c12, %c0_30] : memref<27x512xf32, #tpu.memory_space<vmem>>, vector<1x512xf32>
    %81 = vector.broadcast %80 : vector<1x512xf32> to vector<18x512xf32>
    %82 = arith.mulf %79, %81 : vector<18x512xf32>
    %c13 = arith.constant 13 : index
    %c0_31 = arith.constant 0 : index
    %83 = vector.load %arg5[%c13, %c0_31] : memref<27x512xf32, #tpu.memory_space<vmem>>, vector<1x512xf32>
    %84 = vector.broadcast %83 : vector<1x512xf32> to vector<18x512xf32>
    %85 = arith.mulf %4, %84 : vector<18x512xf32>
    %86 = vector.extract_strided_slice %4 {offsets = [0, 1], sizes = [18, 511], strides = [1, 1]} : vector<18x512xf32> to vector<18x511xf32>
    %cst_32 = arith.constant 0.000000e+00 : f32
    %87 = vector.broadcast %cst_32 : f32 to vector<18x1xf32>
    %88 = tpu.concatenate %86, %87 in 1 : vector<18x511xf32>, vector<18x1xf32> -> vector<18x512xf32>
    %c14 = arith.constant 14 : index
    %c0_33 = arith.constant 0 : index
    %89 = vector.load %arg5[%c14, %c0_33] : memref<27x512xf32, #tpu.memory_space<vmem>>, vector<1x512xf32>
    %90 = vector.broadcast %89 : vector<1x512xf32> to vector<18x512xf32>
    %91 = arith.mulf %88, %90 : vector<18x512xf32>
    %92 = vector.extract_strided_slice %4 {offsets = [0, 7], sizes = [18, 505], strides = [1, 1]} : vector<18x512xf32> to vector<18x505xf32>
    %cst_34 = arith.constant 0.000000e+00 : f32
    %93 = vector.broadcast %cst_34 : f32 to vector<18x7xf32>
    %94 = tpu.concatenate %92, %93 in 1 : vector<18x505xf32>, vector<18x7xf32> -> vector<18x512xf32>
    %c15 = arith.constant 15 : index
    %c0_35 = arith.constant 0 : index
    %95 = vector.load %arg5[%c15, %c0_35] : memref<27x512xf32, #tpu.memory_space<vmem>>, vector<1x512xf32>
    %96 = vector.broadcast %95 : vector<1x512xf32> to vector<18x512xf32>
    %97 = arith.mulf %94, %96 : vector<18x512xf32>
    %98 = vector.extract_strided_slice %4 {offsets = [0, 8], sizes = [18, 504], strides = [1, 1]} : vector<18x512xf32> to vector<18x504xf32>
    %cst_36 = arith.constant 0.000000e+00 : f32
    %99 = vector.broadcast %cst_36 : f32 to vector<18x8xf32>
    %100 = tpu.concatenate %98, %99 in 1 : vector<18x504xf32>, vector<18x8xf32> -> vector<18x512xf32>
    %c16 = arith.constant 16 : index
    %c0_37 = arith.constant 0 : index
    %101 = vector.load %arg5[%c16, %c0_37] : memref<27x512xf32, #tpu.memory_space<vmem>>, vector<1x512xf32>
    %102 = vector.broadcast %101 : vector<1x512xf32> to vector<18x512xf32>
    %103 = arith.mulf %100, %102 : vector<18x512xf32>
    %104 = vector.extract_strided_slice %4 {offsets = [0, 9], sizes = [18, 503], strides = [1, 1]} : vector<18x512xf32> to vector<18x503xf32>
    %cst_38 = arith.constant 0.000000e+00 : f32
    %105 = vector.broadcast %cst_38 : f32 to vector<18x9xf32>
    %106 = tpu.concatenate %104, %105 in 1 : vector<18x503xf32>, vector<18x9xf32> -> vector<18x512xf32>
    %c17 = arith.constant 17 : index
    %c0_39 = arith.constant 0 : index
    %107 = vector.load %arg5[%c17, %c0_39] : memref<27x512xf32, #tpu.memory_space<vmem>>, vector<1x512xf32>
    %108 = vector.broadcast %107 : vector<1x512xf32> to vector<18x512xf32>
    %109 = arith.mulf %106, %108 : vector<18x512xf32>
    %110 = vector.extract_strided_slice %4 {offsets = [0, 55], sizes = [18, 457], strides = [1, 1]} : vector<18x512xf32> to vector<18x457xf32>
    %cst_40 = arith.constant 0.000000e+00 : f32
    %111 = vector.broadcast %cst_40 : f32 to vector<18x55xf32>
    %112 = tpu.concatenate %110, %111 in 1 : vector<18x457xf32>, vector<18x55xf32> -> vector<18x512xf32>
    %c18 = arith.constant 18 : index
    %c0_41 = arith.constant 0 : index
    %113 = vector.load %arg5[%c18, %c0_41] : memref<27x512xf32, #tpu.memory_space<vmem>>, vector<1x512xf32>
    %114 = vector.broadcast %113 : vector<1x512xf32> to vector<18x512xf32>
    %115 = arith.mulf %112, %114 : vector<18x512xf32>
    %116 = vector.extract_strided_slice %4 {offsets = [0, 56], sizes = [18, 456], strides = [1, 1]} : vector<18x512xf32> to vector<18x456xf32>
    %cst_42 = arith.constant 0.000000e+00 : f32
    %117 = vector.broadcast %cst_42 : f32 to vector<18x56xf32>
    %118 = tpu.concatenate %116, %117 in 1 : vector<18x456xf32>, vector<18x56xf32> -> vector<18x512xf32>
    %c19 = arith.constant 19 : index
    %c0_43 = arith.constant 0 : index
    %119 = vector.load %arg5[%c19, %c0_43] : memref<27x512xf32, #tpu.memory_space<vmem>>, vector<1x512xf32>
    %120 = vector.broadcast %119 : vector<1x512xf32> to vector<18x512xf32>
    %121 = arith.mulf %118, %120 : vector<18x512xf32>
    %122 = vector.extract_strided_slice %4 {offsets = [0, 57], sizes = [18, 455], strides = [1, 1]} : vector<18x512xf32> to vector<18x455xf32>
    %cst_44 = arith.constant 0.000000e+00 : f32
    %123 = vector.broadcast %cst_44 : f32 to vector<18x57xf32>
    %124 = tpu.concatenate %122, %123 in 1 : vector<18x455xf32>, vector<18x57xf32> -> vector<18x512xf32>
    %c20 = arith.constant 20 : index
    %c0_45 = arith.constant 0 : index
    %125 = vector.load %arg5[%c20, %c0_45] : memref<27x512xf32, #tpu.memory_space<vmem>>, vector<1x512xf32>
    %126 = vector.broadcast %125 : vector<1x512xf32> to vector<18x512xf32>
    %127 = arith.mulf %124, %126 : vector<18x512xf32>
    %128 = vector.extract_strided_slice %4 {offsets = [0, 63], sizes = [18, 449], strides = [1, 1]} : vector<18x512xf32> to vector<18x449xf32>
    %cst_46 = arith.constant 0.000000e+00 : f32
    %129 = vector.broadcast %cst_46 : f32 to vector<18x63xf32>
    %130 = tpu.concatenate %128, %129 in 1 : vector<18x449xf32>, vector<18x63xf32> -> vector<18x512xf32>
    %c21 = arith.constant 21 : index
    %c0_47 = arith.constant 0 : index
    %131 = vector.load %arg5[%c21, %c0_47] : memref<27x512xf32, #tpu.memory_space<vmem>>, vector<1x512xf32>
    %132 = vector.broadcast %131 : vector<1x512xf32> to vector<18x512xf32>
    %133 = arith.mulf %130, %132 : vector<18x512xf32>
    %134 = vector.extract_strided_slice %4 {offsets = [0, 64], sizes = [18, 448], strides = [1, 1]} : vector<18x512xf32> to vector<18x448xf32>
    %cst_48 = arith.constant 0.000000e+00 : f32
    %135 = vector.broadcast %cst_48 : f32 to vector<18x64xf32>
    %136 = tpu.concatenate %134, %135 in 1 : vector<18x448xf32>, vector<18x64xf32> -> vector<18x512xf32>
    %c22 = arith.constant 22 : index
    %c0_49 = arith.constant 0 : index
    %137 = vector.load %arg5[%c22, %c0_49] : memref<27x512xf32, #tpu.memory_space<vmem>>, vector<1x512xf32>
    %138 = vector.broadcast %137 : vector<1x512xf32> to vector<18x512xf32>
    %139 = arith.mulf %136, %138 : vector<18x512xf32>
    %140 = vector.extract_strided_slice %4 {offsets = [0, 65], sizes = [18, 447], strides = [1, 1]} : vector<18x512xf32> to vector<18x447xf32>
    %cst_50 = arith.constant 0.000000e+00 : f32
    %141 = vector.broadcast %cst_50 : f32 to vector<18x65xf32>
    %142 = tpu.concatenate %140, %141 in 1 : vector<18x447xf32>, vector<18x65xf32> -> vector<18x512xf32>
    %c23 = arith.constant 23 : index
    %c0_51 = arith.constant 0 : index
    %143 = vector.load %arg5[%c23, %c0_51] : memref<27x512xf32, #tpu.memory_space<vmem>>, vector<1x512xf32>
    %144 = vector.broadcast %143 : vector<1x512xf32> to vector<18x512xf32>
    %145 = arith.mulf %142, %144 : vector<18x512xf32>
    %146 = vector.extract_strided_slice %4 {offsets = [0, 71], sizes = [18, 441], strides = [1, 1]} : vector<18x512xf32> to vector<18x441xf32>
    %cst_52 = arith.constant 0.000000e+00 : f32
    %147 = vector.broadcast %cst_52 : f32 to vector<18x71xf32>
    %148 = tpu.concatenate %146, %147 in 1 : vector<18x441xf32>, vector<18x71xf32> -> vector<18x512xf32>
    %c24 = arith.constant 24 : index
    %c0_53 = arith.constant 0 : index
    %149 = vector.load %arg5[%c24, %c0_53] : memref<27x512xf32, #tpu.memory_space<vmem>>, vector<1x512xf32>
    %150 = vector.broadcast %149 : vector<1x512xf32> to vector<18x512xf32>
    %151 = arith.mulf %148, %150 : vector<18x512xf32>
    %152 = vector.extract_strided_slice %4 {offsets = [0, 72], sizes = [18, 440], strides = [1, 1]} : vector<18x512xf32> to vector<18x440xf32>
    %cst_54 = arith.constant 0.000000e+00 : f32
    %153 = vector.broadcast %cst_54 : f32 to vector<18x72xf32>
    %154 = tpu.concatenate %152, %153 in 1 : vector<18x440xf32>, vector<18x72xf32> -> vector<18x512xf32>
    %c25 = arith.constant 25 : index
    %c0_55 = arith.constant 0 : index
    %155 = vector.load %arg5[%c25, %c0_55] : memref<27x512xf32, #tpu.memory_space<vmem>>, vector<1x512xf32>
    %156 = vector.broadcast %155 : vector<1x512xf32> to vector<18x512xf32>
    %157 = arith.mulf %154, %156 : vector<18x512xf32>
    %158 = vector.extract_strided_slice %4 {offsets = [0, 73], sizes = [18, 439], strides = [1, 1]} : vector<18x512xf32> to vector<18x439xf32>
    %cst_56 = arith.constant 0.000000e+00 : f32
    %159 = vector.broadcast %cst_56 : f32 to vector<18x73xf32>
    %160 = tpu.concatenate %158, %159 in 1 : vector<18x439xf32>, vector<18x73xf32> -> vector<18x512xf32>
    %c26 = arith.constant 26 : index
    %c0_57 = arith.constant 0 : index
    %161 = vector.load %arg5[%c26, %c0_57] : memref<27x512xf32, #tpu.memory_space<vmem>>, vector<1x512xf32>
    %162 = vector.broadcast %161 : vector<1x512xf32> to vector<18x512xf32>
    %163 = arith.mulf %160, %162 : vector<18x512xf32>
    %164 = tpu.concatenate %10, %16, %22, %28, %34, %40, %46, %52, %58, %64, %70, %76, %82, %85, %91, %97 in 0 : vector<18x512xf32>, vector<18x512xf32>, vector<18x512xf32>, vector<18x512xf32>, vector<18x512xf32>, vector<18x512xf32>, vector<18x512xf32>, vector<18x512xf32>, vector<18x512xf32>, vector<18x512xf32>, vector<18x512xf32>, vector<18x512xf32>, vector<18x512xf32>, vector<18x512xf32>, vector<18x512xf32>, vector<18x512xf32> -> vector<288x512xf32>
    %165 = tpu.concatenate %103, %109, %115, %121, %127, %133, %139, %145, %151, %157, %163 in 0 : vector<18x512xf32>, vector<18x512xf32>, vector<18x512xf32>, vector<18x512xf32>, vector<18x512xf32>, vector<18x512xf32>, vector<18x512xf32>, vector<18x512xf32>, vector<18x512xf32>, vector<18x512xf32>, vector<18x512xf32> -> vector<198x512xf32>
    %166 = tpu.concatenate %164, %165 in 0 : vector<288x512xf32>, vector<198x512xf32> -> vector<486x512xf32>
    %c0_58 = arith.constant 0 : index
    %c0_59 = arith.constant 0 : index
    %167 = vector.load %arg3[%c0_58, %c0_59] : memref<9x486xf32, #tpu.memory_space<vmem>>, vector<9x486xf32>
    %cst_60 = arith.constant dense<0.000000e+00> : vector<9x512xf32>
    %168 = tpu.matmul %167, %166, %cst_60 {dimension_numbers = #tpu.dot_dimension_numbers<[1], [0], [0], [1], [0, 0, 1, 1], [], []>} : vector<9x486xf32>, vector<486x512xf32>, vector<9x512xf32> -> vector<9x512xf32>
    %c0_61 = arith.constant 0 : index
    %c0_62 = arith.constant 0 : index
    %169 = vector.load %arg4[%c0_61, %c0_62] : memref<9x1xf32, #tpu.memory_space<vmem>>, vector<9x1xf32>
    %170 = vector.broadcast %169 : vector<9x1xf32> to vector<9x512xf32>
    %171 = arith.addf %168, %170 : vector<9x512xf32>
    %cst_63 = arith.constant 0.000000e+00 : f32
    %172 = vector.broadcast %cst_63 : f32 to vector<9x512xf32>
    %173 = arith.maximumf %171, %172 : vector<9x512xf32>
    %c0_64 = arith.constant 0 : index
    %c0_65 = arith.constant 0 : index
    %c0_66 = arith.constant 0 : index
    %174 = vector.load %arg6[%c0_64, %c0_65, %c0_66] : memref<1x9x512xf32, #tpu.memory_space<vmem>>, vector<1x9x512xf32>
    %175 = vector.shape_cast %174 : vector<1x9x512xf32> to vector<9x512xf32>
    %176 = vector.shape_cast %173 : vector<9x512xf32> to vector<1x9x512xf32>
    tpu.vector_store %arg6[%c0_64, %c0_65, %c0_66], %176 {strides = array<i32>} : memref<1x9x512xf32, #tpu.memory_space<vmem>>, vector<1x9x512xf32>,
    return
  }
  func.func @transform_0(%arg0: i32) -> (i32, i32, i32) {
    %c0_i32 = arith.constant 0 : i32
    %c0_i32_0 = arith.constant 0 : i32
    %c0_i32_1 = arith.constant 0 : i32
    return %arg0, %c0_i32, %c0_i32_0 : i32, i32, i32
  }
  func.func @transform_1(%arg0: i32) -> (i32, i32, i32) {
    %c0_i32 = arith.constant 0 : i32
    %c0_i32_0 = arith.constant 0 : i32
    %c0_i32_1 = arith.constant 0 : i32
    return %arg0, %c0_i32, %c0_i32_0 : i32, i32, i32
  }
  func.func @transform_2(%arg0: i32) -> (i32, i32) {
    %c0_i32 = arith.constant 0 : i32
    %c0_i32_0 = arith.constant 0 : i32
    %c0_i32_1 = arith.constant 0 : i32
    return %c0_i32, %c0_i32_0 : i32, i32
  }
  func.func @transform_3(%arg0: i32) -> (i32, i32) {
    %c0_i32 = arith.constant 0 : i32
    %c0_i32_0 = arith.constant 0 : i32
    %c0_i32_1 = arith.constant 0 : i32
    return %c0_i32, %c0_i32_0 : i32, i32
  }
  func.func @transform_4(%arg0: i32) -> (i32, i32) {
    %c0_i32 = arith.constant 0 : i32
    %c0_i32_0 = arith.constant 0 : i32
    %c0_i32_1 = arith.constant 0 : i32
    return %c0_i32, %c0_i32_0 : i32, i32
  }
  func.func @transform_5(%arg0: i32) -> (i32, i32, i32) {
    %c0_i32 = arith.constant 0 : i32
    %c0_i32_0 = arith.constant 0 : i32
    %c0_i32_1 = arith.constant 0 : i32
    return %arg0, %c0_i32, %c0_i32_0 : i32, i32, i32
  }
}

</mosaic_0001>

<llo_original>
// kernel: scene_graph_refiner_forward.3
$region0: #{scene_graph_refiner_forward.3}
  #allocation0 [shape = 'u32[]', space=smem, size = 0x4, offset = 0x4, fixed_abs, tag = 'smem constant byte address 0x4 - core index']
  #allocation1 [shape = 'u32[144,128]{1,0:T(1,128)}', space=vmem, size = 0x12000, scoped, tag = 'internal scratch']
  %s0 = inlined_call_operand.vmem [shape: f32[8,9,512], index: 0, kind: input, shape index: {}]
  %s1 = inlined_call_operand.vmem [shape: f32[8,9,512], index: 1, kind: input, shape index: {}]
  %s2 = inlined_call_operand.vmem [shape: f32[9,486], index: 2, kind: input, shape index: {}]
  %s3 = inlined_call_operand.vmem [shape: f32[9,1], index: 3, kind: input, shape index: {}]
  %s4 = inlined_call_operand.vmem [shape: f32[27,512], index: 4, kind: input, shape index: {}]
  %s5 = inlined_call_operand.vmem [shape: f32[8,9,512], index: 5, kind: output, shape index: {}]
  %s6 = sld [smem:[#allocation0]]
  $region53: #{scene_graph_refiner_forward.3} parent=0
    _
  %s8 = ssub.s32 1, %s6
  %s9 = scalar_select 0, %s8, %s6
  loop: start=0, step=1, limit=10
  $region2: #{scene_graph_refiner_forward.3} parent=0 // loop_pre_header
    _
  $region3: #{scene_graph_refiner_forward.3} parent=0 // loop_header
    %s11 = sphi 0, %s15
    %p12 = scmp.ge.s32.totalorder %s11, 10
    %s21 = sphi 0, %s23
    %s24 = sphi 0, %s21
    %s25 = sphi 0, %s24
    %s41 = sphi 0, %s25
    %s47 = sphi 0, %s49
    %s50 = sphi 0, %s47
    %s51 = sphi 0, %s50
    %s67 = sphi 0, %s51
    %s71 = sphi 0, %s71
    %s73 = sphi 0, %s71
    %s74 = sphi 0, %s73
    %s88 = sphi 0, %s74
    %s92 = sphi 0, %s92
    %s94 = sphi 0, %s92
    %s95 = sphi 0, %s94
    %s109 = sphi 0, %s95
    %s113 = sphi 0, %s113
    %s115 = sphi 0, %s113
    %s116 = sphi 0, %s115
    %s130 = sphi 0, %s116
    %s136 = sphi 0, %s138
    %s139 = sphi 0, %s136
    %s140 = sphi 0, %s139
    %s156 = sphi 0, %s140
  $region4: #{scene_graph_refiner_forward.3} parent=0 // loop_header_branch
    %14 = sbr.rel (%p12) target = $region8
  $region5: #{scene_graph_refiner_forward.3} parent=0 // loop_body
    %s16 = ssub.s32 %s11, 1
    %s17 = ssub.s32 %s11, 2
    %s18 = sadd.s32 %s11, 1
    %s19 = ssub.s32 %s11, %s18
    %p20 = scmp.eq.s32.totalorder %s19, 0
    %s22 = sadd.s32 %s21, 1
    %s23 = scalar_select %p20, %s21, %s22
    %p26 = pneg %p20
    %p27 = scmp.eq.s32.totalorder %s11, 7
    %p28 = por %p26, %p27
    %p29 = scmp.ne.s32.totalorder %s21, %s24
    %p30 = scmp.eq.s32.totalorder %s11, 0
    %p31 = por %p29, %p30
    %p32 = scmp.ne.s32.totalorder %s21, %s24
    %p33 = scmp.eq.s32.totalorder %s16, 7
    %p34 = por %p32, %p33
    %p35 = scmp.ne.s32.totalorder %s24, %s25
    %p36 = scmp.eq.s32.totalorder %s16, 0
    %p37 = por %p35, %p36
    %p38 = scmp.ne.s32.totalorder %s24, %s25
    %p39 = scmp.eq.s32.totalorder %s17, 7
    %p40 = por %p38, %p39
    %p42 = scmp.ne.s32.totalorder %s25, %s41
    %p43 = scmp.eq.s32.totalorder %s17, 0
    %p44 = por %p42, %p43
    %s45 = ssub.s32 %s11, %s18
    %p46 = scmp.eq.s32.totalorder %s45, 0
    %s48 = sadd.s32 %s47, 1
    %s49 = scalar_select %p46, %s47, %s48
    %p52 = pneg %p46
    %p53 = scmp.eq.s32.totalorder %s11, 7
    %p54 = por %p52, %p53
    %p55 = scmp.ne.s32.totalorder %s47, %s50
    %p56 = scmp.eq.s32.totalorder %s11, 0
    %p57 = por %p55, %p56
    %p58 = scmp.ne.s32.totalorder %s47, %s50
    %p59 = scmp.eq.s32.totalorder %s16, 7
    %p60 = por %p58, %p59
    %p61 = scmp.ne.s32.totalorder %s50, %s51
    %p62 = scmp.eq.s32.totalorder %s16, 0
    %p63 = por %p61, %p62
    %p64 = scmp.ne.s32.totalorder %s50, %s51
    %p65 = scmp.eq.s32.totalorder %s17, 7
    %p66 = por %p64, %p65
    %p68 = scmp.ne.s32.totalorder %s51, %s67
    %p69 = scmp.eq.s32.totalorder %s17, 0
    %p70 = por %p68, %p69
    %s72 = sadd.s32 %s71, 1
    %p75 = scmp.eq.s32.totalorder %s11, 7
    %p76 = scmp.ne.s32.totalorder %s71, %s73
    %p77 = scmp.eq.s32.totalorder %s11, 0
    %p78 = por %p76, %p77
    %p79 = scmp.ne.s32.totalorder %s71, %s73
    %p80 = scmp.eq.s32.totalorder %s16, 7
    %p81 = por %p79, %p80
    %p82 = scmp.ne.s32.totalorder %s73, %s74
    %p83 = scmp.eq.s32.totalorder %s16, 0
    %p84 = por %p82, %p83
    %p85 = scmp.ne.s32.totalorder %s73, %s74
    %p86 = scmp.eq.s32.totalorder %s17, 7
    %p87 = por %p85, %p86
    %p89 = scmp.ne.s32.totalorder %s74, %s88
    %p90 = scmp.eq.s32.totalorder %s17, 0
    %p91 = por %p89, %p90
    %s93 = sadd.s32 %s92, 1
    %p96 = scmp.eq.s32.totalorder %s11, 7
    %p97 = scmp.ne.s32.totalorder %s92, %s94
    %p98 = scmp.eq.s32.totalorder %s11, 0
    %p99 = por %p97, %p98
    %p100 = scmp.ne.s32.totalorder %s92, %s94
    %p101 = scmp.eq.s32.totalorder %s16, 7
    %p102 = por %p100, %p101
    %p103 = scmp.ne.s32.totalorder %s94, %s95
    %p104 = scmp.eq.s32.totalorder %s16, 0
    %p105 = por %p103, %p104
    %p106 = scmp.ne.s32.totalorder %s94, %s95
    %p107 = scmp.eq.s32.totalorder %s17, 7
    %p108 = por %p106, %p107
    %p110 = scmp.ne.s32.totalorder %s95, %s109
    %p111 = scmp.eq.s32.totalorder %s17, 0
    %p112 = por %p110, %p111
    %s114 = sadd.s32 %s113, 1
    %p117 = scmp.eq.s32.totalorder %s11, 7
    %p118 = scmp.ne.s32.totalorder %s113, %s115
    %p119 = scmp.eq.s32.totalorder %s11, 0
    %p120 = por %p118, %p119
    %p121 = scmp.ne.s32.totalorder %s113, %s115
    %p122 = scmp.eq.s32.totalorder %s16, 7
    %p123 = por %p121, %p122
    %p124 = scmp.ne.s32.totalorder %s115, %s116
    %p125 = scmp.eq.s32.totalorder %s16, 0
    %p126 = por %p124, %p125
    %p127 = scmp.ne.s32.totalorder %s115, %s116
    %p128 = scmp.eq.s32.totalorder %s17, 7
    %p129 = por %p127, %p128
    %p131 = scmp.ne.s32.totalorder %s116, %s130
    %p132 = scmp.eq.s32.totalorder %s17, 0
    %p133 = por %p131, %p132
    %s134 = ssub.s32 %s11, %s18
    %p135 = scmp.eq.s32.totalorder %s134, 0
    %s137 = sadd.s32 %s136, 1
    %s138 = scalar_select %p135, %s136, %s137
    %p141 = pneg %p135
    %p142 = scmp.eq.s32.totalorder %s11, 7
    %p143 = por %p141, %p142
    %p144 = scmp.ne.s32.totalorder %s136, %s139
    %p145 = scmp.eq.s32.totalorder %s11, 0
    %p146 = por %p144, %p145
    %p147 = scmp.ne.s32.totalorder %s136, %s139
    %p148 = scmp.eq.s32.totalorder %s16, 7
    %p149 = por %p147, %p148
    %p150 = scmp.ne.s32.totalorder %s139, %s140
    %p151 = scmp.eq.s32.totalorder %s16, 0
    %p152 = por %p150, %p151
    %p153 = scmp.ne.s32.totalorder %s139, %s140
    %p154 = scmp.eq.s32.totalorder %s17, 7
    %p155 = por %p153, %p154
    %p157 = scmp.ne.s32.totalorder %s140, %s156
    %p158 = scmp.eq.s32.totalorder %s17, 0
    %p159 = por %p157, %p158
    %p160 = scmp.le.s32.totalorder 1, %s11
    %p161 = scmp.lt.s32.totalorder %s11, 9
    %p162 = pnand %p160, %p161
    %p163 = pneg %p162
    // Predicated region
    $region9: #{scene_graph_refiner_forward.3} parent=5 // pred_check
      _
    $region10: #{scene_graph_refiner_forward.3} parent=5 // pred_check_branch
      %165 = sbr.rel (%p162) target = $region12
    $region11: #{scene_graph_refiner_forward.3} parent=5 // pred_region
      %s166 = ssub.s32 %s11, 1
      // Predicated region
      $region13: #{scene_graph_refiner_forward.3} parent=11 // pred_check
        %p167 = pneg %p84
      $region14: #{scene_graph_refiner_forward.3} parent=11 // pred_check_branch
        %169 = sbr.rel (%p167) target = $region16
      $region15: #{scene_graph_refiner_forward.3} parent=11 // pred_region
        _
      $region16: #{scene_graph_refiner_forward.3} parent=11 // pred_fallthru
        _
      // Predicated region
      $region17: #{scene_graph_refiner_forward.3} parent=11 // pred_check
        %p170 = pneg %p105
      $region18: #{scene_graph_refiner_forward.3} parent=11 // pred_check_branch
        %172 = sbr.rel (%p170) target = $region20
      $region19: #{scene_graph_refiner_forward.3} parent=11 // pred_region
        _
      $region20: #{scene_graph_refiner_forward.3} parent=11 // pred_fallthru
        _
      // Predicated region
      $region21: #{scene_graph_refiner_forward.3} parent=11 // pred_check
        %p173 = pneg %p126
      $region22: #{scene_graph_refiner_forward.3} parent=11 // pred_check_branch
        %175 = sbr.rel (%p173) target = $region24
      $region23: #{scene_graph_refiner_forward.3} parent=11 // pred_region
        _
      $region24: #{scene_graph_refiner_forward.3} parent=11 // pred_fallthru
        _
    $region12: #{scene_graph_refiner_forward.3} parent=5 // pred_fallthru
      _
    %p176 = scmp.lt.s32.totalorder %s11, 8
    // Predicated region
    $region25: #{scene_graph_refiner_forward.3} parent=5 // pred_check
      %p177 = pneg %p176
    $region26: #{scene_graph_refiner_forward.3} parent=5 // pred_check_branch
      %179 = sbr.rel (%p177) target = $region28
    $region27: #{scene_graph_refiner_forward.3} parent=5 // pred_region
      // Predicated region
      $region29: #{scene_graph_refiner_forward.3} parent=27 // pred_check
        %p180 = pneg %p31
      $region30: #{scene_graph_refiner_forward.3} parent=27 // pred_check_branch
        %182 = sbr.rel (%p180) target = $region32
      $region31: #{scene_graph_refiner_forward.3} parent=27 // pred_region
        %p183 = scmp.lt.s32.totalorder %s11, 7
        %s184 = scalar_select %p183, %s11, 7
        %s185 = smul.addr %s184, 8
        %s186 = smul.addr %s185, 8
        %s187 = scalar_lea.vmem %s0, %s186
      $region32: #{scene_graph_refiner_forward.3} parent=27 // pred_fallthru
        _
      // Predicated region
      $region33: #{scene_graph_refiner_forward.3} parent=27 // pred_check
        %p188 = pneg %p57
      $region34: #{scene_graph_refiner_forward.3} parent=27 // pred_check_branch
        %190 = sbr.rel (%p188) target = $region36
      $region35: #{scene_graph_refiner_forward.3} parent=27 // pred_region
        %p191 = scmp.lt.s32.totalorder %s11, 7
        %s192 = scalar_select %p191, %s11, 7
        %s193 = smul.addr %s192, 8
        %s194 = smul.addr %s193, 8
        %s195 = scalar_lea.vmem %s1, %s194
      $region36: #{scene_graph_refiner_forward.3} parent=27 // pred_fallthru
        _
    $region28: #{scene_graph_refiner_forward.3} parent=5 // pred_fallthru
      _
    %p196 = scmp.le.s32.totalorder 1, %s11
    %p197 = scmp.lt.s32.totalorder %s11, 9
    %p198 = pnand %p196, %p197
    %p199 = pneg %p198
    // Predicated region
    $region37: #{scene_graph_refiner_forward.3} parent=5 // pred_check
      _
    $region38: #{scene_graph_refiner_forward.3} parent=5 // pred_check_branch
      %201 = sbr.rel (%p198) target = $region40
    $region39: #{scene_graph_refiner_forward.3} parent=5 // pred_region
      %s202 = ssub.s32 %s11, 1
      %p203 = scmp.lt.s32.totalorder %s16, 7
      %s204 = scalar_select %p203, %s16, 7
      %s205 = smul.addr %s204, 8
      %s206 = smul.addr %s205, 8
      %s207 = scalar_lea.vmem %s0, %s206
      %p208 = pneg %p37
      %p209 = pneg %p34
      %p210 = scmp.lt.s32.totalorder %s16, 7
      %s211 = scalar_select %p210, %s16, 7
      %s212 = smul.addr %s211, 8
      %s213 = smul.addr %s212, 8
      %s214 = scalar_lea.vmem %s1, %s213
      %p215 = pneg %p63
      %p216 = pneg %p60
      %p217 = pneg %p84
      %p218 = pneg %p81
      %p219 = pneg %p105
      %p220 = pneg %p102
      %p221 = pneg %p126
      %p222 = pneg %p123
      %p223 = pneg %p152
      %p224 = pneg %p149
      %p225 = scmp.lt.s32.totalorder %s16, 7
      %s226 = scalar_select %p225, %s16, 7
      %s227 = smul.addr %s226, 8
      %s228 = smul.addr %s227, 8
      %s229 = scalar_lea.vmem %s5, %s228
      %p230 = scmp.lt.s32.totalorder %s16, 7
      %s231 = scalar_select %p230, %s16, 7
      %s232 = smul.addr %s231, 8
      %s233 = smul.addr %s232, 8
      %s234 = scalar_lea.vmem %s0, %s233
      %p235 = scmp.lt.s32.totalorder %s16, 7
      %s236 = scalar_select %p235, %s16, 7
      %s237 = smul.addr %s236, 8
      %s238 = smul.addr %s237, 8
      %s239 = scalar_lea.vmem %s1, %s238
      %p240 = scmp.lt.s32.totalorder %s16, 7
      %s241 = scalar_select %p240, %s16, 7
      %s242 = smul.addr %s241, 8
      %s243 = smul.addr %s242, 8
      %s244 = scalar_lea.vmem %s5, %s243
      %v245 = vld [vmem:[%s234] sm:$0xff]
      %v246 = vld [vmem:[%s234 + $0x8] sm:$0xff]
      %v247 = vld [vmem:[%s234 + $0x10] sm:$0xff]
      %v248 = vld [vmem:[%s234 + $0x18] sm:$0xff]
      %v249 = vld [vmem:[%s234 + $0x20] sm:$0x1]
      %v250 = vld [vmem:[%s234 + $0x28] sm:$0x1]
      %v251 = vld [vmem:[%s234 + $0x30] sm:$0x1]
      %v252 = vld [vmem:[%s234 + $0x38] sm:$0x1]
      %v253 = vld [vmem:[%s239] sm:$0xff]
      %v254 = vld [vmem:[%s239 + $0x8] sm:$0xff]
      %v255 = vld [vmem:[%s239 + $0x10] sm:$0xff]
      %v256 = vld [vmem:[%s239 + $0x18] sm:$0xff]
      %v257 = vld [vmem:[%s239 + $0x20] sm:$0x1]
      %v258 = vld [vmem:[%s239 + $0x28] sm:$0x1]
      %v259 = vld [vmem:[%s239 + $0x30] sm:$0x1]
      %v260 = vld [vmem:[%s239 + $0x38] sm:$0x1]
      %vm269 = vcmask 1040384
      %v270 = vrot.slane %v253, 7
      %v271 = vrot.slane %v254, 7
      %v272 = vrot.slane %v255, 7
      %v273 = vrot.slane %v256, 7
      %v274 = vrot.slane %v257, 7
      %v275 = vsel %vm269, %v270, %v274
      %v276 = vrot.slane %v258, 7
      %v277 = vsel %vm269, %v271, %v276
      %v278 = vrot.slane %v259, 7
      %v279 = vsel %vm269, %v272, %v278
      %v280 = vrot.slane %v260, 7
      %v281 = vsel %vm269, %v273, %v280
      %v290 = vsel %vm269, %v249, %v270
      %v291 = vsel %vm269, %v250, %v271
      %v292 = vsel %vm269, %v251, %v272
      %v293 = vsel %vm269, %v252, %v273
      %302 = vrot.lane.b32.xlu0 %v245, 73
      %v303 = vpop.permute.xlu0 %302
      %304 = vrot.lane.b32.xlu0 %v246, 73
      %v305 = vpop.permute.xlu0 %304
      %306 = vrot.lane.b32.xlu0 %v247, 73
      %v307 = vpop.permute.xlu0 %306
      %308 = vrot.lane.b32.xlu0 %v248, 73
      %v309 = vpop.permute.xlu0 %308
      %310 = vrot.lane.b32.xlu0 %v290, 73
      %v311 = vpop.permute.xlu0 %310
      %312 = vrot.lane.b32.xlu0 %v291, 73
      %v313 = vpop.permute.xlu0 %312
      %314 = vrot.lane.b32.xlu0 %v292, 73
      %v315 = vpop.permute.xlu0 %314
      %316 = vrot.lane.b32.xlu0 %v293, 73
      %v317 = vpop.permute.xlu0 %316
      %318 = vrot.lane.b32.xlu0 %v275, 73
      %v319 = vpop.permute.xlu0 %318
      %320 = vrot.lane.b32.xlu0 %v277, 73
      %v321 = vpop.permute.xlu0 %320
      %322 = vrot.lane.b32.xlu0 %v279, 73
      %v323 = vpop.permute.xlu0 %322
      %324 = vrot.lane.b32.xlu0 %v281, 73
      %v325 = vpop.permute.xlu0 %324
      %vm326 = vcmask 596992
      %v327 = vsel %vm326, %v303, %v305
      %v328 = vsel %vm326, %v305, %v307
      %v329 = vsel %vm326, %v307, %v309
      %v330 = vsel %vm326, %v311, %v313
      %v331 = vsel %vm326, %v313, %v315
      %v332 = vsel %vm326, %v315, %v317
      %v333 = vsel %vm326, %v319, %v321
      %v334 = vsel %vm326, %v321, %v323
      %v335 = vsel %vm326, %v323, %v325
      %v348 = vsel %vm326, 0.0, %v303
      %v349 = vsel %vm326, 0.0, %v311
      %v350 = vsel %vm326, 0.0, %v319
      %v351 = vld [vmem:[%s4] ss:$8 sm:$0xf]
      %v353 = vlaneseq
      %v354 = vshrl.u32 %v353, 7
      %v355 = vsub.s32 0, %v354
      %v356 = vrot.slane %v351, %v355
      %v357 = vlaneseq
      %v358 = vshrl.u32 %v357, 7
      %v359 = vsub.s32 1, %v358
      %v360 = vrot.slane %v351, %v359
      %v361 = vlaneseq
      %v362 = vshrl.u32 %v361, 7
      %v363 = vsub.s32 2, %v362
      %v364 = vrot.slane %v351, %v363
      %v365 = vlaneseq
      %v366 = vshrl.u32 %v365, 7
      %v367 = vsub.s32 3, %v366
      %v368 = vrot.slane %v351, %v367
      %v373 = vmul.f32 %v348, %v356
      %v374 = vmul.f32 %v327, %v360
      %v375 = vmul.f32 %v328, %v364
      %v376 = vmul.f32 %v329, %v368
      %v377 = vmul.f32 %v349, %v356
      %v378 = vmul.f32 %v330, %v360
      %v379 = vmul.f32 %v331, %v364
      %v380 = vmul.f32 %v332, %v368
      %v381 = vmul.f32 %v350, %v356
      %v382 = vmul.f32 %v333, %v360
      %v383 = vmul.f32 %v334, %v364
      %v384 = vmul.f32 %v335, %v368
      %385 = vrot.lane.b32.xlu0 %v245, 72
      %v386 = vpop.permute.xlu0 %385
      %387 = vrot.lane.b32.xlu0 %v246, 72
      %v388 = vpop.permute.xlu0 %387
      %389 = vrot.lane.b32.xlu0 %v247, 72
      %v390 = vpop.permute.xlu0 %389
      %391 = vrot.lane.b32.xlu0 %v248, 72
      %v392 = vpop.permute.xlu0 %391
      %393 = vrot.lane.b32.xlu0 %v290, 72
      %v394 = vpop.permute.xlu0 %393
      %395 = vrot.lane.b32.xlu0 %v291, 72
      %v396 = vpop.permute.xlu0 %395
      %397 = vrot.lane.b32.xlu0 %v292, 72
      %v398 = vpop.permute.xlu0 %397
      %399 = vrot.lane.b32.xlu0 %v293, 72
      %v400 = vpop.permute.xlu0 %399
      %401 = vrot.lane.b32.xlu0 %v275, 72
      %v402 = vpop.permute.xlu0 %401
      %403 = vrot.lane.b32.xlu0 %v277, 72
      %v404 = vpop.permute.xlu0 %403
      %405 = vrot.lane.b32.xlu0 %v279, 72
      %v406 = vpop.permute.xlu0 %405
      %407 = vrot.lane.b32.xlu0 %v281, 72
      %v408 = vpop.permute.xlu0 %407
      %vm409 = vcmask 588800
      %v410 = vsel %vm409, %v386, %v388
      %v411 = vsel %vm409, %v388, %v390
      %v412 = vsel %vm409, %v390, %v392
      %v413 = vsel %vm409, %v394, %v396
      %v414 = vsel %vm409, %v396, %v398
      %v415 = vsel %vm409, %v398, %v400
      %v416 = vsel %vm409, %v402, %v404
      %v417 = vsel %vm409, %v404, %v406
      %v418 = vsel %vm409, %v406, %v408
      %v431 = vsel %vm409, 0.0, %v386
      %v432 = vsel %vm409, 0.0, %v394
      %v433 = vsel %vm409, 0.0, %v402
      %s434 = scalar_lea.vmem %s4, 1
      %v435 = vld [vmem:[%s434] ss:$8 sm:$0xf]
      %v437 = vlaneseq
      %v438 = vshrl.u32 %v437, 7
      %v439 = vsub.s32 0, %v438
      %v440 = vrot.slane %v435, %v439
      %v441 = vlaneseq
      %v442 = vshrl.u32 %v441, 7
      %v443 = vsub.s32 1, %v442
      %v444 = vrot.slane %v435, %v443
      %v445 = vlaneseq
      %v446 = vshrl.u32 %v445, 7
      %v447 = vsub.s32 2, %v446
      %v448 = vrot.slane %v435, %v447
      %v449 = vlaneseq
      %v450 = vshrl.u32 %v449, 7
      %v451 = vsub.s32 3, %v450
      %v452 = vrot.slane %v435, %v451
      %v457 = vmul.f32 %v431, %v440
      %v458 = vmul.f32 %v410, %v444
      %v459 = vmul.f32 %v411, %v448
      %v460 = vmul.f32 %v412, %v452
      %v461 = vmul.f32 %v432, %v440
      %v462 = vmul.f32 %v413, %v444
      %v463 = vmul.f32 %v414, %v448
      %v464 = vmul.f32 %v415, %v452
      %v465 = vmul.f32 %v433, %v440
      %v466 = vmul.f32 %v416, %v444
      %v467 = vmul.f32 %v417, %v448
      %v468 = vmul.f32 %v418, %v452
      %469 = vrot.lane.b32.xlu0 %v245, 71
      %v470 = vpop.permute.xlu0 %469
      %471 = vrot.lane.b32.xlu0 %v246, 71
      %v472 = vpop.permute.xlu0 %471
      %473 = vrot.lane.b32.xlu0 %v247, 71
      %v474 = vpop.permute.xlu0 %473
      %475 = vrot.lane.b32.xlu0 %v248, 71
      %v476 = vpop.permute.xlu0 %475
      %477 = vrot.lane.b32.xlu0 %v290, 71
      %v478 = vpop.permute.xlu0 %477
      %479 = vrot.lane.b32.xlu0 %v291, 71
      %v480 = vpop.permute.xlu0 %479
      %481 = vrot.lane.b32.xlu0 %v292, 71
      %v482 = vpop.permute.xlu0 %481
      %483 = vrot.lane.b32.xlu0 %v293, 71
      %v484 = vpop.permute.xlu0 %483
      %485 = vrot.lane.b32.xlu0 %v275, 71
      %v486 = vpop.permute.xlu0 %485
      %487 = vrot.lane.b32.xlu0 %v277, 71
      %v488 = vpop.permute.xlu0 %487
      %489 = vrot.lane.b32.xlu0 %v279, 71
      %v490 = vpop.permute.xlu0 %489
      %491 = vrot.lane.b32.xlu0 %v281, 71
      %v492 = vpop.permute.xlu0 %491
      %vm493 = vcmask 580608
      %v494 = vsel %vm493, %v470, %v472
      %v495 = vsel %vm493, %v472, %v474
      %v496 = vsel %vm493, %v474, %v476
      %v497 = vsel %vm493, %v478, %v480
      %v498 = vsel %vm493, %v480, %v482
      %v499 = vsel %vm493, %v482, %v484
      %v500 = vsel %vm493, %v486, %v488
      %v501 = vsel %vm493, %v488, %v490
      %v502 = vsel %vm493, %v490, %v492
      %v515 = vsel %vm493, 0.0, %v470
      %v516 = vsel %vm493, 0.0, %v478
      %v517 = vsel %vm493, 0.0, %v486
      %s518 = scalar_lea.vmem %s4, 2
      %v519 = vld [vmem:[%s518] ss:$8 sm:$0xf]
      %v521 = vlaneseq
      %v522 = vshrl.u32 %v521, 7
      %v523 = vsub.s32 0, %v522
      %v524 = vrot.slane %v519, %v523
      %v525 = vlaneseq
      %v526 = vshrl.u32 %v525, 7
      %v527 = vsub.s32 1, %v526
      %v528 = vrot.slane %v519, %v527
      %v529 = vlaneseq
      %v530 = vshrl.u32 %v529, 7
      %v531 = vsub.s32 2, %v530
      %v532 = vrot.slane %v519, %v531
      %v533 = vlaneseq
      %v534 = vshrl.u32 %v533, 7
      %v535 = vsub.s32 3, %v534
      %v536 = vrot.slane %v519, %v535
      %v541 = vmul.f32 %v515, %v524
      %v542 = vmul.f32 %v494, %v528
      %v543 = vmul.f32 %v495, %v532
      %v544 = vmul.f32 %v496, %v536
      %v545 = vmul.f32 %v516, %v524
      %v546 = vmul.f32 %v497, %v528
      %v547 = vmul.f32 %v498, %v532
      %v548 = vmul.f32 %v499, %v536
      %v549 = vmul.f32 %v517, %v524
      %v550 = vmul.f32 %v500, %v528
      %v551 = vmul.f32 %v501, %v532
      %v552 = vmul.f32 %v502, %v536
      %553 = vrot.lane.b32.xlu0 %v245, 65
      %v554 = vpop.permute.xlu0 %553
      %555 = vrot.lane.b32.xlu0 %v246, 65
      %v556 = vpop.permute.xlu0 %555
      %557 = vrot.lane.b32.xlu0 %v247, 65
      %v558 = vpop.permute.xlu0 %557
      %559 = vrot.lane.b32.xlu0 %v248, 65
      %v560 = vpop.permute.xlu0 %559
      %561 = vrot.lane.b32.xlu0 %v290, 65
      %v562 = vpop.permute.xlu0 %561
      %563 = vrot.lane.b32.xlu0 %v291, 65
      %v564 = vpop.permute.xlu0 %563
      %565 = vrot.lane.b32.xlu0 %v292, 65
      %v566 = vpop.permute.xlu0 %565
      %567 = vrot.lane.b32.xlu0 %v293, 65
      %v568 = vpop.permute.xlu0 %567
      %569 = vrot.lane.b32.xlu0 %v275, 65
      %v570 = vpop.permute.xlu0 %569
      %571 = vrot.lane.b32.xlu0 %v277, 65
      %v572 = vpop.permute.xlu0 %571
      %573 = vrot.lane.b32.xlu0 %v279, 65
      %v574 = vpop.permute.xlu0 %573
      %575 = vrot.lane.b32.xlu0 %v281, 65
      %v576 = vpop.permute.xlu0 %575
      %vm577 = vcmask 531456
      %v578 = vsel %vm577, %v554, %v556
      %v579 = vsel %vm577, %v556, %v558
      %v580 = vsel %vm577, %v558, %v560
      %v581 = vsel %vm577, %v562, %v564
      %v582 = vsel %vm577, %v564, %v566
      %v583 = vsel %vm577, %v566, %v568
      %v584 = vsel %vm577, %v570, %v572
      %v585 = vsel %vm577, %v572, %v574
      %v586 = vsel %vm577, %v574, %v576
      %v599 = vsel %vm577, 0.0, %v554
      %v600 = vsel %vm577, 0.0, %v562
      %v601 = vsel %vm577, 0.0, %v570
      %s602 = scalar_lea.vmem %s4, 3
      %v603 = vld [vmem:[%s602] ss:$8 sm:$0xf]
      %v605 = vlaneseq
      %v606 = vshrl.u32 %v605, 7
      %v607 = vsub.s32 0, %v606
      %v608 = vrot.slane %v603, %v607
      %v609 = vlaneseq
      %v610 = vshrl.u32 %v609, 7
      %v611 = vsub.s32 1, %v610
      %v612 = vrot.slane %v603, %v611
      %v613 = vlaneseq
      %v614 = vshrl.u32 %v613, 7
      %v615 = vsub.s32 2, %v614
      %v616 = vrot.slane %v603, %v615
      %v617 = vlaneseq
      %v618 = vshrl.u32 %v617, 7
      %v619 = vsub.s32 3, %v618
      %v620 = vrot.slane %v603, %v619
      %v625 = vmul.f32 %v599, %v608
      %v626 = vmul.f32 %v578, %v612
      %v627 = vmul.f32 %v579, %v616
      %v628 = vmul.f32 %v580, %v620
      %v629 = vmul.f32 %v600, %v608
      %v630 = vmul.f32 %v581, %v612
      %v631 = vmul.f32 %v582, %v616
      %v632 = vmul.f32 %v583, %v620
      %v633 = vmul.f32 %v601, %v608
      %v634 = vmul.f32 %v584, %v612
      %v635 = vmul.f32 %v585, %v616
      %v636 = vmul.f32 %v586, %v620
      %637 = vrot.lane.b32.xlu0 %v245, 64
      %v638 = vpop.permute.xlu0 %637
      %639 = vrot.lane.b32.xlu0 %v246, 64
      %v640 = vpop.permute.xlu0 %639
      %641 = vrot.lane.b32.xlu0 %v247, 64
      %v642 = vpop.permute.xlu0 %641
      %643 = vrot.lane.b32.xlu0 %v248, 64
      %v644 = vpop.permute.xlu0 %643
      %645 = vrot.lane.b32.xlu0 %v290, 64
      %v646 = vpop.permute.xlu0 %645
      %647 = vrot.lane.b32.xlu0 %v291, 64
      %v648 = vpop.permute.xlu0 %647
      %649 = vrot.lane.b32.xlu0 %v292, 64
      %v650 = vpop.permute.xlu0 %649
      %651 = vrot.lane.b32.xlu0 %v293, 64
      %v652 = vpop.permute.xlu0 %651
      %653 = vrot.lane.b32.xlu0 %v275, 64
      %v654 = vpop.permute.xlu0 %653
      %655 = vrot.lane.b32.xlu0 %v277, 64
      %v656 = vpop.permute.xlu0 %655
      %657 = vrot.lane.b32.xlu0 %v279, 64
      %v658 = vpop.permute.xlu0 %657
      %659 = vrot.lane.b32.xlu0 %v281, 64
      %v660 = vpop.permute.xlu0 %659
      %vm661 = vcmask 523264
      %v662 = vsel %vm661, %v638, %v640
      %v663 = vsel %vm661, %v640, %v642
      %v664 = vsel %vm661, %v642, %v644
      %v665 = vsel %vm661, %v646, %v648
      %v666 = vsel %vm661, %v648, %v650
      %v667 = vsel %vm661, %v650, %v652
      %v668 = vsel %vm661, %v654, %v656
      %v669 = vsel %vm661, %v656, %v658
      %v670 = vsel %vm661, %v658, %v660
      %v683 = vsel %vm661, 0.0, %v638
      %v684 = vsel %vm661, 0.0, %v646
      %v685 = vsel %vm661, 0.0, %v654
      %s686 = scalar_lea.vmem %s4, 4
      %v687 = vld [vmem:[%s686] ss:$8 sm:$0xf]
      %v689 = vlaneseq
      %v690 = vshrl.u32 %v689, 7
      %v691 = vsub.s32 0, %v690
      %v692 = vrot.slane %v687, %v691
      %v693 = vlaneseq
      %v694 = vshrl.u32 %v693, 7
      %v695 = vsub.s32 1, %v694
      %v696 = vrot.slane %v687, %v695
      %v697 = vlaneseq
      %v698 = vshrl.u32 %v697, 7
      %v699 = vsub.s32 2, %v698
      %v700 = vrot.slane %v687, %v699
      %v701 = vlaneseq
      %v702 = vshrl.u32 %v701, 7
      %v703 = vsub.s32 3, %v702
      %v704 = vrot.slane %v687, %v703
      %v709 = vmul.f32 %v683, %v692
      %v710 = vmul.f32 %v662, %v696
      %v711 = vmul.f32 %v663, %v700
      %v712 = vmul.f32 %v664, %v704
      %v713 = vmul.f32 %v684, %v692
      %v714 = vmul.f32 %v665, %v696
      %v715 = vmul.f32 %v666, %v700
      %v716 = vmul.f32 %v667, %v704
      %v717 = vmul.f32 %v685, %v692
      %v718 = vmul.f32 %v668, %v696
      %v719 = vmul.f32 %v669, %v700
      %v720 = vmul.f32 %v670, %v704
      %721 = vrot.lane.b32.xlu0 %v245, 63
      %v722 = vpop.permute.xlu0 %721
      %723 = vrot.lane.b32.xlu0 %v246, 63
      %v724 = vpop.permute.xlu0 %723
      %725 = vrot.lane.b32.xlu0 %v247, 63
      %v726 = vpop.permute.xlu0 %725
      %727 = vrot.lane.b32.xlu0 %v248, 63
      %v728 = vpop.permute.xlu0 %727
      %729 = vrot.lane.b32.xlu0 %v290, 63
      %v730 = vpop.permute.xlu0 %729
      %731 = vrot.lane.b32.xlu0 %v291, 63
      %v732 = vpop.permute.xlu0 %731
      %733 = vrot.lane.b32.xlu0 %v292, 63
      %v734 = vpop.permute.xlu0 %733
      %735 = vrot.lane.b32.xlu0 %v293, 63
      %v736 = vpop.permute.xlu0 %735
      %737 = vrot.lane.b32.xlu0 %v275, 63
      %v738 = vpop.permute.xlu0 %737
      %739 = vrot.lane.b32.xlu0 %v277, 63
      %v740 = vpop.permute.xlu0 %739
      %741 = vrot.lane.b32.xlu0 %v279, 63
      %v742 = vpop.permute.xlu0 %741
      %743 = vrot.lane.b32.xlu0 %v281, 63
      %v744 = vpop.permute.xlu0 %743
      %vm745 = vcmask 515072
      %v746 = vsel %vm745, %v722, %v724
      %v747 = vsel %vm745, %v724, %v726
      %v748 = vsel %vm745, %v726, %v728
      %v749 = vsel %vm745, %v730, %v732
      %v750 = vsel %vm745, %v732, %v734
      %v751 = vsel %vm745, %v734, %v736
      %v752 = vsel %vm745, %v738, %v740
      %v753 = vsel %vm745, %v740, %v742
      %v754 = vsel %vm745, %v742, %v744
      %v767 = vsel %vm745, 0.0, %v722
      %v768 = vsel %vm745, 0.0, %v730
      %v769 = vsel %vm745, 0.0, %v738
      %s770 = scalar_lea.vmem %s4, 5
      %v771 = vld [vmem:[%s770] ss:$8 sm:$0xf]
      %v773 = vlaneseq
      %v774 = vshrl.u32 %v773, 7
      %v775 = vsub.s32 0, %v774
      %v776 = vrot.slane %v771, %v775
      %v777 = vlaneseq
      %v778 = vshrl.u32 %v777, 7
      %v779 = vsub.s32 1, %v778
      %v780 = vrot.slane %v771, %v779
      %v781 = vlaneseq
      %v782 = vshrl.u32 %v781, 7
      %v783 = vsub.s32 2, %v782
      %v784 = vrot.slane %v771, %v783
      %v785 = vlaneseq
      %v786 = vshrl.u32 %v785, 7
      %v787 = vsub.s32 3, %v786
      %v788 = vrot.slane %v771, %v787
      %v793 = vmul.f32 %v767, %v776
      %v794 = vmul.f32 %v746, %v780
      %v795 = vmul.f32 %v747, %v784
      %v796 = vmul.f32 %v748, %v788
      %v797 = vmul.f32 %v768, %v776
      %v798 = vmul.f32 %v749, %v780
      %v799 = vmul.f32 %v750, %v784
      %v800 = vmul.f32 %v751, %v788
      %v801 = vmul.f32 %v769, %v776
      %v802 = vmul.f32 %v752, %v780
      %v803 = vmul.f32 %v753, %v784
      %v804 = vmul.f32 %v754, %v788
      %805 = vrot.lane.b32.xlu0 %v245, 57
      %v806 = vpop.permute.xlu0 %805
      %807 = vrot.lane.b32.xlu0 %v246, 57
      %v808 = vpop.permute.xlu0 %807
      %809 = vrot.lane.b32.xlu0 %v247, 57
      %v810 = vpop.permute.xlu0 %809
      %811 = vrot.lane.b32.xlu0 %v248, 57
      %v812 = vpop.permute.xlu0 %811
      %813 = vrot.lane.b32.xlu0 %v290, 57
      %v814 = vpop.permute.xlu0 %813
      %815 = vrot.lane.b32.xlu0 %v291, 57
      %v816 = vpop.permute.xlu0 %815
      %817 = vrot.lane.b32.xlu0 %v292, 57
      %v818 = vpop.permute.xlu0 %817
      %819 = vrot.lane.b32.xlu0 %v293, 57
      %v820 = vpop.permute.xlu0 %819
      %821 = vrot.lane.b32.xlu0 %v275, 57
      %v822 = vpop.permute.xlu0 %821
      %823 = vrot.lane.b32.xlu0 %v277, 57
      %v824 = vpop.permute.xlu0 %823
      %825 = vrot.lane.b32.xlu0 %v279, 57
      %v826 = vpop.permute.xlu0 %825
      %827 = vrot.lane.b32.xlu0 %v281, 57
      %v828 = vpop.permute.xlu0 %827
      %vm829 = vcmask 465920
      %v830 = vsel %vm829, %v806, %v808
      %v831 = vsel %vm829, %v808, %v810
      %v832 = vsel %vm829, %v810, %v812
      %v833 = vsel %vm829, %v814, %v816
      %v834 = vsel %vm829, %v816, %v818
      %v835 = vsel %vm829, %v818, %v820
      %v836 = vsel %vm829, %v822, %v824
      %v837 = vsel %vm829, %v824, %v826
      %v838 = vsel %vm829, %v826, %v828
      %v851 = vsel %vm829, 0.0, %v806
      %v852 = vsel %vm829, 0.0, %v814
      %v853 = vsel %vm829, 0.0, %v822
      %s854 = scalar_lea.vmem %s4, 6
      %v855 = vld [vmem:[%s854] ss:$8 sm:$0xf]
      %v857 = vlaneseq
      %v858 = vshrl.u32 %v857, 7
      %v859 = vsub.s32 0, %v858
      %v860 = vrot.slane %v855, %v859
      %v861 = vlaneseq
      %v862 = vshrl.u32 %v861, 7
      %v863 = vsub.s32 1, %v862
      %v864 = vrot.slane %v855, %v863
      %v865 = vlaneseq
      %v866 = vshrl.u32 %v865, 7
      %v867 = vsub.s32 2, %v866
      %v868 = vrot.slane %v855, %v867
      %v869 = vlaneseq
      %v870 = vshrl.u32 %v869, 7
      %v871 = vsub.s32 3, %v870
      %v872 = vrot.slane %v855, %v871
      %v877 = vmul.f32 %v851, %v860
      %v878 = vmul.f32 %v830, %v864
      %v879 = vmul.f32 %v831, %v868
      %v880 = vmul.f32 %v832, %v872
      %v881 = vmul.f32 %v852, %v860
      %v882 = vmul.f32 %v833, %v864
      %v883 = vmul.f32 %v834, %v868
      %v884 = vmul.f32 %v835, %v872
      %v885 = vmul.f32 %v853, %v860
      %v886 = vmul.f32 %v836, %v864
      %v887 = vmul.f32 %v837, %v868
      %v888 = vmul.f32 %v838, %v872
      %889 = vrot.lane.b32.xlu0 %v245, 56
      %v890 = vpop.permute.xlu0 %889
      %891 = vrot.lane.b32.xlu0 %v246, 56
      %v892 = vpop.permute.xlu0 %891
      %893 = vrot.lane.b32.xlu0 %v247, 56
      %v894 = vpop.permute.xlu0 %893
      %895 = vrot.lane.b32.xlu0 %v248, 56
      %v896 = vpop.permute.xlu0 %895
      %897 = vrot.lane.b32.xlu0 %v290, 56
      %v898 = vpop.permute.xlu0 %897
      %899 = vrot.lane.b32.xlu0 %v291, 56
      %v900 = vpop.permute.xlu0 %899
      %901 = vrot.lane.b32.xlu0 %v292, 56
      %v902 = vpop.permute.xlu0 %901
      %903 = vrot.lane.b32.xlu0 %v293, 56
      %v904 = vpop.permute.xlu0 %903
      %905 = vrot.lane.b32.xlu0 %v275, 56
      %v906 = vpop.permute.xlu0 %905
      %907 = vrot.lane.b32.xlu0 %v277, 56
      %v908 = vpop.permute.xlu0 %907
      %909 = vrot.lane.b32.xlu0 %v279, 56
      %v910 = vpop.permute.xlu0 %909
      %911 = vrot.lane.b32.xlu0 %v281, 56
      %v912 = vpop.permute.xlu0 %911
      %vm913 = vcmask 457728
      %v914 = vsel %vm913, %v890, %v892
      %v915 = vsel %vm913, %v892, %v894
      %v916 = vsel %vm913, %v894, %v896
      %v917 = vsel %vm913, %v898, %v900
      %v918 = vsel %vm913, %v900, %v902
      %v919 = vsel %vm913, %v902, %v904
      %v920 = vsel %vm913, %v906, %v908
      %v921 = vsel %vm913, %v908, %v910
      %v922 = vsel %vm913, %v910, %v912
      %v935 = vsel %vm913, 0.0, %v890
      %v936 = vsel %vm913, 0.0, %v898
      %v937 = vsel %vm913, 0.0, %v906
      %s938 = scalar_lea.vmem %s4, 7
      %v939 = vld [vmem:[%s938] ss:$8 sm:$0xf]
      %v941 = vlaneseq
      %v942 = vshrl.u32 %v941, 7
      %v943 = vsub.s32 0, %v942
      %v944 = vrot.slane %v939, %v943
      %v945 = vlaneseq
      %v946 = vshrl.u32 %v945, 7
      %v947 = vsub.s32 1, %v946
      %v948 = vrot.slane %v939, %v947
      %v949 = vlaneseq
      %v950 = vshrl.u32 %v949, 7
      %v951 = vsub.s32 2, %v950
      %v952 = vrot.slane %v939, %v951
      %v953 = vlaneseq
      %v954 = vshrl.u32 %v953, 7
      %v955 = vsub.s32 3, %v954
      %v956 = vrot.slane %v939, %v955
      %v961 = vmul.f32 %v935, %v944
      %v962 = vmul.f32 %v914, %v948
      %v963 = vmul.f32 %v915, %v952
      %v964 = vmul.f32 %v916, %v956
      %v965 = vmul.f32 %v936, %v944
      %v966 = vmul.f32 %v917, %v948
      %v967 = vmul.f32 %v918, %v952
      %v968 = vmul.f32 %v919, %v956
      %v969 = vmul.f32 %v937, %v944
      %v970 = vmul.f32 %v920, %v948
      %v971 = vmul.f32 %v921, %v952
      %v972 = vmul.f32 %v922, %v956
      %973 = vrot.lane.b32.xlu0 %v245, 55
      %v974 = vpop.permute.xlu0 %973
      %975 = vrot.lane.b32.xlu0 %v246, 55
      %v976 = vpop.permute.xlu0 %975
      %977 = vrot.lane.b32.xlu0 %v247, 55
      %v978 = vpop.permute.xlu0 %977
      %979 = vrot.lane.b32.xlu0 %v248, 55
      %v980 = vpop.permute.xlu0 %979
      %981 = vrot.lane.b32.xlu0 %v290, 55
      %v982 = vpop.permute.xlu0 %981
      %983 = vrot.lane.b32.xlu0 %v291, 55
      %v984 = vpop.permute.xlu0 %983
      %985 = vrot.lane.b32.xlu0 %v292, 55
      %v986 = vpop.permute.xlu0 %985
      %987 = vrot.lane.b32.xlu0 %v293, 55
      %v988 = vpop.permute.xlu0 %987
      %989 = vrot.lane.b32.xlu0 %v275, 55
      %v990 = vpop.permute.xlu0 %989
      %991 = vrot.lane.b32.xlu0 %v277, 55
      %v992 = vpop.permute.xlu0 %991
      %993 = vrot.lane.b32.xlu0 %v279, 55
      %v994 = vpop.permute.xlu0 %993
      %995 = vrot.lane.b32.xlu0 %v281, 55
      %v996 = vpop.permute.xlu0 %995
      %vm997 = vcmask 449536
      %v998 = vsel %vm997, %v974, %v976
      %v999 = vsel %vm997, %v976, %v978
      %v1000 = vsel %vm997, %v978, %v980
      %v1001 = vsel %vm997, %v982, %v984
      %v1002 = vsel %vm997, %v984, %v986
      %v1003 = vsel %vm997, %v986, %v988
      %v1004 = vsel %vm997, %v990, %v992
      %v1005 = vsel %vm997, %v992, %v994
      %v1006 = vsel %vm997, %v994, %v996
      %v1019 = vsel %vm997, 0.0, %v974
      %v1020 = vsel %vm997, 0.0, %v982
      %v1021 = vsel %vm997, 0.0, %v990
      %s1022 = scalar_lea.vmem %s4, 32
      %v1023 = vld [vmem:[%s1022] ss:$8 sm:$0xf]
      %v1025 = vlaneseq
      %v1026 = vshrl.u32 %v1025, 7
      %v1027 = vsub.s32 0, %v1026
      %v1028 = vrot.slane %v1023, %v1027
      %v1029 = vlaneseq
      %v1030 = vshrl.u32 %v1029, 7
      %v1031 = vsub.s32 1, %v1030
      %v1032 = vrot.slane %v1023, %v1031
      %v1033 = vlaneseq
      %v1034 = vshrl.u32 %v1033, 7
      %v1035 = vsub.s32 2, %v1034
      %v1036 = vrot.slane %v1023, %v1035
      %v1037 = vlaneseq
      %v1038 = vshrl.u32 %v1037, 7
      %v1039 = vsub.s32 3, %v1038
      %v1040 = vrot.slane %v1023, %v1039
      %v1045 = vmul.f32 %v1019, %v1028
      %v1046 = vmul.f32 %v998, %v1032
      %v1047 = vmul.f32 %v999, %v1036
      %v1048 = vmul.f32 %v1000, %v1040
      %v1049 = vmul.f32 %v1020, %v1028
      %v1050 = vmul.f32 %v1001, %v1032
      %v1051 = vmul.f32 %v1002, %v1036
      %v1052 = vmul.f32 %v1003, %v1040
      %v1053 = vmul.f32 %v1021, %v1028
      %v1054 = vmul.f32 %v1004, %v1032
      %v1055 = vmul.f32 %v1005, %v1036
      %v1056 = vmul.f32 %v1006, %v1040
      %1057 = vrot.lane.b32.xlu0 %v245, 9
      %v1058 = vpop.permute.xlu0 %1057
      %1059 = vrot.lane.b32.xlu0 %v246, 9
      %v1060 = vpop.permute.xlu0 %1059
      %1061 = vrot.lane.b32.xlu0 %v247, 9
      %v1062 = vpop.permute.xlu0 %1061
      %1063 = vrot.lane.b32.xlu0 %v248, 9
      %v1064 = vpop.permute.xlu0 %1063
      %1065 = vrot.lane.b32.xlu0 %v290, 9
      %v1066 = vpop.permute.xlu0 %1065
      %1067 = vrot.lane.b32.xlu0 %v291, 9
      %v1068 = vpop.permute.xlu0 %1067
      %1069 = vrot.lane.b32.xlu0 %v292, 9
      %v1070 = vpop.permute.xlu0 %1069
      %1071 = vrot.lane.b32.xlu0 %v293, 9
      %v1072 = vpop.permute.xlu0 %1071
      %1073 = vrot.lane.b32.xlu0 %v275, 9
      %v1074 = vpop.permute.xlu0 %1073
      %1075 = vrot.lane.b32.xlu0 %v277, 9
      %v1076 = vpop.permute.xlu0 %1075
      %1077 = vrot.lane.b32.xlu0 %v279, 9
      %v1078 = vpop.permute.xlu0 %1077
      %1079 = vrot.lane.b32.xlu0 %v281, 9
      %v1080 = vpop.permute.xlu0 %1079
      %vm1081 = vcmask 72704
      %v1082 = vsel %vm1081, %v1058, %v1060
      %v1083 = vsel %vm1081, %v1060, %v1062
      %v1084 = vsel %vm1081, %v1062, %v1064
      %v1085 = vsel %vm1081, %v1066, %v1068
      %v1086 = vsel %vm1081, %v1068, %v1070
      %v1087 = vsel %vm1081, %v1070, %v1072
      %v1088 = vsel %vm1081, %v1074, %v1076
      %v1089 = vsel %vm1081, %v1076, %v1078
      %v1090 = vsel %vm1081, %v1078, %v1080
      %v1103 = vsel %vm1081, 0.0, %v1058
      %v1104 = vsel %vm1081, 0.0, %v1066
      %v1105 = vsel %vm1081, 0.0, %v1074
      %s1106 = scalar_lea.vmem %s4, 33
      %v1107 = vld [vmem:[%s1106] ss:$8 sm:$0xf]
      %v1109 = vlaneseq
      %v1110 = vshrl.u32 %v1109, 7
      %v1111 = vsub.s32 0, %v1110
      %v1112 = vrot.slane %v1107, %v1111
      %v1113 = vlaneseq
      %v1114 = vshrl.u32 %v1113, 7
      %v1115 = vsub.s32 1, %v1114
      %v1116 = vrot.slane %v1107, %v1115
      %v1117 = vlaneseq
      %v1118 = vshrl.u32 %v1117, 7
      %v1119 = vsub.s32 2, %v1118
      %v1120 = vrot.slane %v1107, %v1119
      %v1121 = vlaneseq
      %v1122 = vshrl.u32 %v1121, 7
      %v1123 = vsub.s32 3, %v1122
      %v1124 = vrot.slane %v1107, %v1123
      %v1129 = vmul.f32 %v1103, %v1112
      %v1130 = vmul.f32 %v1082, %v1116
      %v1131 = vmul.f32 %v1083, %v1120
      %v1132 = vmul.f32 %v1084, %v1124
      %v1133 = vmul.f32 %v1104, %v1112
      %v1134 = vmul.f32 %v1085, %v1116
      %v1135 = vmul.f32 %v1086, %v1120
      %v1136 = vmul.f32 %v1087, %v1124
      %v1137 = vmul.f32 %v1105, %v1112
      %v1138 = vmul.f32 %v1088, %v1116
      %v1139 = vmul.f32 %v1089, %v1120
      %v1140 = vmul.f32 %v1090, %v1124
      %1141 = vrot.lane.b32.xlu0 %v245, 8
      %v1142 = vpop.permute.xlu0 %1141
      %1143 = vrot.lane.b32.xlu0 %v246, 8
      %v1144 = vpop.permute.xlu0 %1143
      %1145 = vrot.lane.b32.xlu0 %v247, 8
      %v1146 = vpop.permute.xlu0 %1145
      %1147 = vrot.lane.b32.xlu0 %v248, 8
      %v1148 = vpop.permute.xlu0 %1147
      %1149 = vrot.lane.b32.xlu0 %v290, 8
      %v1150 = vpop.permute.xlu0 %1149
      %1151 = vrot.lane.b32.xlu0 %v291, 8
      %v1152 = vpop.permute.xlu0 %1151
      %1153 = vrot.lane.b32.xlu0 %v292, 8
      %v1154 = vpop.permute.xlu0 %1153
      %1155 = vrot.lane.b32.xlu0 %v293, 8
      %v1156 = vpop.permute.xlu0 %1155
      %1157 = vrot.lane.b32.xlu0 %v275, 8
      %v1158 = vpop.permute.xlu0 %1157
      %1159 = vrot.lane.b32.xlu0 %v277, 8
      %v1160 = vpop.permute.xlu0 %1159
      %1161 = vrot.lane.b32.xlu0 %v279, 8
      %v1162 = vpop.permute.xlu0 %1161
      %1163 = vrot.lane.b32.xlu0 %v281, 8
      %v1164 = vpop.permute.xlu0 %1163
      %vm1165 = vcmask 64512
      %v1166 = vsel %vm1165, %v1142, %v1144
      %v1167 = vsel %vm1165, %v1144, %v1146
      %v1168 = vsel %vm1165, %v1146, %v1148
      %v1169 = vsel %vm1165, %v1150, %v1152
      %v1170 = vsel %vm1165, %v1152, %v1154
      %v1171 = vsel %vm1165, %v1154, %v1156
      %v1172 = vsel %vm1165, %v1158, %v1160
      %v1173 = vsel %vm1165, %v1160, %v1162
      %v1174 = vsel %vm1165, %v1162, %v1164
      %v1187 = vsel %vm1165, 0.0, %v1142
      %v1188 = vsel %vm1165, 0.0, %v1150
      %v1189 = vsel %vm1165, 0.0, %v1158
      %s1190 = scalar_lea.vmem %s4, 34
      %v1191 = vld [vmem:[%s1190] ss:$8 sm:$0xf]
      %v1193 = vlaneseq
      %v1194 = vshrl.u32 %v1193, 7
      %v1195 = vsub.s32 0, %v1194
      %v1196 = vrot.slane %v1191, %v1195
      %v1197 = vlaneseq
      %v1198 = vshrl.u32 %v1197, 7
      %v1199 = vsub.s32 1, %v1198
      %v1200 = vrot.slane %v1191, %v1199
      %v1201 = vlaneseq
      %v1202 = vshrl.u32 %v1201, 7
      %v1203 = vsub.s32 2, %v1202
      %v1204 = vrot.slane %v1191, %v1203
      %v1205 = vlaneseq
      %v1206 = vshrl.u32 %v1205, 7
      %v1207 = vsub.s32 3, %v1206
      %v1208 = vrot.slane %v1191, %v1207
      %v1213 = vmul.f32 %v1187, %v1196
      %v1214 = vmul.f32 %v1166, %v1200
      %v1215 = vmul.f32 %v1167, %v1204
      %v1216 = vmul.f32 %v1168, %v1208
      %v1217 = vmul.f32 %v1188, %v1196
      %v1218 = vmul.f32 %v1169, %v1200
      %v1219 = vmul.f32 %v1170, %v1204
      %v1220 = vmul.f32 %v1171, %v1208
      %v1221 = vmul.f32 %v1189, %v1196
      %v1222 = vmul.f32 %v1172, %v1200
      %v1223 = vmul.f32 %v1173, %v1204
      %v1224 = vmul.f32 %v1174, %v1208
      %1225 = vrot.lane.b32.xlu0 %v245, 7
      %v1226 = vpop.permute.xlu0 %1225
      %1227 = vrot.lane.b32.xlu0 %v246, 7
      %v1228 = vpop.permute.xlu0 %1227
      %1229 = vrot.lane.b32.xlu0 %v247, 7
      %v1230 = vpop.permute.xlu0 %1229
      %1231 = vrot.lane.b32.xlu0 %v248, 7
      %v1232 = vpop.permute.xlu0 %1231
      %1233 = vrot.lane.b32.xlu0 %v290, 7
      %v1234 = vpop.permute.xlu0 %1233
      %1235 = vrot.lane.b32.xlu0 %v291, 7
      %v1236 = vpop.permute.xlu0 %1235
      %1237 = vrot.lane.b32.xlu0 %v292, 7
      %v1238 = vpop.permute.xlu0 %1237
      %1239 = vrot.lane.b32.xlu0 %v293, 7
      %v1240 = vpop.permute.xlu0 %1239
      %1241 = vrot.lane.b32.xlu0 %v275, 7
      %v1242 = vpop.permute.xlu0 %1241
      %1243 = vrot.lane.b32.xlu0 %v277, 7
      %v1244 = vpop.permute.xlu0 %1243
      %1245 = vrot.lane.b32.xlu0 %v279, 7
      %v1246 = vpop.permute.xlu0 %1245
      %1247 = vrot.lane.b32.xlu0 %v281, 7
      %v1248 = vpop.permute.xlu0 %1247
      %vm1249 = vcmask 56320
      %v1250 = vsel %vm1249, %v1226, %v1228
      %v1251 = vsel %vm1249, %v1228, %v1230
      %v1252 = vsel %vm1249, %v1230, %v1232
      %v1253 = vsel %vm1249, %v1234, %v1236
      %v1254 = vsel %vm1249, %v1236, %v1238
      %v1255 = vsel %vm1249, %v1238, %v1240
      %v1256 = vsel %vm1249, %v1242, %v1244
      %v1257 = vsel %vm1249, %v1244, %v1246
      %v1258 = vsel %vm1249, %v1246, %v1248
      %v1271 = vsel %vm1249, 0.0, %v1226
      %v1272 = vsel %vm1249, 0.0, %v1234
      %v1273 = vsel %vm1249, 0.0, %v1242
      %s1274 = scalar_lea.vmem %s4, 35
      %v1275 = vld [vmem:[%s1274] ss:$8 sm:$0xf]
      %v1277 = vlaneseq
      %v1278 = vshrl.u32 %v1277, 7
      %v1279 = vsub.s32 0, %v1278
      %v1280 = vrot.slane %v1275, %v1279
      %v1281 = vlaneseq
      %v1282 = vshrl.u32 %v1281, 7
      %v1283 = vsub.s32 1, %v1282
      %v1284 = vrot.slane %v1275, %v1283
      %v1285 = vlaneseq
      %v1286 = vshrl.u32 %v1285, 7
      %v1287 = vsub.s32 2, %v1286
      %v1288 = vrot.slane %v1275, %v1287
      %v1289 = vlaneseq
      %v1290 = vshrl.u32 %v1289, 7
      %v1291 = vsub.s32 3, %v1290
      %v1292 = vrot.slane %v1275, %v1291
      %v1297 = vmul.f32 %v1271, %v1280
      %v1298 = vmul.f32 %v1250, %v1284
      %v1299 = vmul.f32 %v1251, %v1288
      %v1300 = vmul.f32 %v1252, %v1292
      %v1301 = vmul.f32 %v1272, %v1280
      %v1302 = vmul.f32 %v1253, %v1284
      %v1303 = vmul.f32 %v1254, %v1288
      %v1304 = vmul.f32 %v1255, %v1292
      %v1305 = vmul.f32 %v1273, %v1280
      %v1306 = vmul.f32 %v1256, %v1284
      %v1307 = vmul.f32 %v1257, %v1288
      %v1308 = vmul.f32 %v1258, %v1292
      %1309 = vrot.lane.b32.xlu0 %v245, 1
      %v1310 = vpop.permute.xlu0 %1309
      %1311 = vrot.lane.b32.xlu0 %v246, 1
      %v1312 = vpop.permute.xlu0 %1311
      %1313 = vrot.lane.b32.xlu0 %v247, 1
      %v1314 = vpop.permute.xlu0 %1313
      %1315 = vrot.lane.b32.xlu0 %v248, 1
      %v1316 = vpop.permute.xlu0 %1315
      %1317 = vrot.lane.b32.xlu0 %v290, 1
      %v1318 = vpop.permute.xlu0 %1317
      %1319 = vrot.lane.b32.xlu0 %v291, 1
      %v1320 = vpop.permute.xlu0 %1319
      %1321 = vrot.lane.b32.xlu0 %v292, 1
      %v1322 = vpop.permute.xlu0 %1321
      %1323 = vrot.lane.b32.xlu0 %v293, 1
      %v1324 = vpop.permute.xlu0 %1323
      %1325 = vrot.lane.b32.xlu0 %v275, 1
      %v1326 = vpop.permute.xlu0 %1325
      %1327 = vrot.lane.b32.xlu0 %v277, 1
      %v1328 = vpop.permute.xlu0 %1327
      %1329 = vrot.lane.b32.xlu0 %v279, 1
      %v1330 = vpop.permute.xlu0 %1329
      %1331 = vrot.lane.b32.xlu0 %v281, 1
      %v1332 = vpop.permute.xlu0 %1331
      %vm1333 = vcmask 7168
      %v1334 = vsel %vm1333, %v1310, %v1312
      %v1335 = vsel %vm1333, %v1312, %v1314
      %v1336 = vsel %vm1333, %v1314, %v1316
      %v1337 = vsel %vm1333, %v1318, %v1320
      %v1338 = vsel %vm1333, %v1320, %v1322
      %v1339 = vsel %vm1333, %v1322, %v1324
      %v1340 = vsel %vm1333, %v1326, %v1328
      %v1341 = vsel %vm1333, %v1328, %v1330
      %v1342 = vsel %vm1333, %v1330, %v1332
      %v1355 = vsel %vm1333, 0.0, %v1310
      %v1356 = vsel %vm1333, 0.0, %v1318
      %v1357 = vsel %vm1333, 0.0, %v1326
      %s1358 = scalar_lea.vmem %s4, 36
      %v1359 = vld [vmem:[%s1358] ss:$8 sm:$0xf]
      %v1361 = vlaneseq
      %v1362 = vshrl.u32 %v1361, 7
      %v1363 = vsub.s32 0, %v1362
      %v1364 = vrot.slane %v1359, %v1363
      %v1365 = vlaneseq
      %v1366 = vshrl.u32 %v1365, 7
      %v1367 = vsub.s32 1, %v1366
      %v1368 = vrot.slane %v1359, %v1367
      %v1369 = vlaneseq
      %v1370 = vshrl.u32 %v1369, 7
      %v1371 = vsub.s32 2, %v1370
      %v1372 = vrot.slane %v1359, %v1371
      %v1373 = vlaneseq
      %v1374 = vshrl.u32 %v1373, 7
      %v1375 = vsub.s32 3, %v1374
      %v1376 = vrot.slane %v1359, %v1375
      %v1381 = vmul.f32 %v1355, %v1364
      %v1382 = vmul.f32 %v1334, %v1368
      %v1383 = vmul.f32 %v1335, %v1372
      %v1384 = vmul.f32 %v1336, %v1376
      %v1385 = vmul.f32 %v1356, %v1364
      %v1386 = vmul.f32 %v1337, %v1368
      %v1387 = vmul.f32 %v1338, %v1372
      %v1388 = vmul.f32 %v1339, %v1376
      %v1389 = vmul.f32 %v1357, %v1364
      %v1390 = vmul.f32 %v1340, %v1368
      %v1391 = vmul.f32 %v1341, %v1372
      %v1392 = vmul.f32 %v1342, %v1376
      %s1393 = scalar_lea.vmem %s4, 37
      %v1394 = vld [vmem:[%s1393] ss:$8 sm:$0xf]
      %v1396 = vlaneseq
      %v1397 = vshrl.u32 %v1396, 7
      %v1398 = vsub.s32 0, %v1397
      %v1399 = vrot.slane %v1394, %v1398
      %v1400 = vlaneseq
      %v1401 = vshrl.u32 %v1400, 7
      %v1402 = vsub.s32 1, %v1401
      %v1403 = vrot.slane %v1394, %v1402
      %v1404 = vlaneseq
      %v1405 = vshrl.u32 %v1404, 7
      %v1406 = vsub.s32 2, %v1405
      %v1407 = vrot.slane %v1394, %v1406
      %v1408 = vlaneseq
      %v1409 = vshrl.u32 %v1408, 7
      %v1410 = vsub.s32 3, %v1409
      %v1411 = vrot.slane %v1394, %v1410
      %v1416 = vmul.f32 %v245, %v1399
      %v1417 = vmul.f32 %v246, %v1403
      %v1418 = vmul.f32 %v247, %v1407
      %v1419 = vmul.f32 %v248, %v1411
      %v1420 = vmul.f32 %v290, %v1399
      %v1421 = vmul.f32 %v291, %v1403
      %v1422 = vmul.f32 %v292, %v1407
      %v1423 = vmul.f32 %v293, %v1411
      %v1424 = vmul.f32 %v275, %v1399
      %v1425 = vmul.f32 %v277, %v1403
      %v1426 = vmul.f32 %v279, %v1407
      %v1427 = vmul.f32 %v281, %v1411
      %1428 = vrot.lane.b32.xlu0 %v245, 127
      %v1429 = vpop.permute.xlu0 %1428
      %1430 = vrot.lane.b32.xlu0 %v246, 127
      %v1431 = vpop.permute.xlu0 %1430
      %1432 = vrot.lane.b32.xlu0 %v247, 127
      %v1433 = vpop.permute.xlu0 %1432
      %1434 = vrot.lane.b32.xlu0 %v248, 127
      %v1435 = vpop.permute.xlu0 %1434
      %1436 = vrot.lane.b32.xlu0 %v290, 127
      %v1437 = vpop.permute.xlu0 %1436
      %1438 = vrot.lane.b32.xlu0 %v291, 127
      %v1439 = vpop.permute.xlu0 %1438
      %1440 = vrot.lane.b32.xlu0 %v292, 127
      %v1441 = vpop.permute.xlu0 %1440
      %1442 = vrot.lane.b32.xlu0 %v293, 127
      %v1443 = vpop.permute.xlu0 %1442
      %1444 = vrot.lane.b32.xlu0 %v275, 127
      %v1445 = vpop.permute.xlu0 %1444
      %1446 = vrot.lane.b32.xlu0 %v277, 127
      %v1447 = vpop.permute.xlu0 %1446
      %1448 = vrot.lane.b32.xlu0 %v279, 127
      %v1449 = vpop.permute.xlu0 %1448
      %1450 = vrot.lane.b32.xlu0 %v281, 127
      %v1451 = vpop.permute.xlu0 %1450
      %vm1452 = vcmask 1039360
      %v1453 = vsel %vm1452, %v1429, %v1431
      %v1454 = vsel %vm1452, %v1431, %v1433
      %v1455 = vsel %vm1452, %v1433, %v1435
      %v1456 = vsel %vm1452, %v1437, %v1439
      %v1457 = vsel %vm1452, %v1439, %v1441
      %v1458 = vsel %vm1452, %v1441, %v1443
      %v1459 = vsel %vm1452, %v1445, %v1447
      %v1460 = vsel %vm1452, %v1447, %v1449
      %v1461 = vsel %vm1452, %v1449, %v1451
      %v1474 = vsel %vm1452, %v1435, 0.0
      %v1475 = vsel %vm1452, %v1443, 0.0
      %v1476 = vsel %vm1452, %v1451, 0.0
      %s1477 = scalar_lea.vmem %s4, 38
      %v1478 = vld [vmem:[%s1477] ss:$8 sm:$0xf]
      %v1480 = vlaneseq
      %v1481 = vshrl.u32 %v1480, 7
      %v1482 = vsub.s32 0, %v1481
      %v1483 = vrot.slane %v1478, %v1482
      %v1484 = vlaneseq
      %v1485 = vshrl.u32 %v1484, 7
      %v1486 = vsub.s32 1, %v1485
      %v1487 = vrot.slane %v1478, %v1486
      %v1488 = vlaneseq
      %v1489 = vshrl.u32 %v1488, 7
      %v1490 = vsub.s32 2, %v1489
      %v1491 = vrot.slane %v1478, %v1490
      %v1492 = vlaneseq
      %v1493 = vshrl.u32 %v1492, 7
      %v1494 = vsub.s32 3, %v1493
      %v1495 = vrot.slane %v1478, %v1494
      %v1500 = vmul.f32 %v1453, %v1483
      %v1501 = vmul.f32 %v1454, %v1487
      %v1502 = vmul.f32 %v1455, %v1491
      %v1503 = vmul.f32 %v1474, %v1495
      %v1504 = vmul.f32 %v1456, %v1483
      %v1505 = vmul.f32 %v1457, %v1487
      %v1506 = vmul.f32 %v1458, %v1491
      %v1507 = vmul.f32 %v1475, %v1495
      %v1508 = vmul.f32 %v1459, %v1483
      %v1509 = vmul.f32 %v1460, %v1487
      %v1510 = vmul.f32 %v1461, %v1491
      %v1511 = vmul.f32 %v1476, %v1495
      %1512 = vrot.lane.b32.xlu0 %v245, 121
      %v1513 = vpop.permute.xlu0 %1512
      %1514 = vrot.lane.b32.xlu0 %v246, 121
      %v1515 = vpop.permute.xlu0 %1514
      %1516 = vrot.lane.b32.xlu0 %v247, 121
      %v1517 = vpop.permute.xlu0 %1516
      %1518 = vrot.lane.b32.xlu0 %v248, 121
      %v1519 = vpop.permute.xlu0 %1518
      %1520 = vrot.lane.b32.xlu0 %v290, 121
      %v1521 = vpop.permute.xlu0 %1520
      %1522 = vrot.lane.b32.xlu0 %v291, 121
      %v1523 = vpop.permute.xlu0 %1522
      %1524 = vrot.lane.b32.xlu0 %v292, 121
      %v1525 = vpop.permute.xlu0 %1524
      %1526 = vrot.lane.b32.xlu0 %v293, 121
      %v1527 = vpop.permute.xlu0 %1526
      %1528 = vrot.lane.b32.xlu0 %v275, 121
      %v1529 = vpop.permute.xlu0 %1528
      %1530 = vrot.lane.b32.xlu0 %v277, 121
      %v1531 = vpop.permute.xlu0 %1530
      %1532 = vrot.lane.b32.xlu0 %v279, 121
      %v1533 = vpop.permute.xlu0 %1532
      %1534 = vrot.lane.b32.xlu0 %v281, 121
      %v1535 = vpop.permute.xlu0 %1534
      %vm1536 = vcmask 990208
      %v1537 = vsel %vm1536, %v1513, %v1515
      %v1538 = vsel %vm1536, %v1515, %v1517
      %v1539 = vsel %vm1536, %v1517, %v1519
      %v1540 = vsel %vm1536, %v1521, %v1523
      %v1541 = vsel %vm1536, %v1523, %v1525
      %v1542 = vsel %vm1536, %v1525, %v1527
      %v1543 = vsel %vm1536, %v1529, %v1531
      %v1544 = vsel %vm1536, %v1531, %v1533
      %v1545 = vsel %vm1536, %v1533, %v1535
      %v1558 = vsel %vm1536, %v1519, 0.0
      %v1559 = vsel %vm1536, %v1527, 0.0
      %v1560 = vsel %vm1536, %v1535, 0.0
      %s1561 = scalar_lea.vmem %s4, 39
      %v1562 = vld [vmem:[%s1561] ss:$8 sm:$0xf]
      %v1564 = vlaneseq
      %v1565 = vshrl.u32 %v1564, 7
      %v1566 = vsub.s32 0, %v1565
      %v1567 = vrot.slane %v1562, %v1566
      %v1568 = vlaneseq
      %v1569 = vshrl.u32 %v1568, 7
      %v1570 = vsub.s32 1, %v1569
      %v1571 = vrot.slane %v1562, %v1570
      %v1572 = vlaneseq
      %v1573 = vshrl.u32 %v1572, 7
      %v1574 = vsub.s32 2, %v1573
      %v1575 = vrot.slane %v1562, %v1574
      %v1576 = vlaneseq
      %v1577 = vshrl.u32 %v1576, 7
      %v1578 = vsub.s32 3, %v1577
      %v1579 = vrot.slane %v1562, %v1578
      %v1584 = vmul.f32 %v1537, %v1567
      %v1585 = vmul.f32 %v1538, %v1571
      %v1586 = vmul.f32 %v1539, %v1575
      %v1587 = vmul.f32 %v1558, %v1579
      %v1588 = vmul.f32 %v1540, %v1567
      %v1589 = vmul.f32 %v1541, %v1571
      %v1590 = vmul.f32 %v1542, %v1575
      %v1591 = vmul.f32 %v1559, %v1579
      %v1592 = vmul.f32 %v1543, %v1567
      %v1593 = vmul.f32 %v1544, %v1571
      %v1594 = vmul.f32 %v1545, %v1575
      %v1595 = vmul.f32 %v1560, %v1579
      %1596 = vrot.lane.b32.xlu0 %v245, 120
      %v1597 = vpop.permute.xlu0 %1596
      %1598 = vrot.lane.b32.xlu0 %v246, 120
      %v1599 = vpop.permute.xlu0 %1598
      %1600 = vrot.lane.b32.xlu0 %v247, 120
      %v1601 = vpop.permute.xlu0 %1600
      %1602 = vrot.lane.b32.xlu0 %v248, 120
      %v1603 = vpop.permute.xlu0 %1602
      %1604 = vrot.lane.b32.xlu0 %v290, 120
      %v1605 = vpop.permute.xlu0 %1604
      %1606 = vrot.lane.b32.xlu0 %v291, 120
      %v1607 = vpop.permute.xlu0 %1606
      %1608 = vrot.lane.b32.xlu0 %v292, 120
      %v1609 = vpop.permute.xlu0 %1608
      %1610 = vrot.lane.b32.xlu0 %v293, 120
      %v1611 = vpop.permute.xlu0 %1610
      %1612 = vrot.lane.b32.xlu0 %v275, 120
      %v1613 = vpop.permute.xlu0 %1612
      %1614 = vrot.lane.b32.xlu0 %v277, 120
      %v1615 = vpop.permute.xlu0 %1614
      %1616 = vrot.lane.b32.xlu0 %v279, 120
      %v1617 = vpop.permute.xlu0 %1616
      %1618 = vrot.lane.b32.xlu0 %v281, 120
      %v1619 = vpop.permute.xlu0 %1618
      %vm1620 = vcmask 982016
      %v1621 = vsel %vm1620, %v1597, %v1599
      %v1622 = vsel %vm1620, %v1599, %v1601
      %v1623 = vsel %vm1620, %v1601, %v1603
      %v1624 = vsel %vm1620, %v1605, %v1607
      %v1625 = vsel %vm1620, %v1607, %v1609
      %v1626 = vsel %vm1620, %v1609, %v1611
      %v1627 = vsel %vm1620, %v1613, %v1615
      %v1628 = vsel %vm1620, %v1615, %v1617
      %v1629 = vsel %vm1620, %v1617, %v1619
      %v1642 = vsel %vm1620, %v1603, 0.0
      %v1643 = vsel %vm1620, %v1611, 0.0
      %v1644 = vsel %vm1620, %v1619, 0.0
      %s1645 = scalar_lea.vmem %s4, 64
      %v1646 = vld [vmem:[%s1645] ss:$8 sm:$0xf]
      %v1648 = vlaneseq
      %v1649 = vshrl.u32 %v1648, 7
      %v1650 = vsub.s32 0, %v1649
      %v1651 = vrot.slane %v1646, %v1650
      %v1652 = vlaneseq
      %v1653 = vshrl.u32 %v1652, 7
      %v1654 = vsub.s32 1, %v1653
      %v1655 = vrot.slane %v1646, %v1654
      %v1656 = vlaneseq
      %v1657 = vshrl.u32 %v1656, 7
      %v1658 = vsub.s32 2, %v1657
      %v1659 = vrot.slane %v1646, %v1658
      %v1660 = vlaneseq
      %v1661 = vshrl.u32 %v1660, 7
      %v1662 = vsub.s32 3, %v1661
      %v1663 = vrot.slane %v1646, %v1662
      %v1668 = vmul.f32 %v1621, %v1651
      %v1669 = vmul.f32 %v1622, %v1655
      %v1670 = vmul.f32 %v1623, %v1659
      %v1671 = vmul.f32 %v1642, %v1663
      %v1672 = vmul.f32 %v1624, %v1651
      %v1673 = vmul.f32 %v1625, %v1655
      %v1674 = vmul.f32 %v1626, %v1659
      %v1675 = vmul.f32 %v1643, %v1663
      %v1676 = vmul.f32 %v1627, %v1651
      %v1677 = vmul.f32 %v1628, %v1655
      %v1678 = vmul.f32 %v1629, %v1659
      %v1679 = vmul.f32 %v1644, %v1663
      %1680 = vrot.lane.b32.xlu0 %v245, 119
      %v1681 = vpop.permute.xlu0 %1680
      %1682 = vrot.lane.b32.xlu0 %v246, 119
      %v1683 = vpop.permute.xlu0 %1682
      %1684 = vrot.lane.b32.xlu0 %v247, 119
      %v1685 = vpop.permute.xlu0 %1684
      %1686 = vrot.lane.b32.xlu0 %v248, 119
      %v1687 = vpop.permute.xlu0 %1686
      %1688 = vrot.lane.b32.xlu0 %v290, 119
      %v1689 = vpop.permute.xlu0 %1688
      %1690 = vrot.lane.b32.xlu0 %v291, 119
      %v1691 = vpop.permute.xlu0 %1690
      %1692 = vrot.lane.b32.xlu0 %v292, 119
      %v1693 = vpop.permute.xlu0 %1692
      %1694 = vrot.lane.b32.xlu0 %v293, 119
      %v1695 = vpop.permute.xlu0 %1694
      %1696 = vrot.lane.b32.xlu0 %v275, 119
      %v1697 = vpop.permute.xlu0 %1696
      %1698 = vrot.lane.b32.xlu0 %v277, 119
      %v1699 = vpop.permute.xlu0 %1698
      %1700 = vrot.lane.b32.xlu0 %v279, 119
      %v1701 = vpop.permute.xlu0 %1700
      %1702 = vrot.lane.b32.xlu0 %v281, 119
      %v1703 = vpop.permute.xlu0 %1702
      %vm1704 = vcmask 973824
      %v1705 = vsel %vm1704, %v1681, %v1683
      %v1706 = vsel %vm1704, %v1683, %v1685
      %v1707 = vsel %vm1704, %v1685, %v1687
      %v1708 = vsel %vm1704, %v1689, %v1691
      %v1709 = vsel %vm1704, %v1691, %v1693
      %v1710 = vsel %vm1704, %v1693, %v1695
      %v1711 = vsel %vm1704, %v1697, %v1699
      %v1712 = vsel %vm1704, %v1699, %v1701
      %v1713 = vsel %vm1704, %v1701, %v1703
      %v1726 = vsel %vm1704, %v1687, 0.0
      %v1727 = vsel %vm1704, %v1695, 0.0
      %v1728 = vsel %vm1704, %v1703, 0.0
      %s1729 = scalar_lea.vmem %s4, 65
      %v1730 = vld [vmem:[%s1729] ss:$8 sm:$0xf]
      %v1732 = vlaneseq
      %v1733 = vshrl.u32 %v1732, 7
      %v1734 = vsub.s32 0, %v1733
      %v1735 = vrot.slane %v1730, %v1734
      %v1736 = vlaneseq
      %v1737 = vshrl.u32 %v1736, 7
      %v1738 = vsub.s32 1, %v1737
      %v1739 = vrot.slane %v1730, %v1738
      %v1740 = vlaneseq
      %v1741 = vshrl.u32 %v1740, 7
      %v1742 = vsub.s32 2, %v1741
      %v1743 = vrot.slane %v1730, %v1742
      %v1744 = vlaneseq
      %v1745 = vshrl.u32 %v1744, 7
      %v1746 = vsub.s32 3, %v1745
      %v1747 = vrot.slane %v1730, %v1746
      %v1752 = vmul.f32 %v1705, %v1735
      %v1753 = vmul.f32 %v1706, %v1739
      %v1754 = vmul.f32 %v1707, %v1743
      %v1755 = vmul.f32 %v1726, %v1747
      %v1756 = vmul.f32 %v1708, %v1735
      %v1757 = vmul.f32 %v1709, %v1739
      %v1758 = vmul.f32 %v1710, %v1743
      %v1759 = vmul.f32 %v1727, %v1747
      %v1760 = vmul.f32 %v1711, %v1735
      %v1761 = vmul.f32 %v1712, %v1739
      %v1762 = vmul.f32 %v1713, %v1743
      %v1763 = vmul.f32 %v1728, %v1747
      %v1767 = vsel %vm326, %v309, 0.0
      %v1768 = vsel %vm326, %v317, 0.0
      %v1769 = vsel %vm326, %v325, 0.0
      %s1770 = scalar_lea.vmem %s4, 66
      %v1771 = vld [vmem:[%s1770] ss:$8 sm:$0xf]
      %v1773 = vlaneseq
      %v1774 = vshrl.u32 %v1773, 7
      %v1775 = vsub.s32 0, %v1774
      %v1776 = vrot.slane %v1771, %v1775
      %v1777 = vlaneseq
      %v1778 = vshrl.u32 %v1777, 7
      %v1779 = vsub.s32 1, %v1778
      %v1780 = vrot.slane %v1771, %v1779
      %v1781 = vlaneseq
      %v1782 = vshrl.u32 %v1781, 7
      %v1783 = vsub.s32 2, %v1782
      %v1784 = vrot.slane %v1771, %v1783
      %v1785 = vlaneseq
      %v1786 = vshrl.u32 %v1785, 7
      %v1787 = vsub.s32 3, %v1786
      %v1788 = vrot.slane %v1771, %v1787
      %v1793 = vmul.f32 %v327, %v1776
      %v1794 = vmul.f32 %v328, %v1780
      %v1795 = vmul.f32 %v329, %v1784
      %v1796 = vmul.f32 %v1767, %v1788
      %v1797 = vmul.f32 %v330, %v1776
      %v1798 = vmul.f32 %v331, %v1780
      %v1799 = vmul.f32 %v332, %v1784
      %v1800 = vmul.f32 %v1768, %v1788
      %v1801 = vmul.f32 %v333, %v1776
      %v1802 = vmul.f32 %v334, %v1780
      %v1803 = vmul.f32 %v335, %v1784
      %v1804 = vmul.f32 %v1769, %v1788
      %v1808 = vsel %vm409, %v392, 0.0
      %v1809 = vsel %vm409, %v400, 0.0
      %v1810 = vsel %vm409, %v408, 0.0
      %s1811 = scalar_lea.vmem %s4, 67
      %v1812 = vld [vmem:[%s1811] ss:$8 sm:$0xf]
      %v1814 = vlaneseq
      %v1815 = vshrl.u32 %v1814, 7
      %v1816 = vsub.s32 0, %v1815
      %v1817 = vrot.slane %v1812, %v1816
      %v1818 = vlaneseq
      %v1819 = vshrl.u32 %v1818, 7
      %v1820 = vsub.s32 1, %v1819
      %v1821 = vrot.slane %v1812, %v1820
      %v1822 = vlaneseq
      %v1823 = vshrl.u32 %v1822, 7
      %v1824 = vsub.s32 2, %v1823
      %v1825 = vrot.slane %v1812, %v1824
      %v1826 = vlaneseq
      %v1827 = vshrl.u32 %v1826, 7
      %v1828 = vsub.s32 3, %v1827
      %v1829 = vrot.slane %v1812, %v1828
      %v1834 = vmul.f32 %v410, %v1817
      %v1835 = vmul.f32 %v411, %v1821
      %v1836 = vmul.f32 %v412, %v1825
      %v1837 = vmul.f32 %v1808, %v1829
      %v1838 = vmul.f32 %v413, %v1817
      %v1839 = vmul.f32 %v414, %v1821
      %v1840 = vmul.f32 %v415, %v1825
      %v1841 = vmul.f32 %v1809, %v1829
      %v1842 = vmul.f32 %v416, %v1817
      %v1843 = vmul.f32 %v417, %v1821
      %v1844 = vmul.f32 %v418, %v1825
      %v1845 = vmul.f32 %v1810, %v1829
      %v1849 = vsel %vm493, %v476, 0.0
      %v1850 = vsel %vm493, %v484, 0.0
      %v1851 = vsel %vm493, %v492, 0.0
      %s1852 = scalar_lea.vmem %s4, 68
      %v1853 = vld [vmem:[%s1852] ss:$8 sm:$0xf]
      %v1855 = vlaneseq
      %v1856 = vshrl.u32 %v1855, 7
      %v1857 = vsub.s32 0, %v1856
      %v1858 = vrot.slane %v1853, %v1857
      %v1859 = vlaneseq
      %v1860 = vshrl.u32 %v1859, 7
      %v1861 = vsub.s32 1, %v1860
      %v1862 = vrot.slane %v1853, %v1861
      %v1863 = vlaneseq
      %v1864 = vshrl.u32 %v1863, 7
      %v1865 = vsub.s32 2, %v1864
      %v1866 = vrot.slane %v1853, %v1865
      %v1867 = vlaneseq
      %v1868 = vshrl.u32 %v1867, 7
      %v1869 = vsub.s32 3, %v1868
      %v1870 = vrot.slane %v1853, %v1869
      %v1875 = vmul.f32 %v494, %v1858
      %v1876 = vmul.f32 %v495, %v1862
      %v1877 = vmul.f32 %v496, %v1866
      %v1878 = vmul.f32 %v1849, %v1870
      %v1879 = vmul.f32 %v497, %v1858
      %v1880 = vmul.f32 %v498, %v1862
      %v1881 = vmul.f32 %v499, %v1866
      %v1882 = vmul.f32 %v1850, %v1870
      %v1883 = vmul.f32 %v500, %v1858
      %v1884 = vmul.f32 %v501, %v1862
      %v1885 = vmul.f32 %v502, %v1866
      %v1886 = vmul.f32 %v1851, %v1870
      %v1890 = vsel %vm577, %v560, 0.0
      %v1891 = vsel %vm577, %v568, 0.0
      %v1892 = vsel %vm577, %v576, 0.0
      %s1893 = scalar_lea.vmem %s4, 69
      %v1894 = vld [vmem:[%s1893] ss:$8 sm:$0xf]
      %v1896 = vlaneseq
      %v1897 = vshrl.u32 %v1896, 7
      %v1898 = vsub.s32 0, %v1897
      %v1899 = vrot.slane %v1894, %v1898
      %v1900 = vlaneseq
      %v1901 = vshrl.u32 %v1900, 7
      %v1902 = vsub.s32 1, %v1901
      %v1903 = vrot.slane %v1894, %v1902
      %v1904 = vlaneseq
      %v1905 = vshrl.u32 %v1904, 7
      %v1906 = vsub.s32 2, %v1905
      %v1907 = vrot.slane %v1894, %v1906
      %v1908 = vlaneseq
      %v1909 = vshrl.u32 %v1908, 7
      %v1910 = vsub.s32 3, %v1909
      %v1911 = vrot.slane %v1894, %v1910
      %v1916 = vmul.f32 %v578, %v1899
      %v1917 = vmul.f32 %v579, %v1903
      %v1918 = vmul.f32 %v580, %v1907
      %v1919 = vmul.f32 %v1890, %v1911
      %v1920 = vmul.f32 %v581, %v1899
      %v1921 = vmul.f32 %v582, %v1903
      %v1922 = vmul.f32 %v583, %v1907
      %v1923 = vmul.f32 %v1891, %v1911
      %v1924 = vmul.f32 %v584, %v1899
      %v1925 = vmul.f32 %v585, %v1903
      %v1926 = vmul.f32 %v586, %v1907
      %v1927 = vmul.f32 %v1892, %v1911
      %v1931 = vsel %vm661, %v644, 0.0
      %v1932 = vsel %vm661, %v652, 0.0
      %v1933 = vsel %vm661, %v660, 0.0
      %s1934 = scalar_lea.vmem %s4, 70
      %v1935 = vld [vmem:[%s1934] ss:$8 sm:$0xf]
      %v1937 = vlaneseq
      %v1938 = vshrl.u32 %v1937, 7
      %v1939 = vsub.s32 0, %v1938
      %v1940 = vrot.slane %v1935, %v1939
      %v1941 = vlaneseq
      %v1942 = vshrl.u32 %v1941, 7
      %v1943 = vsub.s32 1, %v1942
      %v1944 = vrot.slane %v1935, %v1943
      %v1945 = vlaneseq
      %v1946 = vshrl.u32 %v1945, 7
      %v1947 = vsub.s32 2, %v1946
      %v1948 = vrot.slane %v1935, %v1947
      %v1949 = vlaneseq
      %v1950 = vshrl.u32 %v1949, 7
      %v1951 = vsub.s32 3, %v1950
      %v1952 = vrot.slane %v1935, %v1951
      %v1957 = vmul.f32 %v662, %v1940
      %v1958 = vmul.f32 %v663, %v1944
      %v1959 = vmul.f32 %v664, %v1948
      %v1960 = vmul.f32 %v1931, %v1952
      %v1961 = vmul.f32 %v665, %v1940
      %v1962 = vmul.f32 %v666, %v1944
      %v1963 = vmul.f32 %v667, %v1948
      %v1964 = vmul.f32 %v1932, %v1952
      %v1965 = vmul.f32 %v668, %v1940
      %v1966 = vmul.f32 %v669, %v1944
      %v1967 = vmul.f32 %v670, %v1948
      %v1968 = vmul.f32 %v1933, %v1952
      %v1972 = vsel %vm745, %v728, 0.0
      %v1973 = vsel %vm745, %v736, 0.0
      %v1974 = vsel %vm745, %v744, 0.0
      %s1975 = scalar_lea.vmem %s4, 71
      %v1976 = vld [vmem:[%s1975] ss:$8 sm:$0xf]
      %v1978 = vlaneseq
      %v1979 = vshrl.u32 %v1978, 7
      %v1980 = vsub.s32 0, %v1979
      %v1981 = vrot.slane %v1976, %v1980
      %v1982 = vlaneseq
      %v1983 = vshrl.u32 %v1982, 7
      %v1984 = vsub.s32 1, %v1983
      %v1985 = vrot.slane %v1976, %v1984
      %v1986 = vlaneseq
      %v1987 = vshrl.u32 %v1986, 7
      %v1988 = vsub.s32 2, %v1987
      %v1989 = vrot.slane %v1976, %v1988
      %v1990 = vlaneseq
      %v1991 = vshrl.u32 %v1990, 7
      %v1992 = vsub.s32 3, %v1991
      %v1993 = vrot.slane %v1976, %v1992
      %v1998 = vmul.f32 %v746, %v1981
      %v1999 = vmul.f32 %v747, %v1985
      %v2000 = vmul.f32 %v748, %v1989
      %v2001 = vmul.f32 %v1972, %v1993
      %v2002 = vmul.f32 %v749, %v1981
      %v2003 = vmul.f32 %v750, %v1985
      %v2004 = vmul.f32 %v751, %v1989
      %v2005 = vmul.f32 %v1973, %v1993
      %v2006 = vmul.f32 %v752, %v1981
      %v2007 = vmul.f32 %v753, %v1985
      %v2008 = vmul.f32 %v754, %v1989
      %v2009 = vmul.f32 %v1974, %v1993
      %v2013 = vsel %vm829, %v812, 0.0
      %v2014 = vsel %vm829, %v820, 0.0
      %v2015 = vsel %vm829, %v828, 0.0
      %s2016 = scalar_lea.vmem %s4, 96
      %v2017 = vld [vmem:[%s2016] ss:$8 sm:$0xf]
      %v2019 = vlaneseq
      %v2020 = vshrl.u32 %v2019, 7
      %v2021 = vsub.s32 0, %v2020
      %v2022 = vrot.slane %v2017, %v2021
      %v2023 = vlaneseq
      %v2024 = vshrl.u32 %v2023, 7
      %v2025 = vsub.s32 1, %v2024
      %v2026 = vrot.slane %v2017, %v2025
      %v2027 = vlaneseq
      %v2028 = vshrl.u32 %v2027, 7
      %v2029 = vsub.s32 2, %v2028
      %v2030 = vrot.slane %v2017, %v2029
      %v2031 = vlaneseq
      %v2032 = vshrl.u32 %v2031, 7
      %v2033 = vsub.s32 3, %v2032
      %v2034 = vrot.slane %v2017, %v2033
      %v2039 = vmul.f32 %v830, %v2022
      %v2040 = vmul.f32 %v831, %v2026
      %v2041 = vmul.f32 %v832, %v2030
      %v2042 = vmul.f32 %v2013, %v2034
      %v2043 = vmul.f32 %v833, %v2022
      %v2044 = vmul.f32 %v834, %v2026
      %v2045 = vmul.f32 %v835, %v2030
      %v2046 = vmul.f32 %v2014, %v2034
      %v2047 = vmul.f32 %v836, %v2022
      %v2048 = vmul.f32 %v837, %v2026
      %v2049 = vmul.f32 %v838, %v2030
      %v2050 = vmul.f32 %v2015, %v2034
      %v2054 = vsel %vm913, %v896, 0.0
      %v2055 = vsel %vm913, %v904, 0.0
      %v2056 = vsel %vm913, %v912, 0.0
      %s2057 = scalar_lea.vmem %s4, 97
      %v2058 = vld [vmem:[%s2057] ss:$8 sm:$0xf]
      %v2060 = vlaneseq
      %v2061 = vshrl.u32 %v2060, 7
      %v2062 = vsub.s32 0, %v2061
      %v2063 = vrot.slane %v2058, %v2062
      %v2064 = vlaneseq
      %v2065 = vshrl.u32 %v2064, 7
      %v2066 = vsub.s32 1, %v2065
      %v2067 = vrot.slane %v2058, %v2066
      %v2068 = vlaneseq
      %v2069 = vshrl.u32 %v2068, 7
      %v2070 = vsub.s32 2, %v2069
      %v2071 = vrot.slane %v2058, %v2070
      %v2072 = vlaneseq
      %v2073 = vshrl.u32 %v2072, 7
      %v2074 = vsub.s32 3, %v2073
      %v2075 = vrot.slane %v2058, %v2074
      %v2080 = vmul.f32 %v914, %v2063
      %v2081 = vmul.f32 %v915, %v2067
      %v2082 = vmul.f32 %v916, %v2071
      %v2083 = vmul.f32 %v2054, %v2075
      %v2084 = vmul.f32 %v917, %v2063
      %v2085 = vmul.f32 %v918, %v2067
      %v2086 = vmul.f32 %v919, %v2071
      %v2087 = vmul.f32 %v2055, %v2075
      %v2088 = vmul.f32 %v920, %v2063
      %v2089 = vmul.f32 %v921, %v2067
      %v2090 = vmul.f32 %v922, %v2071
      %v2091 = vmul.f32 %v2056, %v2075
      %v2095 = vsel %vm997, %v980, 0.0
      %v2096 = vsel %vm997, %v988, 0.0
      %v2097 = vsel %vm997, %v996, 0.0
      %s2098 = scalar_lea.vmem %s4, 98
      %v2099 = vld [vmem:[%s2098] ss:$8 sm:$0xf]
      %v2101 = vlaneseq
      %v2102 = vshrl.u32 %v2101, 7
      %v2103 = vsub.s32 0, %v2102
      %v2104 = vrot.slane %v2099, %v2103
      %v2105 = vlaneseq
      %v2106 = vshrl.u32 %v2105, 7
      %v2107 = vsub.s32 1, %v2106
      %v2108 = vrot.slane %v2099, %v2107
      %v2109 = vlaneseq
      %v2110 = vshrl.u32 %v2109, 7
      %v2111 = vsub.s32 2, %v2110
      %v2112 = vrot.slane %v2099, %v2111
      %v2113 = vlaneseq
      %v2114 = vshrl.u32 %v2113, 7
      %v2115 = vsub.s32 3, %v2114
      %v2116 = vrot.slane %v2099, %v2115
      %v2121 = vmul.f32 %v998, %v2104
      %v2122 = vmul.f32 %v999, %v2108
      %v2123 = vmul.f32 %v1000, %v2112
      %v2124 = vmul.f32 %v2095, %v2116
      %v2125 = vmul.f32 %v1001, %v2104
      %v2126 = vmul.f32 %v1002, %v2108
      %v2127 = vmul.f32 %v1003, %v2112
      %v2128 = vmul.f32 %v2096, %v2116
      %v2129 = vmul.f32 %v1004, %v2104
      %v2130 = vmul.f32 %v1005, %v2108
      %v2131 = vmul.f32 %v1006, %v2112
      %v2132 = vmul.f32 %v2097, %v2116
      %vm2145 = vcmask 1041408
      %v2146 = vrot.slane %v457, 6
      %v2147 = vrot.slane %v458, 6
      %v2148 = vrot.slane %v459, 6
      %v2149 = vrot.slane %v460, 6
      %v2150 = vrot.slane %v461, 6
      %v2151 = vsel %vm2145, %v2146, %v2150
      %v2152 = vrot.slane %v462, 6
      %v2153 = vsel %vm2145, %v2147, %v2152
      %v2154 = vrot.slane %v463, 6
      %v2155 = vsel %vm2145, %v2148, %v2154
      %v2156 = vrot.slane %v464, 6
      %v2157 = vsel %vm2145, %v2149, %v2156
      %v2158 = vrot.slane %v465, 6
      %v2159 = vsel %vm2145, %v2150, %v2158
      %v2160 = vrot.slane %v466, 6
      %v2161 = vsel %vm2145, %v2152, %v2160
      %v2162 = vrot.slane %v467, 6
      %v2163 = vsel %vm2145, %v2154, %v2162
      %v2164 = vrot.slane %v468, 6
      %v2165 = vsel %vm2145, %v2156, %v2164
      %vm2190 = vcmask 1043456
      %v2191 = vrot.slane %v541, 4
      %v2192 = vrot.slane %v542, 4
      %v2193 = vrot.slane %v543, 4
      %v2194 = vrot.slane %v544, 4
      %v2195 = vrot.slane %v545, 4
      %v2196 = vsel %vm2190, %v2191, %v2195
      %v2197 = vrot.slane %v546, 4
      %v2198 = vsel %vm2190, %v2192, %v2197
      %v2199 = vrot.slane %v547, 4
      %v2200 = vsel %vm2190, %v2193, %v2199
      %v2201 = vrot.slane %v548, 4
      %v2202 = vsel %vm2190, %v2194, %v2201
      %v2203 = vrot.slane %v549, 4
      %v2204 = vsel %vm2190, %v2195, %v2203
      %v2205 = vrot.slane %v550, 4
      %v2206 = vsel %vm2190, %v2197, %v2205
      %v2207 = vrot.slane %v551, 4
      %v2208 = vsel %vm2190, %v2199, %v2207
      %v2209 = vrot.slane %v552, 4
      %v2210 = vsel %vm2190, %v2201, %v2209
      %vm2235 = vcmask 1045504
      %v2236 = vrot.slane %v625, 2
      %v2237 = vrot.slane %v626, 2
      %v2238 = vrot.slane %v627, 2
      %v2239 = vrot.slane %v628, 2
      %v2240 = vrot.slane %v629, 2
      %v2241 = vsel %vm2235, %v2236, %v2240
      %v2242 = vrot.slane %v630, 2
      %v2243 = vsel %vm2235, %v2237, %v2242
      %v2244 = vrot.slane %v631, 2
      %v2245 = vsel %vm2235, %v2238, %v2244
      %v2246 = vrot.slane %v632, 2
      %v2247 = vsel %vm2235, %v2239, %v2246
      %v2248 = vrot.slane %v633, 2
      %v2249 = vsel %vm2235, %v2240, %v2248
      %v2250 = vrot.slane %v634, 2
      %v2251 = vsel %vm2235, %v2242, %v2250
      %v2252 = vrot.slane %v635, 2
      %v2253 = vsel %vm2235, %v2244, %v2252
      %v2254 = vrot.slane %v636, 2
      %v2255 = vsel %vm2235, %v2246, %v2254
      %v2280 = vrot.slane %v793, 6
      %v2281 = vrot.slane %v794, 6
      %v2282 = vrot.slane %v795, 6
      %v2283 = vrot.slane %v796, 6
      %v2284 = vrot.slane %v797, 6
      %v2285 = vsel %vm2145, %v2280, %v2284
      %v2286 = vrot.slane %v798, 6
      %v2287 = vsel %vm2145, %v2281, %v2286
      %v2288 = vrot.slane %v799, 6
      %v2289 = vsel %vm2145, %v2282, %v2288
      %v2290 = vrot.slane %v800, 6
      %v2291 = vsel %vm2145, %v2283, %v2290
      %v2292 = vrot.slane %v801, 6
      %v2293 = vsel %vm2145, %v2284, %v2292
      %v2294 = vrot.slane %v802, 6
      %v2295 = vsel %vm2145, %v2286, %v2294
      %v2296 = vrot.slane %v803, 6
      %v2297 = vsel %vm2145, %v2288, %v2296
      %v2298 = vrot.slane %v804, 6
      %v2299 = vsel %vm2145, %v2290, %v2298
      %v2324 = vrot.slane %v877, 4
      %v2325 = vrot.slane %v878, 4
      %v2326 = vrot.slane %v879, 4
      %v2327 = vrot.slane %v880, 4
      %v2328 = vrot.slane %v881, 4
      %v2329 = vsel %vm2190, %v2324, %v2328
      %v2330 = vrot.slane %v882, 4
      %v2331 = vsel %vm2190, %v2325, %v2330
      %v2332 = vrot.slane %v883, 4
      %v2333 = vsel %vm2190, %v2326, %v2332
      %v2334 = vrot.slane %v884, 4
      %v2335 = vsel %vm2190, %v2327, %v2334
      %v2336 = vrot.slane %v885, 4
      %v2337 = vsel %vm2190, %v2328, %v2336
      %v2338 = vrot.slane %v886, 4
      %v2339 = vsel %vm2190, %v2330, %v2338
      %v2340 = vrot.slane %v887, 4
      %v2341 = vsel %vm2190, %v2332, %v2340
      %v2342 = vrot.slane %v888, 4
      %v2343 = vsel %vm2190, %v2334, %v2342
      %v2368 = vrot.slane %v961, 2
      %v2369 = vrot.slane %v962, 2
      %v2370 = vrot.slane %v963, 2
      %v2371 = vrot.slane %v964, 2
      %v2372 = vrot.slane %v965, 2
      %v2373 = vsel %vm2235, %v2368, %v2372
      %v2374 = vrot.slane %v966, 2
      %v2375 = vsel %vm2235, %v2369, %v2374
      %v2376 = vrot.slane %v967, 2
      %v2377 = vsel %vm2235, %v2370, %v2376
      %v2378 = vrot.slane %v968, 2
      %v2379 = vsel %vm2235, %v2371, %v2378
      %v2380 = vrot.slane %v969, 2
      %v2381 = vsel %vm2235, %v2372, %v2380
      %v2382 = vrot.slane %v970, 2
      %v2383 = vsel %vm2235, %v2374, %v2382
      %v2384 = vrot.slane %v971, 2
      %v2385 = vsel %vm2235, %v2376, %v2384
      %v2386 = vrot.slane %v972, 2
      %v2387 = vsel %vm2235, %v2378, %v2386
      %v2412 = vrot.slane %v1129, 6
      %v2413 = vrot.slane %v1130, 6
      %v2414 = vrot.slane %v1131, 6
      %v2415 = vrot.slane %v1132, 6
      %v2416 = vrot.slane %v1133, 6
      %v2417 = vsel %vm2145, %v2412, %v2416
      %v2418 = vrot.slane %v1134, 6
      %v2419 = vsel %vm2145, %v2413, %v2418
      %v2420 = vrot.slane %v1135, 6
      %v2421 = vsel %vm2145, %v2414, %v2420
      %v2422 = vrot.slane %v1136, 6
      %v2423 = vsel %vm2145, %v2415, %v2422
      %v2424 = vrot.slane %v1137, 6
      %v2425 = vsel %vm2145, %v2416, %v2424
      %v2426 = vrot.slane %v1138, 6
      %v2427 = vsel %vm2145, %v2418, %v2426
      %v2428 = vrot.slane %v1139, 6
      %v2429 = vsel %vm2145, %v2420, %v2428
      %v2430 = vrot.slane %v1140, 6
      %v2431 = vsel %vm2145, %v2422, %v2430
      %v2456 = vrot.slane %v1213, 4
      %v2457 = vrot.slane %v1214, 4
      %v2458 = vrot.slane %v1215, 4
      %v2459 = vrot.slane %v1216, 4
      %v2460 = vrot.slane %v1217, 4
      %v2461 = vsel %vm2190, %v2456, %v2460
      %v2462 = vrot.slane %v1218, 4
      %v2463 = vsel %vm2190, %v2457, %v2462
      %v2464 = vrot.slane %v1219, 4
      %v2465 = vsel %vm2190, %v2458, %v2464
      %v2466 = vrot.slane %v1220, 4
      %v2467 = vsel %vm2190, %v2459, %v2466
      %v2468 = vrot.slane %v1221, 4
      %v2469 = vsel %vm2190, %v2460, %v2468
      %v2470 = vrot.slane %v1222, 4
      %v2471 = vsel %vm2190, %v2462, %v2470
      %v2472 = vrot.slane %v1223, 4
      %v2473 = vsel %vm2190, %v2464, %v2472
      %v2474 = vrot.slane %v1224, 4
      %v2475 = vsel %vm2190, %v2466, %v2474
      %v2500 = vrot.slane %v1297, 2
      %v2501 = vrot.slane %v1298, 2
      %v2502 = vrot.slane %v1299, 2
      %v2503 = vrot.slane %v1300, 2
      %v2504 = vrot.slane %v1301, 2
      %v2505 = vsel %vm2235, %v2500, %v2504
      %v2506 = vrot.slane %v1302, 2
      %v2507 = vsel %vm2235, %v2501, %v2506
      %v2508 = vrot.slane %v1303, 2
      %v2509 = vsel %vm2235, %v2502, %v2508
      %v2510 = vrot.slane %v1304, 2
      %v2511 = vsel %vm2235, %v2503, %v2510
      %v2512 = vrot.slane %v1305, 2
      %v2513 = vsel %vm2235, %v2504, %v2512
      %v2514 = vrot.slane %v1306, 2
      %v2515 = vsel %vm2235, %v2506, %v2514
      %v2516 = vrot.slane %v1307, 2
      %v2517 = vsel %vm2235, %v2508, %v2516
      %v2518 = vrot.slane %v1308, 2
      %v2519 = vsel %vm2235, %v2510, %v2518
      %v2544 = vrot.slane %v1416, 6
      %v2545 = vrot.slane %v1417, 6
      %v2546 = vrot.slane %v1418, 6
      %v2547 = vrot.slane %v1419, 6
      %v2548 = vrot.slane %v1420, 6
      %v2549 = vsel %vm2145, %v2544, %v2548
      %v2550 = vrot.slane %v1421, 6
      %v2551 = vsel %vm2145, %v2545, %v2550
      %v2552 = vrot.slane %v1422, 6
      %v2553 = vsel %vm2145, %v2546, %v2552
      %v2554 = vrot.slane %v1423, 6
      %v2555 = vsel %vm2145, %v2547, %v2554
      %v2556 = vrot.slane %v1424, 6
      %v2557 = vsel %vm2145, %v2548, %v2556
      %v2558 = vrot.slane %v1425, 6
      %v2559 = vsel %vm2145, %v2550, %v2558
      %v2560 = vrot.slane %v1426, 6
      %v2561 = vsel %vm2145, %v2552, %v2560
      %v2562 = vrot.slane %v1427, 6
      %v2563 = vsel %vm2145, %v2554, %v2562
      %v2588 = vrot.slane %v1500, 4
      %v2589 = vrot.slane %v1501, 4
      %v2590 = vrot.slane %v1502, 4
      %v2591 = vrot.slane %v1503, 4
      %v2592 = vrot.slane %v1504, 4
      %v2593 = vsel %vm2190, %v2588, %v2592
      %v2594 = vrot.slane %v1505, 4
      %v2595 = vsel %vm2190, %v2589, %v2594
      %v2596 = vrot.slane %v1506, 4
      %v2597 = vsel %vm2190, %v2590, %v2596
      %v2598 = vrot.slane %v1507, 4
      %v2599 = vsel %vm2190, %v2591, %v2598
      %v2600 = vrot.slane %v1508, 4
      %v2601 = vsel %vm2190, %v2592, %v2600
      %v2602 = vrot.slane %v1509, 4
      %v2603 = vsel %vm2190, %v2594, %v2602
      %v2604 = vrot.slane %v1510, 4
      %v2605 = vsel %vm2190, %v2596, %v2604
      %v2606 = vrot.slane %v1511, 4
      %v2607 = vsel %vm2190, %v2598, %v2606
      %v2632 = vrot.slane %v1584, 2
      %v2633 = vrot.slane %v1585, 2
      %v2634 = vrot.slane %v1586, 2
      %v2635 = vrot.slane %v1587, 2
      %v2636 = vrot.slane %v1588, 2
      %v2637 = vsel %vm2235, %v2632, %v2636
      %v2638 = vrot.slane %v1589, 2
      %v2639 = vsel %vm2235, %v2633, %v2638
      %v2640 = vrot.slane %v1590, 2
      %v2641 = vsel %vm2235, %v2634, %v2640
      %v2642 = vrot.slane %v1591, 2
      %v2643 = vsel %vm2235, %v2635, %v2642
      %v2644 = vrot.slane %v1592, 2
      %v2645 = vsel %vm2235, %v2636, %v2644
      %v2646 = vrot.slane %v1593, 2
      %v2647 = vsel %vm2235, %v2638, %v2646
      %v2648 = vrot.slane %v1594, 2
      %v2649 = vsel %vm2235, %v2640, %v2648
      %v2650 = vrot.slane %v1595, 2
      %v2651 = vsel %vm2235, %v2642, %v2650
      %v2664 = vsel %vm2145, %v381, %v2146
      %v2665 = vsel %vm2145, %v382, %v2147
      %v2666 = vsel %vm2145, %v383, %v2148
      %v2667 = vsel %vm2145, %v384, %v2149
      %v2668 = vsel %vm2190, %v2159, %v2191
      %v2669 = vsel %vm2190, %v2161, %v2192
      %v2670 = vsel %vm2190, %v2163, %v2193
      %v2671 = vsel %vm2190, %v2165, %v2194
      %v2672 = vsel %vm2235, %v2204, %v2236
      %v2673 = vsel %vm2235, %v2206, %v2237
      %v2674 = vsel %vm2235, %v2208, %v2238
      %v2675 = vsel %vm2235, %v2210, %v2239
      %v2676 = vsel %vm2145, %v717, %v2280
      %v2677 = vsel %vm2145, %v718, %v2281
      %v2678 = vsel %vm2145, %v719, %v2282
      %v2679 = vsel %vm2145, %v720, %v2283
      %v2680 = vsel %vm2190, %v2293, %v2324
      %v2681 = vsel %vm2190, %v2295, %v2325
      %v2682 = vsel %vm2190, %v2297, %v2326
      %v2683 = vsel %vm2190, %v2299, %v2327
      %v2684 = vsel %vm2235, %v2337, %v2368
      %v2685 = vsel %vm2235, %v2339, %v2369
      %v2686 = vsel %vm2235, %v2341, %v2370
      %v2687 = vsel %vm2235, %v2343, %v2371
      %v2688 = vsel %vm2145, %v1053, %v2412
      %v2689 = vsel %vm2145, %v1054, %v2413
      %v2690 = vsel %vm2145, %v1055, %v2414
      %v2691 = vsel %vm2145, %v1056, %v2415
      %v2692 = vsel %vm2190, %v2425, %v2456
      %v2693 = vsel %vm2190, %v2427, %v2457
      %v2694 = vsel %vm2190, %v2429, %v2458
      %v2695 = vsel %vm2190, %v2431, %v2459
      %v2696 = vsel %vm2235, %v2469, %v2500
      %v2697 = vsel %vm2235, %v2471, %v2501
      %v2698 = vsel %vm2235, %v2473, %v2502
      %v2699 = vsel %vm2235, %v2475, %v2503
      %v2700 = vsel %vm2145, %v1389, %v2544
      %v2701 = vsel %vm2145, %v1390, %v2545
      %v2702 = vsel %vm2145, %v1391, %v2546
      %v2703 = vsel %vm2145, %v1392, %v2547
      %v2704 = vsel %vm2190, %v2557, %v2588
      %v2705 = vsel %vm2190, %v2559, %v2589
      %v2706 = vsel %vm2190, %v2561, %v2590
      %v2707 = vsel %vm2190, %v2563, %v2591
      %v2708 = vsel %vm2235, %v2601, %v2632
      %v2709 = vsel %vm2235, %v2603, %v2633
      %v2710 = vsel %vm2235, %v2605, %v2634
      %v2711 = vsel %vm2235, %v2607, %v2635
      %v2724 = vrot.slane %v1752, 6
      %v2725 = vrot.slane %v1753, 6
      %v2726 = vrot.slane %v1754, 6
      %v2727 = vrot.slane %v1755, 6
      %v2728 = vrot.slane %v1756, 6
      %v2729 = vsel %vm2145, %v2724, %v2728
      %v2730 = vrot.slane %v1757, 6
      %v2731 = vsel %vm2145, %v2725, %v2730
      %v2732 = vrot.slane %v1758, 6
      %v2733 = vsel %vm2145, %v2726, %v2732
      %v2734 = vrot.slane %v1759, 6
      %v2735 = vsel %vm2145, %v2727, %v2734
      %v2736 = vrot.slane %v1760, 6
      %v2737 = vsel %vm2145, %v2728, %v2736
      %v2738 = vrot.slane %v1761, 6
      %v2739 = vsel %vm2145, %v2730, %v2738
      %v2740 = vrot.slane %v1762, 6
      %v2741 = vsel %vm2145, %v2732, %v2740
      %v2742 = vrot.slane %v1763, 6
      %v2743 = vsel %vm2145, %v2734, %v2742
      %v2768 = vrot.slane %v1793, 4
      %v2769 = vrot.slane %v1794, 4
      %v2770 = vrot.slane %v1795, 4
      %v2771 = vrot.slane %v1796, 4
      %v2772 = vrot.slane %v1797, 4
      %v2773 = vsel %vm2190, %v2768, %v2772
      %v2774 = vrot.slane %v1798, 4
      %v2775 = vsel %vm2190, %v2769, %v2774
      %v2776 = vrot.slane %v1799, 4
      %v2777 = vsel %vm2190, %v2770, %v2776
      %v2778 = vrot.slane %v1800, 4
      %v2779 = vsel %vm2190, %v2771, %v2778
      %v2780 = vrot.slane %v1801, 4
      %v2781 = vsel %vm2190, %v2772, %v2780
      %v2782 = vrot.slane %v1802, 4
      %v2783 = vsel %vm2190, %v2774, %v2782
      %v2784 = vrot.slane %v1803, 4
      %v2785 = vsel %vm2190, %v2776, %v2784
      %v2786 = vrot.slane %v1804, 4
      %v2787 = vsel %vm2190, %v2778, %v2786
      %v2812 = vrot.slane %v1834, 2
      %v2813 = vrot.slane %v1835, 2
      %v2814 = vrot.slane %v1836, 2
      %v2815 = vrot.slane %v1837, 2
      %v2816 = vrot.slane %v1838, 2
      %v2817 = vsel %vm2235, %v2812, %v2816
      %v2818 = vrot.slane %v1839, 2
      %v2819 = vsel %vm2235, %v2813, %v2818
      %v2820 = vrot.slane %v1840, 2
      %v2821 = vsel %vm2235, %v2814, %v2820
      %v2822 = vrot.slane %v1841, 2
      %v2823 = vsel %vm2235, %v2815, %v2822
      %v2824 = vrot.slane %v1842, 2
      %v2825 = vsel %vm2235, %v2816, %v2824
      %v2826 = vrot.slane %v1843, 2
      %v2827 = vsel %vm2235, %v2818, %v2826
      %v2828 = vrot.slane %v1844, 2
      %v2829 = vsel %vm2235, %v2820, %v2828
      %v2830 = vrot.slane %v1845, 2
      %v2831 = vsel %vm2235, %v2822, %v2830
      %v2856 = vrot.slane %v1916, 6
      %v2857 = vrot.slane %v1917, 6
      %v2858 = vrot.slane %v1918, 6
      %v2859 = vrot.slane %v1919, 6
      %v2860 = vrot.slane %v1920, 6
      %v2861 = vsel %vm2145, %v2856, %v2860
      %v2862 = vrot.slane %v1921, 6
      %v2863 = vsel %vm2145, %v2857, %v2862
      %v2864 = vrot.slane %v1922, 6
      %v2865 = vsel %vm2145, %v2858, %v2864
      %v2866 = vrot.slane %v1923, 6
      %v2867 = vsel %vm2145, %v2859, %v2866
      %v2868 = vrot.slane %v1924, 6
      %v2869 = vsel %vm2145, %v2860, %v2868
      %v2870 = vrot.slane %v1925, 6
      %v2871 = vsel %vm2145, %v2862, %v2870
      %v2872 = vrot.slane %v1926, 6
      %v2873 = vsel %vm2145, %v2864, %v2872
      %v2874 = vrot.slane %v1927, 6
      %v2875 = vsel %vm2145, %v2866, %v2874
      %v2900 = vrot.slane %v1957, 4
      %v2901 = vrot.slane %v1958, 4
      %v2902 = vrot.slane %v1959, 4
      %v2903 = vrot.slane %v1960, 4
      %v2904 = vrot.slane %v1961, 4
      %v2905 = vsel %vm2190, %v2900, %v2904
      %v2906 = vrot.slane %v1962, 4
      %v2907 = vsel %vm2190, %v2901, %v2906
      %v2908 = vrot.slane %v1963, 4
      %v2909 = vsel %vm2190, %v2902, %v2908
      %v2910 = vrot.slane %v1964, 4
      %v2911 = vsel %vm2190, %v2903, %v2910
      %v2912 = vrot.slane %v1965, 4
      %v2913 = vsel %vm2190, %v2904, %v2912
      %v2914 = vrot.slane %v1966, 4
      %v2915 = vsel %vm2190, %v2906, %v2914
      %v2916 = vrot.slane %v1967, 4
      %v2917 = vsel %vm2190, %v2908, %v2916
      %v2918 = vrot.slane %v1968, 4
      %v2919 = vsel %vm2190, %v2910, %v2918
      %v2944 = vrot.slane %v1998, 2
      %v2945 = vrot.slane %v1999, 2
      %v2946 = vrot.slane %v2000, 2
      %v2947 = vrot.slane %v2001, 2
      %v2948 = vrot.slane %v2002, 2
      %v2949 = vsel %vm2235, %v2944, %v2948
      %v2950 = vrot.slane %v2003, 2
      %v2951 = vsel %vm2235, %v2945, %v2950
      %v2952 = vrot.slane %v2004, 2
      %v2953 = vsel %vm2235, %v2946, %v2952
      %v2954 = vrot.slane %v2005, 2
      %v2955 = vsel %vm2235, %v2947, %v2954
      %v2956 = vrot.slane %v2006, 2
      %v2957 = vsel %vm2235, %v2948, %v2956
      %v2958 = vrot.slane %v2007, 2
      %v2959 = vsel %vm2235, %v2950, %v2958
      %v2960 = vrot.slane %v2008, 2
      %v2961 = vsel %vm2235, %v2952, %v2960
      %v2962 = vrot.slane %v2009, 2
      %v2963 = vsel %vm2235, %v2954, %v2962
      %v2988 = vrot.slane %v2080, 6
      %v2989 = vrot.slane %v2081, 6
      %v2990 = vrot.slane %v2082, 6
      %v2991 = vrot.slane %v2083, 6
      %v2992 = vrot.slane %v2084, 6
      %v2993 = vsel %vm2145, %v2988, %v2992
      %v2994 = vrot.slane %v2085, 6
      %v2995 = vsel %vm2145, %v2989, %v2994
      %v2996 = vrot.slane %v2086, 6
      %v2997 = vsel %vm2145, %v2990, %v2996
      %v2998 = vrot.slane %v2087, 6
      %v2999 = vsel %vm2145, %v2991, %v2998
      %v3000 = vrot.slane %v2088, 6
      %v3001 = vsel %vm2145, %v2992, %v3000
      %v3002 = vrot.slane %v2089, 6
      %v3003 = vsel %vm2145, %v2994, %v3002
      %v3004 = vrot.slane %v2090, 6
      %v3005 = vsel %vm2145, %v2996, %v3004
      %v3006 = vrot.slane %v2091, 6
      %v3007 = vsel %vm2145, %v2998, %v3006
      %v3032 = vrot.slane %v2121, 4
      %v3033 = vrot.slane %v2122, 4
      %v3034 = vrot.slane %v2123, 4
      %v3035 = vrot.slane %v2124, 4
      %v3036 = vrot.slane %v2125, 4
      %v3037 = vsel %vm2190, %v3032, %v3036
      %v3038 = vrot.slane %v2126, 4
      %v3039 = vsel %vm2190, %v3033, %v3038
      %v3040 = vrot.slane %v2127, 4
      %v3041 = vsel %vm2190, %v3034, %v3040
      %v3042 = vrot.slane %v2128, 4
      %v3043 = vsel %vm2190, %v3035, %v3042
      %v3044 = vrot.slane %v2129, 4
      %v3045 = vsel %vm2190, %v3036, %v3044
      %v3046 = vrot.slane %v2130, 4
      %v3047 = vsel %vm2190, %v3038, %v3046
      %v3048 = vrot.slane %v2131, 4
      %v3049 = vsel %vm2190, %v3040, %v3048
      %v3050 = vrot.slane %v2132, 4
      %v3051 = vsel %vm2190, %v3042, %v3050
      %v3060 = vsel %vm2145, %v1676, %v2724
      %v3061 = vsel %vm2145, %v1677, %v2725
      %v3062 = vsel %vm2145, %v1678, %v2726
      %v3063 = vsel %vm2145, %v1679, %v2727
      %v3064 = vsel %vm2190, %v2737, %v2768
      %v3065 = vsel %vm2190, %v2739, %v2769
      %v3066 = vsel %vm2190, %v2741, %v2770
      %v3067 = vsel %vm2190, %v2743, %v2771
      %v3068 = vsel %vm2235, %v2781, %v2812
      %v3069 = vsel %vm2235, %v2783, %v2813
      %v3070 = vsel %vm2235, %v2785, %v2814
      %v3071 = vsel %vm2235, %v2787, %v2815
      %v3072 = vsel %vm2145, %v1883, %v2856
      %v3073 = vsel %vm2145, %v1884, %v2857
      %v3074 = vsel %vm2145, %v1885, %v2858
      %v3075 = vsel %vm2145, %v1886, %v2859
      %v3076 = vsel %vm2190, %v2869, %v2900
      %v3077 = vsel %vm2190, %v2871, %v2901
      %v3078 = vsel %vm2190, %v2873, %v2902
      %v3079 = vsel %vm2190, %v2875, %v2903
      %v3080 = vsel %vm2235, %v2913, %v2944
      %v3081 = vsel %vm2235, %v2915, %v2945
      %v3082 = vsel %vm2235, %v2917, %v2946
      %v3083 = vsel %vm2235, %v2919, %v2947
      %v3084 = vsel %vm2145, %v2047, %v2988
      %v3085 = vsel %vm2145, %v2048, %v2989
      %v3086 = vsel %vm2145, %v2049, %v2990
      %v3087 = vsel %vm2145, %v2050, %v2991
      %v3088 = vsel %vm2190, %v3001, %v3032
      %v3089 = vsel %vm2190, %v3003, %v3033
      %v3090 = vsel %vm2190, %v3005, %v3034
      %v3091 = vsel %vm2190, %v3007, %v3035
      %v3092 = vld [vmem:[%s2] sm:$0xff]
      %v3093 = vld [vmem:[%s2 + $0x8] sm:$0xff]
      %v3094 = vld [vmem:[%s2 + $0x10] sm:$0xff]
      %v3095 = vld [vmem:[%s2 + $0x18] sm:$0xff]
      %v3096 = vld [vmem:[%s2 + $0x20] sm:$0x1]
      %v3097 = vld [vmem:[%s2 + $0x28] sm:$0x1]
      %v3098 = vld [vmem:[%s2 + $0x30] sm:$0x1]
      %v3099 = vld [vmem:[%s2 + $0x38] sm:$0x1]
      %v3100 = vld [vmem:[%s3] sm:$0xff]
      %v3101 = vld [vmem:[%s3 + $0x8] sm:$0x1]
      %3103 = vset.pattern.permute.xlu0 0
      %3104 = vperm.xlu0 %3103, %v3100
      %v3105 = vpop.permute.xlu0 %3104
      %3108 = vset.pattern.permute.xlu0 0
      %3109 = vperm.xlu0 %3108, %v3101
      %v3110 = vpop.permute.xlu0 %3109
      %vm3112 = vcmask 834560
      %v3114 = vsel %vm3112, %v3095, 0
      %v3117 = vsel %vm3112, %v3099, 0
      %v3119 = vsel %vm2235, %v3045, 0
      %v3121 = vsel %vm2235, %v3047, 0
      %v3123 = vsel %vm2235, %v3049, 0
      %v3125 = vsel %vm2235, %v3051, 0
      %3127 = vmatprep.subr.mxu0 %v374
      %3128 = vmatpush1.msra.mxu0 %v373
      %3129 = vmatprep.subr.mxu0 %v378
      %3130 = vmatpush1.msra.mxu0 %v377
      %3131 = vmatprep.subr.mxu0 %v2665
      %3132 = vmatpush1.msra.mxu0 %v2664
      %3133 = vmatprep.subr.mxu0 %v2153
      %3134 = vmatpush1.msra.mxu0 %v2151
      %3135 = vmatprep.subr.mxu0 %v2669
      %3136 = vmatpush1.msra.mxu0 %v2668
      %3137 = vmatprep.subr.mxu0 %v2198
      %3138 = vmatpush1.msra.mxu0 %v2196
      %3139 = vmatprep.subr.mxu0 %v2673
      %3140 = vmatpush1.msra.mxu0 %v2672
      %3141 = vmatprep.subr.mxu0 %v2243
      %3142 = vmatpush1.msra.mxu0 %v2241
      %3143 = vmatprep.subr.mxu0 %v2251
      %3144 = vmatpush1.msra.mxu0 %v2249
      %3145 = vmatprep.subr.mxu0 %v710
      %3146 = vmatpush1.msra.mxu0 %v709
      %3147 = vmatprep.subr.mxu0 %v714
      %3148 = vmatpush1.msra.mxu0 %v713
      %3149 = vmatprep.subr.mxu0 %v2677
      %3150 = vmatpush1.msra.mxu0 %v2676
      %3151 = vmatprep.subr.mxu0 %v2287
      %3152 = vmatpush1.msra.mxu0 %v2285
      %3153 = vmatprep.subr.mxu0 %v2681
      %3154 = vmatpush1.msra.mxu0 %v2680
      %3155 = vmatprep.subr.mxu0 %v2331
      %3156 = vmatpush1.msra.mxu0 %v2329
      %3157 = vmatprep.subr.mxu0 %v2685
      %3158 = vmatpush1.msra.mxu0 %v2684
      %3159 = vmatprep.subr.mxu0 %v2375
      %3160 = vmatpush1.msra.mxu0 %v2373
      %3161 = vmatprep.subr.mxu0 %v2383
      %3162 = vmatpush1.msra.mxu0 %v2381
      %3163 = vmatprep.subr.mxu0 %v1046
      %3164 = vmatpush1.msra.mxu0 %v1045
      %3165 = vmatprep.subr.mxu0 %v1050
      %3166 = vmatpush1.msra.mxu0 %v1049
      %3167 = vmatprep.subr.mxu0 %v2689
      %3168 = vmatpush1.msra.mxu0 %v2688
      %3169 = vmatprep.subr.mxu0 %v2419
      %3170 = vmatpush1.msra.mxu0 %v2417
      %3171 = vmatprep.subr.mxu0 %v2693
      %3172 = vmatpush1.msra.mxu0 %v2692
      %3173 = vmatprep.subr.mxu0 %v2463
      %3174 = vmatpush1.msra.mxu0 %v2461
      %3175 = vmatprep.subr.mxu0 %v2697
      %3176 = vmatpush1.msra.mxu0 %v2696
      %3177 = vmatprep.subr.mxu0 %v2507
      %3178 = vmatpush1.msra.mxu0 %v2505
      %3179 = vmatprep.subr.mxu0 %v2515
      %3180 = vmatpush1.msra.mxu0 %v2513
      %3181 = vmatprep.subr.mxu0 %v1382
      %3182 = vmatpush1.msra.mxu0 %v1381
      %3183 = vmatprep.subr.mxu0 %v1386
      %3184 = vmatpush1.msra.mxu0 %v1385
      %3185 = vmatprep.subr.mxu0 %v2701
      %3186 = vmatpush1.msra.mxu0 %v2700
      %3187 = vmatprep.subr.mxu0 %v2551
      %3188 = vmatpush1.msra.mxu0 %v2549
      %3189 = vmatprep.subr.mxu0 %v2705
      %3190 = vmatpush1.msra.mxu0 %v2704
      %3191 = vmatprep.mubr.f32.mxu0 %v3093
      %3192 = vmatmul.mubr.f32.gmra.mrb[0].mxu0 %v3092
      %v3193 = vpop.f32.mrb[0].mxu0
      %v3194 = vadd.f32 %v3105, %v3193
      %v3195 = vpop.f32.mrb[0].mxu0
      %v3196 = vadd.f32 %v3105, %v3195
      %3197 = vmatprep.mubr.f32.mxu0 %v3097
      %3198 = vmatmul.mubr.f32.gmra.mrb[0].mxu0 %v3096
      %v3199 = vpop.f32.mrb[0].mxu0
      %v3200 = vadd.f32 %v3110, %v3199
      %v3201 = vpop.f32.mrb[0].mxu0
      %v3202 = vadd.f32 %v3110, %v3201
      %3203 = vdwg.mxu0
      %3204 = vmatprep.subr.mxu0 %v2595
      %3205 = vmatpush1.msra.mxu0 %v2593
      %3206 = vmatprep.subr.mxu0 %v2709
      %3207 = vmatpush1.msra.mxu0 %v2708
      %3208 = vmatprep.subr.mxu0 %v2639
      %3209 = vmatpush1.msra.mxu0 %v2637
      %3210 = vmatprep.subr.mxu0 %v2647
      %3211 = vmatpush1.msra.mxu0 %v2645
      %3212 = vmatprep.subr.mxu0 %v1669
      %3213 = vmatpush1.msra.mxu0 %v1668
      %3214 = vmatprep.subr.mxu0 %v1673
      %3215 = vmatpush1.msra.mxu0 %v1672
      %3216 = vmatprep.subr.mxu0 %v3061
      %3217 = vmatpush1.msra.mxu0 %v3060
      %3218 = vmatprep.subr.mxu0 %v2731
      %3219 = vmatpush1.msra.mxu0 %v2729
      %3220 = vmatprep.subr.mxu0 %v3065
      %3221 = vmatpush1.msra.mxu0 %v3064
      %3222 = vmatprep.subr.mxu0 %v2775
      %3223 = vmatpush1.msra.mxu0 %v2773
      %3224 = vmatprep.subr.mxu0 %v3069
      %3225 = vmatpush1.msra.mxu0 %v3068
      %3226 = vmatprep.subr.mxu0 %v2819
      %3227 = vmatpush1.msra.mxu0 %v2817
      %3228 = vmatprep.subr.mxu0 %v2827
      %3229 = vmatpush1.msra.mxu0 %v2825
      %3230 = vmatprep.subr.mxu0 %v1876
      %3231 = vmatpush1.msra.mxu0 %v1875
      %3232 = vmatprep.subr.mxu0 %v1880
      %3233 = vmatpush1.msra.mxu0 %v1879
      %3234 = vmatprep.subr.mxu0 %v3073
      %3235 = vmatpush1.msra.mxu0 %v3072
      %3236 = vmatprep.subr.mxu0 %v2863
      %3237 = vmatpush1.msra.mxu0 %v2861
      %3238 = vmatprep.subr.mxu0 %v3077
      %3239 = vmatpush1.msra.mxu0 %v3076
      %3240 = vmatprep.subr.mxu0 %v2907
      %3241 = vmatpush1.msra.mxu0 %v2905
      %3242 = vmatprep.subr.mxu0 %v3081
      %3243 = vmatpush1.msra.mxu0 %v3080
      %3244 = vmatprep.subr.mxu0 %v2951
      %3245 = vmatpush1.msra.mxu0 %v2949
      %3246 = vmatprep.subr.mxu0 %v2959
      %3247 = vmatpush1.msra.mxu0 %v2957
      %3248 = vmatprep.subr.mxu0 %v2040
      %3249 = vmatpush1.msra.mxu0 %v2039
      %3250 = vmatprep.subr.mxu0 %v2044
      %3251 = vmatpush1.msra.mxu0 %v2043
      %3252 = vmatprep.subr.mxu0 %v3085
      %3253 = vmatpush1.msra.mxu0 %v3084
      %3254 = vmatprep.subr.mxu0 %v2995
      %3255 = vmatpush1.msra.mxu0 %v2993
      %3256 = vmatprep.subr.mxu0 %v3089
      %3257 = vmatpush1.msra.mxu0 %v3088
      %3258 = vmatprep.subr.mxu0 %v3039
      %3259 = vmatpush1.msra.mxu0 %v3037
      %3260 = vmatprep.subr.mxu0 %v3121
      %3261 = vmatpush1.msra.mxu0 %v3119
      %3262 = vmatprep.subr.mxu0 0.0
      %3263 = vmatpush1.msra.mxu0 0.0
      %3264 = vmatprep.subr.mxu0 0.0
      %3265 = vmatpush1.msra.mxu0 0.0
      %3266 = vmatprep.subr.mxu0 0.0
      %3267 = vmatpush1.msra.mxu0 0.0
      %3268 = vmatprep.mubr.f32.mxu0 %v3114
      %3269 = vmatmul.mubr.f32.gmra.mrb[0].mxu0 %v3094
      %v3270 = vpop.f32.mrb[0].mxu0
      %v3271 = vadd.f32 %v3194, %v3270
      %v3272 = vpop.f32.mrb[0].mxu0
      %v3273 = vadd.f32 %v3196, %v3272
      %3274 = vmatprep.mubr.f32.mxu0 %v3117
      %3275 = vmatmul.mubr.f32.gmra.mrb[0].mxu0 %v3098
      %v3276 = vpop.f32.mrb[0].mxu0
      %v3277 = vadd.f32 %v3200, %v3276
      %v3278 = vpop.f32.mrb[0].mxu0
      %v3279 = vadd.f32 %v3202, %v3278
      %3280 = vdwg.mxu0
      %3281 = vmatprep.subr.mxu0 %v376
      %3282 = vmatpush1.msra.mxu0 %v375
      %3283 = vmatprep.subr.mxu0 %v380
      %3284 = vmatpush1.msra.mxu0 %v379
      %3285 = vmatprep.subr.mxu0 %v2667
      %3286 = vmatpush1.msra.mxu0 %v2666
      %3287 = vmatprep.subr.mxu0 %v2157
      %3288 = vmatpush1.msra.mxu0 %v2155
      %3289 = vmatprep.subr.mxu0 %v2671
      %3290 = vmatpush1.msra.mxu0 %v2670
      %3291 = vmatprep.subr.mxu0 %v2202
      %3292 = vmatpush1.msra.mxu0 %v2200
      %3293 = vmatprep.subr.mxu0 %v2675
      %3294 = vmatpush1.msra.mxu0 %v2674
      %3295 = vmatprep.subr.mxu0 %v2247
      %3296 = vmatpush1.msra.mxu0 %v2245
      %3297 = vmatprep.subr.mxu0 %v2255
      %3298 = vmatpush1.msra.mxu0 %v2253
      %3299 = vmatprep.subr.mxu0 %v712
      %3300 = vmatpush1.msra.mxu0 %v711
      %3301 = vmatprep.subr.mxu0 %v716
      %3302 = vmatpush1.msra.mxu0 %v715
      %3303 = vmatprep.subr.mxu0 %v2679
      %3304 = vmatpush1.msra.mxu0 %v2678
      %3305 = vmatprep.subr.mxu0 %v2291
      %3306 = vmatpush1.msra.mxu0 %v2289
      %3307 = vmatprep.subr.mxu0 %v2683
      %3308 = vmatpush1.msra.mxu0 %v2682
      %3309 = vmatprep.subr.mxu0 %v2335
      %3310 = vmatpush1.msra.mxu0 %v2333
      %3311 = vmatprep.subr.mxu0 %v2687
      %3312 = vmatpush1.msra.mxu0 %v2686
      %3313 = vmatprep.subr.mxu0 %v2379
      %3314 = vmatpush1.msra.mxu0 %v2377
      %3315 = vmatprep.subr.mxu0 %v2387
      %3316 = vmatpush1.msra.mxu0 %v2385
      %3317 = vmatprep.subr.mxu0 %v1048
      %3318 = vmatpush1.msra.mxu0 %v1047
      %3319 = vmatprep.subr.mxu0 %v1052
      %3320 = vmatpush1.msra.mxu0 %v1051
      %3321 = vmatprep.subr.mxu0 %v2691
      %3322 = vmatpush1.msra.mxu0 %v2690
      %3323 = vmatprep.subr.mxu0 %v2423
      %3324 = vmatpush1.msra.mxu0 %v2421
      %3325 = vmatprep.subr.mxu0 %v2695
      %3326 = vmatpush1.msra.mxu0 %v2694
      %3327 = vmatprep.subr.mxu0 %v2467
      %3328 = vmatpush1.msra.mxu0 %v2465
      %3329 = vmatprep.subr.mxu0 %v2699
      %3330 = vmatpush1.msra.mxu0 %v2698
      %3331 = vmatprep.subr.mxu0 %v2511
      %3332 = vmatpush1.msra.mxu0 %v2509
      %3333 = vmatprep.subr.mxu0 %v2519
      %3334 = vmatpush1.msra.mxu0 %v2517
      %3335 = vmatprep.subr.mxu0 %v1384
      %3336 = vmatpush1.msra.mxu0 %v1383
      %3337 = vmatprep.subr.mxu0 %v1388
      %3338 = vmatpush1.msra.mxu0 %v1387
      %3339 = vmatprep.subr.mxu0 %v2703
      %3340 = vmatpush1.msra.mxu0 %v2702
      %3341 = vmatprep.subr.mxu0 %v2555
      %3342 = vmatpush1.msra.mxu0 %v2553
      %3343 = vmatprep.subr.mxu0 %v2707
      %3344 = vmatpush1.msra.mxu0 %v2706
      %3345 = vmatprep.mubr.f32.mxu0 %v3093
      %3346 = vmatmul.mubr.f32.gmra.mrb[0].mxu0 %v3092
      %v3347 = vpop.f32.mrb[0].mxu0
      %v3348 = vadd.f32 %v3105, %v3347
      %v3349 = vpop.f32.mrb[0].mxu0
      %v3350 = vadd.f32 %v3105, %v3349
      %3351 = vmatprep.mubr.f32.mxu0 %v3097
      %3352 = vmatmul.mubr.f32.gmra.mrb[0].mxu0 %v3096
      %v3353 = vpop.f32.mrb[0].mxu0
      %v3354 = vadd.f32 %v3110, %v3353
      %v3355 = vpop.f32.mrb[0].mxu0
      %v3356 = vadd.f32 %v3110, %v3355
      %3357 = vdwg.mxu0
      %3358 = vmatprep.subr.mxu0 %v2599
      %3359 = vmatpush1.msra.mxu0 %v2597
      %3360 = vmatprep.subr.mxu0 %v2711
      %3361 = vmatpush1.msra.mxu0 %v2710
      %3362 = vmatprep.subr.mxu0 %v2643
      %3363 = vmatpush1.msra.mxu0 %v2641
      %3364 = vmatprep.subr.mxu0 %v2651
      %3365 = vmatpush1.msra.mxu0 %v2649
      %3366 = vmatprep.subr.mxu0 %v1671
      %3367 = vmatpush1.msra.mxu0 %v1670
      %3368 = vmatprep.subr.mxu0 %v1675
      %3369 = vmatpush1.msra.mxu0 %v1674
      %3370 = vmatprep.subr.mxu0 %v3063
      %3371 = vmatpush1.msra.mxu0 %v3062
      %3372 = vmatprep.subr.mxu0 %v2735
      %3373 = vmatpush1.msra.mxu0 %v2733
      %3374 = vmatprep.subr.mxu0 %v3067
      %3375 = vmatpush1.msra.mxu0 %v3066
      %3376 = vmatprep.subr.mxu0 %v2779
      %3377 = vmatpush1.msra.mxu0 %v2777
      %3378 = vmatprep.subr.mxu0 %v3071
      %3379 = vmatpush1.msra.mxu0 %v3070
      %3380 = vmatprep.subr.mxu0 %v2823
      %3381 = vmatpush1.msra.mxu0 %v2821
      %3382 = vmatprep.subr.mxu0 %v2831
      %3383 = vmatpush1.msra.mxu0 %v2829
      %3384 = vmatprep.subr.mxu0 %v1878
      %3385 = vmatpush1.msra.mxu0 %v1877
      %3386 = vmatprep.subr.mxu0 %v1882
      %3387 = vmatpush1.msra.mxu0 %v1881
      %3388 = vmatprep.subr.mxu0 %v3075
      %3389 = vmatpush1.msra.mxu0 %v3074
      %3390 = vmatprep.subr.mxu0 %v2867
      %3391 = vmatpush1.msra.mxu0 %v2865
      %3392 = vmatprep.subr.mxu0 %v3079
      %3393 = vmatpush1.msra.mxu0 %v3078
      %3394 = vmatprep.subr.mxu0 %v2911
      %3395 = vmatpush1.msra.mxu0 %v2909
      %3396 = vmatprep.subr.mxu0 %v3083
      %3397 = vmatpush1.msra.mxu0 %v3082
      %3398 = vmatprep.subr.mxu0 %v2955
      %3399 = vmatpush1.msra.mxu0 %v2953
      %3400 = vmatprep.subr.mxu0 %v2963
      %3401 = vmatpush1.msra.mxu0 %v2961
      %3402 = vmatprep.subr.mxu0 %v2042
      %3403 = vmatpush1.msra.mxu0 %v2041
      %3404 = vmatprep.subr.mxu0 %v2046
      %3405 = vmatpush1.msra.mxu0 %v2045
      %3406 = vmatprep.subr.mxu0 %v3087
      %3407 = vmatpush1.msra.mxu0 %v3086
      %3408 = vmatprep.subr.mxu0 %v2999
      %3409 = vmatpush1.msra.mxu0 %v2997
      %3410 = vmatprep.subr.mxu0 %v3091
      %3411 = vmatpush1.msra.mxu0 %v3090
      %3412 = vmatprep.subr.mxu0 %v3043
      %3413 = vmatpush1.msra.mxu0 %v3041
      %3414 = vmatprep.subr.mxu0 %v3125
      %3415 = vmatpush1.msra.mxu0 %v3123
      %3416 = vmatprep.subr.mxu0 0.0
      %3417 = vmatpush1.msra.mxu0 0.0
      %3418 = vmatprep.subr.mxu0 0.0
      %3419 = vmatpush1.msra.mxu0 0.0
      %3420 = vmatprep.subr.mxu0 0.0
      %3421 = vmatpush1.msra.mxu0 0.0
      %3422 = vmatprep.mubr.f32.mxu0 %v3114
      %3423 = vmatmul.mubr.f32.gmra.mrb[0].mxu0 %v3094
      %v3424 = vpop.f32.mrb[0].mxu0
      %v3425 = vadd.f32 %v3348, %v3424
      %v3426 = vpop.f32.mrb[0].mxu0
      %v3427 = vadd.f32 %v3350, %v3426
      %3428 = vmatprep.mubr.f32.mxu0 %v3117
      %3429 = vmatmul.mubr.f32.gmra.mrb[0].mxu0 %v3098
      %v3430 = vpop.f32.mrb[0].mxu0
      %v3431 = vadd.f32 %v3354, %v3430
      %v3432 = vpop.f32.mrb[0].mxu0
      %v3433 = vadd.f32 %v3356, %v3432
      %3434 = vdwg.mxu0
      %v3435 = vmax.f32 %v3271, 0.0
      %v3436 = vmax.f32 %v3273, 0.0
      %v3437 = vmax.f32 %v3425, 0.0
      %v3438 = vmax.f32 %v3427, 0.0
      %v3439 = vmax.f32 %v3277, 0.0
      %v3440 = vmax.f32 %v3279, 0.0
      %v3441 = vmax.f32 %v3431, 0.0
      %v3442 = vmax.f32 %v3433, 0.0
      %3443 = vst [vmem:[%s244] sm:$0xff] %v3435
      %3444 = vst [vmem:[%s244 + $0x8] sm:$0xff] %v3436
      %3445 = vst [vmem:[%s244 + $0x10] sm:$0xff] %v3437
      %3446 = vst [vmem:[%s244 + $0x18] sm:$0xff] %v3438
      %3447 = vst [vmem:[%s244 + $0x20] sm:$0x1] %v3439
      %3448 = vst [vmem:[%s244 + $0x28] sm:$0x1] %v3440
      %3449 = vst [vmem:[%s244 + $0x30] sm:$0x1] %v3441
      %3450 = vst [vmem:[%s244 + $0x38] sm:$0x1] %v3442
      %p3451 = scmp.lt.s32.totalorder %s16, 7
      %s3452 = scalar_select %p3451, %s16, 7
      %s3453 = smul.addr %s3452, 8
      %s3454 = smul.addr %s3453, 8
      %s3455 = scalar_lea.vmem %s5, %s3454
      // Predicated region
      $region41: #{scene_graph_refiner_forward.3} parent=39 // pred_check
        %p3456 = pneg %p149
      $region42: #{scene_graph_refiner_forward.3} parent=39 // pred_check_branch
        %3458 = sbr.rel (%p3456) target = $region44
      $region43: #{scene_graph_refiner_forward.3} parent=39 // pred_region
        _
      $region44: #{scene_graph_refiner_forward.3} parent=39 // pred_fallthru
        _
    $region40: #{scene_graph_refiner_forward.3} parent=5 // pred_fallthru
      _
    %p3459 = scmp.le.s32.totalorder 2, %s11
    // Predicated region
    $region45: #{scene_graph_refiner_forward.3} parent=5 // pred_check
      %p3460 = pneg %p3459
    $region46: #{scene_graph_refiner_forward.3} parent=5 // pred_check_branch
      %3462 = sbr.rel (%p3460) target = $region48
    $region47: #{scene_graph_refiner_forward.3} parent=5 // pred_region
      %s3463 = ssub.s32 %s11, 2
      // Predicated region
      $region49: #{scene_graph_refiner_forward.3} parent=47 // pred_check
        %p3464 = pneg %p155
      $region50: #{scene_graph_refiner_forward.3} parent=47 // pred_check_branch
        %3466 = sbr.rel (%p3464) target = $region52
      $region51: #{scene_graph_refiner_forward.3} parent=47 // pred_region
        %p3467 = scmp.lt.s32.totalorder %s17, 7
        %s3468 = scalar_select %p3467, %s17, 7
        %s3469 = smul.addr %s3468, 8
        %s3470 = smul.addr %s3469, 8
        %s3471 = scalar_lea.vmem %s5, %s3470
      $region52: #{scene_graph_refiner_forward.3} parent=47 // pred_fallthru
        _
    $region48: #{scene_graph_refiner_forward.3} parent=5 // pred_fallthru
      _
  $region6: #{scene_graph_refiner_forward.3} parent=0 // loop_footer
    %s15 = sadd.s32 1, %s11
  $region7: #{scene_graph_refiner_forward.3} parent=0 // loop_footer_branch
    %10 = sbr.rel target = $region3
  $region8: #{scene_graph_refiner_forward.3} parent=0 // loop_exit
    _

// kernel: scene_graph_refiner_forward.2
$region0: #{scene_graph_refiner_forward.2}
  #allocation0 [shape = 'u32[]', space=smem, size = 0x4, offset = 0x4, fixed_abs, tag = 'smem constant byte address 0x4 - core index']
  #allocation1 [shape = 'u32[144,128]{1,0:T(1,128)}', space=vmem, size = 0x12000, scoped, tag = 'internal scratch']
  %s0 = inlined_call_operand.hbm [shape: s32[2,16], index: 0, kind: input, shape index: {}]
  %s1 = inlined_call_operand.hbm [shape: f32[8,9], index: 1, kind: input, shape index: {}]
  %s2 = inlined_call_operand.hbm [shape: f32[9,32], index: 2, kind: input, shape index: {}]
  %s3 = inlined_call_operand.vmem [shape: f32[32,4], index: 3, kind: input, shape index: {}]
  %s4 = inlined_call_operand.vmem [shape: f32[32,4], index: 4, kind: input, shape index: {}]
  %s5 = inlined_call_operand.hbm [shape: f32[1,32], index: 5, kind: input, shape index: {}]
  %s6 = inlined_call_operand.vmem [shape: f32[32,9], index: 6, kind: input, shape index: {}]
  %s7 = inlined_call_operand.vmem [shape: f32[9,1], index: 7, kind: input, shape index: {}]
  %s8 = inlined_call_operand.vmem [shape: f32[9,1], index: 8, kind: input, shape index: {}]
  %s9 = inlined_call_operand.hbm [shape: f32[1,9], index: 9, kind: input, shape index: {}]
  %s10 = inlined_call_operand.hbm [shape: f32[1,9], index: 10, kind: input, shape index: {}]
  %s11 = inlined_call_operand.hbm [shape: f32[1,9], index: 11, kind: input, shape index: {}]
  %s12 = inlined_call_operand.hbm [shape: f32[9,32], index: 12, kind: input, shape index: {}]
  %s13 = inlined_call_operand.hbm [shape: f32[1,32], index: 13, kind: input, shape index: {}]
  %s14 = inlined_call_operand.hbm [shape: f32[32,128], index: 14, kind: input, shape index: {}]
  %s15 = inlined_call_operand.hbm [shape: f32[1,128], index: 15, kind: input, shape index: {}]
  %s16 = inlined_call_operand.hbm [shape: f32[128,4608], index: 16, kind: input, shape index: {}]
  %s17 = inlined_call_operand.hbm [shape: f32[1,4608], index: 17, kind: input, shape index: {}]
  %s18 = inlined_call_operand.vmem [shape: f32[8,4608], index: 18, kind: output, shape index: {}]
  %s19 = sld [smem:[#allocation0]]
  $region134: #{scene_graph_refiner_forward.2} parent=0
    _
  %s21 = ssub.s32 1, %s19
  %s22 = scalar_select 0, %s21, %s19
  $region1: #{scene_graph_refiner_forward.2} parent=0
    #allocation2 [shape = 'u8[1024]{0}', space=smem, size = 0x400, scoped, tag = 'input window, operand 0, single buffered']
    #allocation3 [shape = 's32[1]{0}', space=sflag, size = 0x4, scoped, tag = 'scoped memory for scene_graph_refiner_forward.2']
    #allocation4 [shape = 's32[1]{0}', space=sflag, size = 0x4, scoped, tag = 'scoped memory for scene_graph_refiner_forward.2']
    #allocation5 [shape = 'u8[4096]{0}', space=vmem, size = 0x1000, scoped, tag = 'input window, operand 1, single buffered']
    #allocation6 [shape = 'u8[8192]{0}', space=vmem, size = 0x2000, scoped, tag = 'input window, operand 2, single buffered']
    #allocation7 [shape = 's32[1]{0}', space=sflag, size = 0x4, scoped, tag = 'scoped memory for scene_graph_refiner_forward.2']
    #allocation8 [shape = 'u8[512]{0}', space=vmem, size = 0x400, scoped, tag = 'input window, operand 5, single buffered']
    #allocation9 [shape = 'u8[512]{0}', space=vmem, size = 0x400, scoped, tag = 'input window, operand 9, single buffered']
    #allocation10 [shape = 's32[1]{0}', space=sflag, size = 0x4, scoped, tag = 'scoped memory for scene_graph_refiner_forward.2']
    #allocation11 [shape = 'u8[512]{0}', space=vmem, size = 0x400, scoped, tag = 'input window, operand 10, single buffered']
    #allocation12 [shape = 'u8[512]{0}', space=vmem, size = 0x400, scoped, tag = 'input window, operand 11, single buffered']
    #allocation13 [shape = 's32[1]{0}', space=sflag, size = 0x4, scoped, tag = 'scoped memory for scene_graph_refiner_forward.2']
    #allocation14 [shape = 'u8[8192]{0}', space=vmem, size = 0x2000, scoped, tag = 'input window, operand 12, single buffered']
    #allocation15 [shape = 'u8[512]{0}', space=vmem, size = 0x400, scoped, tag = 'input window, operand 13, single buffered']
    #allocation16 [shape = 's32[1]{0}', space=sflag, size = 0x4, scoped, tag = 'scoped memory for scene_graph_refiner_forward.2']
    #allocation17 [shape = 'u8[16384]{0}', space=vmem, size = 0x4000, scoped, tag = 'input window, operand 14, single buffered']
    #allocation18 [shape = 'u8[512]{0}', space=vmem, size = 0x400, scoped, tag = 'input window, operand 15, single buffered']
    #allocation19 [shape = 's32[1]{0}', space=sflag, size = 0x4, scoped, tag = 'scoped memory for scene_graph_refiner_forward.2']
    #allocation20 [shape = 'u8[2359296]{0}', space=vmem, size = 0x240000, scoped, tag = 'input window, operand 16, single buffered']
    #allocation21 [shape = 'u8[18432]{0}', space=vmem, size = 0x4800, scoped, tag = 'input window, operand 17, single buffered']
    #allocation22 [shape = 's32[1]{0}', space=sflag, size = 0x4, scoped, tag = 'scoped memory for scene_graph_refiner_forward.2']
    %23 = vsyncpa [#allocation4], 0
    %24 = vsyncpa [#allocation3], 0
    %25 = vsyncpa [#allocation7], 0
    %26 = vsyncpa [#allocation10], 0
    %27 = vsyncpa [#allocation13], 0
    %28 = vsyncpa [#allocation16], 0
    %29 = vsyncpa [#allocation19], 0
    %30 = vsyncpa [#allocation22], 0
    // Predicated region
    $region2: #{scene_graph_refiner_forward.2} parent=1 // pred_check
      _
    $region3: #{scene_graph_refiner_forward.2} parent=1 // pred_check_branch
      %32 = sbr.rel (0) target = $region5
    $region4: #{scene_graph_refiner_forward.2} parent=1 // pred_region
      %s34 = ssub.s32 32, 32
      %35 = vsyncadd [#allocation4], %s34
      %38 = dma.hbm_to_smem %s0, 32, [#allocation2], [#allocation4]
    $region5: #{scene_graph_refiner_forward.2} parent=1 // pred_fallthru
      _
    // Predicated region
    $region6: #{scene_graph_refiner_forward.2} parent=1 // pred_check
      _
    $region7: #{scene_graph_refiner_forward.2} parent=1 // pred_check_branch
      %40 = sbr.rel (0) target = $region9
    $region8: #{scene_graph_refiner_forward.2} parent=1 // pred_region
      %s42 = ssub.s32 128, 128
      %43 = vsyncadd [#allocation3], %s42
      %s45 = sshll.u32 [#allocation5], 4
      %s46 = int_to_ptr.vmem [resolvable:$true] %s45
      %48 = dma.hbm_to_vmem [thread:$0]  %s1, 128, %s46, [#allocation3]
    $region9: #{scene_graph_refiner_forward.2} parent=1 // pred_fallthru
      _
    // Predicated region
    $region10: #{scene_graph_refiner_forward.2} parent=1 // pred_check
      _
    $region11: #{scene_graph_refiner_forward.2} parent=1 // pred_check_branch
      %50 = sbr.rel (0) target = $region13
    $region12: #{scene_graph_refiner_forward.2} parent=1 // pred_region
      %s52 = ssub.s32 256, 256
      %53 = vsyncadd [#allocation7], %s52
      %s54 = sshll.u32 [#allocation6], 4
      %s55 = int_to_ptr.vmem [resolvable:$true] %s54
      %60 = dma.hbm_to_vmem [thread:$0]  %s2, 256, %s55, [#allocation7], 128, 128, 8
    $region13: #{scene_graph_refiner_forward.2} parent=1 // pred_fallthru
      _
    // Predicated region
    $region14: #{scene_graph_refiner_forward.2} parent=1 // pred_check
      _
    $region15: #{scene_graph_refiner_forward.2} parent=1 // pred_check_branch
      %62 = sbr.rel (0) target = $region17
    $region16: #{scene_graph_refiner_forward.2} parent=1 // pred_region
      _
    $region17: #{scene_graph_refiner_forward.2} parent=1 // pred_fallthru
      _
    // Predicated region
    $region18: #{scene_graph_refiner_forward.2} parent=1 // pred_check
      _
    $region19: #{scene_graph_refiner_forward.2} parent=1 // pred_check_branch
      %64 = sbr.rel (0) target = $region21
    $region20: #{scene_graph_refiner_forward.2} parent=1 // pred_region
      _
    $region21: #{scene_graph_refiner_forward.2} parent=1 // pred_fallthru
      _
    // Predicated region
    $region22: #{scene_graph_refiner_forward.2} parent=1 // pred_check
      _
    $region23: #{scene_graph_refiner_forward.2} parent=1 // pred_check_branch
      %66 = sbr.rel (0) target = $region25
    $region24: #{scene_graph_refiner_forward.2} parent=1 // pred_region
      %s68 = ssub.s32 16, 16
      %69 = vsyncadd [#allocation7], %s68
      %s71 = sshll.u32 [#allocation8], 4
      %s72 = int_to_ptr.vmem [resolvable:$true] %s71
      %74 = dma.hbm_to_vmem [thread:$0]  %s5, 16, %s72, [#allocation7]
    $region25: #{scene_graph_refiner_forward.2} parent=1 // pred_fallthru
      _
    // Predicated region
    $region26: #{scene_graph_refiner_forward.2} parent=1 // pred_check
      _
    $region27: #{scene_graph_refiner_forward.2} parent=1 // pred_check_branch
      %76 = sbr.rel (0) target = $region29
    $region28: #{scene_graph_refiner_forward.2} parent=1 // pred_region
      _
    $region29: #{scene_graph_refiner_forward.2} parent=1 // pred_fallthru
      _
    // Predicated region
    $region30: #{scene_graph_refiner_forward.2} parent=1 // pred_check
      _
    $region31: #{scene_graph_refiner_forward.2} parent=1 // pred_check_branch
      %78 = sbr.rel (0) target = $region33
    $region32: #{scene_graph_refiner_forward.2} parent=1 // pred_region
      _
    $region33: #{scene_graph_refiner_forward.2} parent=1 // pred_fallthru
      _
    // Predicated region
    $region34: #{scene_graph_refiner_forward.2} parent=1 // pred_check
      _
    $region35: #{scene_graph_refiner_forward.2} parent=1 // pred_check_branch
      %80 = sbr.rel (0) target = $region37
    $region36: #{scene_graph_refiner_forward.2} parent=1 // pred_region
      _
    $region37: #{scene_graph_refiner_forward.2} parent=1 // pred_fallthru
      _
    // Predicated region
    $region38: #{scene_graph_refiner_forward.2} parent=1 // pred_check
      _
    $region39: #{scene_graph_refiner_forward.2} parent=1 // pred_check_branch
      %82 = sbr.rel (0) target = $region41
    $region40: #{scene_graph_refiner_forward.2} parent=1 // pred_region
      %s84 = ssub.s32 16, 16
      %85 = vsyncadd [#allocation10], %s84
      %s87 = sshll.u32 [#allocation9], 4
      %s88 = int_to_ptr.vmem [resolvable:$true] %s87
      %90 = dma.hbm_to_vmem [thread:$0]  %s9, 16, %s88, [#allocation10]
    $region41: #{scene_graph_refiner_forward.2} parent=1 // pred_fallthru
      _
    // Predicated region
    $region42: #{scene_graph_refiner_forward.2} parent=1 // pred_check
      _
    $region43: #{scene_graph_refiner_forward.2} parent=1 // pred_check_branch
      %92 = sbr.rel (0) target = $region45
    $region44: #{scene_graph_refiner_forward.2} parent=1 // pred_region
      %s94 = ssub.s32 16, 16
      %95 = vsyncadd [#allocation10], %s94
      %s97 = sshll.u32 [#allocation11], 4
      %s98 = int_to_ptr.vmem [resolvable:$true] %s97
      %100 = dma.hbm_to_vmem [thread:$0]  %s10, 16, %s98, [#allocation10]
    $region45: #{scene_graph_refiner_forward.2} parent=1 // pred_fallthru
      _
    // Predicated region
    $region46: #{scene_graph_refiner_forward.2} parent=1 // pred_check
      _
    $region47: #{scene_graph_refiner_forward.2} parent=1 // pred_check_branch
      %102 = sbr.rel (0) target = $region49
    $region48: #{scene_graph_refiner_forward.2} parent=1 // pred_region
      %s104 = ssub.s32 16, 16
      %105 = vsyncadd [#allocation13], %s104
      %s107 = sshll.u32 [#allocation12], 4
      %s108 = int_to_ptr.vmem [resolvable:$true] %s107
      %110 = dma.hbm_to_vmem [thread:$0]  %s11, 16, %s108, [#allocation13]
    $region49: #{scene_graph_refiner_forward.2} parent=1 // pred_fallthru
      _
    // Predicated region
    $region50: #{scene_graph_refiner_forward.2} parent=1 // pred_check
      _
    $region51: #{scene_graph_refiner_forward.2} parent=1 // pred_check_branch
      %112 = sbr.rel (0) target = $region53
    $region52: #{scene_graph_refiner_forward.2} parent=1 // pred_region
      %s114 = ssub.s32 256, 256
      %115 = vsyncadd [#allocation13], %s114
      %s116 = sshll.u32 [#allocation14], 4
      %s117 = int_to_ptr.vmem [resolvable:$true] %s116
      %122 = dma.hbm_to_vmem [thread:$0]  %s12, 256, %s117, [#allocation13], 128, 128, 8
    $region53: #{scene_graph_refiner_forward.2} parent=1 // pred_fallthru
      _
    // Predicated region
    $region54: #{scene_graph_refiner_forward.2} parent=1 // pred_check
      _
    $region55: #{scene_graph_refiner_forward.2} parent=1 // pred_check_branch
      %124 = sbr.rel (0) target = $region57
    $region56: #{scene_graph_refiner_forward.2} parent=1 // pred_region
      %s126 = ssub.s32 16, 16
      %127 = vsyncadd [#allocation16], %s126
      %s129 = sshll.u32 [#allocation15], 4
      %s130 = int_to_ptr.vmem [resolvable:$true] %s129
      %132 = dma.hbm_to_vmem [thread:$0]  %s13, 16, %s130, [#allocation16]
    $region57: #{scene_graph_refiner_forward.2} parent=1 // pred_fallthru
      _
    // Predicated region
    $region58: #{scene_graph_refiner_forward.2} parent=1 // pred_check
      _
    $region59: #{scene_graph_refiner_forward.2} parent=1 // pred_check_branch
      %134 = sbr.rel (0) target = $region61
    $region60: #{scene_graph_refiner_forward.2} parent=1 // pred_region
      %s136 = ssub.s32 512, 512
      %137 = vsyncadd [#allocation16], %s136
      %s138 = sshll.u32 [#allocation17], 4
      %s139 = int_to_ptr.vmem [resolvable:$true] %s138
      %144 = dma.hbm_to_vmem [thread:$0]  %s14, 512, %s139, [#allocation16], 128, 128, 8
    $region61: #{scene_graph_refiner_forward.2} parent=1 // pred_fallthru
      _
    // Predicated region
    $region62: #{scene_graph_refiner_forward.2} parent=1 // pred_check
      _
    $region63: #{scene_graph_refiner_forward.2} parent=1 // pred_check_branch
      %146 = sbr.rel (0) target = $region65
    $region64: #{scene_graph_refiner_forward.2} parent=1 // pred_region
      %s148 = ssub.s32 16, 16
      %149 = vsyncadd [#allocation19], %s148
      %s151 = sshll.u32 [#allocation18], 4
      %s152 = int_to_ptr.vmem [resolvable:$true] %s151
      %154 = dma.hbm_to_vmem [thread:$0]  %s15, 16, %s152, [#allocation19]
    $region65: #{scene_graph_refiner_forward.2} parent=1 // pred_fallthru
      _
    // Predicated region
    $region66: #{scene_graph_refiner_forward.2} parent=1 // pred_check
      _
    $region67: #{scene_graph_refiner_forward.2} parent=1 // pred_check_branch
      %156 = sbr.rel (0) target = $region69
    $region68: #{scene_graph_refiner_forward.2} parent=1 // pred_region
      %s158 = ssub.s32 73728, 73728
      %159 = vsyncadd [#allocation19], %s158
      %s160 = sshll.u32 [#allocation20], 4
      %s161 = int_to_ptr.vmem [resolvable:$true] %s160
      %166 = dma.hbm_to_vmem [thread:$0]  %s16, 73728, %s161, [#allocation19], 4608, 4608, 288
    $region69: #{scene_graph_refiner_forward.2} parent=1 // pred_fallthru
      _
    // Predicated region
    $region70: #{scene_graph_refiner_forward.2} parent=1 // pred_check
      _
    $region71: #{scene_graph_refiner_forward.2} parent=1 // pred_check_branch
      %168 = sbr.rel (0) target = $region73
    $region72: #{scene_graph_refiner_forward.2} parent=1 // pred_region
      %s170 = ssub.s32 576, 576
      %171 = vsyncadd [#allocation22], %s170
      %s173 = sshll.u32 [#allocation21], 4
      %s174 = int_to_ptr.vmem [resolvable:$true] %s173
      %176 = dma.hbm_to_vmem [thread:$0]  %s17, 576, %s174, [#allocation22]
    $region73: #{scene_graph_refiner_forward.2} parent=1 // pred_fallthru
      _
    // Predicated region
    $region74: #{scene_graph_refiner_forward.2} parent=1 // pred_check
      _
    $region75: #{scene_graph_refiner_forward.2} parent=1 // pred_check_branch
      %178 = sbr.rel (0) target = $region77
    $region76: #{scene_graph_refiner_forward.2} parent=1 // pred_region
      %179 = dma.done [#allocation4], 32
    $region77: #{scene_graph_refiner_forward.2} parent=1 // pred_fallthru
      _
    // Predicated region
    $region78: #{scene_graph_refiner_forward.2} parent=1 // pred_check
      _
    $region79: #{scene_graph_refiner_forward.2} parent=1 // pred_check_branch
      %181 = sbr.rel (0) target = $region81
    $region80: #{scene_graph_refiner_forward.2} parent=1 // pred_region
      %182 = dma.done [#allocation3], 128
    $region81: #{scene_graph_refiner_forward.2} parent=1 // pred_fallthru
      _
    // Predicated region
    $region82: #{scene_graph_refiner_forward.2} parent=1 // pred_check
      _
    $region83: #{scene_graph_refiner_forward.2} parent=1 // pred_check_branch
      %184 = sbr.rel (0) target = $region85
    $region84: #{scene_graph_refiner_forward.2} parent=1 // pred_region
      %185 = dma.done [#allocation7], 256
    $region85: #{scene_graph_refiner_forward.2} parent=1 // pred_fallthru
      _
    // Predicated region
    $region86: #{scene_graph_refiner_forward.2} parent=1 // pred_check
      _
    $region87: #{scene_graph_refiner_forward.2} parent=1 // pred_check_branch
      %187 = sbr.rel (0) target = $region89
    $region88: #{scene_graph_refiner_forward.2} parent=1 // pred_region
      %188 = dma.done [#allocation7], 16
    $region89: #{scene_graph_refiner_forward.2} parent=1 // pred_fallthru
      _
    // Predicated region
    $region90: #{scene_graph_refiner_forward.2} parent=1 // pred_check
      _
    $region91: #{scene_graph_refiner_forward.2} parent=1 // pred_check_branch
      %190 = sbr.rel (0) target = $region93
    $region92: #{scene_graph_refiner_forward.2} parent=1 // pred_region
      %191 = dma.done [#allocation10], 16
    $region93: #{scene_graph_refiner_forward.2} parent=1 // pred_fallthru
      _
    // Predicated region
    $region94: #{scene_graph_refiner_forward.2} parent=1 // pred_check
      _
    $region95: #{scene_graph_refiner_forward.2} parent=1 // pred_check_branch
      %193 = sbr.rel (0) target = $region97
    $region96: #{scene_graph_refiner_forward.2} parent=1 // pred_region
      %194 = dma.done [#allocation10], 16
    $region97: #{scene_graph_refiner_forward.2} parent=1 // pred_fallthru
      _
    // Predicated region
    $region98: #{scene_graph_refiner_forward.2} parent=1 // pred_check
      _
    $region99: #{scene_graph_refiner_forward.2} parent=1 // pred_check_branch
      %196 = sbr.rel (0) target = $region101
    $region100: #{scene_graph_refiner_forward.2} parent=1 // pred_region
      %197 = dma.done [#allocation13], 16
    $region101: #{scene_graph_refiner_forward.2} parent=1 // pred_fallthru
      _
    // Predicated region
    $region102: #{scene_graph_refiner_forward.2} parent=1 // pred_check
      _
    $region103: #{scene_graph_refiner_forward.2} parent=1 // pred_check_branch
      %199 = sbr.rel (0) target = $region105
    $region104: #{scene_graph_refiner_forward.2} parent=1 // pred_region
      %200 = dma.done [#allocation13], 256
    $region105: #{scene_graph_refiner_forward.2} parent=1 // pred_fallthru
      _
    // Predicated region
    $region106: #{scene_graph_refiner_forward.2} parent=1 // pred_check
      _
    $region107: #{scene_graph_refiner_forward.2} parent=1 // pred_check_branch
      %202 = sbr.rel (0) target = $region109
    $region108: #{scene_graph_refiner_forward.2} parent=1 // pred_region
      %203 = dma.done [#allocation16], 16
    $region109: #{scene_graph_refiner_forward.2} parent=1 // pred_fallthru
      _
    // Predicated region
    $region110: #{scene_graph_refiner_forward.2} parent=1 // pred_check
      _
    $region111: #{scene_graph_refiner_forward.2} parent=1 // pred_check_branch
      %205 = sbr.rel (0) target = $region113
    $region112: #{scene_graph_refiner_forward.2} parent=1 // pred_region
      %206 = dma.done [#allocation16], 512
    $region113: #{scene_graph_refiner_forward.2} parent=1 // pred_fallthru
      _
    // Predicated region
    $region114: #{scene_graph_refiner_forward.2} parent=1 // pred_check
      _
    $region115: #{scene_graph_refiner_forward.2} parent=1 // pred_check_branch
      %208 = sbr.rel (0) target = $region117
    $region116: #{scene_graph_refiner_forward.2} parent=1 // pred_region
      %209 = dma.done [#allocation19], 16
    $region117: #{scene_graph_refiner_forward.2} parent=1 // pred_fallthru
      _
    // Predicated region
    $region118: #{scene_graph_refiner_forward.2} parent=1 // pred_check
      _
    $region119: #{scene_graph_refiner_forward.2} parent=1 // pred_check_branch
      %211 = sbr.rel (0) target = $region121
    $region120: #{scene_graph_refiner_forward.2} parent=1 // pred_region
      %212 = dma.done [#allocation19], 73728
    $region121: #{scene_graph_refiner_forward.2} parent=1 // pred_fallthru
      _
    // Predicated region
    $region122: #{scene_graph_refiner_forward.2} parent=1 // pred_check
      _
    $region123: #{scene_graph_refiner_forward.2} parent=1 // pred_check_branch
      %214 = sbr.rel (0) target = $region125
    $region124: #{scene_graph_refiner_forward.2} parent=1 // pred_region
      %215 = dma.done [#allocation22], 576
    $region125: #{scene_graph_refiner_forward.2} parent=1 // pred_fallthru
      _
    %216 = sfence
    %v217 = vlaneseq
    %v218 = vshrl.u32 %v217, 7
    %v219 = vlaneseq
    %v220 = vand.u32 %v219, 127
    %vm221 = vcmp.eq.s32.totalorder %v218, %v220
    %v222 = vsel %vm221, 1, 0
    %v223 = vcvt.s32.f32 %v222
    %s224 = sld [smem:[#allocation2]]
    %s225 = sld [smem:[#allocation2 + $0x80]]
    %v226 = vstv %s225
    %vm227 = vcmp.eq.s32.totalorder %v218, %v226
    %v228 = vstv %s224
    %vm229 = vcmp.eq.s32.totalorder %v220, %v228
    %vm230 = vmand %vm227, %vm229
    %v231 = vsel %vm230, 1.0, 0.0
    %v232 = vmax.f32 %v223, %v231
    %s233 = sld [smem:[#allocation2 + $0x1]]
    %s234 = sld [smem:[#allocation2 + $0x81]]
    %v235 = vstv %s234
    %vm236 = vcmp.eq.s32.totalorder %v218, %v235
    %v237 = vstv %s233
    %vm238 = vcmp.eq.s32.totalorder %v220, %v237
    %vm239 = vmand %vm236, %vm238
    %v240 = vsel %vm239, 1.0, 0.0
    %v241 = vmax.f32 %v232, %v240
    %s242 = sld [smem:[#allocation2 + $0x2]]
    %s243 = sld [smem:[#allocation2 + $0x82]]
    %v244 = vstv %s243
    %vm245 = vcmp.eq.s32.totalorder %v218, %v244
    %v246 = vstv %s242
    %vm247 = vcmp.eq.s32.totalorder %v220, %v246
    %vm248 = vmand %vm245, %vm247
    %v249 = vsel %vm248, 1.0, 0.0
    %v250 = vmax.f32 %v241, %v249
    %s251 = sld [smem:[#allocation2 + $0x3]]
    %s252 = sld [smem:[#allocation2 + $0x83]]
    %v253 = vstv %s252
    %vm254 = vcmp.eq.s32.totalorder %v218, %v253
    %v255 = vstv %s251
    %vm256 = vcmp.eq.s32.totalorder %v220, %v255
    %vm257 = vmand %vm254, %vm256
    %v258 = vsel %vm257, 1.0, 0.0
    %v259 = vmax.f32 %v250, %v258
    %s260 = sld [smem:[#allocation2 + $0x4]]
    %s261 = sld [smem:[#allocation2 + $0x84]]
    %v262 = vstv %s261
    %vm263 = vcmp.eq.s32.totalorder %v218, %v262
    %v264 = vstv %s260
    %vm265 = vcmp.eq.s32.totalorder %v220, %v264
    %vm266 = vmand %vm263, %vm265
    %v267 = vsel %vm266, 1.0, 0.0
    %v268 = vmax.f32 %v259, %v267
    %s269 = sld [smem:[#allocation2 + $0x5]]
    %s270 = sld [smem:[#allocation2 + $0x85]]
    %v271 = vstv %s270
    %vm272 = vcmp.eq.s32.totalorder %v218, %v271
    %v273 = vstv %s269
    %vm274 = vcmp.eq.s32.totalorder %v220, %v273
    %vm275 = vmand %vm272, %vm274
    %v276 = vsel %vm275, 1.0, 0.0
    %v277 = vmax.f32 %v268, %v276
    %s278 = sld [smem:[#allocation2 + $0x6]]
    %s279 = sld [smem:[#allocation2 + $0x86]]
    %v280 = vstv %s279
    %vm281 = vcmp.eq.s32.totalorder %v218, %v280
    %v282 = vstv %s278
    %vm283 = vcmp.eq.s32.totalorder %v220, %v282
    %vm284 = vmand %vm281, %vm283
    %v285 = vsel %vm284, 1.0, 0.0
    %v286 = vmax.f32 %v277, %v285
    %s287 = sld [smem:[#allocation2 + $0x7]]
    %s288 = sld [smem:[#allocation2 + $0x87]]
    %v289 = vstv %s288
    %vm290 = vcmp.eq.s32.totalorder %v218, %v289
    %v291 = vstv %s287
    %vm292 = vcmp.eq.s32.totalorder %v220, %v291
    %vm293 = vmand %vm290, %vm292
    %v294 = vsel %vm293, 1.0, 0.0
    %v295 = vmax.f32 %v286, %v294
    %s296 = sld [smem:[#allocation2 + $0x8]]
    %s297 = sld [smem:[#allocation2 + $0x88]]
    %v298 = vstv %s297
    %vm299 = vcmp.eq.s32.totalorder %v218, %v298
    %v300 = vstv %s296
    %vm301 = vcmp.eq.s32.totalorder %v220, %v300
    %vm302 = vmand %vm299, %vm301
    %v303 = vsel %vm302, 1.0, 0.0
    %v304 = vmax.f32 %v295, %v303
    %s305 = sld [smem:[#allocation2 + $0x9]]
    %s306 = sld [smem:[#allocation2 + $0x89]]
    %v307 = vstv %s306
    %vm308 = vcmp.eq.s32.totalorder %v218, %v307
    %v309 = vstv %s305
    %vm310 = vcmp.eq.s32.totalorder %v220, %v309
    %vm311 = vmand %vm308, %vm310
    %v312 = vsel %vm311, 1.0, 0.0
    %v313 = vmax.f32 %v304, %v312
    %s314 = sld [smem:[#allocation2 + $0xa]]
    %s315 = sld [smem:[#allocation2 + $0x8a]]
    %v316 = vstv %s315
    %vm317 = vcmp.eq.s32.totalorder %v218, %v316
    %v318 = vstv %s314
    %vm319 = vcmp.eq.s32.totalorder %v220, %v318
    %vm320 = vmand %vm317, %vm319
    %v321 = vsel %vm320, 1.0, 0.0
    %v322 = vmax.f32 %v313, %v321
    %s323 = sld [smem:[#allocation2 + $0xb]]
    %s324 = sld [smem:[#allocation2 + $0x8b]]
    %v325 = vstv %s324
    %vm326 = vcmp.eq.s32.totalorder %v218, %v325
    %v327 = vstv %s323
    %vm328 = vcmp.eq.s32.totalorder %v220, %v327
    %vm329 = vmand %vm326, %vm328
    %v330 = vsel %vm329, 1.0, 0.0
    %v331 = vmax.f32 %v322, %v330
    %s332 = sld [smem:[#allocation2 + $0xc]]
    %s333 = sld [smem:[#allocation2 + $0x8c]]
    %v334 = vstv %s333
    %vm335 = vcmp.eq.s32.totalorder %v218, %v334
    %v336 = vstv %s332
    %vm337 = vcmp.eq.s32.totalorder %v220, %v336
    %vm338 = vmand %vm335, %vm337
    %v339 = vsel %vm338, 1.0, 0.0
    %v340 = vmax.f32 %v331, %v339
    %s341 = sld [smem:[#allocation2 + $0xd]]
    %s342 = sld [smem:[#allocation2 + $0x8d]]
    %v343 = vstv %s342
    %vm344 = vcmp.eq.s32.totalorder %v218, %v343
    %v345 = vstv %s341
    %vm346 = vcmp.eq.s32.totalorder %v220, %v345
    %vm347 = vmand %vm344, %vm346
    %v348 = vsel %vm347, 1.0, 0.0
    %v349 = vmax.f32 %v340, %v348
    %s350 = sld [smem:[#allocation2 + $0xe]]
    %s351 = sld [smem:[#allocation2 + $0x8e]]
    %v352 = vstv %s351
    %vm353 = vcmp.eq.s32.totalorder %v218, %v352
    %v354 = vstv %s350
    %vm355 = vcmp.eq.s32.totalorder %v220, %v354
    %vm356 = vmand %vm353, %vm355
    %v357 = vsel %vm356, 1.0, 0.0
    %v358 = vmax.f32 %v349, %v357
    %s359 = sld [smem:[#allocation2 + $0xf]]
    %s360 = sld [smem:[#allocation2 + $0x8f]]
    %v361 = vstv %s360
    %vm362 = vcmp.eq.s32.totalorder %v218, %v361
    %v363 = vstv %s359
    %vm364 = vcmp.eq.s32.totalorder %v220, %v363
    %vm365 = vmand %vm362, %vm364
    %v366 = vsel %vm365, 1.0, 0.0
    %v367 = vmax.f32 %v358, %v366
    %v368 = vld [vmem:[#allocation5] sm:$0xff]
    %v369 = vld [vmem:[#allocation6] sm:$0xff]
    %v370 = vld [vmem:[#allocation6 + $0x8] sm:$0x1]
    %vm371 = vcmask 72704
    %v373 = vsel %vm371, %v368, 0
    %vm375 = vcmask 1040384
    %v377 = vsel %vm375, %v370, 0
    %379 = vmatprep.subr.mxu0 0.0
    %380 = vmatpush1.msra.mxu0 %v369
    %381 = vmatprep.subr.mxu0 0.0
    %382 = vmatpush1.msra.mxu0 %v377
    %383 = vmatprep.subr.mxu0 0.0
    %384 = vmatpush1.msra.mxu0 0.0
    %385 = vmatprep.subr.mxu0 0.0
    %386 = vmatpush1.msra.mxu0 0.0
    %387 = vmatprep.subr.mxu0 0.0
    %388 = vmatpush1.msra.mxu0 0.0
    %389 = vmatprep.subr.mxu0 0.0
    %390 = vmatpush1.msra.mxu0 0.0
    %391 = vmatprep.subr.mxu0 0.0
    %392 = vmatpush1.msra.mxu0 0.0
    %393 = vmatprep.subr.mxu0 0.0
    %394 = vmatpush1.msra.mxu0 0.0
    %395 = vmatprep.subr.mxu0 0.0
    %396 = vmatpush1.msra.mxu0 0.0
    %397 = vmatprep.subr.mxu0 0.0
    %398 = vmatpush1.msra.mxu0 0.0
    %399 = vmatprep.subr.mxu0 0.0
    %400 = vmatpush1.msra.mxu0 0.0
    %401 = vmatprep.subr.mxu0 0.0
    %402 = vmatpush1.msra.mxu0 0.0
    %403 = vmatprep.subr.mxu0 0.0
    %404 = vmatpush1.msra.mxu0 0.0
    %405 = vmatprep.subr.mxu0 0.0
    %406 = vmatpush1.msra.mxu0 0.0
    %407 = vmatprep.subr.mxu0 0.0
    %408 = vmatpush1.msra.mxu0 0.0
    %409 = vmatprep.subr.mxu0 0.0
    %410 = vmatpush1.msra.mxu0 0.0
    %411 = vmatprep.subr.mxu0 0.0
    %412 = vmatpush1.msra.mxu0 0.0
    %413 = vmatprep.subr.mxu0 0.0
    %414 = vmatpush1.msra.mxu0 0.0
    %415 = vmatprep.subr.mxu0 0.0
    %416 = vmatpush1.msra.mxu0 0.0
    %417 = vmatprep.subr.mxu0 0.0
    %418 = vmatpush1.msra.mxu0 0.0
    %419 = vmatprep.subr.mxu0 0.0
    %420 = vmatpush1.msra.mxu0 0.0
    %421 = vmatprep.subr.mxu0 0.0
    %422 = vmatpush1.msra.mxu0 0.0
    %423 = vmatprep.subr.mxu0 0.0
    %424 = vmatpush1.msra.mxu0 0.0
    %425 = vmatprep.subr.mxu0 0.0
    %426 = vmatpush1.msra.mxu0 0.0
    %427 = vmatprep.subr.mxu0 0.0
    %428 = vmatpush1.msra.mxu0 0.0
    %429 = vmatprep.subr.mxu0 0.0
    %430 = vmatpush1.msra.mxu0 0.0
    %431 = vmatprep.subr.mxu0 0.0
    %432 = vmatpush1.msra.mxu0 0.0
    %433 = vmatprep.subr.mxu0 0.0
    %434 = vmatpush1.msra.mxu0 0.0
    %435 = vmatprep.subr.mxu0 0.0
    %436 = vmatpush1.msra.mxu0 0.0
    %437 = vmatprep.subr.mxu0 0.0
    %438 = vmatpush1.msra.mxu0 0.0
    %439 = vmatprep.subr.mxu0 0.0
    %440 = vmatpush1.msra.mxu0 0.0
    %441 = vmatprep.subr.mxu0 0.0
    %442 = vmatpush1.msra.mxu0 0.0
    %443 = vmatprep.mubr.f32.mxu0 0.0
    %444 = vmatmul.mubr.f32.gmra.mrb[0].mxu0 %v373
    %v445 = vpop.f32.mrb[0].mxu0
    %v446 = vadd.f32 0.0, %v445
    %v447 = vpop.f32.mrb[0].mxu0
    %448 = vdwg.mxu0
    %v449 = vld [vmem:[%s4] sm:$0xff]
    %v450 = vld [vmem:[%s4 + $0x8] sm:$0xff]
    %v451 = vld [vmem:[%s4 + $0x10] sm:$0xff]
    %v452 = vld [vmem:[%s4 + $0x18] sm:$0xff]
    %vm453 = vcmask 261120
    %v455 = vsel %vm453, %v446, 0
    %457 = vmatprep.subr.mxu0 0.0
    %458 = vmatpush1.msra.mxu0 %v449
    %459 = vmatprep.subr.mxu0 0.0
    %460 = vmatpush1.msra.mxu0 %v450
    %461 = vmatprep.subr.mxu0 0.0
    %462 = vmatpush1.msra.mxu0 %v451
    %463 = vmatprep.subr.mxu0 0.0
    %464 = vmatpush1.msra.mxu0 %v452
    %465 = vmatprep.subr.mxu0 0.0
    %466 = vmatpush1.msra.mxu0 0.0
    %467 = vmatprep.subr.mxu0 0.0
    %468 = vmatpush1.msra.mxu0 0.0
    %469 = vmatprep.subr.mxu0 0.0
    %470 = vmatpush1.msra.mxu0 0.0
    %471 = vmatprep.subr.mxu0 0.0
    %472 = vmatpush1.msra.mxu0 0.0
    %473 = vmatprep.subr.mxu0 0.0
    %474 = vmatpush1.msra.mxu0 0.0
    %475 = vmatprep.subr.mxu0 0.0
    %476 = vmatpush1.msra.mxu0 0.0
    %477 = vmatprep.subr.mxu0 0.0
    %478 = vmatpush1.msra.mxu0 0.0
    %479 = vmatprep.subr.mxu0 0.0
    %480 = vmatpush1.msra.mxu0 0.0
    %481 = vmatprep.subr.mxu0 0.0
    %482 = vmatpush1.msra.mxu0 0.0
    %483 = vmatprep.subr.mxu0 0.0
    %484 = vmatpush1.msra.mxu0 0.0
    %485 = vmatprep.subr.mxu0 0.0
    %486 = vmatpush1.msra.mxu0 0.0
    %487 = vmatprep.subr.mxu0 0.0
    %488 = vmatpush1.msra.mxu0 0.0
    %489 = vmatprep.subr.mxu0 0.0
    %490 = vmatpush1.msra.mxu0 0.0
    %491 = vmatprep.subr.mxu0 0.0
    %492 = vmatpush1.msra.mxu0 0.0
    %493 = vmatprep.subr.mxu0 0.0
    %494 = vmatpush1.msra.mxu0 0.0
    %495 = vmatprep.subr.mxu0 0.0
    %496 = vmatpush1.msra.mxu0 0.0
    %497 = vmatprep.subr.mxu0 0.0
    %498 = vmatpush1.msra.mxu0 0.0
    %499 = vmatprep.subr.mxu0 0.0
    %500 = vmatpush1.msra.mxu0 0.0
    %501 = vmatprep.subr.mxu0 0.0
    %502 = vmatpush1.msra.mxu0 0.0
    %503 = vmatprep.subr.mxu0 0.0
    %504 = vmatpush1.msra.mxu0 0.0
    %505 = vmatprep.subr.mxu0 0.0
    %506 = vmatpush1.msra.mxu0 0.0
    %507 = vmatprep.subr.mxu0 0.0
    %508 = vmatpush1.msra.mxu0 0.0
    %509 = vmatprep.subr.mxu0 0.0
    %510 = vmatpush1.msra.mxu0 0.0
    %511 = vmatprep.subr.mxu0 0.0
    %512 = vmatpush1.msra.mxu0 0.0
    %513 = vmatprep.subr.mxu0 0.0
    %514 = vmatpush1.msra.mxu0 0.0
    %515 = vmatprep.subr.mxu0 0.0
    %516 = vmatpush1.msra.mxu0 0.0
    %517 = vmatprep.subr.mxu0 0.0
    %518 = vmatpush1.msra.mxu0 0.0
    %519 = vmatprep.subr.mxu0 0.0
    %520 = vmatpush1.msra.mxu0 0.0
    %521 = vmatprep.mubr.f32.mxu0 0.0
    %522 = vmatmul.mubr.f32.gmra.mrb[0].mxu0 %v455
    %v523 = vpop.f32.mrb[0].mxu0
    %v524 = vadd.f32 0.0, %v523
    %v525 = vpop.f32.mrb[0].mxu0
    %526 = vdwg.mxu0
    %v527 = vld [vmem:[%s3] sm:$0xff]
    %v528 = vld [vmem:[%s3 + $0x8] sm:$0xff]
    %v529 = vld [vmem:[%s3 + $0x10] sm:$0xff]
    %v530 = vld [vmem:[%s3 + $0x18] sm:$0xff]
    %531 = vmatprep.subr.mxu0 0.0
    %532 = vmatpush1.msra.mxu0 %v527
    %533 = vmatprep.subr.mxu0 0.0
    %534 = vmatpush1.msra.mxu0 %v528
    %535 = vmatprep.subr.mxu0 0.0
    %536 = vmatpush1.msra.mxu0 %v529
    %537 = vmatprep.subr.mxu0 0.0
    %538 = vmatpush1.msra.mxu0 %v530
    %539 = vmatprep.subr.mxu0 0.0
    %540 = vmatpush1.msra.mxu0 0.0
    %541 = vmatprep.subr.mxu0 0.0
    %542 = vmatpush1.msra.mxu0 0.0
    %543 = vmatprep.subr.mxu0 0.0
    %544 = vmatpush1.msra.mxu0 0.0
    %545 = vmatprep.subr.mxu0 0.0
    %546 = vmatpush1.msra.mxu0 0.0
    %547 = vmatprep.subr.mxu0 0.0
    %548 = vmatpush1.msra.mxu0 0.0
    %549 = vmatprep.subr.mxu0 0.0
    %550 = vmatpush1.msra.mxu0 0.0
    %551 = vmatprep.subr.mxu0 0.0
    %552 = vmatpush1.msra.mxu0 0.0
    %553 = vmatprep.subr.mxu0 0.0
    %554 = vmatpush1.msra.mxu0 0.0
    %555 = vmatprep.subr.mxu0 0.0
    %556 = vmatpush1.msra.mxu0 0.0
    %557 = vmatprep.subr.mxu0 0.0
    %558 = vmatpush1.msra.mxu0 0.0
    %559 = vmatprep.subr.mxu0 0.0
    %560 = vmatpush1.msra.mxu0 0.0
    %561 = vmatprep.subr.mxu0 0.0
    %562 = vmatpush1.msra.mxu0 0.0
    %563 = vmatprep.subr.mxu0 0.0
    %564 = vmatpush1.msra.mxu0 0.0
    %565 = vmatprep.subr.mxu0 0.0
    %566 = vmatpush1.msra.mxu0 0.0
    %567 = vmatprep.subr.mxu0 0.0
    %568 = vmatpush1.msra.mxu0 0.0
    %569 = vmatprep.subr.mxu0 0.0
    %570 = vmatpush1.msra.mxu0 0.0
    %571 = vmatprep.subr.mxu0 0.0
    %572 = vmatpush1.msra.mxu0 0.0
    %573 = vmatprep.subr.mxu0 0.0
    %574 = vmatpush1.msra.mxu0 0.0
    %575 = vmatprep.subr.mxu0 0.0
    %576 = vmatpush1.msra.mxu0 0.0
    %577 = vmatprep.subr.mxu0 0.0
    %578 = vmatpush1.msra.mxu0 0.0
    %579 = vmatprep.subr.mxu0 0.0
    %580 = vmatpush1.msra.mxu0 0.0
    %581 = vmatprep.subr.mxu0 0.0
    %582 = vmatpush1.msra.mxu0 0.0
    %583 = vmatprep.subr.mxu0 0.0
    %584 = vmatpush1.msra.mxu0 0.0
    %585 = vmatprep.subr.mxu0 0.0
    %586 = vmatpush1.msra.mxu0 0.0
    %587 = vmatprep.subr.mxu0 0.0
    %588 = vmatpush1.msra.mxu0 0.0
    %589 = vmatprep.subr.mxu0 0.0
    %590 = vmatpush1.msra.mxu0 0.0
    %591 = vmatprep.subr.mxu0 0.0
    %592 = vmatpush1.msra.mxu0 0.0
    %593 = vmatprep.subr.mxu0 0.0
    %594 = vmatpush1.msra.mxu0 0.0
    %595 = vmatprep.mubr.f32.mxu0 0.0
    %596 = vmatmul.mubr.f32.gmra.mrb[0].mxu0 %v455
    %v597 = vpop.f32.mrb[0].mxu0
    %v598 = vadd.f32 0.0, %v597
    %v599 = vpop.f32.mrb[0].mxu0
    %600 = vdwg.mxu0
    %601 = vxpose.xlu0.b32.start [1/16] %v598, 128
    %602 = vxpose.xlu0.b32.cont [2/16] 0.0, 128
    %603 = vxpose.xlu0.b32.cont [3/16] 0.0, 128
    %604 = vxpose.xlu0.b32.cont [4/16] 0.0, 128
    %605 = vxpose.xlu0.b32.cont [5/16] 0.0, 128
    %606 = vxpose.xlu0.b32.cont [6/16] 0.0, 128
    %607 = vxpose.xlu0.b32.cont [7/16] 0.0, 128
    %608 = vxpose.xlu0.b32.cont [8/16] 0.0, 128
    %609 = vxpose.xlu0.b32.cont [9/16] 0.0, 128
    %610 = vxpose.xlu0.b32.cont [10/16] 0.0, 128
    %611 = vxpose.xlu0.b32.cont [11/16] 0.0, 128
    %612 = vxpose.xlu0.b32.cont [12/16] 0.0, 128
    %613 = vxpose.xlu0.b32.cont [13/16] 0.0, 128
    %614 = vxpose.xlu0.b32.cont [14/16] 0.0, 128
    %615 = vxpose.xlu0.b32.cont [15/16] 0.0, 128
    %616 = vxpose.xlu0.b32.end [16/16] 0.0, 128
    %v617 = vpop.trf.xlu0
    %v618 = vpop.trf.xlu0
    %v619 = vpop.trf.xlu0
    %v620 = vpop.trf.xlu0
    %v621 = vpop.trf.xlu0
    %v622 = vpop.trf.xlu0
    %v623 = vpop.trf.xlu0
    %v624 = vpop.trf.xlu0
    %v625 = vpop.trf.xlu0
    %v626 = vpop.trf.xlu0
    %v627 = vpop.trf.xlu0
    %v628 = vpop.trf.xlu0
    %v629 = vpop.trf.xlu0
    %v630 = vpop.trf.xlu0
    %v631 = vpop.trf.xlu0
    %v632 = vpop.trf.xlu0
    %634 = vset.pattern.permute.xlu0 0
    %635 = vperm.xlu0 %634, %v524
    %v636 = vpop.permute.xlu0 %635
    %v638 = vlaneseq
    %v639 = vshrl.u32 %v638, 7
    %v640 = vsub.s32 0, %v639
    %v641 = vrot.slane %v617, %v640
    %v642 = vadd.f32 %v636, %v641
    %vm643 = vcmp.gt.f32.partialorder %v642, 0.0
    %v644 = vmul.f32 %v642, 0.2
    %v645 = vsel %vm643, %v642, %v644
    %vm646 = vcmp.gt.f32.partialorder %v367, 0.0
    %v647 = vsel %vm646, %v645, -1e+30
    %vm648 = vcmask 64512
    %v649 = vsel %vm648, %v647, -inf
    %650 = vmax.xlane.f32.xlu0 %v649
    %v651 = vpop.xlane.xlu0 %650
    %v652 = vsub.f32 %v647, %v651
    %v653 = vmul.f32 %v652, 1.442695
    %v654 = vpow.pop %v653
    %v655 = vmul.f32 %v654, %v367
    %v656 = vsel %vm648, %v655, 0.0
    %657 = vadd.xlane.f32.xlu0 %v656
    %v658 = vpop.xlane.xlu0 %657
    %v659 = vrcp.pop %v658
    %v660 = vmul.f32 %v655, %v659
    %v662 = vsel %vm648, %v660, 0
    %664 = vmatprep.subr.mxu0 0.0
    %665 = vmatpush1.msra.mxu0 %v446
    %666 = vmatprep.subr.mxu0 0.0
    %667 = vmatpush1.msra.mxu0 0.0
    %668 = vmatprep.subr.mxu0 0.0
    %669 = vmatpush1.msra.mxu0 0.0
    %670 = vmatprep.subr.mxu0 0.0
    %671 = vmatpush1.msra.mxu0 0.0
    %672 = vmatprep.subr.mxu0 0.0
    %673 = vmatpush1.msra.mxu0 0.0
    %674 = vmatprep.subr.mxu0 0.0
    %675 = vmatpush1.msra.mxu0 0.0
    %676 = vmatprep.subr.mxu0 0.0
    %677 = vmatpush1.msra.mxu0 0.0
    %678 = vmatprep.subr.mxu0 0.0
    %679 = vmatpush1.msra.mxu0 0.0
    %680 = vmatprep.subr.mxu0 0.0
    %681 = vmatpush1.msra.mxu0 0.0
    %682 = vmatprep.subr.mxu0 0.0
    %683 = vmatpush1.msra.mxu0 0.0
    %684 = vmatprep.subr.mxu0 0.0
    %685 = vmatpush1.msra.mxu0 0.0
    %686 = vmatprep.subr.mxu0 0.0
    %687 = vmatpush1.msra.mxu0 0.0
    %688 = vmatprep.subr.mxu0 0.0
    %689 = vmatpush1.msra.mxu0 0.0
    %690 = vmatprep.subr.mxu0 0.0
    %691 = vmatpush1.msra.mxu0 0.0
    %692 = vmatprep.subr.mxu0 0.0
    %693 = vmatpush1.msra.mxu0 0.0
    %694 = vmatprep.subr.mxu0 0.0
    %695 = vmatpush1.msra.mxu0 0.0
    %696 = vmatprep.subr.mxu0 0.0
    %697 = vmatpush1.msra.mxu0 0.0
    %698 = vmatprep.subr.mxu0 0.0
    %699 = vmatpush1.msra.mxu0 0.0
    %700 = vmatprep.subr.mxu0 0.0
    %701 = vmatpush1.msra.mxu0 0.0
    %702 = vmatprep.subr.mxu0 0.0
    %703 = vmatpush1.msra.mxu0 0.0
    %704 = vmatprep.subr.mxu0 0.0
    %705 = vmatpush1.msra.mxu0 0.0
    %706 = vmatprep.subr.mxu0 0.0
    %707 = vmatpush1.msra.mxu0 0.0
    %708 = vmatprep.subr.mxu0 0.0
    %709 = vmatpush1.msra.mxu0 0.0
    %710 = vmatprep.subr.mxu0 0.0
    %711 = vmatpush1.msra.mxu0 0.0
    %712 = vmatprep.subr.mxu0 0.0
    %713 = vmatpush1.msra.mxu0 0.0
    %714 = vmatprep.subr.mxu0 0.0
    %715 = vmatpush1.msra.mxu0 0.0
    %716 = vmatprep.subr.mxu0 0.0
    %717 = vmatpush1.msra.mxu0 0.0
    %718 = vmatprep.subr.mxu0 0.0
    %719 = vmatpush1.msra.mxu0 0.0
    %720 = vmatprep.subr.mxu0 0.0
    %721 = vmatpush1.msra.mxu0 0.0
    %722 = vmatprep.subr.mxu0 0.0
    %723 = vmatpush1.msra.mxu0 0.0
    %724 = vmatprep.subr.mxu0 0.0
    %725 = vmatpush1.msra.mxu0 0.0
    %726 = vmatprep.subr.mxu0 0.0
    %727 = vmatpush1.msra.mxu0 0.0
    %728 = vmatprep.mubr.f32.mxu0 0.0
    %729 = vmatmul.mubr.f32.gmra.mrb[0].mxu0 %v662
    %v730 = vpop.f32.mrb[0].mxu0
    %v731 = vadd.f32 0.0, %v730
    %v732 = vpop.f32.mrb[0].mxu0
    %733 = vdwg.mxu0
    %734 = vset.pattern.permute.xlu0 1
    %735 = vperm.xlu0 %734, %v524
    %v736 = vpop.permute.xlu0 %735
    %v738 = vlaneseq
    %v739 = vshrl.u32 %v738, 7
    %v740 = vsub.s32 1, %v739
    %v741 = vrot.slane %v617, %v740
    %v742 = vadd.f32 %v736, %v741
    %vm743 = vcmp.gt.f32.partialorder %v742, 0.0
    %v744 = vmul.f32 %v742, 0.2
    %v745 = vsel %vm743, %v742, %v744
    %v746 = vsel %vm646, %v745, -1e+30
    %v747 = vsel %vm648, %v746, -inf
    %748 = vmax.xlane.f32.xlu0 %v747
    %v749 = vpop.xlane.xlu0 %748
    %v750 = vsub.f32 %v746, %v749
    %v751 = vmul.f32 %v750, 1.442695
    %v752 = vpow.pop %v751
    %v753 = vmul.f32 %v752, %v367
    %v754 = vsel %vm648, %v753, 0.0
    %755 = vadd.xlane.f32.xlu0 %v754
    %v756 = vpop.xlane.xlu0 %755
    %v757 = vrcp.pop %v756
    %v758 = vmul.f32 %v753, %v757
    %759 = vrot.lane.b32.xlu0 %v446, 120
    %v760 = vpop.permute.xlu0 %759
    %v763 = vsel %vm648, %v758, 0
    %765 = vmatprep.subr.mxu0 0.0
    %766 = vmatpush1.msra.mxu0 %v760
    %767 = vmatprep.subr.mxu0 0.0
    %768 = vmatpush1.msra.mxu0 0.0
    %769 = vmatprep.subr.mxu0 0.0
    %770 = vmatpush1.msra.mxu0 0.0
    %771 = vmatprep.subr.mxu0 0.0
    %772 = vmatpush1.msra.mxu0 0.0
    %773 = vmatprep.subr.mxu0 0.0
    %774 = vmatpush1.msra.mxu0 0.0
    %775 = vmatprep.subr.mxu0 0.0
    %776 = vmatpush1.msra.mxu0 0.0
    %777 = vmatprep.subr.mxu0 0.0
    %778 = vmatpush1.msra.mxu0 0.0
    %779 = vmatprep.subr.mxu0 0.0
    %780 = vmatpush1.msra.mxu0 0.0
    %781 = vmatprep.subr.mxu0 0.0
    %782 = vmatpush1.msra.mxu0 0.0
    %783 = vmatprep.subr.mxu0 0.0
    %784 = vmatpush1.msra.mxu0 0.0
    %785 = vmatprep.subr.mxu0 0.0
    %786 = vmatpush1.msra.mxu0 0.0
    %787 = vmatprep.subr.mxu0 0.0
    %788 = vmatpush1.msra.mxu0 0.0
    %789 = vmatprep.subr.mxu0 0.0
    %790 = vmatpush1.msra.mxu0 0.0
    %791 = vmatprep.subr.mxu0 0.0
    %792 = vmatpush1.msra.mxu0 0.0
    %793 = vmatprep.subr.mxu0 0.0
    %794 = vmatpush1.msra.mxu0 0.0
    %795 = vmatprep.subr.mxu0 0.0
    %796 = vmatpush1.msra.mxu0 0.0
    %797 = vmatprep.subr.mxu0 0.0
    %798 = vmatpush1.msra.mxu0 0.0
    %799 = vmatprep.subr.mxu0 0.0
    %800 = vmatpush1.msra.mxu0 0.0
    %801 = vmatprep.subr.mxu0 0.0
    %802 = vmatpush1.msra.mxu0 0.0
    %803 = vmatprep.subr.mxu0 0.0
    %804 = vmatpush1.msra.mxu0 0.0
    %805 = vmatprep.subr.mxu0 0.0
    %806 = vmatpush1.msra.mxu0 0.0
    %807 = vmatprep.subr.mxu0 0.0
    %808 = vmatpush1.msra.mxu0 0.0
    %809 = vmatprep.subr.mxu0 0.0
    %810 = vmatpush1.msra.mxu0 0.0
    %811 = vmatprep.subr.mxu0 0.0
    %812 = vmatpush1.msra.mxu0 0.0
    %813 = vmatprep.subr.mxu0 0.0
    %814 = vmatpush1.msra.mxu0 0.0
    %815 = vmatprep.subr.mxu0 0.0
    %816 = vmatpush1.msra.mxu0 0.0
    %817 = vmatprep.subr.mxu0 0.0
    %818 = vmatpush1.msra.mxu0 0.0
    %819 = vmatprep.subr.mxu0 0.0
    %820 = vmatpush1.msra.mxu0 0.0
    %821 = vmatprep.subr.mxu0 0.0
    %822 = vmatpush1.msra.mxu0 0.0
    %823 = vmatprep.subr.mxu0 0.0
    %824 = vmatpush1.msra.mxu0 0.0
    %825 = vmatprep.subr.mxu0 0.0
    %826 = vmatpush1.msra.mxu0 0.0
    %827 = vmatprep.subr.mxu0 0.0
    %828 = vmatpush1.msra.mxu0 0.0
    %829 = vmatprep.mubr.f32.mxu0 0.0
    %830 = vmatmul.mubr.f32.gmra.mrb[0].mxu0 %v763
    %v831 = vpop.f32.mrb[0].mxu0
    %v832 = vadd.f32 0.0, %v831
    %v833 = vpop.f32.mrb[0].mxu0
    %834 = vdwg.mxu0
    %835 = vset.pattern.permute.xlu0 2
    %836 = vperm.xlu0 %835, %v524
    %v837 = vpop.permute.xlu0 %836
    %v839 = vlaneseq
    %v840 = vshrl.u32 %v839, 7
    %v841 = vsub.s32 2, %v840
    %v842 = vrot.slane %v617, %v841
    %v843 = vadd.f32 %v837, %v842
    %vm844 = vcmp.gt.f32.partialorder %v843, 0.0
    %v845 = vmul.f32 %v843, 0.2
    %v846 = vsel %vm844, %v843, %v845
    %v847 = vsel %vm646, %v846, -1e+30
    %v848 = vsel %vm648, %v847, -inf
    %849 = vmax.xlane.f32.xlu0 %v848
    %v850 = vpop.xlane.xlu0 %849
    %v851 = vsub.f32 %v847, %v850
    %v852 = vmul.f32 %v851, 1.442695
    %v853 = vpow.pop %v852
    %v854 = vmul.f32 %v853, %v367
    %v855 = vsel %vm648, %v854, 0.0
    %856 = vadd.xlane.f32.xlu0 %v855
    %v857 = vpop.xlane.xlu0 %856
    %v858 = vrcp.pop %v857
    %v859 = vmul.f32 %v854, %v858
    %860 = vrot.lane.b32.xlu0 %v446, 112
    %v861 = vpop.permute.xlu0 %860
    %v864 = vsel %vm648, %v859, 0
    %866 = vmatprep.subr.mxu0 0.0
    %867 = vmatpush1.msra.mxu0 %v861
    %868 = vmatprep.subr.mxu0 0.0
    %869 = vmatpush1.msra.mxu0 0.0
    %870 = vmatprep.subr.mxu0 0.0
    %871 = vmatpush1.msra.mxu0 0.0
    %872 = vmatprep.subr.mxu0 0.0
    %873 = vmatpush1.msra.mxu0 0.0
    %874 = vmatprep.subr.mxu0 0.0
    %875 = vmatpush1.msra.mxu0 0.0
    %876 = vmatprep.subr.mxu0 0.0
    %877 = vmatpush1.msra.mxu0 0.0
    %878 = vmatprep.subr.mxu0 0.0
    %879 = vmatpush1.msra.mxu0 0.0
    %880 = vmatprep.subr.mxu0 0.0
    %881 = vmatpush1.msra.mxu0 0.0
    %882 = vmatprep.subr.mxu0 0.0
    %883 = vmatpush1.msra.mxu0 0.0
    %884 = vmatprep.subr.mxu0 0.0
    %885 = vmatpush1.msra.mxu0 0.0
    %886 = vmatprep.subr.mxu0 0.0
    %887 = vmatpush1.msra.mxu0 0.0
    %888 = vmatprep.subr.mxu0 0.0
    %889 = vmatpush1.msra.mxu0 0.0
    %890 = vmatprep.subr.mxu0 0.0
    %891 = vmatpush1.msra.mxu0 0.0
    %892 = vmatprep.subr.mxu0 0.0
    %893 = vmatpush1.msra.mxu0 0.0
    %894 = vmatprep.subr.mxu0 0.0
    %895 = vmatpush1.msra.mxu0 0.0
    %896 = vmatprep.subr.mxu0 0.0
    %897 = vmatpush1.msra.mxu0 0.0
    %898 = vmatprep.subr.mxu0 0.0
    %899 = vmatpush1.msra.mxu0 0.0
    %900 = vmatprep.subr.mxu0 0.0
    %901 = vmatpush1.msra.mxu0 0.0
    %902 = vmatprep.subr.mxu0 0.0
    %903 = vmatpush1.msra.mxu0 0.0
    %904 = vmatprep.subr.mxu0 0.0
    %905 = vmatpush1.msra.mxu0 0.0
    %906 = vmatprep.subr.mxu0 0.0
    %907 = vmatpush1.msra.mxu0 0.0
    %908 = vmatprep.subr.mxu0 0.0
    %909 = vmatpush1.msra.mxu0 0.0
    %910 = vmatprep.subr.mxu0 0.0
    %911 = vmatpush1.msra.mxu0 0.0
    %912 = vmatprep.subr.mxu0 0.0
    %913 = vmatpush1.msra.mxu0 0.0
    %914 = vmatprep.subr.mxu0 0.0
    %915 = vmatpush1.msra.mxu0 0.0
    %916 = vmatprep.subr.mxu0 0.0
    %917 = vmatpush1.msra.mxu0 0.0
    %918 = vmatprep.subr.mxu0 0.0
    %919 = vmatpush1.msra.mxu0 0.0
    %920 = vmatprep.subr.mxu0 0.0
    %921 = vmatpush1.msra.mxu0 0.0
    %922 = vmatprep.subr.mxu0 0.0
    %923 = vmatpush1.msra.mxu0 0.0
    %924 = vmatprep.subr.mxu0 0.0
    %925 = vmatpush1.msra.mxu0 0.0
    %926 = vmatprep.subr.mxu0 0.0
    %927 = vmatpush1.msra.mxu0 0.0
    %928 = vmatprep.subr.mxu0 0.0
    %929 = vmatpush1.msra.mxu0 0.0
    %930 = vmatprep.mubr.f32.mxu0 0.0
    %931 = vmatmul.mubr.f32.gmra.mrb[0].mxu0 %v864
    %v932 = vpop.f32.mrb[0].mxu0
    %v933 = vadd.f32 0.0, %v932
    %v934 = vpop.f32.mrb[0].mxu0
    %935 = vdwg.mxu0
    %936 = vset.pattern.permute.xlu0 3
    %937 = vperm.xlu0 %936, %v524
    %v938 = vpop.permute.xlu0 %937
    %v940 = vlaneseq
    %v941 = vshrl.u32 %v940, 7
    %v942 = vsub.s32 3, %v941
    %v943 = vrot.slane %v617, %v942
    %v944 = vadd.f32 %v938, %v943
    %vm945 = vcmp.gt.f32.partialorder %v944, 0.0
    %v946 = vmul.f32 %v944, 0.2
    %v947 = vsel %vm945, %v944, %v946
    %v948 = vsel %vm646, %v947, -1e+30
    %v949 = vsel %vm648, %v948, -inf
    %950 = vmax.xlane.f32.xlu0 %v949
    %v951 = vpop.xlane.xlu0 %950
    %v952 = vsub.f32 %v948, %v951
    %v953 = vmul.f32 %v952, 1.442695
    %v954 = vpow.pop %v953
    %v955 = vmul.f32 %v954, %v367
    %v956 = vsel %vm648, %v955, 0.0
    %957 = vadd.xlane.f32.xlu0 %v956
    %v958 = vpop.xlane.xlu0 %957
    %v959 = vrcp.pop %v958
    %v960 = vmul.f32 %v955, %v959
    %961 = vrot.lane.b32.xlu0 %v446, 104
    %v962 = vpop.permute.xlu0 %961
    %v965 = vsel %vm648, %v960, 0
    %967 = vmatprep.subr.mxu0 0.0
    %968 = vmatpush1.msra.mxu0 %v962
    %969 = vmatprep.subr.mxu0 0.0
    %970 = vmatpush1.msra.mxu0 0.0
    %971 = vmatprep.subr.mxu0 0.0
    %972 = vmatpush1.msra.mxu0 0.0
    %973 = vmatprep.subr.mxu0 0.0
    %974 = vmatpush1.msra.mxu0 0.0
    %975 = vmatprep.subr.mxu0 0.0
    %976 = vmatpush1.msra.mxu0 0.0
    %977 = vmatprep.subr.mxu0 0.0
    %978 = vmatpush1.msra.mxu0 0.0
    %979 = vmatprep.subr.mxu0 0.0
    %980 = vmatpush1.msra.mxu0 0.0
    %981 = vmatprep.subr.mxu0 0.0
    %982 = vmatpush1.msra.mxu0 0.0
    %983 = vmatprep.subr.mxu0 0.0
    %984 = vmatpush1.msra.mxu0 0.0
    %985 = vmatprep.subr.mxu0 0.0
    %986 = vmatpush1.msra.mxu0 0.0
    %987 = vmatprep.subr.mxu0 0.0
    %988 = vmatpush1.msra.mxu0 0.0
    %989 = vmatprep.subr.mxu0 0.0
    %990 = vmatpush1.msra.mxu0 0.0
    %991 = vmatprep.subr.mxu0 0.0
    %992 = vmatpush1.msra.mxu0 0.0
    %993 = vmatprep.subr.mxu0 0.0
    %994 = vmatpush1.msra.mxu0 0.0
    %995 = vmatprep.subr.mxu0 0.0
    %996 = vmatpush1.msra.mxu0 0.0
    %997 = vmatprep.subr.mxu0 0.0
    %998 = vmatpush1.msra.mxu0 0.0
    %999 = vmatprep.subr.mxu0 0.0
    %1000 = vmatpush1.msra.mxu0 0.0
    %1001 = vmatprep.subr.mxu0 0.0
    %1002 = vmatpush1.msra.mxu0 0.0
    %1003 = vmatprep.subr.mxu0 0.0
    %1004 = vmatpush1.msra.mxu0 0.0
    %1005 = vmatprep.subr.mxu0 0.0
    %1006 = vmatpush1.msra.mxu0 0.0
    %1007 = vmatprep.subr.mxu0 0.0
    %1008 = vmatpush1.msra.mxu0 0.0
    %1009 = vmatprep.subr.mxu0 0.0
    %1010 = vmatpush1.msra.mxu0 0.0
    %1011 = vmatprep.subr.mxu0 0.0
    %1012 = vmatpush1.msra.mxu0 0.0
    %1013 = vmatprep.subr.mxu0 0.0
    %1014 = vmatpush1.msra.mxu0 0.0
    %1015 = vmatprep.subr.mxu0 0.0
    %1016 = vmatpush1.msra.mxu0 0.0
    %1017 = vmatprep.subr.mxu0 0.0
    %1018 = vmatpush1.msra.mxu0 0.0
    %1019 = vmatprep.subr.mxu0 0.0
    %1020 = vmatpush1.msra.mxu0 0.0
    %1021 = vmatprep.subr.mxu0 0.0
    %1022 = vmatpush1.msra.mxu0 0.0
    %1023 = vmatprep.subr.mxu0 0.0
    %1024 = vmatpush1.msra.mxu0 0.0
    %1025 = vmatprep.subr.mxu0 0.0
    %1026 = vmatpush1.msra.mxu0 0.0
    %1027 = vmatprep.subr.mxu0 0.0
    %1028 = vmatpush1.msra.mxu0 0.0
    %1029 = vmatprep.subr.mxu0 0.0
    %1030 = vmatpush1.msra.mxu0 0.0
    %1031 = vmatprep.mubr.f32.mxu0 0.0
    %1032 = vmatmul.mubr.f32.gmra.mrb[0].mxu0 %v965
    %v1033 = vpop.f32.mrb[0].mxu0
    %v1034 = vadd.f32 0.0, %v1033
    %v1035 = vpop.f32.mrb[0].mxu0
    %1036 = vdwg.mxu0
    %1038 = vrot.lane.b32.xlu0 %v832, 8
    %v1039 = vpop.permute.xlu0 %1038
    %1042 = vrot.lane.b32.xlu0 %v933, 16
    %v1043 = vpop.permute.xlu0 %1042
    %1046 = vrot.lane.b32.xlu0 %v1034, 24
    %v1047 = vpop.permute.xlu0 %1046
    %v1049 = vsel %vm648, %v731, %v1039
    %vm1050 = vcmask 130048
    %v1051 = vsel %vm1050, %v1049, %v1043
    %vm1052 = vcmask 195584
    %v1053 = vsel %vm1052, %v1051, %v1047
    %v1054 = vld [vmem:[#allocation8] sm:$0x1]
    %v1056 = vlaneseq
    %v1057 = vshrl.u32 %v1056, 7
    %v1058 = vsub.s32 0, %v1057
    %v1059 = vrot.slane %v1054, %v1058
    %v1061 = vadd.f32 %v1053, %v1059
    %v1062 = vmax.f32 %v1061, 0.0
    %v1063 = vld [vmem:[%s6] sm:$0xff]
    %v1064 = vld [vmem:[%s6 + $0x8] sm:$0xff]
    %v1065 = vld [vmem:[%s6 + $0x10] sm:$0xff]
    %v1066 = vld [vmem:[%s6 + $0x18] sm:$0xff]
    %v1068 = vsel %vm453, %v1062, 0
    %1070 = vmatprep.subr.mxu0 0.0
    %1071 = vmatpush1.msra.mxu0 %v1063
    %1072 = vmatprep.subr.mxu0 0.0
    %1073 = vmatpush1.msra.mxu0 %v1064
    %1074 = vmatprep.subr.mxu0 0.0
    %1075 = vmatpush1.msra.mxu0 %v1065
    %1076 = vmatprep.subr.mxu0 0.0
    %1077 = vmatpush1.msra.mxu0 %v1066
    %1078 = vmatprep.subr.mxu0 0.0
    %1079 = vmatpush1.msra.mxu0 0.0
    %1080 = vmatprep.subr.mxu0 0.0
    %1081 = vmatpush1.msra.mxu0 0.0
    %1082 = vmatprep.subr.mxu0 0.0
    %1083 = vmatpush1.msra.mxu0 0.0
    %1084 = vmatprep.subr.mxu0 0.0
    %1085 = vmatpush1.msra.mxu0 0.0
    %1086 = vmatprep.subr.mxu0 0.0
    %1087 = vmatpush1.msra.mxu0 0.0
    %1088 = vmatprep.subr.mxu0 0.0
    %1089 = vmatpush1.msra.mxu0 0.0
    %1090 = vmatprep.subr.mxu0 0.0
    %1091 = vmatpush1.msra.mxu0 0.0
    %1092 = vmatprep.subr.mxu0 0.0
    %1093 = vmatpush1.msra.mxu0 0.0
    %1094 = vmatprep.subr.mxu0 0.0
    %1095 = vmatpush1.msra.mxu0 0.0
    %1096 = vmatprep.subr.mxu0 0.0
    %1097 = vmatpush1.msra.mxu0 0.0
    %1098 = vmatprep.subr.mxu0 0.0
    %1099 = vmatpush1.msra.mxu0 0.0
    %1100 = vmatprep.subr.mxu0 0.0
    %1101 = vmatpush1.msra.mxu0 0.0
    %1102 = vmatprep.subr.mxu0 0.0
    %1103 = vmatpush1.msra.mxu0 0.0
    %1104 = vmatprep.subr.mxu0 0.0
    %1105 = vmatpush1.msra.mxu0 0.0
    %1106 = vmatprep.subr.mxu0 0.0
    %1107 = vmatpush1.msra.mxu0 0.0
    %1108 = vmatprep.subr.mxu0 0.0
    %1109 = vmatpush1.msra.mxu0 0.0
    %1110 = vmatprep.subr.mxu0 0.0
    %1111 = vmatpush1.msra.mxu0 0.0
    %1112 = vmatprep.subr.mxu0 0.0
    %1113 = vmatpush1.msra.mxu0 0.0
    %1114 = vmatprep.subr.mxu0 0.0
    %1115 = vmatpush1.msra.mxu0 0.0
    %1116 = vmatprep.subr.mxu0 0.0
    %1117 = vmatpush1.msra.mxu0 0.0
    %1118 = vmatprep.subr.mxu0 0.0
    %1119 = vmatpush1.msra.mxu0 0.0
    %1120 = vmatprep.subr.mxu0 0.0
    %1121 = vmatpush1.msra.mxu0 0.0
    %1122 = vmatprep.subr.mxu0 0.0
    %1123 = vmatpush1.msra.mxu0 0.0
    %1124 = vmatprep.subr.mxu0 0.0
    %1125 = vmatpush1.msra.mxu0 0.0
    %1126 = vmatprep.subr.mxu0 0.0
    %1127 = vmatpush1.msra.mxu0 0.0
    %1128 = vmatprep.subr.mxu0 0.0
    %1129 = vmatpush1.msra.mxu0 0.0
    %1130 = vmatprep.subr.mxu0 0.0
    %1131 = vmatpush1.msra.mxu0 0.0
    %1132 = vmatprep.subr.mxu0 0.0
    %1133 = vmatpush1.msra.mxu0 0.0
    %1134 = vmatprep.mubr.f32.mxu0 0.0
    %1135 = vmatmul.mubr.f32.gmra.mrb[0].mxu0 %v1068
    %v1136 = vpop.f32.mrb[0].mxu0
    %v1137 = vadd.f32 0.0, %v1136
    %v1138 = vpop.f32.mrb[0].mxu0
    %1139 = vdwg.mxu0
    %v1140 = vld [vmem:[%s8] sm:$0xff]
    %v1141 = vld [vmem:[%s8 + $0x8] sm:$0x1]
    %v1143 = vsel %vm371, %v1137, 0
    %v1146 = vsel %vm375, %v1141, 0
    %1148 = vmatprep.subr.mxu0 0.0
    %1149 = vmatpush1.msra.mxu0 %v1140
    %1150 = vmatprep.subr.mxu0 0.0
    %1151 = vmatpush1.msra.mxu0 %v1146
    %1152 = vmatprep.subr.mxu0 0.0
    %1153 = vmatpush1.msra.mxu0 0.0
    %1154 = vmatprep.subr.mxu0 0.0
    %1155 = vmatpush1.msra.mxu0 0.0
    %1156 = vmatprep.subr.mxu0 0.0
    %1157 = vmatpush1.msra.mxu0 0.0
    %1158 = vmatprep.subr.mxu0 0.0
    %1159 = vmatpush1.msra.mxu0 0.0
    %1160 = vmatprep.subr.mxu0 0.0
    %1161 = vmatpush1.msra.mxu0 0.0
    %1162 = vmatprep.subr.mxu0 0.0
    %1163 = vmatpush1.msra.mxu0 0.0
    %1164 = vmatprep.subr.mxu0 0.0
    %1165 = vmatpush1.msra.mxu0 0.0
    %1166 = vmatprep.subr.mxu0 0.0
    %1167 = vmatpush1.msra.mxu0 0.0
    %1168 = vmatprep.subr.mxu0 0.0
    %1169 = vmatpush1.msra.mxu0 0.0
    %1170 = vmatprep.subr.mxu0 0.0
    %1171 = vmatpush1.msra.mxu0 0.0
    %1172 = vmatprep.subr.mxu0 0.0
    %1173 = vmatpush1.msra.mxu0 0.0
    %1174 = vmatprep.subr.mxu0 0.0
    %1175 = vmatpush1.msra.mxu0 0.0
    %1176 = vmatprep.subr.mxu0 0.0
    %1177 = vmatpush1.msra.mxu0 0.0
    %1178 = vmatprep.subr.mxu0 0.0
    %1179 = vmatpush1.msra.mxu0 0.0
    %1180 = vmatprep.subr.mxu0 0.0
    %1181 = vmatpush1.msra.mxu0 0.0
    %1182 = vmatprep.subr.mxu0 0.0
    %1183 = vmatpush1.msra.mxu0 0.0
    %1184 = vmatprep.subr.mxu0 0.0
    %1185 = vmatpush1.msra.mxu0 0.0
    %1186 = vmatprep.subr.mxu0 0.0
    %1187 = vmatpush1.msra.mxu0 0.0
    %1188 = vmatprep.subr.mxu0 0.0
    %1189 = vmatpush1.msra.mxu0 0.0
    %1190 = vmatprep.subr.mxu0 0.0
    %1191 = vmatpush1.msra.mxu0 0.0
    %1192 = vmatprep.subr.mxu0 0.0
    %1193 = vmatpush1.msra.mxu0 0.0
    %1194 = vmatprep.subr.mxu0 0.0
    %1195 = vmatpush1.msra.mxu0 0.0
    %1196 = vmatprep.subr.mxu0 0.0
    %1197 = vmatpush1.msra.mxu0 0.0
    %1198 = vmatprep.subr.mxu0 0.0
    %1199 = vmatpush1.msra.mxu0 0.0
    %1200 = vmatprep.subr.mxu0 0.0
    %1201 = vmatpush1.msra.mxu0 0.0
    %1202 = vmatprep.subr.mxu0 0.0
    %1203 = vmatpush1.msra.mxu0 0.0
    %1204 = vmatprep.subr.mxu0 0.0
    %1205 = vmatpush1.msra.mxu0 0.0
    %1206 = vmatprep.subr.mxu0 0.0
    %1207 = vmatpush1.msra.mxu0 0.0
    %1208 = vmatprep.subr.mxu0 0.0
    %1209 = vmatpush1.msra.mxu0 0.0
    %1210 = vmatprep.subr.mxu0 0.0
    %1211 = vmatpush1.msra.mxu0 0.0
    %1212 = vmatprep.mubr.f32.mxu0 0.0
    %1213 = vmatmul.mubr.f32.gmra.mrb[0].mxu0 %v1143
    %v1214 = vpop.f32.mrb[0].mxu0
    %v1215 = vadd.f32 0.0, %v1214
    %v1216 = vpop.f32.mrb[0].mxu0
    %1217 = vdwg.mxu0
    %v1218 = vld [vmem:[%s7] sm:$0xff]
    %v1219 = vld [vmem:[%s7 + $0x8] sm:$0x1]
    %v1221 = vsel %vm375, %v1219, 0
    %1223 = vmatprep.subr.mxu0 0.0
    %1224 = vmatpush1.msra.mxu0 %v1218
    %1225 = vmatprep.subr.mxu0 0.0
    %1226 = vmatpush1.msra.mxu0 %v1221
    %1227 = vmatprep.subr.mxu0 0.0
    %1228 = vmatpush1.msra.mxu0 0.0
    %1229 = vmatprep.subr.mxu0 0.0
    %1230 = vmatpush1.msra.mxu0 0.0
    %1231 = vmatprep.subr.mxu0 0.0
    %1232 = vmatpush1.msra.mxu0 0.0
    %1233 = vmatprep.subr.mxu0 0.0
    %1234 = vmatpush1.msra.mxu0 0.0
    %1235 = vmatprep.subr.mxu0 0.0
    %1236 = vmatpush1.msra.mxu0 0.0
    %1237 = vmatprep.subr.mxu0 0.0
    %1238 = vmatpush1.msra.mxu0 0.0
    %1239 = vmatprep.subr.mxu0 0.0
    %1240 = vmatpush1.msra.mxu0 0.0
    %1241 = vmatprep.subr.mxu0 0.0
    %1242 = vmatpush1.msra.mxu0 0.0
    %1243 = vmatprep.subr.mxu0 0.0
    %1244 = vmatpush1.msra.mxu0 0.0
    %1245 = vmatprep.subr.mxu0 0.0
    %1246 = vmatpush1.msra.mxu0 0.0
    %1247 = vmatprep.subr.mxu0 0.0
    %1248 = vmatpush1.msra.mxu0 0.0
    %1249 = vmatprep.subr.mxu0 0.0
    %1250 = vmatpush1.msra.mxu0 0.0
    %1251 = vmatprep.subr.mxu0 0.0
    %1252 = vmatpush1.msra.mxu0 0.0
    %1253 = vmatprep.subr.mxu0 0.0
    %1254 = vmatpush1.msra.mxu0 0.0
    %1255 = vmatprep.subr.mxu0 0.0
    %1256 = vmatpush1.msra.mxu0 0.0
    %1257 = vmatprep.subr.mxu0 0.0
    %1258 = vmatpush1.msra.mxu0 0.0
    %1259 = vmatprep.subr.mxu0 0.0
    %1260 = vmatpush1.msra.mxu0 0.0
    %1261 = vmatprep.subr.mxu0 0.0
    %1262 = vmatpush1.msra.mxu0 0.0
    %1263 = vmatprep.subr.mxu0 0.0
    %1264 = vmatpush1.msra.mxu0 0.0
    %1265 = vmatprep.subr.mxu0 0.0
    %1266 = vmatpush1.msra.mxu0 0.0
    %1267 = vmatprep.subr.mxu0 0.0
    %1268 = vmatpush1.msra.mxu0 0.0
    %1269 = vmatprep.subr.mxu0 0.0
    %1270 = vmatpush1.msra.mxu0 0.0
    %1271 = vmatprep.subr.mxu0 0.0
    %1272 = vmatpush1.msra.mxu0 0.0
    %1273 = vmatprep.subr.mxu0 0.0
    %1274 = vmatpush1.msra.mxu0 0.0
    %1275 = vmatprep.subr.mxu0 0.0
    %1276 = vmatpush1.msra.mxu0 0.0
    %1277 = vmatprep.subr.mxu0 0.0
    %1278 = vmatpush1.msra.mxu0 0.0
    %1279 = vmatprep.subr.mxu0 0.0
    %1280 = vmatpush1.msra.mxu0 0.0
    %1281 = vmatprep.subr.mxu0 0.0
    %1282 = vmatpush1.msra.mxu0 0.0
    %1283 = vmatprep.subr.mxu0 0.0
    %1284 = vmatpush1.msra.mxu0 0.0
    %1285 = vmatprep.subr.mxu0 0.0
    %1286 = vmatpush1.msra.mxu0 0.0
    %1287 = vmatprep.mubr.f32.mxu0 0.0
    %1288 = vmatmul.mubr.f32.gmra.mrb[0].mxu0 %v1143
    %v1289 = vpop.f32.mrb[0].mxu0
    %v1290 = vadd.f32 0.0, %v1289
    %v1291 = vpop.f32.mrb[0].mxu0
    %1292 = vdwg.mxu0
    %1293 = vxpose.xlu0.b32.start [1/16] %v1290, 128
    %1294 = vxpose.xlu0.b32.cont [2/16] 0.0, 128
    %1295 = vxpose.xlu0.b32.cont [3/16] 0.0, 128
    %1296 = vxpose.xlu0.b32.cont [4/16] 0.0, 128
    %1297 = vxpose.xlu0.b32.cont [5/16] 0.0, 128
    %1298 = vxpose.xlu0.b32.cont [6/16] 0.0, 128
    %1299 = vxpose.xlu0.b32.cont [7/16] 0.0, 128
    %1300 = vxpose.xlu0.b32.cont [8/16] 0.0, 128
    %1301 = vxpose.xlu0.b32.cont [9/16] 0.0, 128
    %1302 = vxpose.xlu0.b32.cont [10/16] 0.0, 128
    %1303 = vxpose.xlu0.b32.cont [11/16] 0.0, 128
    %1304 = vxpose.xlu0.b32.cont [12/16] 0.0, 128
    %1305 = vxpose.xlu0.b32.cont [13/16] 0.0, 128
    %1306 = vxpose.xlu0.b32.cont [14/16] 0.0, 128
    %1307 = vxpose.xlu0.b32.cont [15/16] 0.0, 128
    %1308 = vxpose.xlu0.b32.end [16/16] 0.0, 128
    %v1309 = vpop.trf.xlu0
    %v1310 = vpop.trf.xlu0
    %v1311 = vpop.trf.xlu0
    %v1312 = vpop.trf.xlu0
    %v1313 = vpop.trf.xlu0
    %v1314 = vpop.trf.xlu0
    %v1315 = vpop.trf.xlu0
    %v1316 = vpop.trf.xlu0
    %v1317 = vpop.trf.xlu0
    %v1318 = vpop.trf.xlu0
    %v1319 = vpop.trf.xlu0
    %v1320 = vpop.trf.xlu0
    %v1321 = vpop.trf.xlu0
    %v1322 = vpop.trf.xlu0
    %v1323 = vpop.trf.xlu0
    %v1324 = vpop.trf.xlu0
    %1326 = vset.pattern.permute.xlu0 0
    %1327 = vperm.xlu0 %1326, %v1215
    %v1328 = vpop.permute.xlu0 %1327
    %v1330 = vlaneseq
    %v1331 = vshrl.u32 %v1330, 7
    %v1332 = vsub.s32 0, %v1331
    %v1333 = vrot.slane %v1309, %v1332
    %v1334 = vadd.f32 %v1328, %v1333
    %vm1335 = vcmp.gt.f32.partialorder %v1334, 0.0
    %v1336 = vmul.f32 %v1334, 0.2
    %v1337 = vsel %vm1335, %v1334, %v1336
    %v1338 = vsel %vm646, %v1337, -1e+30
    %v1339 = vsel %vm648, %v1338, -inf
    %1340 = vmax.xlane.f32.xlu0 %v1339
    %v1341 = vpop.xlane.xlu0 %1340
    %v1342 = vsub.f32 %v1338, %v1341
    %v1343 = vmul.f32 %v1342, 1.442695
    %v1344 = vpow.pop %v1343
    %v1345 = vmul.f32 %v1344, %v367
    %v1346 = vsel %vm648, %v1345, 0.0
    %1347 = vadd.xlane.f32.xlu0 %v1346
    %v1348 = vpop.xlane.xlu0 %1347
    %v1349 = vrcp.pop %v1348
    %v1350 = vmul.f32 %v1345, %v1349
    %v1351 = vld [vmem:[#allocation9] sm:$0x1]
    %v1353 = vlaneseq
    %v1354 = vshrl.u32 %v1353, 7
    %v1355 = vsub.s32 0, %v1354
    %v1356 = vrot.slane %v1351, %v1355
    %v1359 = vsel %vm648, %v1350, 0
    %1361 = vmatprep.subr.mxu0 0.0
    %1362 = vmatpush1.msra.mxu0 %v1137
    %1363 = vmatprep.subr.mxu0 0.0
    %1364 = vmatpush1.msra.mxu0 0.0
    %1365 = vmatprep.subr.mxu0 0.0
    %1366 = vmatpush1.msra.mxu0 0.0
    %1367 = vmatprep.subr.mxu0 0.0
    %1368 = vmatpush1.msra.mxu0 0.0
    %1369 = vmatprep.subr.mxu0 0.0
    %1370 = vmatpush1.msra.mxu0 0.0
    %1371 = vmatprep.subr.mxu0 0.0
    %1372 = vmatpush1.msra.mxu0 0.0
    %1373 = vmatprep.subr.mxu0 0.0
    %1374 = vmatpush1.msra.mxu0 0.0
    %1375 = vmatprep.subr.mxu0 0.0
    %1376 = vmatpush1.msra.mxu0 0.0
    %1377 = vmatprep.subr.mxu0 0.0
    %1378 = vmatpush1.msra.mxu0 0.0
    %1379 = vmatprep.subr.mxu0 0.0
    %1380 = vmatpush1.msra.mxu0 0.0
    %1381 = vmatprep.subr.mxu0 0.0
    %1382 = vmatpush1.msra.mxu0 0.0
    %1383 = vmatprep.subr.mxu0 0.0
    %1384 = vmatpush1.msra.mxu0 0.0
    %1385 = vmatprep.subr.mxu0 0.0
    %1386 = vmatpush1.msra.mxu0 0.0
    %1387 = vmatprep.subr.mxu0 0.0
    %1388 = vmatpush1.msra.mxu0 0.0
    %1389 = vmatprep.subr.mxu0 0.0
    %1390 = vmatpush1.msra.mxu0 0.0
    %1391 = vmatprep.subr.mxu0 0.0
    %1392 = vmatpush1.msra.mxu0 0.0
    %1393 = vmatprep.subr.mxu0 0.0
    %1394 = vmatpush1.msra.mxu0 0.0
    %1395 = vmatprep.subr.mxu0 0.0
    %1396 = vmatpush1.msra.mxu0 0.0
    %1397 = vmatprep.subr.mxu0 0.0
    %1398 = vmatpush1.msra.mxu0 0.0
    %1399 = vmatprep.subr.mxu0 0.0
    %1400 = vmatpush1.msra.mxu0 0.0
    %1401 = vmatprep.subr.mxu0 0.0
    %1402 = vmatpush1.msra.mxu0 0.0
    %1403 = vmatprep.subr.mxu0 0.0
    %1404 = vmatpush1.msra.mxu0 0.0
    %1405 = vmatprep.subr.mxu0 0.0
    %1406 = vmatpush1.msra.mxu0 0.0
    %1407 = vmatprep.subr.mxu0 0.0
    %1408 = vmatpush1.msra.mxu0 0.0
    %1409 = vmatprep.subr.mxu0 0.0
    %1410 = vmatpush1.msra.mxu0 0.0
    %1411 = vmatprep.subr.mxu0 0.0
    %1412 = vmatpush1.msra.mxu0 0.0
    %1413 = vmatprep.subr.mxu0 0.0
    %1414 = vmatpush1.msra.mxu0 0.0
    %1415 = vmatprep.subr.mxu0 0.0
    %1416 = vmatpush1.msra.mxu0 0.0
    %1417 = vmatprep.subr.mxu0 0.0
    %1418 = vmatpush1.msra.mxu0 0.0
    %1419 = vmatprep.subr.mxu0 0.0
    %1420 = vmatpush1.msra.mxu0 0.0
    %1421 = vmatprep.subr.mxu0 0.0
    %1422 = vmatpush1.msra.mxu0 0.0
    %1423 = vmatprep.subr.mxu0 0.0
    %1424 = vmatpush1.msra.mxu0 0.0
    %1425 = vmatprep.mubr.f32.mxu0 0.0
    %1426 = vmatmul.mubr.f32.gmra.mrb[0].mxu0 %v1359
    %v1427 = vpop.f32.mrb[0].mxu0
    %v1428 = vadd.f32 %v1356, %v1427
    %v1429 = vpop.f32.mrb[0].mxu0
    %1430 = vdwg.mxu0
    %v1431 = vsel %vm371, %v1428, 0.0
    %1432 = vadd.xlane.f32.xlu0 %v1431
    %v1433 = vpop.xlane.xlu0 %1432
    %v1434 = vrcp.pop 9.0
    %v1435 = vmul.f32 %v1433, %v1434
    %v1436 = vsub.f32 %v1428, %v1435
    %v1437 = vmul.f32 %v1436, %v1436
    %v1438 = vsel %vm371, %v1437, 0.0
    %1439 = vadd.xlane.f32.xlu0 %v1438
    %v1440 = vpop.xlane.xlu0 %1439
    %v1441 = vmul.f32 %v1440, %v1434
    %v1442 = vadd.f32 %v1441, 1e-05
    %v1443 = vrsqrt.pop %v1442
    %v1444 = vmul.f32 %v1436, %v1443
    %v1445 = vld [vmem:[#allocation11] sm:$0x1]
    %v1447 = vlaneseq
    %v1448 = vshrl.u32 %v1447, 7
    %v1449 = vsub.s32 0, %v1448
    %v1450 = vrot.slane %v1445, %v1449
    %v1452 = vmul.f32 %v1444, %v1450
    %v1453 = vld [vmem:[#allocation12] sm:$0x1]
    %v1455 = vlaneseq
    %v1456 = vshrl.u32 %v1455, 7
    %v1457 = vsub.s32 0, %v1456
    %v1458 = vrot.slane %v1453, %v1457
    %v1460 = vadd.f32 %v1452, %v1458
    %v1461 = vld [vmem:[#allocation14] sm:$0xff]
    %v1462 = vld [vmem:[#allocation14 + $0x8] sm:$0x1]
    %v1463 = vld [vmem:[#allocation15] sm:$0x1]
    %v1465 = vlaneseq
    %v1466 = vshrl.u32 %v1465, 7
    %v1467 = vsub.s32 0, %v1466
    %v1468 = vrot.slane %v1463, %v1467
    %v1471 = vsel %vm371, %v1460, 0
    %v1474 = vsel %vm375, %v1462, 0
    %1476 = vmatprep.subr.mxu0 0.0
    %1477 = vmatpush1.msra.mxu0 %v1461
    %1478 = vmatprep.subr.mxu0 0.0
    %1479 = vmatpush1.msra.mxu0 %v1474
    %1480 = vmatprep.subr.mxu0 0.0
    %1481 = vmatpush1.msra.mxu0 0.0
    %1482 = vmatprep.subr.mxu0 0.0
    %1483 = vmatpush1.msra.mxu0 0.0
    %1484 = vmatprep.subr.mxu0 0.0
    %1485 = vmatpush1.msra.mxu0 0.0
    %1486 = vmatprep.subr.mxu0 0.0
    %1487 = vmatpush1.msra.mxu0 0.0
    %1488 = vmatprep.subr.mxu0 0.0
    %1489 = vmatpush1.msra.mxu0 0.0
    %1490 = vmatprep.subr.mxu0 0.0
    %1491 = vmatpush1.msra.mxu0 0.0
    %1492 = vmatprep.subr.mxu0 0.0
    %1493 = vmatpush1.msra.mxu0 0.0
    %1494 = vmatprep.subr.mxu0 0.0
    %1495 = vmatpush1.msra.mxu0 0.0
    %1496 = vmatprep.subr.mxu0 0.0
    %1497 = vmatpush1.msra.mxu0 0.0
    %1498 = vmatprep.subr.mxu0 0.0
    %1499 = vmatpush1.msra.mxu0 0.0
    %1500 = vmatprep.subr.mxu0 0.0
    %1501 = vmatpush1.msra.mxu0 0.0
    %1502 = vmatprep.subr.mxu0 0.0
    %1503 = vmatpush1.msra.mxu0 0.0
    %1504 = vmatprep.subr.mxu0 0.0
    %1505 = vmatpush1.msra.mxu0 0.0
    %1506 = vmatprep.subr.mxu0 0.0
    %1507 = vmatpush1.msra.mxu0 0.0
    %1508 = vmatprep.subr.mxu0 0.0
    %1509 = vmatpush1.msra.mxu0 0.0
    %1510 = vmatprep.subr.mxu0 0.0
    %1511 = vmatpush1.msra.mxu0 0.0
    %1512 = vmatprep.subr.mxu0 0.0
    %1513 = vmatpush1.msra.mxu0 0.0
    %1514 = vmatprep.subr.mxu0 0.0
    %1515 = vmatpush1.msra.mxu0 0.0
    %1516 = vmatprep.subr.mxu0 0.0
    %1517 = vmatpush1.msra.mxu0 0.0
    %1518 = vmatprep.subr.mxu0 0.0
    %1519 = vmatpush1.msra.mxu0 0.0
    %1520 = vmatprep.subr.mxu0 0.0
    %1521 = vmatpush1.msra.mxu0 0.0
    %1522 = vmatprep.subr.mxu0 0.0
    %1523 = vmatpush1.msra.mxu0 0.0
    %1524 = vmatprep.subr.mxu0 0.0
    %1525 = vmatpush1.msra.mxu0 0.0
    %1526 = vmatprep.subr.mxu0 0.0
    %1527 = vmatpush1.msra.mxu0 0.0
    %1528 = vmatprep.subr.mxu0 0.0
    %1529 = vmatpush1.msra.mxu0 0.0
    %1530 = vmatprep.subr.mxu0 0.0
    %1531 = vmatpush1.msra.mxu0 0.0
    %1532 = vmatprep.subr.mxu0 0.0
    %1533 = vmatpush1.msra.mxu0 0.0
    %1534 = vmatprep.subr.mxu0 0.0
    %1535 = vmatpush1.msra.mxu0 0.0
    %1536 = vmatprep.subr.mxu0 0.0
    %1537 = vmatpush1.msra.mxu0 0.0
    %1538 = vmatprep.subr.mxu0 0.0
    %1539 = vmatpush1.msra.mxu0 0.0
    %1540 = vmatprep.mubr.f32.mxu0 0.0
    %1541 = vmatmul.mubr.f32.gmra.mrb[0].mxu0 %v1471
    %v1542 = vpop.f32.mrb[0].mxu0
    %v1543 = vadd.f32 %v1468, %v1542
    %v1544 = vpop.f32.mrb[0].mxu0
    %1545 = vdwg.mxu0
    %v1546 = vmax.f32 %v1543, 0.0
    %v1547 = vld [vmem:[#allocation17] sm:$0xff]
    %v1548 = vld [vmem:[#allocation17 + $0x8] sm:$0xff]
    %v1549 = vld [vmem:[#allocation17 + $0x10] sm:$0xff]
    %v1550 = vld [vmem:[#allocation17 + $0x18] sm:$0xff]
    %v1551 = vld [vmem:[#allocation18] sm:$0x1]
    %v1553 = vlaneseq
    %v1554 = vshrl.u32 %v1553, 7
    %v1555 = vsub.s32 0, %v1554
    %v1556 = vrot.slane %v1551, %v1555
    %v1559 = vsel %vm453, %v1546, 0
    %1561 = vmatprep.subr.mxu0 0.0
    %1562 = vmatpush1.msra.mxu0 %v1547
    %1563 = vmatprep.subr.mxu0 0.0
    %1564 = vmatpush1.msra.mxu0 %v1548
    %1565 = vmatprep.subr.mxu0 0.0
    %1566 = vmatpush1.msra.mxu0 %v1549
    %1567 = vmatprep.subr.mxu0 0.0
    %1568 = vmatpush1.msra.mxu0 %v1550
    %1569 = vmatprep.subr.mxu0 0.0
    %1570 = vmatpush1.msra.mxu0 0.0
    %1571 = vmatprep.subr.mxu0 0.0
    %1572 = vmatpush1.msra.mxu0 0.0
    %1573 = vmatprep.subr.mxu0 0.0
    %1574 = vmatpush1.msra.mxu0 0.0
    %1575 = vmatprep.subr.mxu0 0.0
    %1576 = vmatpush1.msra.mxu0 0.0
    %1577 = vmatprep.subr.mxu0 0.0
    %1578 = vmatpush1.msra.mxu0 0.0
    %1579 = vmatprep.subr.mxu0 0.0
    %1580 = vmatpush1.msra.mxu0 0.0
    %1581 = vmatprep.subr.mxu0 0.0
    %1582 = vmatpush1.msra.mxu0 0.0
    %1583 = vmatprep.subr.mxu0 0.0
    %1584 = vmatpush1.msra.mxu0 0.0
    %1585 = vmatprep.subr.mxu0 0.0
    %1586 = vmatpush1.msra.mxu0 0.0
    %1587 = vmatprep.subr.mxu0 0.0
    %1588 = vmatpush1.msra.mxu0 0.0
    %1589 = vmatprep.subr.mxu0 0.0
    %1590 = vmatpush1.msra.mxu0 0.0
    %1591 = vmatprep.subr.mxu0 0.0
    %1592 = vmatpush1.msra.mxu0 0.0
    %1593 = vmatprep.subr.mxu0 0.0
    %1594 = vmatpush1.msra.mxu0 0.0
    %1595 = vmatprep.subr.mxu0 0.0
    %1596 = vmatpush1.msra.mxu0 0.0
    %1597 = vmatprep.subr.mxu0 0.0
    %1598 = vmatpush1.msra.mxu0 0.0
    %1599 = vmatprep.subr.mxu0 0.0
    %1600 = vmatpush1.msra.mxu0 0.0
    %1601 = vmatprep.subr.mxu0 0.0
    %1602 = vmatpush1.msra.mxu0 0.0
    %1603 = vmatprep.subr.mxu0 0.0
    %1604 = vmatpush1.msra.mxu0 0.0
    %1605 = vmatprep.subr.mxu0 0.0
    %1606 = vmatpush1.msra.mxu0 0.0
    %1607 = vmatprep.subr.mxu0 0.0
    %1608 = vmatpush1.msra.mxu0 0.0
    %1609 = vmatprep.subr.mxu0 0.0
    %1610 = vmatpush1.msra.mxu0 0.0
    %1611 = vmatprep.subr.mxu0 0.0
    %1612 = vmatpush1.msra.mxu0 0.0
    %1613 = vmatprep.subr.mxu0 0.0
    %1614 = vmatpush1.msra.mxu0 0.0
    %1615 = vmatprep.subr.mxu0 0.0
    %1616 = vmatpush1.msra.mxu0 0.0
    %1617 = vmatprep.subr.mxu0 0.0
    %1618 = vmatpush1.msra.mxu0 0.0
    %1619 = vmatprep.subr.mxu0 0.0
    %1620 = vmatpush1.msra.mxu0 0.0
    %1621 = vmatprep.subr.mxu0 0.0
    %1622 = vmatpush1.msra.mxu0 0.0
    %1623 = vmatprep.subr.mxu0 0.0
    %1624 = vmatpush1.msra.mxu0 0.0
    %1625 = vmatprep.mubr.f32.mxu0 0.0
    %1626 = vmatmul.mubr.f32.gmra.mrb[0].mxu0 %v1559
    %v1627 = vpop.f32.mrb[0].mxu0
    %v1628 = vadd.f32 %v1556, %v1627
    %v1629 = vpop.f32.mrb[0].mxu0
    %1630 = vdwg.mxu0
    %v1631 = vmax.f32 %v1628, 0.0
    %v1632 = vld [vmem:[#allocation20] sm:$0xff]
    %v1633 = vld [vmem:[#allocation20 + $0x8] sm:$0xff]
    %v1634 = vld [vmem:[#allocation20 + $0x10] sm:$0xff]
    %v1635 = vld [vmem:[#allocation20 + $0x18] sm:$0xff]
    %v1636 = vld [vmem:[#allocation20 + $0x20] sm:$0xff]
    %v1637 = vld [vmem:[#allocation20 + $0x28] sm:$0xff]
    %v1638 = vld [vmem:[#allocation20 + $0x30] sm:$0xff]
    %v1639 = vld [vmem:[#allocation20 + $0x38] sm:$0xff]
    %v1640 = vld [vmem:[#allocation20 + $0x40] sm:$0xff]
    %v1641 = vld [vmem:[#allocation20 + $0x48] sm:$0xff]
    %v1642 = vld [vmem:[#allocation20 + $0x50] sm:$0xff]
    %v1643 = vld [vmem:[#allocation20 + $0x58] sm:$0xff]
    %v1644 = vld [vmem:[#allocation20 + $0x60] sm:$0xff]
    %v1645 = vld [vmem:[#allocation20 + $0x68] sm:$0xff]
    %v1646 = vld [vmem:[#allocation20 + $0x70] sm:$0xff]
    %v1647 = vld [vmem:[#allocation20 + $0x78] sm:$0xff]
    %v1648 = vld [vmem:[#allocation20 + $0x80] sm:$0xff]
    %v1649 = vld [vmem:[#allocation20 + $0x88] sm:$0xff]
    %v1650 = vld [vmem:[#allocation20 + $0x90] sm:$0xff]
    %v1651 = vld [vmem:[#allocation20 + $0x98] sm:$0xff]
    %v1652 = vld [vmem:[#allocation20 + $0xa0] sm:$0xff]
    %v1653 = vld [vmem:[#allocation20 + $0xa8] sm:$0xff]
    %v1654 = vld [vmem:[#allocation20 + $0xb0] sm:$0xff]
    %v1655 = vld [vmem:[#allocation20 + $0xb8] sm:$0xff]
    %v1656 = vld [vmem:[#allocation20 + $0xc0] sm:$0xff]
    %v1657 = vld [vmem:[#allocation20 + $0xc8] sm:$0xff]
    %v1658 = vld [vmem:[#allocation20 + $0xd0] sm:$0xff]
    %v1659 = vld [vmem:[#allocation20 + $0xd8] sm:$0xff]
    %v1660 = vld [vmem:[#allocation20 + $0xe0] sm:$0xff]
    %v1661 = vld [vmem:[#allocation20 + $0xe8] sm:$0xff]
    %v1662 = vld [vmem:[#allocation20 + $0xf0] sm:$0xff]
    %v1663 = vld [vmem:[#allocation20 + $0xf8] sm:$0xff]
    %v1664 = vld [vmem:[#allocation20 + $0x100] sm:$0xff]
    %v1665 = vld [vmem:[#allocation20 + $0x108] sm:$0xff]
    %v1666 = vld [vmem:[#allocation20 + $0x110] sm:$0xff]
    %v1667 = vld [vmem:[#allocation20 + $0x118] sm:$0xff]
    %v1668 = vld [vmem:[#allocation20 + $0x120] sm:$0xff]
    %v1669 = vld [vmem:[#allocation20 + $0x128] sm:$0xff]
    %v1670 = vld [vmem:[#allocation20 + $0x130] sm:$0xff]
    %v1671 = vld [vmem:[#allocation20 + $0x138] sm:$0xff]
    %v1672 = vld [vmem:[#allocation20 + $0x140] sm:$0xff]
    %v1673 = vld [vmem:[#allocation20 + $0x148] sm:$0xff]
    %v1674 = vld [vmem:[#allocation20 + $0x150] sm:$0xff]
    %v1675 = vld [vmem:[#allocation20 + $0x158] sm:$0xff]
    %v1676 = vld [vmem:[#allocation20 + $0x160] sm:$0xff]
    %v1677 = vld [vmem:[#allocation20 + $0x168] sm:$0xff]
    %v1678 = vld [vmem:[#allocation20 + $0x170] sm:$0xff]
    %v1679 = vld [vmem:[#allocation20 + $0x178] sm:$0xff]
    %v1680 = vld [vmem:[#allocation20 + $0x180] sm:$0xff]
    %v1681 = vld [vmem:[#allocation20 + $0x188] sm:$0xff]
    %v1682 = vld [vmem:[#allocation20 + $0x190] sm:$0xff]
    %v1683 = vld [vmem:[#allocation20 + $0x198] sm:$0xff]
    %v1684 = vld [vmem:[#allocation20 + $0x1a0] sm:$0xff]
    %v1685 = vld [vmem:[#allocation20 + $0x1a8] sm:$0xff]
    %v1686 = vld [vmem:[#allocation20 + $0x1b0] sm:$0xff]
    %v1687 = vld [vmem:[#allocation20 + $0x1b8] sm:$0xff]
    %v1688 = vld [vmem:[#allocation20 + $0x1c0] sm:$0xff]
    %v1689 = vld [vmem:[#allocation20 + $0x1c8] sm:$0xff]
    %v1690 = vld [vmem:[#allocation20 + $0x1d0] sm:$0xff]
    %v1691 = vld [vmem:[#allocation20 + $0x1d8] sm:$0xff]
    %v1692 = vld [vmem:[#allocation20 + $0x1e0] sm:$0xff]
    %v1693 = vld [vmem:[#allocation20 + $0x1e8] sm:$0xff]
    %v1694 = vld [vmem:[#allocation20 + $0x1f0] sm:$0xff]
    %v1695 = vld [vmem:[#allocation20 + $0x1f8] sm:$0xff]
    %v1696 = vld [vmem:[#allocation20 + $0x200] sm:$0xff]
    %v1697 = vld [vmem:[#allocation20 + $0x208] sm:$0xff]
    %v1698 = vld [vmem:[#allocation20 + $0x210] sm:$0xff]
    %v1699 = vld [vmem:[#allocation20 + $0x218] sm:$0xff]
    %v1700 = vld [vmem:[#allocation20 + $0x220] sm:$0xff]
    %v1701 = vld [vmem:[#allocation20 + $0x228] sm:$0xff]
    %v1702 = vld [vmem:[#allocation20 + $0x230] sm:$0xff]
    %v1703 = vld [vmem:[#allocation20 + $0x238] sm:$0xff]
    %v1704 = vld [vmem:[#allocation20 + $0x240] sm:$0xff]
    %v1705 = vld [vmem:[#allocation20 + $0x248] sm:$0xff]
    %v1706 = vld [vmem:[#allocation20 + $0x250] sm:$0xff]
    %v1707 = vld [vmem:[#allocation20 + $0x258] sm:$0xff]
    %v1708 = vld [vmem:[#allocation20 + $0x260] sm:$0xff]
    %v1709 = vld [vmem:[#allocation20 + $0x268] sm:$0xff]
    %v1710 = vld [vmem:[#allocation20 + $0x270] sm:$0xff]
    %v1711 = vld [vmem:[#allocation20 + $0x278] sm:$0xff]
    %v1712 = vld [vmem:[#allocation20 + $0x280] sm:$0xff]
    %v1713 = vld [vmem:[#allocation20 + $0x288] sm:$0xff]
    %v1714 = vld [vmem:[#allocation20 + $0x290] sm:$0xff]
    %v1715 = vld [vmem:[#allocation20 + $0x298] sm:$0xff]
    %v1716 = vld [vmem:[#allocation20 + $0x2a0] sm:$0xff]
    %v1717 = vld [vmem:[#allocation20 + $0x2a8] sm:$0xff]
    %v1718 = vld [vmem:[#allocation20 + $0x2b0] sm:$0xff]
    %v1719 = vld [vmem:[#allocation20 + $0x2b8] sm:$0xff]
    %v1720 = vld [vmem:[#allocation20 + $0x2c0] sm:$0xff]
    %v1721 = vld [vmem:[#allocation20 + $0x2c8] sm:$0xff]
    %v1722 = vld [vmem:[#allocation20 + $0x2d0] sm:$0xff]
    %v1723 = vld [vmem:[#allocation20 + $0x2d8] sm:$0xff]
    %v1724 = vld [vmem:[#allocation20 + $0x2e0] sm:$0xff]
    %v1725 = vld [vmem:[#allocation20 + $0x2e8] sm:$0xff]
    %v1726 = vld [vmem:[#allocation20 + $0x2f0] sm:$0xff]
    %v1727 = vld [vmem:[#allocation20 + $0x2f8] sm:$0xff]
    %v1728 = vld [vmem:[#allocation20 + $0x300] sm:$0xff]
    %v1729 = vld [vmem:[#allocation20 + $0x308] sm:$0xff]
    %v1730 = vld [vmem:[#allocation20 + $0x310] sm:$0xff]
    %v1731 = vld [vmem:[#allocation20 + $0x318] sm:$0xff]
    %v1732 = vld [vmem:[#allocation20 + $0x320] sm:$0xff]
    %v1733 = vld [vmem:[#allocation20 + $0x328] sm:$0xff]
    %v1734 = vld [vmem:[#allocation20 + $0x330] sm:$0xff]
    %v1735 = vld [vmem:[#allocation20 + $0x338] sm:$0xff]
    %v1736 = vld [vmem:[#allocation20 + $0x340] sm:$0xff]
    %v1737 = vld [vmem:[#allocation20 + $0x348] sm:$0xff]
    %v1738 = vld [vmem:[#allocation20 + $0x350] sm:$0xff]
    %v1739 = vld [vmem:[#allocation20 + $0x358] sm:$0xff]
    %v1740 = vld [vmem:[#allocation20 + $0x360] sm:$0xff]
    %v1741 = vld [vmem:[#allocation20 + $0x368] sm:$0xff]
    %v1742 = vld [vmem:[#allocation20 + $0x370] sm:$0xff]
    %v1743 = vld [vmem:[#allocation20 + $0x378] sm:$0xff]
    %v1744 = vld [vmem:[#allocation20 + $0x380] sm:$0xff]
    %v1745 = vld [vmem:[#allocation20 + $0x388] sm:$0xff]
    %v1746 = vld [vmem:[#allocation20 + $0x390] sm:$0xff]
    %v1747 = vld [vmem:[#allocation20 + $0x398] sm:$0xff]
    %v1748 = vld [vmem:[#allocation20 + $0x3a0] sm:$0xff]
    %v1749 = vld [vmem:[#allocation20 + $0x3a8] sm:$0xff]
    %v1750 = vld [vmem:[#allocation20 + $0x3b0] sm:$0xff]
    %v1751 = vld [vmem:[#allocation20 + $0x3b8] sm:$0xff]
    %v1752 = vld [vmem:[#allocation20 + $0x3c0] sm:$0xff]
    %v1753 = vld [vmem:[#allocation20 + $0x3c8] sm:$0xff]
    %v1754 = vld [vmem:[#allocation20 + $0x3d0] sm:$0xff]
    %v1755 = vld [vmem:[#allocation20 + $0x3d8] sm:$0xff]
    %v1756 = vld [vmem:[#allocation20 + $0x3e0] sm:$0xff]
    %v1757 = vld [vmem:[#allocation20 + $0x3e8] sm:$0xff]
    %v1758 = vld [vmem:[#allocation20 + $0x3f0] sm:$0xff]
    %v1759 = vld [vmem:[#allocation20 + $0x3f8] sm:$0xff]
    %v1760 = vld [vmem:[#allocation20 + $0x400] sm:$0xff]
    %v1761 = vld [vmem:[#allocation20 + $0x408] sm:$0xff]
    %v1762 = vld [vmem:[#allocation20 + $0x410] sm:$0xff]
    %v1763 = vld [vmem:[#allocation20 + $0x418] sm:$0xff]
    %v1764 = vld [vmem:[#allocation20 + $0x420] sm:$0xff]
    %v1765 = vld [vmem:[#allocation20 + $0x428] sm:$0xff]
    %v1766 = vld [vmem:[#allocation20 + $0x430] sm:$0xff]
    %v1767 = vld [vmem:[#allocation20 + $0x438] sm:$0xff]
    %v1768 = vld [vmem:[#allocation20 + $0x440] sm:$0xff]
    %v1769 = vld [vmem:[#allocation20 + $0x448] sm:$0xff]
    %v1770 = vld [vmem:[#allocation20 + $0x450] sm:$0xff]
    %v1771 = vld [vmem:[#allocation20 + $0x458] sm:$0xff]
    %v1772 = vld [vmem:[#allocation20 + $0x460] sm:$0xff]
    %v1773 = vld [vmem:[#allocation20 + $0x468] sm:$0xff]
    %v1774 = vld [vmem:[#allocation20 + $0x470] sm:$0xff]
    %v1775 = vld [vmem:[#allocation20 + $0x478] sm:$0xff]
    %v1776 = vld [vmem:[#allocation20 + $0x480] sm:$0xff]
    %v1777 = vld [vmem:[#allocation20 + $0x488] sm:$0xff]
    %v1778 = vld [vmem:[#allocation20 + $0x490] sm:$0xff]
    %v1779 = vld [vmem:[#allocation20 + $0x498] sm:$0xff]
    %v1780 = vld [vmem:[#allocation20 + $0x4a0] sm:$0xff]
    %v1781 = vld [vmem:[#allocation20 + $0x4a8] sm:$0xff]
    %v1782 = vld [vmem:[#allocation20 + $0x4b0] sm:$0xff]
    %v1783 = vld [vmem:[#allocation20 + $0x4b8] sm:$0xff]
    %v1784 = vld [vmem:[#allocation20 + $0x4c0] sm:$0xff]
    %v1785 = vld [vmem:[#allocation20 + $0x4c8] sm:$0xff]
    %v1786 = vld [vmem:[#allocation20 + $0x4d0] sm:$0xff]
    %v1787 = vld [vmem:[#allocation20 + $0x4d8] sm:$0xff]
    %v1788 = vld [vmem:[#allocation20 + $0x4e0] sm:$0xff]
    %v1789 = vld [vmem:[#allocation20 + $0x4e8] sm:$0xff]
    %v1790 = vld [vmem:[#allocation20 + $0x4f0] sm:$0xff]
    %v1791 = vld [vmem:[#allocation20 + $0x4f8] sm:$0xff]
    %v1792 = vld [vmem:[#allocation20 + $0x500] sm:$0xff]
    %v1793 = vld [vmem:[#allocation20 + $0x508] sm:$0xff]
    %v1794 = vld [vmem:[#allocation20 + $0x510] sm:$0xff]
    %v1795 = vld [vmem:[#allocation20 + $0x518] sm:$0xff]
    %v1796 = vld [vmem:[#allocation20 + $0x520] sm:$0xff]
    %v1797 = vld [vmem:[#allocation20 + $0x528] sm:$0xff]
    %v1798 = vld [vmem:[#allocation20 + $0x530] sm:$0xff]
    %v1799 = vld [vmem:[#allocation20 + $0x538] sm:$0xff]
    %v1800 = vld [vmem:[#allocation20 + $0x540] sm:$0xff]
    %v1801 = vld [vmem:[#allocation20 + $0x548] sm:$0xff]
    %v1802 = vld [vmem:[#allocation20 + $0x550] sm:$0xff]
    %v1803 = vld [vmem:[#allocation20 + $0x558] sm:$0xff]
    %v1804 = vld [vmem:[#allocation20 + $0x560] sm:$0xff]
    %v1805 = vld [vmem:[#allocation20 + $0x568] sm:$0xff]
    %v1806 = vld [vmem:[#allocation20 + $0x570] sm:$0xff]
    %v1807 = vld [vmem:[#allocation20 + $0x578] sm:$0xff]
    %v1808 = vld [vmem:[#allocation20 + $0x580] sm:$0xff]
    %v1809 = vld [vmem:[#allocation20 + $0x588] sm:$0xff]
    %v1810 = vld [vmem:[#allocation20 + $0x590] sm:$0xff]
    %v1811 = vld [vmem:[#allocation20 + $0x598] sm:$0xff]
    %v1812 = vld [vmem:[#allocation20 + $0x5a0] sm:$0xff]
    %v1813 = vld [vmem:[#allocation20 + $0x5a8] sm:$0xff]
    %v1814 = vld [vmem:[#allocation20 + $0x5b0] sm:$0xff]
    %v1815 = vld [vmem:[#allocation20 + $0x5b8] sm:$0xff]
    %v1816 = vld [vmem:[#allocation20 + $0x5c0] sm:$0xff]
    %v1817 = vld [vmem:[#allocation20 + $0x5c8] sm:$0xff]
    %v1818 = vld [vmem:[#allocation20 + $0x5d0] sm:$0xff]
    %v1819 = vld [vmem:[#allocation20 + $0x5d8] sm:$0xff]
    %v1820 = vld [vmem:[#allocation20 + $0x5e0] sm:$0xff]
    %v1821 = vld [vmem:[#allocation20 + $0x5e8] sm:$0xff]
    %v1822 = vld [vmem:[#allocation20 + $0x5f0] sm:$0xff]
    %v1823 = vld [vmem:[#allocation20 + $0x5f8] sm:$0xff]
    %v1824 = vld [vmem:[#allocation20 + $0x600] sm:$0xff]
    %v1825 = vld [vmem:[#allocation20 + $0x608] sm:$0xff]
    %v1826 = vld [vmem:[#allocation20 + $0x610] sm:$0xff]
    %v1827 = vld [vmem:[#allocation20 + $0x618] sm:$0xff]
    %v1828 = vld [vmem:[#allocation20 + $0x620] sm:$0xff]
    %v1829 = vld [vmem:[#allocation20 + $0x628] sm:$0xff]
    %v1830 = vld [vmem:[#allocation20 + $0x630] sm:$0xff]
    %v1831 = vld [vmem:[#allocation20 + $0x638] sm:$0xff]
    %v1832 = vld [vmem:[#allocation20 + $0x640] sm:$0xff]
    %v1833 = vld [vmem:[#allocation20 + $0x648] sm:$0xff]
    %v1834 = vld [vmem:[#allocation20 + $0x650] sm:$0xff]
    %v1835 = vld [vmem:[#allocation20 + $0x658] sm:$0xff]
    %v1836 = vld [vmem:[#allocation20 + $0x660] sm:$0xff]
    %v1837 = vld [vmem:[#allocation20 + $0x668] sm:$0xff]
    %v1838 = vld [vmem:[#allocation20 + $0x670] sm:$0xff]
    %v1839 = vld [vmem:[#allocation20 + $0x678] sm:$0xff]
    %v1840 = vld [vmem:[#allocation20 + $0x680] sm:$0xff]
    %v1841 = vld [vmem:[#allocation20 + $0x688] sm:$0xff]
    %v1842 = vld [vmem:[#allocation20 + $0x690] sm:$0xff]
    %v1843 = vld [vmem:[#allocation20 + $0x698] sm:$0xff]
    %v1844 = vld [vmem:[#allocation20 + $0x6a0] sm:$0xff]
    %v1845 = vld [vmem:[#allocation20 + $0x6a8] sm:$0xff]
    %v1846 = vld [vmem:[#allocation20 + $0x6b0] sm:$0xff]
    %v1847 = vld [vmem:[#allocation20 + $0x6b8] sm:$0xff]
    %v1848 = vld [vmem:[#allocation20 + $0x6c0] sm:$0xff]
    %v1849 = vld [vmem:[#allocation20 + $0x6c8] sm:$0xff]
    %v1850 = vld [vmem:[#allocation20 + $0x6d0] sm:$0xff]
    %v1851 = vld [vmem:[#allocation20 + $0x6d8] sm:$0xff]
    %v1852 = vld [vmem:[#allocation20 + $0x6e0] sm:$0xff]
    %v1853 = vld [vmem:[#allocation20 + $0x6e8] sm:$0xff]
    %v1854 = vld [vmem:[#allocation20 + $0x6f0] sm:$0xff]
    %v1855 = vld [vmem:[#allocation20 + $0x6f8] sm:$0xff]
    %v1856 = vld [vmem:[#allocation20 + $0x700] sm:$0xff]
    %v1857 = vld [vmem:[#allocation20 + $0x708] sm:$0xff]
    %v1858 = vld [vmem:[#allocation20 + $0x710] sm:$0xff]
    %v1859 = vld [vmem:[#allocation20 + $0x718] sm:$0xff]
    %v1860 = vld [vmem:[#allocation20 + $0x720] sm:$0xff]
    %v1861 = vld [vmem:[#allocation20 + $0x728] sm:$0xff]
    %v1862 = vld [vmem:[#allocation20 + $0x730] sm:$0xff]
    %v1863 = vld [vmem:[#allocation20 + $0x738] sm:$0xff]
    %v1864 = vld [vmem:[#allocation20 + $0x740] sm:$0xff]
    %v1865 = vld [vmem:[#allocation20 + $0x748] sm:$0xff]
    %v1866 = vld [vmem:[#allocation20 + $0x750] sm:$0xff]
    %v1867 = vld [vmem:[#allocation20 + $0x758] sm:$0xff]
    %v1868 = vld [vmem:[#allocation20 + $0x760] sm:$0xff]
    %v1869 = vld [vmem:[#allocation20 + $0x768] sm:$0xff]
    %v1870 = vld [vmem:[#allocation20 + $0x770] sm:$0xff]
    %v1871 = vld [vmem:[#allocation20 + $0x778] sm:$0xff]
    %v1872 = vld [vmem:[#allocation20 + $0x780] sm:$0xff]
    %v1873 = vld [vmem:[#allocation20 + $0x788] sm:$0xff]
    %v1874 = vld [vmem:[#allocation20 + $0x790] sm:$0xff]
    %v1875 = vld [vmem:[#allocation20 + $0x798] sm:$0xff]
    %v1876 = vld [vmem:[#allocation20 + $0x7a0] sm:$0xff]
    %v1877 = vld [vmem:[#allocation20 + $0x7a8] sm:$0xff]
    %v1878 = vld [vmem:[#allocation20 + $0x7b0] sm:$0xff]
    %v1879 = vld [vmem:[#allocation20 + $0x7b8] sm:$0xff]
    %v1880 = vld [vmem:[#allocation20 + $0x7c0] sm:$0xff]
    %v1881 = vld [vmem:[#allocation20 + $0x7c8] sm:$0xff]
    %v1882 = vld [vmem:[#allocation20 + $0x7d0] sm:$0xff]
    %v1883 = vld [vmem:[#allocation20 + $0x7d8] sm:$0xff]
    %v1884 = vld [vmem:[#allocation20 + $0x7e0] sm:$0xff]
    %v1885 = vld [vmem:[#allocation20 + $0x7e8] sm:$0xff]
    %v1886 = vld [vmem:[#allocation20 + $0x7f0] sm:$0xff]
    %v1887 = vld [vmem:[#allocation20 + $0x7f8] sm:$0xff]
    %v1888 = vld [vmem:[#allocation20 + $0x800] sm:$0xff]
    %v1889 = vld [vmem:[#allocation20 + $0x808] sm:$0xff]
    %v1890 = vld [vmem:[#allocation20 + $0x810] sm:$0xff]
    %v1891 = vld [vmem:[#allocation20 + $0x818] sm:$0xff]
    %v1892 = vld [vmem:[#allocation20 + $0x820] sm:$0xff]
    %v1893 = vld [vmem:[#allocation20 + $0x828] sm:$0xff]
    %v1894 = vld [vmem:[#allocation20 + $0x830] sm:$0xff]
    %v1895 = vld [vmem:[#allocation20 + $0x838] sm:$0xff]
    %v1896 = vld [vmem:[#allocation20 + $0x840] sm:$0xff]
    %v1897 = vld [vmem:[#allocation20 + $0x848] sm:$0xff]
    %v1898 = vld [vmem:[#allocation20 + $0x850] sm:$0xff]
    %v1899 = vld [vmem:[#allocation20 + $0x858] sm:$0xff]
    %v1900 = vld [vmem:[#allocation20 + $0x860] sm:$0xff]
    %v1901 = vld [vmem:[#allocation20 + $0x868] sm:$0xff]
    %v1902 = vld [vmem:[#allocation20 + $0x870] sm:$0xff]
    %v1903 = vld [vmem:[#allocation20 + $0x878] sm:$0xff]
    %v1904 = vld [vmem:[#allocation20 + $0x880] sm:$0xff]
    %v1905 = vld [vmem:[#allocation20 + $0x888] sm:$0xff]
    %v1906 = vld [vmem:[#allocation20 + $0x890] sm:$0xff]
    %v1907 = vld [vmem:[#allocation20 + $0x898] sm:$0xff]
    %v1908 = vld [vmem:[#allocation20 + $0x8a0] sm:$0xff]
    %v1909 = vld [vmem:[#allocation20 + $0x8a8] sm:$0xff]
    %v1910 = vld [vmem:[#allocation20 + $0x8b0] sm:$0xff]
    %v1911 = vld [vmem:[#allocation20 + $0x8b8] sm:$0xff]
    %v1912 = vld [vmem:[#allocation20 + $0x8c0] sm:$0xff]
    %v1913 = vld [vmem:[#allocation20 + $0x8c8] sm:$0xff]
    %v1914 = vld [vmem:[#allocation20 + $0x8d0] sm:$0xff]
    %v1915 = vld [vmem:[#allocation20 + $0x8d8] sm:$0xff]
    %v1916 = vld [vmem:[#allocation20 + $0x8e0] sm:$0xff]
    %v1917 = vld [vmem:[#allocation20 + $0x8e8] sm:$0xff]
    %v1918 = vld [vmem:[#allocation20 + $0x8f0] sm:$0xff]
    %v1919 = vld [vmem:[#allocation20 + $0x8f8] sm:$0xff]
    %v1920 = vld [vmem:[#allocation20 + $0x900] sm:$0xff]
    %v1921 = vld [vmem:[#allocation20 + $0x908] sm:$0xff]
    %v1922 = vld [vmem:[#allocation20 + $0x910] sm:$0xff]
    %v1923 = vld [vmem:[#allocation20 + $0x918] sm:$0xff]
    %v1924 = vld [vmem:[#allocation20 + $0x920] sm:$0xff]
    %v1925 = vld [vmem:[#allocation20 + $0x928] sm:$0xff]
    %v1926 = vld [vmem:[#allocation20 + $0x930] sm:$0xff]
    %v1927 = vld [vmem:[#allocation20 + $0x938] sm:$0xff]
    %v1928 = vld [vmem:[#allocation20 + $0x940] sm:$0xff]
    %v1929 = vld [vmem:[#allocation20 + $0x948] sm:$0xff]
    %v1930 = vld [vmem:[#allocation20 + $0x950] sm:$0xff]
    %v1931 = vld [vmem:[#allocation20 + $0x958] sm:$0xff]
    %v1932 = vld [vmem:[#allocation20 + $0x960] sm:$0xff]
    %v1933 = vld [vmem:[#allocation20 + $0x968] sm:$0xff]
    %v1934 = vld [vmem:[#allocation20 + $0x970] sm:$0xff]
    %v1935 = vld [vmem:[#allocation20 + $0x978] sm:$0xff]
    %v1936 = vld [vmem:[#allocation20 + $0x980] sm:$0xff]
    %v1937 = vld [vmem:[#allocation20 + $0x988] sm:$0xff]
    %v1938 = vld [vmem:[#allocation20 + $0x990] sm:$0xff]
    %v1939 = vld [vmem:[#allocation20 + $0x998] sm:$0xff]
    %v1940 = vld [vmem:[#allocation20 + $0x9a0] sm:$0xff]
    %v1941 = vld [vmem:[#allocation20 + $0x9a8] sm:$0xff]
    %v1942 = vld [vmem:[#allocation20 + $0x9b0] sm:$0xff]
    %v1943 = vld [vmem:[#allocation20 + $0x9b8] sm:$0xff]
    %v1944 = vld [vmem:[#allocation20 + $0x9c0] sm:$0xff]
    %v1945 = vld [vmem:[#allocation20 + $0x9c8] sm:$0xff]
    %v1946 = vld [vmem:[#allocation20 + $0x9d0] sm:$0xff]
    %v1947 = vld [vmem:[#allocation20 + $0x9d8] sm:$0xff]
    %v1948 = vld [vmem:[#allocation20 + $0x9e0] sm:$0xff]
    %v1949 = vld [vmem:[#allocation20 + $0x9e8] sm:$0xff]
    %v1950 = vld [vmem:[#allocation20 + $0x9f0] sm:$0xff]
    %v1951 = vld [vmem:[#allocation20 + $0x9f8] sm:$0xff]
    %v1952 = vld [vmem:[#allocation20 + $0xa00] sm:$0xff]
    %v1953 = vld [vmem:[#allocation20 + $0xa08] sm:$0xff]
    %v1954 = vld [vmem:[#allocation20 + $0xa10] sm:$0xff]
    %v1955 = vld [vmem:[#allocation20 + $0xa18] sm:$0xff]
    %v1956 = vld [vmem:[#allocation20 + $0xa20] sm:$0xff]
    %v1957 = vld [vmem:[#allocation20 + $0xa28] sm:$0xff]
    %v1958 = vld [vmem:[#allocation20 + $0xa30] sm:$0xff]
    %v1959 = vld [vmem:[#allocation20 + $0xa38] sm:$0xff]
    %v1960 = vld [vmem:[#allocation20 + $0xa40] sm:$0xff]
    %v1961 = vld [vmem:[#allocation20 + $0xa48] sm:$0xff]
    %v1962 = vld [vmem:[#allocation20 + $0xa50] sm:$0xff]
    %v1963 = vld [vmem:[#allocation20 + $0xa58] sm:$0xff]
    %v1964 = vld [vmem:[#allocation20 + $0xa60] sm:$0xff]
    %v1965 = vld [vmem:[#allocation20 + $0xa68] sm:$0xff]
    %v1966 = vld [vmem:[#allocation20 + $0xa70] sm:$0xff]
    %v1967 = vld [vmem:[#allocation20 + $0xa78] sm:$0xff]
    %v1968 = vld [vmem:[#allocation20 + $0xa80] sm:$0xff]
    %v1969 = vld [vmem:[#allocation20 + $0xa88] sm:$0xff]
    %v1970 = vld [vmem:[#allocation20 + $0xa90] sm:$0xff]
    %v1971 = vld [vmem:[#allocation20 + $0xa98] sm:$0xff]
    %v1972 = vld [vmem:[#allocation20 + $0xaa0] sm:$0xff]
    %v1973 = vld [vmem:[#allocation20 + $0xaa8] sm:$0xff]
    %v1974 = vld [vmem:[#allocation20 + $0xab0] sm:$0xff]
    %v1975 = vld [vmem:[#allocation20 + $0xab8] sm:$0xff]
    %v1976 = vld [vmem:[#allocation20 + $0xac0] sm:$0xff]
    %v1977 = vld [vmem:[#allocation20 + $0xac8] sm:$0xff]
    %v1978 = vld [vmem:[#allocation20 + $0xad0] sm:$0xff]
    %v1979 = vld [vmem:[#allocation20 + $0xad8] sm:$0xff]
    %v1980 = vld [vmem:[#allocation20 + $0xae0] sm:$0xff]
    %v1981 = vld [vmem:[#allocation20 + $0xae8] sm:$0xff]
    %v1982 = vld [vmem:[#allocation20 + $0xaf0] sm:$0xff]
    %v1983 = vld [vmem:[#allocation20 + $0xaf8] sm:$0xff]
    %v1984 = vld [vmem:[#allocation20 + $0xb00] sm:$0xff]
    %v1985 = vld [vmem:[#allocation20 + $0xb08] sm:$0xff]
    %v1986 = vld [vmem:[#allocation20 + $0xb10] sm:$0xff]
    %v1987 = vld [vmem:[#allocation20 + $0xb18] sm:$0xff]
    %v1988 = vld [vmem:[#allocation20 + $0xb20] sm:$0xff]
    %v1989 = vld [vmem:[#allocation20 + $0xb28] sm:$0xff]
    %v1990 = vld [vmem:[#allocation20 + $0xb30] sm:$0xff]
    %v1991 = vld [vmem:[#allocation20 + $0xb38] sm:$0xff]
    %v1992 = vld [vmem:[#allocation20 + $0xb40] sm:$0xff]
    %v1993 = vld [vmem:[#allocation20 + $0xb48] sm:$0xff]
    %v1994 = vld [vmem:[#allocation20 + $0xb50] sm:$0xff]
    %v1995 = vld [vmem:[#allocation20 + $0xb58] sm:$0xff]
    %v1996 = vld [vmem:[#allocation20 + $0xb60] sm:$0xff]
    %v1997 = vld [vmem:[#allocation20 + $0xb68] sm:$0xff]
    %v1998 = vld [vmem:[#allocation20 + $0xb70] sm:$0xff]
    %v1999 = vld [vmem:[#allocation20 + $0xb78] sm:$0xff]
    %v2000 = vld [vmem:[#allocation20 + $0xb80] sm:$0xff]
    %v2001 = vld [vmem:[#allocation20 + $0xb88] sm:$0xff]
    %v2002 = vld [vmem:[#allocation20 + $0xb90] sm:$0xff]
    %v2003 = vld [vmem:[#allocation20 + $0xb98] sm:$0xff]
    %v2004 = vld [vmem:[#allocation20 + $0xba0] sm:$0xff]
    %v2005 = vld [vmem:[#allocation20 + $0xba8] sm:$0xff]
    %v2006 = vld [vmem:[#allocation20 + $0xbb0] sm:$0xff]
    %v2007 = vld [vmem:[#allocation20 + $0xbb8] sm:$0xff]
    %v2008 = vld [vmem:[#allocation20 + $0xbc0] sm:$0xff]
    %v2009 = vld [vmem:[#allocation20 + $0xbc8] sm:$0xff]
    %v2010 = vld [vmem:[#allocation20 + $0xbd0] sm:$0xff]
    %v2011 = vld [vmem:[#allocation20 + $0xbd8] sm:$0xff]
    %v2012 = vld [vmem:[#allocation20 + $0xbe0] sm:$0xff]
    %v2013 = vld [vmem:[#allocation20 + $0xbe8] sm:$0xff]
    %v2014 = vld [vmem:[#allocation20 + $0xbf0] sm:$0xff]
    %v2015 = vld [vmem:[#allocation20 + $0xbf8] sm:$0xff]
    %v2016 = vld [vmem:[#allocation20 + $0xc00] sm:$0xff]
    %v2017 = vld [vmem:[#allocation20 + $0xc08] sm:$0xff]
    %v2018 = vld [vmem:[#allocation20 + $0xc10] sm:$0xff]
    %v2019 = vld [vmem:[#allocation20 + $0xc18] sm:$0xff]
    %v2020 = vld [vmem:[#allocation20 + $0xc20] sm:$0xff]
    %v2021 = vld [vmem:[#allocation20 + $0xc28] sm:$0xff]
    %v2022 = vld [vmem:[#allocation20 + $0xc30] sm:$0xff]
    %v2023 = vld [vmem:[#allocation20 + $0xc38] sm:$0xff]
    %v2024 = vld [vmem:[#allocation20 + $0xc40] sm:$0xff]
    %v2025 = vld [vmem:[#allocation20 + $0xc48] sm:$0xff]
    %v2026 = vld [vmem:[#allocation20 + $0xc50] sm:$0xff]
    %v2027 = vld [vmem:[#allocation20 + $0xc58] sm:$0xff]
    %v2028 = vld [vmem:[#allocation20 + $0xc60] sm:$0xff]
    %v2029 = vld [vmem:[#allocation20 + $0xc68] sm:$0xff]
    %v2030 = vld [vmem:[#allocation20 + $0xc70] sm:$0xff]
    %v2031 = vld [vmem:[#allocation20 + $0xc78] sm:$0xff]
    %v2032 = vld [vmem:[#allocation20 + $0xc80] sm:$0xff]
    %v2033 = vld [vmem:[#allocation20 + $0xc88] sm:$0xff]
    %v2034 = vld [vmem:[#allocation20 + $0xc90] sm:$0xff]
    %v2035 = vld [vmem:[#allocation20 + $0xc98] sm:$0xff]
    %v2036 = vld [vmem:[#allocation20 + $0xca0] sm:$0xff]
    %v2037 = vld [vmem:[#allocation20 + $0xca8] sm:$0xff]
    %v2038 = vld [vmem:[#allocation20 + $0xcb0] sm:$0xff]
    %v2039 = vld [vmem:[#allocation20 + $0xcb8] sm:$0xff]
    %v2040 = vld [vmem:[#allocation20 + $0xcc0] sm:$0xff]
    %v2041 = vld [vmem:[#allocation20 + $0xcc8] sm:$0xff]
    %v2042 = vld [vmem:[#allocation20 + $0xcd0] sm:$0xff]
    %v2043 = vld [vmem:[#allocation20 + $0xcd8] sm:$0xff]
    %v2044 = vld [vmem:[#allocation20 + $0xce0] sm:$0xff]
    %v2045 = vld [vmem:[#allocation20 + $0xce8] sm:$0xff]
    %v2046 = vld [vmem:[#allocation20 + $0xcf0] sm:$0xff]
    %v2047 = vld [vmem:[#allocation20 + $0xcf8] sm:$0xff]
    %v2048 = vld [vmem:[#allocation20 + $0xd00] sm:$0xff]
    %v2049 = vld [vmem:[#allocation20 + $0xd08] sm:$0xff]
    %v2050 = vld [vmem:[#allocation20 + $0xd10] sm:$0xff]
    %v2051 = vld [vmem:[#allocation20 + $0xd18] sm:$0xff]
    %v2052 = vld [vmem:[#allocation20 + $0xd20] sm:$0xff]
    %v2053 = vld [vmem:[#allocation20 + $0xd28] sm:$0xff]
    %v2054 = vld [vmem:[#allocation20 + $0xd30] sm:$0xff]
    %v2055 = vld [vmem:[#allocation20 + $0xd38] sm:$0xff]
    %v2056 = vld [vmem:[#allocation20 + $0xd40] sm:$0xff]
    %v2057 = vld [vmem:[#allocation20 + $0xd48] sm:$0xff]
    %v2058 = vld [vmem:[#allocation20 + $0xd50] sm:$0xff]
    %v2059 = vld [vmem:[#allocation20 + $0xd58] sm:$0xff]
    %v2060 = vld [vmem:[#allocation20 + $0xd60] sm:$0xff]
    %v2061 = vld [vmem:[#allocation20 + $0xd68] sm:$0xff]
    %v2062 = vld [vmem:[#allocation20 + $0xd70] sm:$0xff]
    %v2063 = vld [vmem:[#allocation20 + $0xd78] sm:$0xff]
    %v2064 = vld [vmem:[#allocation20 + $0xd80] sm:$0xff]
    %v2065 = vld [vmem:[#allocation20 + $0xd88] sm:$0xff]
    %v2066 = vld [vmem:[#allocation20 + $0xd90] sm:$0xff]
    %v2067 = vld [vmem:[#allocation20 + $0xd98] sm:$0xff]
    %v2068 = vld [vmem:[#allocation20 + $0xda0] sm:$0xff]
    %v2069 = vld [vmem:[#allocation20 + $0xda8] sm:$0xff]
    %v2070 = vld [vmem:[#allocation20 + $0xdb0] sm:$0xff]
    %v2071 = vld [vmem:[#allocation20 + $0xdb8] sm:$0xff]
    %v2072 = vld [vmem:[#allocation20 + $0xdc0] sm:$0xff]
    %v2073 = vld [vmem:[#allocation20 + $0xdc8] sm:$0xff]
    %v2074 = vld [vmem:[#allocation20 + $0xdd0] sm:$0xff]
    %v2075 = vld [vmem:[#allocation20 + $0xdd8] sm:$0xff]
    %v2076 = vld [vmem:[#allocation20 + $0xde0] sm:$0xff]
    %v2077 = vld [vmem:[#allocation20 + $0xde8] sm:$0xff]
    %v2078 = vld [vmem:[#allocation20 + $0xdf0] sm:$0xff]
    %v2079 = vld [vmem:[#allocation20 + $0xdf8] sm:$0xff]
    %v2080 = vld [vmem:[#allocation20 + $0xe00] sm:$0xff]
    %v2081 = vld [vmem:[#allocation20 + $0xe08] sm:$0xff]
    %v2082 = vld [vmem:[#allocation20 + $0xe10] sm:$0xff]
    %v2083 = vld [vmem:[#allocation20 + $0xe18] sm:$0xff]
    %v2084 = vld [vmem:[#allocation20 + $0xe20] sm:$0xff]
    %v2085 = vld [vmem:[#allocation20 + $0xe28] sm:$0xff]
    %v2086 = vld [vmem:[#allocation20 + $0xe30] sm:$0xff]
    %v2087 = vld [vmem:[#allocation20 + $0xe38] sm:$0xff]
    %v2088 = vld [vmem:[#allocation20 + $0xe40] sm:$0xff]
    %v2089 = vld [vmem:[#allocation20 + $0xe48] sm:$0xff]
    %v2090 = vld [vmem:[#allocation20 + $0xe50] sm:$0xff]
    %v2091 = vld [vmem:[#allocation20 + $0xe58] sm:$0xff]
    %v2092 = vld [vmem:[#allocation20 + $0xe60] sm:$0xff]
    %v2093 = vld [vmem:[#allocation20 + $0xe68] sm:$0xff]
    %v2094 = vld [vmem:[#allocation20 + $0xe70] sm:$0xff]
    %v2095 = vld [vmem:[#allocation20 + $0xe78] sm:$0xff]
    %v2096 = vld [vmem:[#allocation20 + $0xe80] sm:$0xff]
    %v2097 = vld [vmem:[#allocation20 + $0xe88] sm:$0xff]
    %v2098 = vld [vmem:[#allocation20 + $0xe90] sm:$0xff]
    %v2099 = vld [vmem:[#allocation20 + $0xe98] sm:$0xff]
    %v2100 = vld [vmem:[#allocation20 + $0xea0] sm:$0xff]
    %v2101 = vld [vmem:[#allocation20 + $0xea8] sm:$0xff]
    %v2102 = vld [vmem:[#allocation20 + $0xeb0] sm:$0xff]
    %v2103 = vld [vmem:[#allocation20 + $0xeb8] sm:$0xff]
    %v2104 = vld [vmem:[#allocation20 + $0xec0] sm:$0xff]
    %v2105 = vld [vmem:[#allocation20 + $0xec8] sm:$0xff]
    %v2106 = vld [vmem:[#allocation20 + $0xed0] sm:$0xff]
    %v2107 = vld [vmem:[#allocation20 + $0xed8] sm:$0xff]
    %v2108 = vld [vmem:[#allocation20 + $0xee0] sm:$0xff]
    %v2109 = vld [vmem:[#allocation20 + $0xee8] sm:$0xff]
    %v2110 = vld [vmem:[#allocation20 + $0xef0] sm:$0xff]
    %v2111 = vld [vmem:[#allocation20 + $0xef8] sm:$0xff]
    %v2112 = vld [vmem:[#allocation20 + $0xf00] sm:$0xff]
    %v2113 = vld [vmem:[#allocation20 + $0xf08] sm:$0xff]
    %v2114 = vld [vmem:[#allocation20 + $0xf10] sm:$0xff]
    %v2115 = vld [vmem:[#allocation20 + $0xf18] sm:$0xff]
    %v2116 = vld [vmem:[#allocation20 + $0xf20] sm:$0xff]
    %v2117 = vld [vmem:[#allocation20 + $0xf28] sm:$0xff]
    %v2118 = vld [vmem:[#allocation20 + $0xf30] sm:$0xff]
    %v2119 = vld [vmem:[#allocation20 + $0xf38] sm:$0xff]
    %v2120 = vld [vmem:[#allocation20 + $0xf40] sm:$0xff]
    %v2121 = vld [vmem:[#allocation20 + $0xf48] sm:$0xff]
    %v2122 = vld [vmem:[#allocation20 + $0xf50] sm:$0xff]
    %v2123 = vld [vmem:[#allocation20 + $0xf58] sm:$0xff]
    %v2124 = vld [vmem:[#allocation20 + $0xf60] sm:$0xff]
    %v2125 = vld [vmem:[#allocation20 + $0xf68] sm:$0xff]
    %v2126 = vld [vmem:[#allocation20 + $0xf70] sm:$0xff]
    %v2127 = vld [vmem:[#allocation20 + $0xf78] sm:$0xff]
    %v2128 = vld [vmem:[#allocation20 + $0xf80] sm:$0xff]
    %v2129 = vld [vmem:[#allocation20 + $0xf88] sm:$0xff]
    %v2130 = vld [vmem:[#allocation20 + $0xf90] sm:$0xff]
    %v2131 = vld [vmem:[#allocation20 + $0xf98] sm:$0xff]
    %v2132 = vld [vmem:[#allocation20 + $0xfa0] sm:$0xff]
    %v2133 = vld [vmem:[#allocation20 + $0xfa8] sm:$0xff]
    %v2134 = vld [vmem:[#allocation20 + $0xfb0] sm:$0xff]
    %v2135 = vld [vmem:[#allocation20 + $0xfb8] sm:$0xff]
    %v2136 = vld [vmem:[#allocation20 + $0xfc0] sm:$0xff]
    %v2137 = vld [vmem:[#allocation20 + $0xfc8] sm:$0xff]
    %v2138 = vld [vmem:[#allocation20 + $0xfd0] sm:$0xff]
    %v2139 = vld [vmem:[#allocation20 + $0xfd8] sm:$0xff]
    %v2140 = vld [vmem:[#allocation20 + $0xfe0] sm:$0xff]
    %v2141 = vld [vmem:[#allocation20 + $0xfe8] sm:$0xff]
    %v2142 = vld [vmem:[#allocation20 + $0xff0] sm:$0xff]
    %v2143 = vld [vmem:[#allocation20 + $0xff8] sm:$0xff]
    %v2144 = vld [vmem:[#allocation20 + $0x1000] sm:$0xff]
    %v2145 = vld [vmem:[#allocation20 + $0x1008] sm:$0xff]
    %v2146 = vld [vmem:[#allocation20 + $0x1010] sm:$0xff]
    %v2147 = vld [vmem:[#allocation20 + $0x1018] sm:$0xff]
    %v2148 = vld [vmem:[#allocation20 + $0x1020] sm:$0xff]
    %v2149 = vld [vmem:[#allocation20 + $0x1028] sm:$0xff]
    %v2150 = vld [vmem:[#allocation20 + $0x1030] sm:$0xff]
    %v2151 = vld [vmem:[#allocation20 + $0x1038] sm:$0xff]
    %v2152 = vld [vmem:[#allocation20 + $0x1040] sm:$0xff]
    %v2153 = vld [vmem:[#allocation20 + $0x1048] sm:$0xff]
    %v2154 = vld [vmem:[#allocation20 + $0x1050] sm:$0xff]
    %v2155 = vld [vmem:[#allocation20 + $0x1058] sm:$0xff]
    %v2156 = vld [vmem:[#allocation20 + $0x1060] sm:$0xff]
    %v2157 = vld [vmem:[#allocation20 + $0x1068] sm:$0xff]
    %v2158 = vld [vmem:[#allocation20 + $0x1070] sm:$0xff]
    %v2159 = vld [vmem:[#allocation20 + $0x1078] sm:$0xff]
    %v2160 = vld [vmem:[#allocation20 + $0x1080] sm:$0xff]
    %v2161 = vld [vmem:[#allocation20 + $0x1088] sm:$0xff]
    %v2162 = vld [vmem:[#allocation20 + $0x1090] sm:$0xff]
    %v2163 = vld [vmem:[#allocation20 + $0x1098] sm:$0xff]
    %v2164 = vld [vmem:[#allocation20 + $0x10a0] sm:$0xff]
    %v2165 = vld [vmem:[#allocation20 + $0x10a8] sm:$0xff]
    %v2166 = vld [vmem:[#allocation20 + $0x10b0] sm:$0xff]
    %v2167 = vld [vmem:[#allocation20 + $0x10b8] sm:$0xff]
    %v2168 = vld [vmem:[#allocation20 + $0x10c0] sm:$0xff]
    %v2169 = vld [vmem:[#allocation20 + $0x10c8] sm:$0xff]
    %v2170 = vld [vmem:[#allocation20 + $0x10d0] sm:$0xff]
    %v2171 = vld [vmem:[#allocation20 + $0x10d8] sm:$0xff]
    %v2172 = vld [vmem:[#allocation20 + $0x10e0] sm:$0xff]
    %v2173 = vld [vmem:[#allocation20 + $0x10e8] sm:$0xff]
    %v2174 = vld [vmem:[#allocation20 + $0x10f0] sm:$0xff]
    %v2175 = vld [vmem:[#allocation20 + $0x10f8] sm:$0xff]
    %v2176 = vld [vmem:[#allocation20 + $0x1100] sm:$0xff]
    %v2177 = vld [vmem:[#allocation20 + $0x1108] sm:$0xff]
    %v2178 = vld [vmem:[#allocation20 + $0x1110] sm:$0xff]
    %v2179 = vld [vmem:[#allocation20 + $0x1118] sm:$0xff]
    %v2180 = vld [vmem:[#allocation20 + $0x1120] sm:$0xff]
    %v2181 = vld [vmem:[#allocation20 + $0x1128] sm:$0xff]
    %v2182 = vld [vmem:[#allocation20 + $0x1130] sm:$0xff]
    %v2183 = vld [vmem:[#allocation20 + $0x1138] sm:$0xff]
    %v2184 = vld [vmem:[#allocation20 + $0x1140] sm:$0xff]
    %v2185 = vld [vmem:[#allocation20 + $0x1148] sm:$0xff]
    %v2186 = vld [vmem:[#allocation20 + $0x1150] sm:$0xff]
    %v2187 = vld [vmem:[#allocation20 + $0x1158] sm:$0xff]
    %v2188 = vld [vmem:[#allocation20 + $0x1160] sm:$0xff]
    %v2189 = vld [vmem:[#allocation20 + $0x1168] sm:$0xff]
    %v2190 = vld [vmem:[#allocation20 + $0x1170] sm:$0xff]
    %v2191 = vld [vmem:[#allocation20 + $0x1178] sm:$0xff]
    %v2192 = vld [vmem:[#allocation20 + $0x1180] sm:$0xff]
    %v2193 = vld [vmem:[#allocation20 + $0x1188] sm:$0xff]
    %v2194 = vld [vmem:[#allocation20 + $0x1190] sm:$0xff]
    %v2195 = vld [vmem:[#allocation20 + $0x1198] sm:$0xff]
    %v2196 = vld [vmem:[#allocation20 + $0x11a0] sm:$0xff]
    %v2197 = vld [vmem:[#allocation20 + $0x11a8] sm:$0xff]
    %v2198 = vld [vmem:[#allocation20 + $0x11b0] sm:$0xff]
    %v2199 = vld [vmem:[#allocation20 + $0x11b8] sm:$0xff]
    %v2200 = vld [vmem:[#allocation20 + $0x11c0] sm:$0xff]
    %v2201 = vld [vmem:[#allocation20 + $0x11c8] sm:$0xff]
    %v2202 = vld [vmem:[#allocation20 + $0x11d0] sm:$0xff]
    %v2203 = vld [vmem:[#allocation20 + $0x11d8] sm:$0xff]
    %v2204 = vld [vmem:[#allocation20 + $0x11e0] sm:$0xff]
    %v2205 = vld [vmem:[#allocation20 + $0x11e8] sm:$0xff]
    %v2206 = vld [vmem:[#allocation20 + $0x11f0] sm:$0xff]
    %v2207 = vld [vmem:[#allocation20 + $0x11f8] sm:$0xff]
    %v2208 = vld [vmem:[#allocation21] sm:$0xff]
    %v2209 = vld [vmem:[#allocation21 + $0x8] sm:$0xff]
    %v2210 = vld [vmem:[#allocation21 + $0x10] sm:$0xff]
    %v2211 = vld [vmem:[#allocation21 + $0x18] sm:$0xff]
    %v2212 = vld [vmem:[#allocation21 + $0x20] sm:$0xf]
    %v2218 = vlaneseq
    %v2219 = vshrl.u32 %v2218, 7
    %v2220 = vsub.s32 0, %v2219
    %v2221 = vrot.slane %v2208, %v2220
    %v2222 = vlaneseq
    %v2223 = vshrl.u32 %v2222, 7
    %v2224 = vsub.s32 1, %v2223
    %v2225 = vrot.slane %v2208, %v2224
    %v2226 = vlaneseq
    %v2227 = vshrl.u32 %v2226, 7
    %v2228 = vsub.s32 2, %v2227
    %v2229 = vrot.slane %v2208, %v2228
    %v2230 = vlaneseq
    %v2231 = vshrl.u32 %v2230, 7
    %v2232 = vsub.s32 3, %v2231
    %v2233 = vrot.slane %v2208, %v2232
    %v2234 = vlaneseq
    %v2235 = vshrl.u32 %v2234, 7
    %v2236 = vsub.s32 4, %v2235
    %v2237 = vrot.slane %v2208, %v2236
    %v2238 = vlaneseq
    %v2239 = vshrl.u32 %v2238, 7
    %v2240 = vsub.s32 5, %v2239
    %v2241 = vrot.slane %v2208, %v2240
    %v2242 = vlaneseq
    %v2243 = vshrl.u32 %v2242, 7
    %v2244 = vsub.s32 6, %v2243
    %v2245 = vrot.slane %v2208, %v2244
    %v2246 = vlaneseq
    %v2247 = vshrl.u32 %v2246, 7
    %v2248 = vsub.s32 7, %v2247
    %v2249 = vrot.slane %v2208, %v2248
    %v2250 = vlaneseq
    %v2251 = vshrl.u32 %v2250, 7
    %v2252 = vsub.s32 0, %v2251
    %v2253 = vrot.slane %v2209, %v2252
    %v2254 = vlaneseq
    %v2255 = vshrl.u32 %v2254, 7
    %v2256 = vsub.s32 1, %v2255
    %v2257 = vrot.slane %v2209, %v2256
    %v2258 = vlaneseq
    %v2259 = vshrl.u32 %v2258, 7
    %v2260 = vsub.s32 2, %v2259
    %v2261 = vrot.slane %v2209, %v2260
    %v2262 = vlaneseq
    %v2263 = vshrl.u32 %v2262, 7
    %v2264 = vsub.s32 3, %v2263
    %v2265 = vrot.slane %v2209, %v2264
    %v2266 = vlaneseq
    %v2267 = vshrl.u32 %v2266, 7
    %v2268 = vsub.s32 4, %v2267
    %v2269 = vrot.slane %v2209, %v2268
    %v2270 = vlaneseq
    %v2271 = vshrl.u32 %v2270, 7
    %v2272 = vsub.s32 5, %v2271
    %v2273 = vrot.slane %v2209, %v2272
    %v2274 = vlaneseq
    %v2275 = vshrl.u32 %v2274, 7
    %v2276 = vsub.s32 6, %v2275
    %v2277 = vrot.slane %v2209, %v2276
    %v2278 = vlaneseq
    %v2279 = vshrl.u32 %v2278, 7
    %v2280 = vsub.s32 7, %v2279
    %v2281 = vrot.slane %v2209, %v2280
    %v2282 = vlaneseq
    %v2283 = vshrl.u32 %v2282, 7
    %v2284 = vsub.s32 0, %v2283
    %v2285 = vrot.slane %v2210, %v2284
    %v2286 = vlaneseq
    %v2287 = vshrl.u32 %v2286, 7
    %v2288 = vsub.s32 1, %v2287
    %v2289 = vrot.slane %v2210, %v2288
    %v2290 = vlaneseq
    %v2291 = vshrl.u32 %v2290, 7
    %v2292 = vsub.s32 2, %v2291
    %v2293 = vrot.slane %v2210, %v2292
    %v2294 = vlaneseq
    %v2295 = vshrl.u32 %v2294, 7
    %v2296 = vsub.s32 3, %v2295
    %v2297 = vrot.slane %v2210, %v2296
    %v2298 = vlaneseq
    %v2299 = vshrl.u32 %v2298, 7
    %v2300 = vsub.s32 4, %v2299
    %v2301 = vrot.slane %v2210, %v2300
    %v2302 = vlaneseq
    %v2303 = vshrl.u32 %v2302, 7
    %v2304 = vsub.s32 5, %v2303
    %v2305 = vrot.slane %v2210, %v2304
    %v2306 = vlaneseq
    %v2307 = vshrl.u32 %v2306, 7
    %v2308 = vsub.s32 6, %v2307
    %v2309 = vrot.slane %v2210, %v2308
    %v2310 = vlaneseq
    %v2311 = vshrl.u32 %v2310, 7
    %v2312 = vsub.s32 7, %v2311
    %v2313 = vrot.slane %v2210, %v2312
    %v2314 = vlaneseq
    %v2315 = vshrl.u32 %v2314, 7
    %v2316 = vsub.s32 0, %v2315
    %v2317 = vrot.slane %v2211, %v2316
    %v2318 = vlaneseq
    %v2319 = vshrl.u32 %v2318, 7
    %v2320 = vsub.s32 1, %v2319
    %v2321 = vrot.slane %v2211, %v2320
    %v2322 = vlaneseq
    %v2323 = vshrl.u32 %v2322, 7
    %v2324 = vsub.s32 2, %v2323
    %v2325 = vrot.slane %v2211, %v2324
    %v2326 = vlaneseq
    %v2327 = vshrl.u32 %v2326, 7
    %v2328 = vsub.s32 3, %v2327
    %v2329 = vrot.slane %v2211, %v2328
    %v2330 = vlaneseq
    %v2331 = vshrl.u32 %v2330, 7
    %v2332 = vsub.s32 4, %v2331
    %v2333 = vrot.slane %v2211, %v2332
    %v2334 = vlaneseq
    %v2335 = vshrl.u32 %v2334, 7
    %v2336 = vsub.s32 5, %v2335
    %v2337 = vrot.slane %v2211, %v2336
    %v2338 = vlaneseq
    %v2339 = vshrl.u32 %v2338, 7
    %v2340 = vsub.s32 6, %v2339
    %v2341 = vrot.slane %v2211, %v2340
    %v2342 = vlaneseq
    %v2343 = vshrl.u32 %v2342, 7
    %v2344 = vsub.s32 7, %v2343
    %v2345 = vrot.slane %v2211, %v2344
    %v2346 = vlaneseq
    %v2347 = vshrl.u32 %v2346, 7
    %v2348 = vsub.s32 0, %v2347
    %v2349 = vrot.slane %v2212, %v2348
    %v2350 = vlaneseq
    %v2351 = vshrl.u32 %v2350, 7
    %v2352 = vsub.s32 1, %v2351
    %v2353 = vrot.slane %v2212, %v2352
    %v2354 = vlaneseq
    %v2355 = vshrl.u32 %v2354, 7
    %v2356 = vsub.s32 2, %v2355
    %v2357 = vrot.slane %v2212, %v2356
    %v2358 = vlaneseq
    %v2359 = vshrl.u32 %v2358, 7
    %v2360 = vsub.s32 3, %v2359
    %v2361 = vrot.slane %v2212, %v2360
    %2398 = vmatprep.subr.mxu0 %v1633
    %2399 = vmatpush1.msra.mxu0 %v1632
    %2400 = vmatprep.subr.mxu0 %v1669
    %2401 = vmatpush1.msra.mxu0 %v1668
    %2402 = vmatprep.subr.mxu0 %v1705
    %2403 = vmatpush1.msra.mxu0 %v1704
    %2404 = vmatprep.subr.mxu0 %v1741
    %2405 = vmatpush1.msra.mxu0 %v1740
    %2406 = vmatprep.subr.mxu0 %v1777
    %2407 = vmatpush1.msra.mxu0 %v1776
    %2408 = vmatprep.subr.mxu0 %v1813
    %2409 = vmatpush1.msra.mxu0 %v1812
    %2410 = vmatprep.subr.mxu0 %v1849
    %2411 = vmatpush1.msra.mxu0 %v1848
    %2412 = vmatprep.subr.mxu0 %v1885
    %2413 = vmatpush1.msra.mxu0 %v1884
    %2414 = vmatprep.subr.mxu0 %v1921
    %2415 = vmatpush1.msra.mxu0 %v1920
    %2416 = vmatprep.subr.mxu0 %v1957
    %2417 = vmatpush1.msra.mxu0 %v1956
    %2418 = vmatprep.subr.mxu0 %v1993
    %2419 = vmatpush1.msra.mxu0 %v1992
    %2420 = vmatprep.subr.mxu0 %v2029
    %2421 = vmatpush1.msra.mxu0 %v2028
    %2422 = vmatprep.subr.mxu0 %v2065
    %2423 = vmatpush1.msra.mxu0 %v2064
    %2424 = vmatprep.subr.mxu0 %v2101
    %2425 = vmatpush1.msra.mxu0 %v2100
    %2426 = vmatprep.subr.mxu0 %v2137
    %2427 = vmatpush1.msra.mxu0 %v2136
    %2428 = vmatprep.subr.mxu0 %v2173
    %2429 = vmatpush1.msra.mxu0 %v2172
    %2430 = vmatprep.subr.mxu0 0.0
    %2431 = vmatpush1.msra.mxu0 0.0
    %2432 = vmatprep.subr.mxu0 0.0
    %2433 = vmatpush1.msra.mxu0 0.0
    %2434 = vmatprep.subr.mxu0 0.0
    %2435 = vmatpush1.msra.mxu0 0.0
    %2436 = vmatprep.subr.mxu0 0.0
    %2437 = vmatpush1.msra.mxu0 0.0
    %2438 = vmatprep.subr.mxu0 0.0
    %2439 = vmatpush1.msra.mxu0 0.0
    %2440 = vmatprep.subr.mxu0 0.0
    %2441 = vmatpush1.msra.mxu0 0.0
    %2442 = vmatprep.subr.mxu0 0.0
    %2443 = vmatpush1.msra.mxu0 0.0
    %2444 = vmatprep.subr.mxu0 0.0
    %2445 = vmatpush1.msra.mxu0 0.0
    %2446 = vmatprep.subr.mxu0 0.0
    %2447 = vmatpush1.msra.mxu0 0.0
    %2448 = vmatprep.subr.mxu0 0.0
    %2449 = vmatpush1.msra.mxu0 0.0
    %2450 = vmatprep.subr.mxu0 0.0
    %2451 = vmatpush1.msra.mxu0 0.0
    %2452 = vmatprep.subr.mxu0 0.0
    %2453 = vmatpush1.msra.mxu0 0.0
    %2454 = vmatprep.subr.mxu0 0.0
    %2455 = vmatpush1.msra.mxu0 0.0
    %2456 = vmatprep.subr.mxu0 0.0
    %2457 = vmatpush1.msra.mxu0 0.0
    %2458 = vmatprep.subr.mxu0 0.0
    %2459 = vmatpush1.msra.mxu0 0.0
    %2460 = vmatprep.subr.mxu0 0.0
    %2461 = vmatpush1.msra.mxu0 0.0
    %2462 = vmatprep.mubr.f32.mxu0 0.0
    %2463 = vmatmul.mubr.f32.gmra.mrb[0].mxu0 %v1631
    %v2464 = vpop.f32.mrb[0].mxu0
    %v2465 = vadd.f32 %v2221, %v2464
    %v2466 = vpop.f32.mrb[0].mxu0
    %v2467 = vadd.f32 %v2225, %v2466
    %2468 = vdwg.mxu0
    %2469 = vmatprep.subr.mxu0 %v1635
    %2470 = vmatpush1.msra.mxu0 %v1634
    %2471 = vmatprep.subr.mxu0 %v1671
    %2472 = vmatpush1.msra.mxu0 %v1670
    %2473 = vmatprep.subr.mxu0 %v1707
    %2474 = vmatpush1.msra.mxu0 %v1706
    %2475 = vmatprep.subr.mxu0 %v1743
    %2476 = vmatpush1.msra.mxu0 %v1742
    %2477 = vmatprep.subr.mxu0 %v1779
    %2478 = vmatpush1.msra.mxu0 %v1778
    %2479 = vmatprep.subr.mxu0 %v1815
    %2480 = vmatpush1.msra.mxu0 %v1814
    %2481 = vmatprep.subr.mxu0 %v1851
    %2482 = vmatpush1.msra.mxu0 %v1850
    %2483 = vmatprep.subr.mxu0 %v1887
    %2484 = vmatpush1.msra.mxu0 %v1886
    %2485 = vmatprep.subr.mxu0 %v1923
    %2486 = vmatpush1.msra.mxu0 %v1922
    %2487 = vmatprep.subr.mxu0 %v1959
    %2488 = vmatpush1.msra.mxu0 %v1958
    %2489 = vmatprep.subr.mxu0 %v1995
    %2490 = vmatpush1.msra.mxu0 %v1994
    %2491 = vmatprep.subr.mxu0 %v2031
    %2492 = vmatpush1.msra.mxu0 %v2030
    %2493 = vmatprep.subr.mxu0 %v2067
    %2494 = vmatpush1.msra.mxu0 %v2066
    %2495 = vmatprep.subr.mxu0 %v2103
    %2496 = vmatpush1.msra.mxu0 %v2102
    %2497 = vmatprep.subr.mxu0 %v2139
    %2498 = vmatpush1.msra.mxu0 %v2138
    %2499 = vmatprep.subr.mxu0 %v2175
    %2500 = vmatpush1.msra.mxu0 %v2174
    %2501 = vmatprep.subr.mxu0 0.0
    %2502 = vmatpush1.msra.mxu0 0.0
    %2503 = vmatprep.subr.mxu0 0.0
    %2504 = vmatpush1.msra.mxu0 0.0
    %2505 = vmatprep.subr.mxu0 0.0
    %2506 = vmatpush1.msra.mxu0 0.0
    %2507 = vmatprep.subr.mxu0 0.0
    %2508 = vmatpush1.msra.mxu0 0.0
    %2509 = vmatprep.subr.mxu0 0.0
    %2510 = vmatpush1.msra.mxu0 0.0
    %2511 = vmatprep.subr.mxu0 0.0
    %2512 = vmatpush1.msra.mxu0 0.0
    %2513 = vmatprep.subr.mxu0 0.0
    %2514 = vmatpush1.msra.mxu0 0.0
    %2515 = vmatprep.subr.mxu0 0.0
    %2516 = vmatpush1.msra.mxu0 0.0
    %2517 = vmatprep.subr.mxu0 0.0
    %2518 = vmatpush1.msra.mxu0 0.0
    %2519 = vmatprep.subr.mxu0 0.0
    %2520 = vmatpush1.msra.mxu0 0.0
    %2521 = vmatprep.subr.mxu0 0.0
    %2522 = vmatpush1.msra.mxu0 0.0
    %2523 = vmatprep.subr.mxu0 0.0
    %2524 = vmatpush1.msra.mxu0 0.0
    %2525 = vmatprep.subr.mxu0 0.0
    %2526 = vmatpush1.msra.mxu0 0.0
    %2527 = vmatprep.subr.mxu0 0.0
    %2528 = vmatpush1.msra.mxu0 0.0
    %2529 = vmatprep.subr.mxu0 0.0
    %2530 = vmatpush1.msra.mxu0 0.0
    %2531 = vmatprep.subr.mxu0 0.0
    %2532 = vmatpush1.msra.mxu0 0.0
    %2533 = vmatprep.mubr.f32.mxu0 0.0
    %2534 = vmatmul.mubr.f32.gmra.mrb[0].mxu0 %v1631
    %v2535 = vpop.f32.mrb[0].mxu0
    %v2536 = vadd.f32 %v2229, %v2535
    %v2537 = vpop.f32.mrb[0].mxu0
    %v2538 = vadd.f32 %v2233, %v2537
    %2539 = vdwg.mxu0
    %2540 = vmatprep.subr.mxu0 %v1637
    %2541 = vmatpush1.msra.mxu0 %v1636
    %2542 = vmatprep.subr.mxu0 %v1673
    %2543 = vmatpush1.msra.mxu0 %v1672
    %2544 = vmatprep.subr.mxu0 %v1709
    %2545 = vmatpush1.msra.mxu0 %v1708
    %2546 = vmatprep.subr.mxu0 %v1745
    %2547 = vmatpush1.msra.mxu0 %v1744
    %2548 = vmatprep.subr.mxu0 %v1781
    %2549 = vmatpush1.msra.mxu0 %v1780
    %2550 = vmatprep.subr.mxu0 %v1817
    %2551 = vmatpush1.msra.mxu0 %v1816
    %2552 = vmatprep.subr.mxu0 %v1853
    %2553 = vmatpush1.msra.mxu0 %v1852
    %2554 = vmatprep.subr.mxu0 %v1889
    %2555 = vmatpush1.msra.mxu0 %v1888
    %2556 = vmatprep.subr.mxu0 %v1925
    %2557 = vmatpush1.msra.mxu0 %v1924
    %2558 = vmatprep.subr.mxu0 %v1961
    %2559 = vmatpush1.msra.mxu0 %v1960
    %2560 = vmatprep.subr.mxu0 %v1997
    %2561 = vmatpush1.msra.mxu0 %v1996
    %2562 = vmatprep.subr.mxu0 %v2033
    %2563 = vmatpush1.msra.mxu0 %v2032
    %2564 = vmatprep.subr.mxu0 %v2069
    %2565 = vmatpush1.msra.mxu0 %v2068
    %2566 = vmatprep.subr.mxu0 %v2105
    %2567 = vmatpush1.msra.mxu0 %v2104
    %2568 = vmatprep.subr.mxu0 %v2141
    %2569 = vmatpush1.msra.mxu0 %v2140
    %2570 = vmatprep.subr.mxu0 %v2177
    %2571 = vmatpush1.msra.mxu0 %v2176
    %2572 = vmatprep.subr.mxu0 0.0
    %2573 = vmatpush1.msra.mxu0 0.0
    %2574 = vmatprep.subr.mxu0 0.0
    %2575 = vmatpush1.msra.mxu0 0.0
    %2576 = vmatprep.subr.mxu0 0.0
    %2577 = vmatpush1.msra.mxu0 0.0
    %2578 = vmatprep.subr.mxu0 0.0
    %2579 = vmatpush1.msra.mxu0 0.0
    %2580 = vmatprep.subr.mxu0 0.0
    %2581 = vmatpush1.msra.mxu0 0.0
    %2582 = vmatprep.subr.mxu0 0.0
    %2583 = vmatpush1.msra.mxu0 0.0
    %2584 = vmatprep.subr.mxu0 0.0
    %2585 = vmatpush1.msra.mxu0 0.0
    %2586 = vmatprep.subr.mxu0 0.0
    %2587 = vmatpush1.msra.mxu0 0.0
    %2588 = vmatprep.subr.mxu0 0.0
    %2589 = vmatpush1.msra.mxu0 0.0
    %2590 = vmatprep.subr.mxu0 0.0
    %2591 = vmatpush1.msra.mxu0 0.0
    %2592 = vmatprep.subr.mxu0 0.0
    %2593 = vmatpush1.msra.mxu0 0.0
    %2594 = vmatprep.subr.mxu0 0.0
    %2595 = vmatpush1.msra.mxu0 0.0
    %2596 = vmatprep.subr.mxu0 0.0
    %2597 = vmatpush1.msra.mxu0 0.0
    %2598 = vmatprep.subr.mxu0 0.0
    %2599 = vmatpush1.msra.mxu0 0.0
    %2600 = vmatprep.subr.mxu0 0.0
    %2601 = vmatpush1.msra.mxu0 0.0
    %2602 = vmatprep.subr.mxu0 0.0
    %2603 = vmatpush1.msra.mxu0 0.0
    %2604 = vmatprep.mubr.f32.mxu0 0.0
    %2605 = vmatmul.mubr.f32.gmra.mrb[0].mxu0 %v1631
    %v2606 = vpop.f32.mrb[0].mxu0
    %v2607 = vadd.f32 %v2237, %v2606
    %v2608 = vpop.f32.mrb[0].mxu0
    %v2609 = vadd.f32 %v2241, %v2608
    %2610 = vdwg.mxu0
    %2611 = vmatprep.subr.mxu0 %v1639
    %2612 = vmatpush1.msra.mxu0 %v1638
    %2613 = vmatprep.subr.mxu0 %v1675
    %2614 = vmatpush1.msra.mxu0 %v1674
    %2615 = vmatprep.subr.mxu0 %v1711
    %2616 = vmatpush1.msra.mxu0 %v1710
    %2617 = vmatprep.subr.mxu0 %v1747
    %2618 = vmatpush1.msra.mxu0 %v1746
    %2619 = vmatprep.subr.mxu0 %v1783
    %2620 = vmatpush1.msra.mxu0 %v1782
    %2621 = vmatprep.subr.mxu0 %v1819
    %2622 = vmatpush1.msra.mxu0 %v1818
    %2623 = vmatprep.subr.mxu0 %v1855
    %2624 = vmatpush1.msra.mxu0 %v1854
    %2625 = vmatprep.subr.mxu0 %v1891
    %2626 = vmatpush1.msra.mxu0 %v1890
    %2627 = vmatprep.subr.mxu0 %v1927
    %2628 = vmatpush1.msra.mxu0 %v1926
    %2629 = vmatprep.subr.mxu0 %v1963
    %2630 = vmatpush1.msra.mxu0 %v1962
    %2631 = vmatprep.subr.mxu0 %v1999
    %2632 = vmatpush1.msra.mxu0 %v1998
    %2633 = vmatprep.subr.mxu0 %v2035
    %2634 = vmatpush1.msra.mxu0 %v2034
    %2635 = vmatprep.subr.mxu0 %v2071
    %2636 = vmatpush1.msra.mxu0 %v2070
    %2637 = vmatprep.subr.mxu0 %v2107
    %2638 = vmatpush1.msra.mxu0 %v2106
    %2639 = vmatprep.subr.mxu0 %v2143
    %2640 = vmatpush1.msra.mxu0 %v2142
    %2641 = vmatprep.subr.mxu0 %v2179
    %2642 = vmatpush1.msra.mxu0 %v2178
    %2643 = vmatprep.subr.mxu0 0.0
    %2644 = vmatpush1.msra.mxu0 0.0
    %2645 = vmatprep.subr.mxu0 0.0
    %2646 = vmatpush1.msra.mxu0 0.0
    %2647 = vmatprep.subr.mxu0 0.0
    %2648 = vmatpush1.msra.mxu0 0.0
    %2649 = vmatprep.subr.mxu0 0.0
    %2650 = vmatpush1.msra.mxu0 0.0
    %2651 = vmatprep.subr.mxu0 0.0
    %2652 = vmatpush1.msra.mxu0 0.0
    %2653 = vmatprep.subr.mxu0 0.0
    %2654 = vmatpush1.msra.mxu0 0.0
    %2655 = vmatprep.subr.mxu0 0.0
    %2656 = vmatpush1.msra.mxu0 0.0
    %2657 = vmatprep.subr.mxu0 0.0
    %2658 = vmatpush1.msra.mxu0 0.0
    %2659 = vmatprep.subr.mxu0 0.0
    %2660 = vmatpush1.msra.mxu0 0.0
    %2661 = vmatprep.subr.mxu0 0.0
    %2662 = vmatpush1.msra.mxu0 0.0
    %2663 = vmatprep.subr.mxu0 0.0
    %2664 = vmatpush1.msra.mxu0 0.0
    %2665 = vmatprep.subr.mxu0 0.0
    %2666 = vmatpush1.msra.mxu0 0.0
    %2667 = vmatprep.subr.mxu0 0.0
    %2668 = vmatpush1.msra.mxu0 0.0
    %2669 = vmatprep.subr.mxu0 0.0
    %2670 = vmatpush1.msra.mxu0 0.0
    %2671 = vmatprep.subr.mxu0 0.0
    %2672 = vmatpush1.msra.mxu0 0.0
    %2673 = vmatprep.subr.mxu0 0.0
    %2674 = vmatpush1.msra.mxu0 0.0
    %2675 = vmatprep.mubr.f32.mxu0 0.0
    %2676 = vmatmul.mubr.f32.gmra.mrb[0].mxu0 %v1631
    %v2677 = vpop.f32.mrb[0].mxu0
    %v2678 = vadd.f32 %v2245, %v2677
    %v2679 = vpop.f32.mrb[0].mxu0
    %v2680 = vadd.f32 %v2249, %v2679
    %2681 = vdwg.mxu0
    %2682 = vmatprep.subr.mxu0 %v1641
    %2683 = vmatpush1.msra.mxu0 %v1640
    %2684 = vmatprep.subr.mxu0 %v1677
    %2685 = vmatpush1.msra.mxu0 %v1676
    %2686 = vmatprep.subr.mxu0 %v1713
    %2687 = vmatpush1.msra.mxu0 %v1712
    %2688 = vmatprep.subr.mxu0 %v1749
    %2689 = vmatpush1.msra.mxu0 %v1748
    %2690 = vmatprep.subr.mxu0 %v1785
    %2691 = vmatpush1.msra.mxu0 %v1784
    %2692 = vmatprep.subr.mxu0 %v1821
    %2693 = vmatpush1.msra.mxu0 %v1820
    %2694 = vmatprep.subr.mxu0 %v1857
    %2695 = vmatpush1.msra.mxu0 %v1856
    %2696 = vmatprep.subr.mxu0 %v1893
    %2697 = vmatpush1.msra.mxu0 %v1892
    %2698 = vmatprep.subr.mxu0 %v1929
    %2699 = vmatpush1.msra.mxu0 %v1928
    %2700 = vmatprep.subr.mxu0 %v1965
    %2701 = vmatpush1.msra.mxu0 %v1964
    %2702 = vmatprep.subr.mxu0 %v2001
    %2703 = vmatpush1.msra.mxu0 %v2000
    %2704 = vmatprep.subr.mxu0 %v2037
    %2705 = vmatpush1.msra.mxu0 %v2036
    %2706 = vmatprep.subr.mxu0 %v2073
    %2707 = vmatpush1.msra.mxu0 %v2072
    %2708 = vmatprep.subr.mxu0 %v2109
    %2709 = vmatpush1.msra.mxu0 %v2108
    %2710 = vmatprep.subr.mxu0 %v2145
    %2711 = vmatpush1.msra.mxu0 %v2144
    %2712 = vmatprep.subr.mxu0 %v2181
    %2713 = vmatpush1.msra.mxu0 %v2180
    %2714 = vmatprep.subr.mxu0 0.0
    %2715 = vmatpush1.msra.mxu0 0.0
    %2716 = vmatprep.subr.mxu0 0.0
    %2717 = vmatpush1.msra.mxu0 0.0
    %2718 = vmatprep.subr.mxu0 0.0
    %2719 = vmatpush1.msra.mxu0 0.0
    %2720 = vmatprep.subr.mxu0 0.0
    %2721 = vmatpush1.msra.mxu0 0.0
    %2722 = vmatprep.subr.mxu0 0.0
    %2723 = vmatpush1.msra.mxu0 0.0
    %2724 = vmatprep.subr.mxu0 0.0
    %2725 = vmatpush1.msra.mxu0 0.0
    %2726 = vmatprep.subr.mxu0 0.0
    %2727 = vmatpush1.msra.mxu0 0.0
    %2728 = vmatprep.subr.mxu0 0.0
    %2729 = vmatpush1.msra.mxu0 0.0
    %2730 = vmatprep.subr.mxu0 0.0
    %2731 = vmatpush1.msra.mxu0 0.0
    %2732 = vmatprep.subr.mxu0 0.0
    %2733 = vmatpush1.msra.mxu0 0.0
    %2734 = vmatprep.subr.mxu0 0.0
    %2735 = vmatpush1.msra.mxu0 0.0
    %2736 = vmatprep.subr.mxu0 0.0
    %2737 = vmatpush1.msra.mxu0 0.0
    %2738 = vmatprep.subr.mxu0 0.0
    %2739 = vmatpush1.msra.mxu0 0.0
    %2740 = vmatprep.subr.mxu0 0.0
    %2741 = vmatpush1.msra.mxu0 0.0
    %2742 = vmatprep.subr.mxu0 0.0
    %2743 = vmatpush1.msra.mxu0 0.0
    %2744 = vmatprep.subr.mxu0 0.0
    %2745 = vmatpush1.msra.mxu0 0.0
    %2746 = vmatprep.mubr.f32.mxu0 0.0
    %2747 = vmatmul.mubr.f32.gmra.mrb[0].mxu0 %v1631
    %v2748 = vpop.f32.mrb[0].mxu0
    %v2749 = vadd.f32 %v2253, %v2748
    %v2750 = vpop.f32.mrb[0].mxu0
    %v2751 = vadd.f32 %v2257, %v2750
    %2752 = vdwg.mxu0
    %2753 = vmatprep.subr.mxu0 %v1643
    %2754 = vmatpush1.msra.mxu0 %v1642
    %2755 = vmatprep.subr.mxu0 %v1679
    %2756 = vmatpush1.msra.mxu0 %v1678
    %2757 = vmatprep.subr.mxu0 %v1715
    %2758 = vmatpush1.msra.mxu0 %v1714
    %2759 = vmatprep.subr.mxu0 %v1751
    %2760 = vmatpush1.msra.mxu0 %v1750
    %2761 = vmatprep.subr.mxu0 %v1787
    %2762 = vmatpush1.msra.mxu0 %v1786
    %2763 = vmatprep.subr.mxu0 %v1823
    %2764 = vmatpush1.msra.mxu0 %v1822
    %2765 = vmatprep.subr.mxu0 %v1859
    %2766 = vmatpush1.msra.mxu0 %v1858
    %2767 = vmatprep.subr.mxu0 %v1895
    %2768 = vmatpush1.msra.mxu0 %v1894
    %2769 = vmatprep.subr.mxu0 %v1931
    %2770 = vmatpush1.msra.mxu0 %v1930
    %2771 = vmatprep.subr.mxu0 %v1967
    %2772 = vmatpush1.msra.mxu0 %v1966
    %2773 = vmatprep.subr.mxu0 %v2003
    %2774 = vmatpush1.msra.mxu0 %v2002
    %2775 = vmatprep.subr.mxu0 %v2039
    %2776 = vmatpush1.msra.mxu0 %v2038
    %2777 = vmatprep.subr.mxu0 %v2075
    %2778 = vmatpush1.msra.mxu0 %v2074
    %2779 = vmatprep.subr.mxu0 %v2111
    %2780 = vmatpush1.msra.mxu0 %v2110
    %2781 = vmatprep.subr.mxu0 %v2147
    %2782 = vmatpush1.msra.mxu0 %v2146
    %2783 = vmatprep.subr.mxu0 %v2183
    %2784 = vmatpush1.msra.mxu0 %v2182
    %2785 = vmatprep.subr.mxu0 0.0
    %2786 = vmatpush1.msra.mxu0 0.0
    %2787 = vmatprep.subr.mxu0 0.0
    %2788 = vmatpush1.msra.mxu0 0.0
    %2789 = vmatprep.subr.mxu0 0.0
    %2790 = vmatpush1.msra.mxu0 0.0
    %2791 = vmatprep.subr.mxu0 0.0
    %2792 = vmatpush1.msra.mxu0 0.0
    %2793 = vmatprep.subr.mxu0 0.0
    %2794 = vmatpush1.msra.mxu0 0.0
    %2795 = vmatprep.subr.mxu0 0.0
    %2796 = vmatpush1.msra.mxu0 0.0
    %2797 = vmatprep.subr.mxu0 0.0
    %2798 = vmatpush1.msra.mxu0 0.0
    %2799 = vmatprep.subr.mxu0 0.0
    %2800 = vmatpush1.msra.mxu0 0.0
    %2801 = vmatprep.subr.mxu0 0.0
    %2802 = vmatpush1.msra.mxu0 0.0
    %2803 = vmatprep.subr.mxu0 0.0
    %2804 = vmatpush1.msra.mxu0 0.0
    %2805 = vmatprep.subr.mxu0 0.0
    %2806 = vmatpush1.msra.mxu0 0.0
    %2807 = vmatprep.subr.mxu0 0.0
    %2808 = vmatpush1.msra.mxu0 0.0
    %2809 = vmatprep.subr.mxu0 0.0
    %2810 = vmatpush1.msra.mxu0 0.0
    %2811 = vmatprep.subr.mxu0 0.0
    %2812 = vmatpush1.msra.mxu0 0.0
    %2813 = vmatprep.subr.mxu0 0.0
    %2814 = vmatpush1.msra.mxu0 0.0
    %2815 = vmatprep.subr.mxu0 0.0
    %2816 = vmatpush1.msra.mxu0 0.0
    %2817 = vmatprep.mubr.f32.mxu0 0.0
    %2818 = vmatmul.mubr.f32.gmra.mrb[0].mxu0 %v1631
    %v2819 = vpop.f32.mrb[0].mxu0
    %v2820 = vadd.f32 %v2261, %v2819
    %v2821 = vpop.f32.mrb[0].mxu0
    %v2822 = vadd.f32 %v2265, %v2821
    %2823 = vdwg.mxu0
    %2824 = vmatprep.subr.mxu0 %v1645
    %2825 = vmatpush1.msra.mxu0 %v1644
    %2826 = vmatprep.subr.mxu0 %v1681
    %2827 = vmatpush1.msra.mxu0 %v1680
    %2828 = vmatprep.subr.mxu0 %v1717
    %2829 = vmatpush1.msra.mxu0 %v1716
    %2830 = vmatprep.subr.mxu0 %v1753
    %2831 = vmatpush1.msra.mxu0 %v1752
    %2832 = vmatprep.subr.mxu0 %v1789
    %2833 = vmatpush1.msra.mxu0 %v1788
    %2834 = vmatprep.subr.mxu0 %v1825
    %2835 = vmatpush1.msra.mxu0 %v1824
    %2836 = vmatprep.subr.mxu0 %v1861
    %2837 = vmatpush1.msra.mxu0 %v1860
    %2838 = vmatprep.subr.mxu0 %v1897
    %2839 = vmatpush1.msra.mxu0 %v1896
    %2840 = vmatprep.subr.mxu0 %v1933
    %2841 = vmatpush1.msra.mxu0 %v1932
    %2842 = vmatprep.subr.mxu0 %v1969
    %2843 = vmatpush1.msra.mxu0 %v1968
    %2844 = vmatprep.subr.mxu0 %v2005
    %2845 = vmatpush1.msra.mxu0 %v2004
    %2846 = vmatprep.subr.mxu0 %v2041
    %2847 = vmatpush1.msra.mxu0 %v2040
    %2848 = vmatprep.subr.mxu0 %v2077
    %2849 = vmatpush1.msra.mxu0 %v2076
    %2850 = vmatprep.subr.mxu0 %v2113
    %2851 = vmatpush1.msra.mxu0 %v2112
    %2852 = vmatprep.subr.mxu0 %v2149
    %2853 = vmatpush1.msra.mxu0 %v2148
    %2854 = vmatprep.subr.mxu0 %v2185
    %2855 = vmatpush1.msra.mxu0 %v2184
    %2856 = vmatprep.subr.mxu0 0.0
    %2857 = vmatpush1.msra.mxu0 0.0
    %2858 = vmatprep.subr.mxu0 0.0
    %2859 = vmatpush1.msra.mxu0 0.0
    %2860 = vmatprep.subr.mxu0 0.0
    %2861 = vmatpush1.msra.mxu0 0.0
    %2862 = vmatprep.subr.mxu0 0.0
    %2863 = vmatpush1.msra.mxu0 0.0
    %2864 = vmatprep.subr.mxu0 0.0
    %2865 = vmatpush1.msra.mxu0 0.0
    %2866 = vmatprep.subr.mxu0 0.0
    %2867 = vmatpush1.msra.mxu0 0.0
    %2868 = vmatprep.subr.mxu0 0.0
    %2869 = vmatpush1.msra.mxu0 0.0
    %2870 = vmatprep.subr.mxu0 0.0
    %2871 = vmatpush1.msra.mxu0 0.0
    %2872 = vmatprep.subr.mxu0 0.0
    %2873 = vmatpush1.msra.mxu0 0.0
    %2874 = vmatprep.subr.mxu0 0.0
    %2875 = vmatpush1.msra.mxu0 0.0
    %2876 = vmatprep.subr.mxu0 0.0
    %2877 = vmatpush1.msra.mxu0 0.0
    %2878 = vmatprep.subr.mxu0 0.0
    %2879 = vmatpush1.msra.mxu0 0.0
    %2880 = vmatprep.subr.mxu0 0.0
    %2881 = vmatpush1.msra.mxu0 0.0
    %2882 = vmatprep.subr.mxu0 0.0
    %2883 = vmatpush1.msra.mxu0 0.0
    %2884 = vmatprep.subr.mxu0 0.0
    %2885 = vmatpush1.msra.mxu0 0.0
    %2886 = vmatprep.subr.mxu0 0.0
    %2887 = vmatpush1.msra.mxu0 0.0
    %2888 = vmatprep.mubr.f32.mxu0 0.0
    %2889 = vmatmul.mubr.f32.gmra.mrb[0].mxu0 %v1631
    %v2890 = vpop.f32.mrb[0].mxu0
    %v2891 = vadd.f32 %v2269, %v2890
    %v2892 = vpop.f32.mrb[0].mxu0
    %v2893 = vadd.f32 %v2273, %v2892
    %2894 = vdwg.mxu0
    %2895 = vmatprep.subr.mxu0 %v1647
    %2896 = vmatpush1.msra.mxu0 %v1646
    %2897 = vmatprep.subr.mxu0 %v1683
    %2898 = vmatpush1.msra.mxu0 %v1682
    %2899 = vmatprep.subr.mxu0 %v1719
    %2900 = vmatpush1.msra.mxu0 %v1718
    %2901 = vmatprep.subr.mxu0 %v1755
    %2902 = vmatpush1.msra.mxu0 %v1754
    %2903 = vmatprep.subr.mxu0 %v1791
    %2904 = vmatpush1.msra.mxu0 %v1790
    %2905 = vmatprep.subr.mxu0 %v1827
    %2906 = vmatpush1.msra.mxu0 %v1826
    %2907 = vmatprep.subr.mxu0 %v1863
    %2908 = vmatpush1.msra.mxu0 %v1862
    %2909 = vmatprep.subr.mxu0 %v1899
    %2910 = vmatpush1.msra.mxu0 %v1898
    %2911 = vmatprep.subr.mxu0 %v1935
    %2912 = vmatpush1.msra.mxu0 %v1934
    %2913 = vmatprep.subr.mxu0 %v1971
    %2914 = vmatpush1.msra.mxu0 %v1970
    %2915 = vmatprep.subr.mxu0 %v2007
    %2916 = vmatpush1.msra.mxu0 %v2006
    %2917 = vmatprep.subr.mxu0 %v2043
    %2918 = vmatpush1.msra.mxu0 %v2042
    %2919 = vmatprep.subr.mxu0 %v2079
    %2920 = vmatpush1.msra.mxu0 %v2078
    %2921 = vmatprep.subr.mxu0 %v2115
    %2922 = vmatpush1.msra.mxu0 %v2114
    %2923 = vmatprep.subr.mxu0 %v2151
    %2924 = vmatpush1.msra.mxu0 %v2150
    %2925 = vmatprep.subr.mxu0 %v2187
    %2926 = vmatpush1.msra.mxu0 %v2186
    %2927 = vmatprep.subr.mxu0 0.0
    %2928 = vmatpush1.msra.mxu0 0.0
    %2929 = vmatprep.subr.mxu0 0.0
    %2930 = vmatpush1.msra.mxu0 0.0
    %2931 = vmatprep.subr.mxu0 0.0
    %2932 = vmatpush1.msra.mxu0 0.0
    %2933 = vmatprep.subr.mxu0 0.0
    %2934 = vmatpush1.msra.mxu0 0.0
    %2935 = vmatprep.subr.mxu0 0.0
    %2936 = vmatpush1.msra.mxu0 0.0
    %2937 = vmatprep.subr.mxu0 0.0
    %2938 = vmatpush1.msra.mxu0 0.0
    %2939 = vmatprep.subr.mxu0 0.0
    %2940 = vmatpush1.msra.mxu0 0.0
    %2941 = vmatprep.subr.mxu0 0.0
    %2942 = vmatpush1.msra.mxu0 0.0
    %2943 = vmatprep.subr.mxu0 0.0
    %2944 = vmatpush1.msra.mxu0 0.0
    %2945 = vmatprep.subr.mxu0 0.0
    %2946 = vmatpush1.msra.mxu0 0.0
    %2947 = vmatprep.subr.mxu0 0.0
    %2948 = vmatpush1.msra.mxu0 0.0
    %2949 = vmatprep.subr.mxu0 0.0
    %2950 = vmatpush1.msra.mxu0 0.0
    %2951 = vmatprep.subr.mxu0 0.0
    %2952 = vmatpush1.msra.mxu0 0.0
    %2953 = vmatprep.subr.mxu0 0.0
    %2954 = vmatpush1.msra.mxu0 0.0
    %2955 = vmatprep.subr.mxu0 0.0
    %2956 = vmatpush1.msra.mxu0 0.0
    %2957 = vmatprep.subr.mxu0 0.0
    %2958 = vmatpush1.msra.mxu0 0.0
    %2959 = vmatprep.mubr.f32.mxu0 0.0
    %2960 = vmatmul.mubr.f32.gmra.mrb[0].mxu0 %v1631
    %v2961 = vpop.f32.mrb[0].mxu0
    %v2962 = vadd.f32 %v2277, %v2961
    %v2963 = vpop.f32.mrb[0].mxu0
    %v2964 = vadd.f32 %v2281, %v2963
    %2965 = vdwg.mxu0
    %2966 = vmatprep.subr.mxu0 %v1649
    %2967 = vmatpush1.msra.mxu0 %v1648
    %2968 = vmatprep.subr.mxu0 %v1685
    %2969 = vmatpush1.msra.mxu0 %v1684
    %2970 = vmatprep.subr.mxu0 %v1721
    %2971 = vmatpush1.msra.mxu0 %v1720
    %2972 = vmatprep.subr.mxu0 %v1757
    %2973 = vmatpush1.msra.mxu0 %v1756
    %2974 = vmatprep.subr.mxu0 %v1793
    %2975 = vmatpush1.msra.mxu0 %v1792
    %2976 = vmatprep.subr.mxu0 %v1829
    %2977 = vmatpush1.msra.mxu0 %v1828
    %2978 = vmatprep.subr.mxu0 %v1865
    %2979 = vmatpush1.msra.mxu0 %v1864
    %2980 = vmatprep.subr.mxu0 %v1901
    %2981 = vmatpush1.msra.mxu0 %v1900
    %2982 = vmatprep.subr.mxu0 %v1937
    %2983 = vmatpush1.msra.mxu0 %v1936
    %2984 = vmatprep.subr.mxu0 %v1973
    %2985 = vmatpush1.msra.mxu0 %v1972
    %2986 = vmatprep.subr.mxu0 %v2009
    %2987 = vmatpush1.msra.mxu0 %v2008
    %2988 = vmatprep.subr.mxu0 %v2045
    %2989 = vmatpush1.msra.mxu0 %v2044
    %2990 = vmatprep.subr.mxu0 %v2081
    %2991 = vmatpush1.msra.mxu0 %v2080
    %2992 = vmatprep.subr.mxu0 %v2117
    %2993 = vmatpush1.msra.mxu0 %v2116
    %2994 = vmatprep.subr.mxu0 %v2153
    %2995 = vmatpush1.msra.mxu0 %v2152
    %2996 = vmatprep.subr.mxu0 %v2189
    %2997 = vmatpush1.msra.mxu0 %v2188
    %2998 = vmatprep.subr.mxu0 0.0
    %2999 = vmatpush1.msra.mxu0 0.0
    %3000 = vmatprep.subr.mxu0 0.0
    %3001 = vmatpush1.msra.mxu0 0.0
    %3002 = vmatprep.subr.mxu0 0.0
    %3003 = vmatpush1.msra.mxu0 0.0
    %3004 = vmatprep.subr.mxu0 0.0
    %3005 = vmatpush1.msra.mxu0 0.0
    %3006 = vmatprep.subr.mxu0 0.0
    %3007 = vmatpush1.msra.mxu0 0.0
    %3008 = vmatprep.subr.mxu0 0.0
    %3009 = vmatpush1.msra.mxu0 0.0
    %3010 = vmatprep.subr.mxu0 0.0
    %3011 = vmatpush1.msra.mxu0 0.0
    %3012 = vmatprep.subr.mxu0 0.0
    %3013 = vmatpush1.msra.mxu0 0.0
    %3014 = vmatprep.subr.mxu0 0.0
    %3015 = vmatpush1.msra.mxu0 0.0
    %3016 = vmatprep.subr.mxu0 0.0
    %3017 = vmatpush1.msra.mxu0 0.0
    %3018 = vmatprep.subr.mxu0 0.0
    %3019 = vmatpush1.msra.mxu0 0.0
    %3020 = vmatprep.subr.mxu0 0.0
    %3021 = vmatpush1.msra.mxu0 0.0
    %3022 = vmatprep.subr.mxu0 0.0
    %3023 = vmatpush1.msra.mxu0 0.0
    %3024 = vmatprep.subr.mxu0 0.0
    %3025 = vmatpush1.msra.mxu0 0.0
    %3026 = vmatprep.subr.mxu0 0.0
    %3027 = vmatpush1.msra.mxu0 0.0
    %3028 = vmatprep.subr.mxu0 0.0
    %3029 = vmatpush1.msra.mxu0 0.0
    %3030 = vmatprep.mubr.f32.mxu0 0.0
    %3031 = vmatmul.mubr.f32.gmra.mrb[0].mxu0 %v1631
    %v3032 = vpop.f32.mrb[0].mxu0
    %v3033 = vadd.f32 %v2285, %v3032
    %v3034 = vpop.f32.mrb[0].mxu0
    %v3035 = vadd.f32 %v2289, %v3034
    %3036 = vdwg.mxu0
    %3037 = vmatprep.subr.mxu0 %v1651
    %3038 = vmatpush1.msra.mxu0 %v1650
    %3039 = vmatprep.subr.mxu0 %v1687
    %3040 = vmatpush1.msra.mxu0 %v1686
    %3041 = vmatprep.subr.mxu0 %v1723
    %3042 = vmatpush1.msra.mxu0 %v1722
    %3043 = vmatprep.subr.mxu0 %v1759
    %3044 = vmatpush1.msra.mxu0 %v1758
    %3045 = vmatprep.subr.mxu0 %v1795
    %3046 = vmatpush1.msra.mxu0 %v1794
    %3047 = vmatprep.subr.mxu0 %v1831
    %3048 = vmatpush1.msra.mxu0 %v1830
    %3049 = vmatprep.subr.mxu0 %v1867
    %3050 = vmatpush1.msra.mxu0 %v1866
    %3051 = vmatprep.subr.mxu0 %v1903
    %3052 = vmatpush1.msra.mxu0 %v1902
    %3053 = vmatprep.subr.mxu0 %v1939
    %3054 = vmatpush1.msra.mxu0 %v1938
    %3055 = vmatprep.subr.mxu0 %v1975
    %3056 = vmatpush1.msra.mxu0 %v1974
    %3057 = vmatprep.subr.mxu0 %v2011
    %3058 = vmatpush1.msra.mxu0 %v2010
    %3059 = vmatprep.subr.mxu0 %v2047
    %3060 = vmatpush1.msra.mxu0 %v2046
    %3061 = vmatprep.subr.mxu0 %v2083
    %3062 = vmatpush1.msra.mxu0 %v2082
    %3063 = vmatprep.subr.mxu0 %v2119
    %3064 = vmatpush1.msra.mxu0 %v2118
    %3065 = vmatprep.subr.mxu0 %v2155
    %3066 = vmatpush1.msra.mxu0 %v2154
    %3067 = vmatprep.subr.mxu0 %v2191
    %3068 = vmatpush1.msra.mxu0 %v2190
    %3069 = vmatprep.subr.mxu0 0.0
    %3070 = vmatpush1.msra.mxu0 0.0
    %3071 = vmatprep.subr.mxu0 0.0
    %3072 = vmatpush1.msra.mxu0 0.0
    %3073 = vmatprep.subr.mxu0 0.0
    %3074 = vmatpush1.msra.mxu0 0.0
    %3075 = vmatprep.subr.mxu0 0.0
    %3076 = vmatpush1.msra.mxu0 0.0
    %3077 = vmatprep.subr.mxu0 0.0
    %3078 = vmatpush1.msra.mxu0 0.0
    %3079 = vmatprep.subr.mxu0 0.0
    %3080 = vmatpush1.msra.mxu0 0.0
    %3081 = vmatprep.subr.mxu0 0.0
    %3082 = vmatpush1.msra.mxu0 0.0
    %3083 = vmatprep.subr.mxu0 0.0
    %3084 = vmatpush1.msra.mxu0 0.0
    %3085 = vmatprep.subr.mxu0 0.0
    %3086 = vmatpush1.msra.mxu0 0.0
    %3087 = vmatprep.subr.mxu0 0.0
    %3088 = vmatpush1.msra.mxu0 0.0
    %3089 = vmatprep.subr.mxu0 0.0
    %3090 = vmatpush1.msra.mxu0 0.0
    %3091 = vmatprep.subr.mxu0 0.0
    %3092 = vmatpush1.msra.mxu0 0.0
    %3093 = vmatprep.subr.mxu0 0.0
    %3094 = vmatpush1.msra.mxu0 0.0
    %3095 = vmatprep.subr.mxu0 0.0
    %3096 = vmatpush1.msra.mxu0 0.0
    %3097 = vmatprep.subr.mxu0 0.0
    %3098 = vmatpush1.msra.mxu0 0.0
    %3099 = vmatprep.subr.mxu0 0.0
    %3100 = vmatpush1.msra.mxu0 0.0
    %3101 = vmatprep.mubr.f32.mxu0 0.0
    %3102 = vmatmul.mubr.f32.gmra.mrb[0].mxu0 %v1631
    %v3103 = vpop.f32.mrb[0].mxu0
    %v3104 = vadd.f32 %v2293, %v3103
    %v3105 = vpop.f32.mrb[0].mxu0
    %v3106 = vadd.f32 %v2297, %v3105
    %3107 = vdwg.mxu0
    %3108 = vmatprep.subr.mxu0 %v1653
    %3109 = vmatpush1.msra.mxu0 %v1652
    %3110 = vmatprep.subr.mxu0 %v1689
    %3111 = vmatpush1.msra.mxu0 %v1688
    %3112 = vmatprep.subr.mxu0 %v1725
    %3113 = vmatpush1.msra.mxu0 %v1724
    %3114 = vmatprep.subr.mxu0 %v1761
    %3115 = vmatpush1.msra.mxu0 %v1760
    %3116 = vmatprep.subr.mxu0 %v1797
    %3117 = vmatpush1.msra.mxu0 %v1796
    %3118 = vmatprep.subr.mxu0 %v1833
    %3119 = vmatpush1.msra.mxu0 %v1832
    %3120 = vmatprep.subr.mxu0 %v1869
    %3121 = vmatpush1.msra.mxu0 %v1868
    %3122 = vmatprep.subr.mxu0 %v1905
    %3123 = vmatpush1.msra.mxu0 %v1904
    %3124 = vmatprep.subr.mxu0 %v1941
    %3125 = vmatpush1.msra.mxu0 %v1940
    %3126 = vmatprep.subr.mxu0 %v1977
    %3127 = vmatpush1.msra.mxu0 %v1976
    %3128 = vmatprep.subr.mxu0 %v2013
    %3129 = vmatpush1.msra.mxu0 %v2012
    %3130 = vmatprep.subr.mxu0 %v2049
    %3131 = vmatpush1.msra.mxu0 %v2048
    %3132 = vmatprep.subr.mxu0 %v2085
    %3133 = vmatpush1.msra.mxu0 %v2084
    %3134 = vmatprep.subr.mxu0 %v2121
    %3135 = vmatpush1.msra.mxu0 %v2120
    %3136 = vmatprep.subr.mxu0 %v2157
    %3137 = vmatpush1.msra.mxu0 %v2156
    %3138 = vmatprep.subr.mxu0 %v2193
    %3139 = vmatpush1.msra.mxu0 %v2192
    %3140 = vmatprep.subr.mxu0 0.0
    %3141 = vmatpush1.msra.mxu0 0.0
    %3142 = vmatprep.subr.mxu0 0.0
    %3143 = vmatpush1.msra.mxu0 0.0
    %3144 = vmatprep.subr.mxu0 0.0
    %3145 = vmatpush1.msra.mxu0 0.0
    %3146 = vmatprep.subr.mxu0 0.0
    %3147 = vmatpush1.msra.mxu0 0.0
    %3148 = vmatprep.subr.mxu0 0.0
    %3149 = vmatpush1.msra.mxu0 0.0
    %3150 = vmatprep.subr.mxu0 0.0
    %3151 = vmatpush1.msra.mxu0 0.0
    %3152 = vmatprep.subr.mxu0 0.0
    %3153 = vmatpush1.msra.mxu0 0.0
    %3154 = vmatprep.subr.mxu0 0.0
    %3155 = vmatpush1.msra.mxu0 0.0
    %3156 = vmatprep.subr.mxu0 0.0
    %3157 = vmatpush1.msra.mxu0 0.0
    %3158 = vmatprep.subr.mxu0 0.0
    %3159 = vmatpush1.msra.mxu0 0.0
    %3160 = vmatprep.subr.mxu0 0.0
    %3161 = vmatpush1.msra.mxu0 0.0
    %3162 = vmatprep.subr.mxu0 0.0
    %3163 = vmatpush1.msra.mxu0 0.0
    %3164 = vmatprep.subr.mxu0 0.0
    %3165 = vmatpush1.msra.mxu0 0.0
    %3166 = vmatprep.subr.mxu0 0.0
    %3167 = vmatpush1.msra.mxu0 0.0
    %3168 = vmatprep.subr.mxu0 0.0
    %3169 = vmatpush1.msra.mxu0 0.0
    %3170 = vmatprep.subr.mxu0 0.0
    %3171 = vmatpush1.msra.mxu0 0.0
    %3172 = vmatprep.mubr.f32.mxu0 0.0
    %3173 = vmatmul.mubr.f32.gmra.mrb[0].mxu0 %v1631
    %v3174 = vpop.f32.mrb[0].mxu0
    %v3175 = vadd.f32 %v2301, %v3174
    %v3176 = vpop.f32.mrb[0].mxu0
    %v3177 = vadd.f32 %v2305, %v3176
    %3178 = vdwg.mxu0
    %3179 = vmatprep.subr.mxu0 %v1655
    %3180 = vmatpush1.msra.mxu0 %v1654
    %3181 = vmatprep.subr.mxu0 %v1691
    %3182 = vmatpush1.msra.mxu0 %v1690
    %3183 = vmatprep.subr.mxu0 %v1727
    %3184 = vmatpush1.msra.mxu0 %v1726
    %3185 = vmatprep.subr.mxu0 %v1763
    %3186 = vmatpush1.msra.mxu0 %v1762
    %3187 = vmatprep.subr.mxu0 %v1799
    %3188 = vmatpush1.msra.mxu0 %v1798
    %3189 = vmatprep.subr.mxu0 %v1835
    %3190 = vmatpush1.msra.mxu0 %v1834
    %3191 = vmatprep.subr.mxu0 %v1871
    %3192 = vmatpush1.msra.mxu0 %v1870
    %3193 = vmatprep.subr.mxu0 %v1907
    %3194 = vmatpush1.msra.mxu0 %v1906
    %3195 = vmatprep.subr.mxu0 %v1943
    %3196 = vmatpush1.msra.mxu0 %v1942
    %3197 = vmatprep.subr.mxu0 %v1979
    %3198 = vmatpush1.msra.mxu0 %v1978
    %3199 = vmatprep.subr.mxu0 %v2015
    %3200 = vmatpush1.msra.mxu0 %v2014
    %3201 = vmatprep.subr.mxu0 %v2051
    %3202 = vmatpush1.msra.mxu0 %v2050
    %3203 = vmatprep.subr.mxu0 %v2087
    %3204 = vmatpush1.msra.mxu0 %v2086
    %3205 = vmatprep.subr.mxu0 %v2123
    %3206 = vmatpush1.msra.mxu0 %v2122
    %3207 = vmatprep.subr.mxu0 %v2159
    %3208 = vmatpush1.msra.mxu0 %v2158
    %3209 = vmatprep.subr.mxu0 %v2195
    %3210 = vmatpush1.msra.mxu0 %v2194
    %3211 = vmatprep.subr.mxu0 0.0
    %3212 = vmatpush1.msra.mxu0 0.0
    %3213 = vmatprep.subr.mxu0 0.0
    %3214 = vmatpush1.msra.mxu0 0.0
    %3215 = vmatprep.subr.mxu0 0.0
    %3216 = vmatpush1.msra.mxu0 0.0
    %3217 = vmatprep.subr.mxu0 0.0
    %3218 = vmatpush1.msra.mxu0 0.0
    %3219 = vmatprep.subr.mxu0 0.0
    %3220 = vmatpush1.msra.mxu0 0.0
    %3221 = vmatprep.subr.mxu0 0.0
    %3222 = vmatpush1.msra.mxu0 0.0
    %3223 = vmatprep.subr.mxu0 0.0
    %3224 = vmatpush1.msra.mxu0 0.0
    %3225 = vmatprep.subr.mxu0 0.0
    %3226 = vmatpush1.msra.mxu0 0.0
    %3227 = vmatprep.subr.mxu0 0.0
    %3228 = vmatpush1.msra.mxu0 0.0
    %3229 = vmatprep.subr.mxu0 0.0
    %3230 = vmatpush1.msra.mxu0 0.0
    %3231 = vmatprep.subr.mxu0 0.0
    %3232 = vmatpush1.msra.mxu0 0.0
    %3233 = vmatprep.subr.mxu0 0.0
    %3234 = vmatpush1.msra.mxu0 0.0
    %3235 = vmatprep.subr.mxu0 0.0
    %3236 = vmatpush1.msra.mxu0 0.0
    %3237 = vmatprep.subr.mxu0 0.0
    %3238 = vmatpush1.msra.mxu0 0.0
    %3239 = vmatprep.subr.mxu0 0.0
    %3240 = vmatpush1.msra.mxu0 0.0
    %3241 = vmatprep.subr.mxu0 0.0
    %3242 = vmatpush1.msra.mxu0 0.0
    %3243 = vmatprep.mubr.f32.mxu0 0.0
    %3244 = vmatmul.mubr.f32.gmra.mrb[0].mxu0 %v1631
    %v3245 = vpop.f32.mrb[0].mxu0
    %v3246 = vadd.f32 %v2309, %v3245
    %v3247 = vpop.f32.mrb[0].mxu0
    %v3248 = vadd.f32 %v2313, %v3247
    %3249 = vdwg.mxu0
    %3250 = vmatprep.subr.mxu0 %v1657
    %3251 = vmatpush1.msra.mxu0 %v1656
    %3252 = vmatprep.subr.mxu0 %v1693
    %3253 = vmatpush1.msra.mxu0 %v1692
    %3254 = vmatprep.subr.mxu0 %v1729
    %3255 = vmatpush1.msra.mxu0 %v1728
    %3256 = vmatprep.subr.mxu0 %v1765
    %3257 = vmatpush1.msra.mxu0 %v1764
    %3258 = vmatprep.subr.mxu0 %v1801
    %3259 = vmatpush1.msra.mxu0 %v1800
    %3260 = vmatprep.subr.mxu0 %v1837
    %3261 = vmatpush1.msra.mxu0 %v1836
    %3262 = vmatprep.subr.mxu0 %v1873
    %3263 = vmatpush1.msra.mxu0 %v1872
    %3264 = vmatprep.subr.mxu0 %v1909
    %3265 = vmatpush1.msra.mxu0 %v1908
    %3266 = vmatprep.subr.mxu0 %v1945
    %3267 = vmatpush1.msra.mxu0 %v1944
    %3268 = vmatprep.subr.mxu0 %v1981
    %3269 = vmatpush1.msra.mxu0 %v1980
    %3270 = vmatprep.subr.mxu0 %v2017
    %3271 = vmatpush1.msra.mxu0 %v2016
    %3272 = vmatprep.subr.mxu0 %v2053
    %3273 = vmatpush1.msra.mxu0 %v2052
    %3274 = vmatprep.subr.mxu0 %v2089
    %3275 = vmatpush1.msra.mxu0 %v2088
    %3276 = vmatprep.subr.mxu0 %v2125
    %3277 = vmatpush1.msra.mxu0 %v2124
    %3278 = vmatprep.subr.mxu0 %v2161
    %3279 = vmatpush1.msra.mxu0 %v2160
    %3280 = vmatprep.subr.mxu0 %v2197
    %3281 = vmatpush1.msra.mxu0 %v2196
    %3282 = vmatprep.subr.mxu0 0.0
    %3283 = vmatpush1.msra.mxu0 0.0
    %3284 = vmatprep.subr.mxu0 0.0
    %3285 = vmatpush1.msra.mxu0 0.0
    %3286 = vmatprep.subr.mxu0 0.0
    %3287 = vmatpush1.msra.mxu0 0.0
    %3288 = vmatprep.subr.mxu0 0.0
    %3289 = vmatpush1.msra.mxu0 0.0
    %3290 = vmatprep.subr.mxu0 0.0
    %3291 = vmatpush1.msra.mxu0 0.0
    %3292 = vmatprep.subr.mxu0 0.0
    %3293 = vmatpush1.msra.mxu0 0.0
    %3294 = vmatprep.subr.mxu0 0.0
    %3295 = vmatpush1.msra.mxu0 0.0
    %3296 = vmatprep.subr.mxu0 0.0
    %3297 = vmatpush1.msra.mxu0 0.0
    %3298 = vmatprep.subr.mxu0 0.0
    %3299 = vmatpush1.msra.mxu0 0.0
    %3300 = vmatprep.subr.mxu0 0.0
    %3301 = vmatpush1.msra.mxu0 0.0
    %3302 = vmatprep.subr.mxu0 0.0
    %3303 = vmatpush1.msra.mxu0 0.0
    %3304 = vmatprep.subr.mxu0 0.0
    %3305 = vmatpush1.msra.mxu0 0.0
    %3306 = vmatprep.subr.mxu0 0.0
    %3307 = vmatpush1.msra.mxu0 0.0
    %3308 = vmatprep.subr.mxu0 0.0
    %3309 = vmatpush1.msra.mxu0 0.0
    %3310 = vmatprep.subr.mxu0 0.0
    %3311 = vmatpush1.msra.mxu0 0.0
    %3312 = vmatprep.subr.mxu0 0.0
    %3313 = vmatpush1.msra.mxu0 0.0
    %3314 = vmatprep.mubr.f32.mxu0 0.0
    %3315 = vmatmul.mubr.f32.gmra.mrb[0].mxu0 %v1631
    %v3316 = vpop.f32.mrb[0].mxu0
    %v3317 = vadd.f32 %v2317, %v3316
    %v3318 = vpop.f32.mrb[0].mxu0
    %v3319 = vadd.f32 %v2321, %v3318
    %3320 = vdwg.mxu0
    %3321 = vmatprep.subr.mxu0 %v1659
    %3322 = vmatpush1.msra.mxu0 %v1658
    %3323 = vmatprep.subr.mxu0 %v1695
    %3324 = vmatpush1.msra.mxu0 %v1694
    %3325 = vmatprep.subr.mxu0 %v1731
    %3326 = vmatpush1.msra.mxu0 %v1730
    %3327 = vmatprep.subr.mxu0 %v1767
    %3328 = vmatpush1.msra.mxu0 %v1766
    %3329 = vmatprep.subr.mxu0 %v1803
    %3330 = vmatpush1.msra.mxu0 %v1802
    %3331 = vmatprep.subr.mxu0 %v1839
    %3332 = vmatpush1.msra.mxu0 %v1838
    %3333 = vmatprep.subr.mxu0 %v1875
    %3334 = vmatpush1.msra.mxu0 %v1874
    %3335 = vmatprep.subr.mxu0 %v1911
    %3336 = vmatpush1.msra.mxu0 %v1910
    %3337 = vmatprep.subr.mxu0 %v1947
    %3338 = vmatpush1.msra.mxu0 %v1946
    %3339 = vmatprep.subr.mxu0 %v1983
    %3340 = vmatpush1.msra.mxu0 %v1982
    %3341 = vmatprep.subr.mxu0 %v2019
    %3342 = vmatpush1.msra.mxu0 %v2018
    %3343 = vmatprep.subr.mxu0 %v2055
    %3344 = vmatpush1.msra.mxu0 %v2054
    %3345 = vmatprep.subr.mxu0 %v2091
    %3346 = vmatpush1.msra.mxu0 %v2090
    %3347 = vmatprep.subr.mxu0 %v2127
    %3348 = vmatpush1.msra.mxu0 %v2126
    %3349 = vmatprep.subr.mxu0 %v2163
    %3350 = vmatpush1.msra.mxu0 %v2162
    %3351 = vmatprep.subr.mxu0 %v2199
    %3352 = vmatpush1.msra.mxu0 %v2198
    %3353 = vmatprep.subr.mxu0 0.0
    %3354 = vmatpush1.msra.mxu0 0.0
    %3355 = vmatprep.subr.mxu0 0.0
    %3356 = vmatpush1.msra.mxu0 0.0
    %3357 = vmatprep.subr.mxu0 0.0
    %3358 = vmatpush1.msra.mxu0 0.0
    %3359 = vmatprep.subr.mxu0 0.0
    %3360 = vmatpush1.msra.mxu0 0.0
    %3361 = vmatprep.subr.mxu0 0.0
    %3362 = vmatpush1.msra.mxu0 0.0
    %3363 = vmatprep.subr.mxu0 0.0
    %3364 = vmatpush1.msra.mxu0 0.0
    %3365 = vmatprep.subr.mxu0 0.0
    %3366 = vmatpush1.msra.mxu0 0.0
    %3367 = vmatprep.subr.mxu0 0.0
    %3368 = vmatpush1.msra.mxu0 0.0
    %3369 = vmatprep.subr.mxu0 0.0
    %3370 = vmatpush1.msra.mxu0 0.0
    %3371 = vmatprep.subr.mxu0 0.0
    %3372 = vmatpush1.msra.mxu0 0.0
    %3373 = vmatprep.subr.mxu0 0.0
    %3374 = vmatpush1.msra.mxu0 0.0
    %3375 = vmatprep.subr.mxu0 0.0
    %3376 = vmatpush1.msra.mxu0 0.0
    %3377 = vmatprep.subr.mxu0 0.0
    %3378 = vmatpush1.msra.mxu0 0.0
    %3379 = vmatprep.subr.mxu0 0.0
    %3380 = vmatpush1.msra.mxu0 0.0
    %3381 = vmatprep.subr.mxu0 0.0
    %3382 = vmatpush1.msra.mxu0 0.0
    %3383 = vmatprep.subr.mxu0 0.0
    %3384 = vmatpush1.msra.mxu0 0.0
    %3385 = vmatprep.mubr.f32.mxu0 0.0
    %3386 = vmatmul.mubr.f32.gmra.mrb[0].mxu0 %v1631
    %v3387 = vpop.f32.mrb[0].mxu0
    %v3388 = vadd.f32 %v2325, %v3387
    %v3389 = vpop.f32.mrb[0].mxu0
    %v3390 = vadd.f32 %v2329, %v3389
    %3391 = vdwg.mxu0
    %3392 = vmatprep.subr.mxu0 %v1661
    %3393 = vmatpush1.msra.mxu0 %v1660
    %3394 = vmatprep.subr.mxu0 %v1697
    %3395 = vmatpush1.msra.mxu0 %v1696
    %3396 = vmatprep.subr.mxu0 %v1733
    %3397 = vmatpush1.msra.mxu0 %v1732
    %3398 = vmatprep.subr.mxu0 %v1769
    %3399 = vmatpush1.msra.mxu0 %v1768
    %3400 = vmatprep.subr.mxu0 %v1805
    %3401 = vmatpush1.msra.mxu0 %v1804
    %3402 = vmatprep.subr.mxu0 %v1841
    %3403 = vmatpush1.msra.mxu0 %v1840
    %3404 = vmatprep.subr.mxu0 %v1877
    %3405 = vmatpush1.msra.mxu0 %v1876
    %3406 = vmatprep.subr.mxu0 %v1913
    %3407 = vmatpush1.msra.mxu0 %v1912
    %3408 = vmatprep.subr.mxu0 %v1949
    %3409 = vmatpush1.msra.mxu0 %v1948
    %3410 = vmatprep.subr.mxu0 %v1985
    %3411 = vmatpush1.msra.mxu0 %v1984
    %3412 = vmatprep.subr.mxu0 %v2021
    %3413 = vmatpush1.msra.mxu0 %v2020
    %3414 = vmatprep.subr.mxu0 %v2057
    %3415 = vmatpush1.msra.mxu0 %v2056
    %3416 = vmatprep.subr.mxu0 %v2093
    %3417 = vmatpush1.msra.mxu0 %v2092
    %3418 = vmatprep.subr.mxu0 %v2129
    %3419 = vmatpush1.msra.mxu0 %v2128
    %3420 = vmatprep.subr.mxu0 %v2165
    %3421 = vmatpush1.msra.mxu0 %v2164
    %3422 = vmatprep.subr.mxu0 %v2201
    %3423 = vmatpush1.msra.mxu0 %v2200
    %3424 = vmatprep.subr.mxu0 0.0
    %3425 = vmatpush1.msra.mxu0 0.0
    %3426 = vmatprep.subr.mxu0 0.0
    %3427 = vmatpush1.msra.mxu0 0.0
    %3428 = vmatprep.subr.mxu0 0.0
    %3429 = vmatpush1.msra.mxu0 0.0
    %3430 = vmatprep.subr.mxu0 0.0
    %3431 = vmatpush1.msra.mxu0 0.0
    %3432 = vmatprep.subr.mxu0 0.0
    %3433 = vmatpush1.msra.mxu0 0.0
    %3434 = vmatprep.subr.mxu0 0.0
    %3435 = vmatpush1.msra.mxu0 0.0
    %3436 = vmatprep.subr.mxu0 0.0
    %3437 = vmatpush1.msra.mxu0 0.0
    %3438 = vmatprep.subr.mxu0 0.0
    %3439 = vmatpush1.msra.mxu0 0.0
    %3440 = vmatprep.subr.mxu0 0.0
    %3441 = vmatpush1.msra.mxu0 0.0
    %3442 = vmatprep.subr.mxu0 0.0
    %3443 = vmatpush1.msra.mxu0 0.0
    %3444 = vmatprep.subr.mxu0 0.0
    %3445 = vmatpush1.msra.mxu0 0.0
    %3446 = vmatprep.subr.mxu0 0.0
    %3447 = vmatpush1.msra.mxu0 0.0
    %3448 = vmatprep.subr.mxu0 0.0
    %3449 = vmatpush1.msra.mxu0 0.0
    %3450 = vmatprep.subr.mxu0 0.0
    %3451 = vmatpush1.msra.mxu0 0.0
    %3452 = vmatprep.subr.mxu0 0.0
    %3453 = vmatpush1.msra.mxu0 0.0
    %3454 = vmatprep.subr.mxu0 0.0
    %3455 = vmatpush1.msra.mxu0 0.0
    %3456 = vmatprep.mubr.f32.mxu0 0.0
    %3457 = vmatmul.mubr.f32.gmra.mrb[0].mxu0 %v1631
    %v3458 = vpop.f32.mrb[0].mxu0
    %v3459 = vadd.f32 %v2333, %v3458
    %v3460 = vpop.f32.mrb[0].mxu0
    %v3461 = vadd.f32 %v2337, %v3460
    %3462 = vdwg.mxu0
    %3463 = vmatprep.subr.mxu0 %v1663
    %3464 = vmatpush1.msra.mxu0 %v1662
    %3465 = vmatprep.subr.mxu0 %v1699
    %3466 = vmatpush1.msra.mxu0 %v1698
    %3467 = vmatprep.subr.mxu0 %v1735
    %3468 = vmatpush1.msra.mxu0 %v1734
    %3469 = vmatprep.subr.mxu0 %v1771
    %3470 = vmatpush1.msra.mxu0 %v1770
    %3471 = vmatprep.subr.mxu0 %v1807
    %3472 = vmatpush1.msra.mxu0 %v1806
    %3473 = vmatprep.subr.mxu0 %v1843
    %3474 = vmatpush1.msra.mxu0 %v1842
    %3475 = vmatprep.subr.mxu0 %v1879
    %3476 = vmatpush1.msra.mxu0 %v1878
    %3477 = vmatprep.subr.mxu0 %v1915
    %3478 = vmatpush1.msra.mxu0 %v1914
    %3479 = vmatprep.subr.mxu0 %v1951
    %3480 = vmatpush1.msra.mxu0 %v1950
    %3481 = vmatprep.subr.mxu0 %v1987
    %3482 = vmatpush1.msra.mxu0 %v1986
    %3483 = vmatprep.subr.mxu0 %v2023
    %3484 = vmatpush1.msra.mxu0 %v2022
    %3485 = vmatprep.subr.mxu0 %v2059
    %3486 = vmatpush1.msra.mxu0 %v2058
    %3487 = vmatprep.subr.mxu0 %v2095
    %3488 = vmatpush1.msra.mxu0 %v2094
    %3489 = vmatprep.subr.mxu0 %v2131
    %3490 = vmatpush1.msra.mxu0 %v2130
    %3491 = vmatprep.subr.mxu0 %v2167
    %3492 = vmatpush1.msra.mxu0 %v2166
    %3493 = vmatprep.subr.mxu0 %v2203
    %3494 = vmatpush1.msra.mxu0 %v2202
    %3495 = vmatprep.subr.mxu0 0.0
    %3496 = vmatpush1.msra.mxu0 0.0
    %3497 = vmatprep.subr.mxu0 0.0
    %3498 = vmatpush1.msra.mxu0 0.0
    %3499 = vmatprep.subr.mxu0 0.0
    %3500 = vmatpush1.msra.mxu0 0.0
    %3501 = vmatprep.subr.mxu0 0.0
    %3502 = vmatpush1.msra.mxu0 0.0
    %3503 = vmatprep.subr.mxu0 0.0
    %3504 = vmatpush1.msra.mxu0 0.0
    %3505 = vmatprep.subr.mxu0 0.0
    %3506 = vmatpush1.msra.mxu0 0.0
    %3507 = vmatprep.subr.mxu0 0.0
    %3508 = vmatpush1.msra.mxu0 0.0
    %3509 = vmatprep.subr.mxu0 0.0
    %3510 = vmatpush1.msra.mxu0 0.0
    %3511 = vmatprep.subr.mxu0 0.0
    %3512 = vmatpush1.msra.mxu0 0.0
    %3513 = vmatprep.subr.mxu0 0.0
    %3514 = vmatpush1.msra.mxu0 0.0
    %3515 = vmatprep.subr.mxu0 0.0
    %3516 = vmatpush1.msra.mxu0 0.0
    %3517 = vmatprep.subr.mxu0 0.0
    %3518 = vmatpush1.msra.mxu0 0.0
    %3519 = vmatprep.subr.mxu0 0.0
    %3520 = vmatpush1.msra.mxu0 0.0
    %3521 = vmatprep.subr.mxu0 0.0
    %3522 = vmatpush1.msra.mxu0 0.0
    %3523 = vmatprep.subr.mxu0 0.0
    %3524 = vmatpush1.msra.mxu0 0.0
    %3525 = vmatprep.subr.mxu0 0.0
    %3526 = vmatpush1.msra.mxu0 0.0
    %3527 = vmatprep.mubr.f32.mxu0 0.0
    %3528 = vmatmul.mubr.f32.gmra.mrb[0].mxu0 %v1631
    %v3529 = vpop.f32.mrb[0].mxu0
    %v3530 = vadd.f32 %v2341, %v3529
    %v3531 = vpop.f32.mrb[0].mxu0
    %v3532 = vadd.f32 %v2345, %v3531
    %3533 = vdwg.mxu0
    %3534 = vmatprep.subr.mxu0 %v1665
    %3535 = vmatpush1.msra.mxu0 %v1664
    %3536 = vmatprep.subr.mxu0 %v1701
    %3537 = vmatpush1.msra.mxu0 %v1700
    %3538 = vmatprep.subr.mxu0 %v1737
    %3539 = vmatpush1.msra.mxu0 %v1736
    %3540 = vmatprep.subr.mxu0 %v1773
    %3541 = vmatpush1.msra.mxu0 %v1772
    %3542 = vmatprep.subr.mxu0 %v1809
    %3543 = vmatpush1.msra.mxu0 %v1808
    %3544 = vmatprep.subr.mxu0 %v1845
    %3545 = vmatpush1.msra.mxu0 %v1844
    %3546 = vmatprep.subr.mxu0 %v1881
    %3547 = vmatpush1.msra.mxu0 %v1880
    %3548 = vmatprep.subr.mxu0 %v1917
    %3549 = vmatpush1.msra.mxu0 %v1916
    %3550 = vmatprep.subr.mxu0 %v1953
    %3551 = vmatpush1.msra.mxu0 %v1952
    %3552 = vmatprep.subr.mxu0 %v1989
    %3553 = vmatpush1.msra.mxu0 %v1988
    %3554 = vmatprep.subr.mxu0 %v2025
    %3555 = vmatpush1.msra.mxu0 %v2024
    %3556 = vmatprep.subr.mxu0 %v2061
    %3557 = vmatpush1.msra.mxu0 %v2060
    %3558 = vmatprep.subr.mxu0 %v2097
    %3559 = vmatpush1.msra.mxu0 %v2096
    %3560 = vmatprep.subr.mxu0 %v2133
    %3561 = vmatpush1.msra.mxu0 %v2132
    %3562 = vmatprep.subr.mxu0 %v2169
    %3563 = vmatpush1.msra.mxu0 %v2168
    %3564 = vmatprep.subr.mxu0 %v2205
    %3565 = vmatpush1.msra.mxu0 %v2204
    %3566 = vmatprep.subr.mxu0 0.0
    %3567 = vmatpush1.msra.mxu0 0.0
    %3568 = vmatprep.subr.mxu0 0.0
    %3569 = vmatpush1.msra.mxu0 0.0
    %3570 = vmatprep.subr.mxu0 0.0
    %3571 = vmatpush1.msra.mxu0 0.0
    %3572 = vmatprep.subr.mxu0 0.0
    %3573 = vmatpush1.msra.mxu0 0.0
    %3574 = vmatprep.subr.mxu0 0.0
    %3575 = vmatpush1.msra.mxu0 0.0
    %3576 = vmatprep.subr.mxu0 0.0
    %3577 = vmatpush1.msra.mxu0 0.0
    %3578 = vmatprep.subr.mxu0 0.0
    %3579 = vmatpush1.msra.mxu0 0.0
    %3580 = vmatprep.subr.mxu0 0.0
    %3581 = vmatpush1.msra.mxu0 0.0
    %3582 = vmatprep.subr.mxu0 0.0
    %3583 = vmatpush1.msra.mxu0 0.0
    %3584 = vmatprep.subr.mxu0 0.0
    %3585 = vmatpush1.msra.mxu0 0.0
    %3586 = vmatprep.subr.mxu0 0.0
    %3587 = vmatpush1.msra.mxu0 0.0
    %3588 = vmatprep.subr.mxu0 0.0
    %3589 = vmatpush1.msra.mxu0 0.0
    %3590 = vmatprep.subr.mxu0 0.0
    %3591 = vmatpush1.msra.mxu0 0.0
    %3592 = vmatprep.subr.mxu0 0.0
    %3593 = vmatpush1.msra.mxu0 0.0
    %3594 = vmatprep.subr.mxu0 0.0
    %3595 = vmatpush1.msra.mxu0 0.0
    %3596 = vmatprep.subr.mxu0 0.0
    %3597 = vmatpush1.msra.mxu0 0.0
    %3598 = vmatprep.mubr.f32.mxu0 0.0
    %3599 = vmatmul.mubr.f32.gmra.mrb[0].mxu0 %v1631
    %v3600 = vpop.f32.mrb[0].mxu0
    %v3601 = vadd.f32 %v2349, %v3600
    %v3602 = vpop.f32.mrb[0].mxu0
    %v3603 = vadd.f32 %v2353, %v3602
    %3604 = vdwg.mxu0
    %3605 = vmatprep.subr.mxu0 %v1667
    %3606 = vmatpush1.msra.mxu0 %v1666
    %3607 = vmatprep.subr.mxu0 %v1703
    %3608 = vmatpush1.msra.mxu0 %v1702
    %3609 = vmatprep.subr.mxu0 %v1739
    %3610 = vmatpush1.msra.mxu0 %v1738
    %3611 = vmatprep.subr.mxu0 %v1775
    %3612 = vmatpush1.msra.mxu0 %v1774
    %3613 = vmatprep.subr.mxu0 %v1811
    %3614 = vmatpush1.msra.mxu0 %v1810
    %3615 = vmatprep.subr.mxu0 %v1847
    %3616 = vmatpush1.msra.mxu0 %v1846
    %3617 = vmatprep.subr.mxu0 %v1883
    %3618 = vmatpush1.msra.mxu0 %v1882
    %3619 = vmatprep.subr.mxu0 %v1919
    %3620 = vmatpush1.msra.mxu0 %v1918
    %3621 = vmatprep.subr.mxu0 %v1955
    %3622 = vmatpush1.msra.mxu0 %v1954
    %3623 = vmatprep.subr.mxu0 %v1991
    %3624 = vmatpush1.msra.mxu0 %v1990
    %3625 = vmatprep.subr.mxu0 %v2027
    %3626 = vmatpush1.msra.mxu0 %v2026
    %3627 = vmatprep.subr.mxu0 %v2063
    %3628 = vmatpush1.msra.mxu0 %v2062
    %3629 = vmatprep.subr.mxu0 %v2099
    %3630 = vmatpush1.msra.mxu0 %v2098
    %3631 = vmatprep.subr.mxu0 %v2135
    %3632 = vmatpush1.msra.mxu0 %v2134
    %3633 = vmatprep.subr.mxu0 %v2171
    %3634 = vmatpush1.msra.mxu0 %v2170
    %3635 = vmatprep.subr.mxu0 %v2207
    %3636 = vmatpush1.msra.mxu0 %v2206
    %3637 = vmatprep.subr.mxu0 0.0
    %3638 = vmatpush1.msra.mxu0 0.0
    %3639 = vmatprep.subr.mxu0 0.0
    %3640 = vmatpush1.msra.mxu0 0.0
    %3641 = vmatprep.subr.mxu0 0.0
    %3642 = vmatpush1.msra.mxu0 0.0
    %3643 = vmatprep.subr.mxu0 0.0
    %3644 = vmatpush1.msra.mxu0 0.0
    %3645 = vmatprep.subr.mxu0 0.0
    %3646 = vmatpush1.msra.mxu0 0.0
    %3647 = vmatprep.subr.mxu0 0.0
    %3648 = vmatpush1.msra.mxu0 0.0
    %3649 = vmatprep.subr.mxu0 0.0
    %3650 = vmatpush1.msra.mxu0 0.0
    %3651 = vmatprep.subr.mxu0 0.0
    %3652 = vmatpush1.msra.mxu0 0.0
    %3653 = vmatprep.subr.mxu0 0.0
    %3654 = vmatpush1.msra.mxu0 0.0
    %3655 = vmatprep.subr.mxu0 0.0
    %3656 = vmatpush1.msra.mxu0 0.0
    %3657 = vmatprep.subr.mxu0 0.0
    %3658 = vmatpush1.msra.mxu0 0.0
    %3659 = vmatprep.subr.mxu0 0.0
    %3660 = vmatpush1.msra.mxu0 0.0
    %3661 = vmatprep.subr.mxu0 0.0
    %3662 = vmatpush1.msra.mxu0 0.0
    %3663 = vmatprep.subr.mxu0 0.0
    %3664 = vmatpush1.msra.mxu0 0.0
    %3665 = vmatprep.subr.mxu0 0.0
    %3666 = vmatpush1.msra.mxu0 0.0
    %3667 = vmatprep.subr.mxu0 0.0
    %3668 = vmatpush1.msra.mxu0 0.0
    %3669 = vmatprep.mubr.f32.mxu0 0.0
    %3670 = vmatmul.mubr.f32.gmra.mrb[0].mxu0 %v1631
    %v3671 = vpop.f32.mrb[0].mxu0
    %v3672 = vadd.f32 %v2357, %v3671
    %v3673 = vpop.f32.mrb[0].mxu0
    %v3674 = vadd.f32 %v2361, %v3673
    %3675 = vdwg.mxu0
    %3676 = vst [vmem:[%s18] sm:$0xff] %v2465
    %3677 = vst [vmem:[%s18 + $0x8] sm:$0xff] %v2467
    %3678 = vst [vmem:[%s18 + $0x10] sm:$0xff] %v2536
    %3679 = vst [vmem:[%s18 + $0x18] sm:$0xff] %v2538
    %3680 = vst [vmem:[%s18 + $0x20] sm:$0xff] %v2607
    %3681 = vst [vmem:[%s18 + $0x28] sm:$0xff] %v2609
    %3682 = vst [vmem:[%s18 + $0x30] sm:$0xff] %v2678
    %3683 = vst [vmem:[%s18 + $0x38] sm:$0xff] %v2680
    %3684 = vst [vmem:[%s18 + $0x40] sm:$0xff] %v2749
    %3685 = vst [vmem:[%s18 + $0x48] sm:$0xff] %v2751
    %3686 = vst [vmem:[%s18 + $0x50] sm:$0xff] %v2820
    %3687 = vst [vmem:[%s18 + $0x58] sm:$0xff] %v2822
    %3688 = vst [vmem:[%s18 + $0x60] sm:$0xff] %v2891
    %3689 = vst [vmem:[%s18 + $0x68] sm:$0xff] %v2893
    %3690 = vst [vmem:[%s18 + $0x70] sm:$0xff] %v2962
    %3691 = vst [vmem:[%s18 + $0x78] sm:$0xff] %v2964
    %3692 = vst [vmem:[%s18 + $0x80] sm:$0xff] %v3033
    %3693 = vst [vmem:[%s18 + $0x88] sm:$0xff] %v3035
    %3694 = vst [vmem:[%s18 + $0x90] sm:$0xff] %v3104
    %3695 = vst [vmem:[%s18 + $0x98] sm:$0xff] %v3106
    %3696 = vst [vmem:[%s18 + $0xa0] sm:$0xff] %v3175
    %3697 = vst [vmem:[%s18 + $0xa8] sm:$0xff] %v3177
    %3698 = vst [vmem:[%s18 + $0xb0] sm:$0xff] %v3246
    %3699 = vst [vmem:[%s18 + $0xb8] sm:$0xff] %v3248
    %3700 = vst [vmem:[%s18 + $0xc0] sm:$0xff] %v3317
    %3701 = vst [vmem:[%s18 + $0xc8] sm:$0xff] %v3319
    %3702 = vst [vmem:[%s18 + $0xd0] sm:$0xff] %v3388
    %3703 = vst [vmem:[%s18 + $0xd8] sm:$0xff] %v3390
    %3704 = vst [vmem:[%s18 + $0xe0] sm:$0xff] %v3459
    %3705 = vst [vmem:[%s18 + $0xe8] sm:$0xff] %v3461
    %3706 = vst [vmem:[%s18 + $0xf0] sm:$0xff] %v3530
    %3707 = vst [vmem:[%s18 + $0xf8] sm:$0xff] %v3532
    %3708 = vst [vmem:[%s18 + $0x100] sm:$0xff] %v3601
    %3709 = vst [vmem:[%s18 + $0x108] sm:$0xff] %v3603
    %3710 = vst [vmem:[%s18 + $0x110] sm:$0xff] %v3672
    %3711 = vst [vmem:[%s18 + $0x118] sm:$0xff] %v3674
    // Predicated region
    $region126: #{scene_graph_refiner_forward.2} parent=1 // pred_check
      _
    $region127: #{scene_graph_refiner_forward.2} parent=1 // pred_check_branch
      %3713 = sbr.rel (0) target = $region129
    $region128: #{scene_graph_refiner_forward.2} parent=1 // pred_region
      _
    $region129: #{scene_graph_refiner_forward.2} parent=1 // pred_fallthru
      _
    // Predicated region
    $region130: #{scene_graph_refiner_forward.2} parent=1 // pred_check
      _
    $region131: #{scene_graph_refiner_forward.2} parent=1 // pred_check_branch
      %3715 = sbr.rel (0) target = $region133
    $region132: #{scene_graph_refiner_forward.2} parent=1 // pred_region
      _
    $region133: #{scene_graph_refiner_forward.2} parent=1 // pred_fallthru
      _
    %3716 = vsyncpa [#allocation3], 1
    %3717 = vsyncpa [#allocation7], 1
    %3718 = vsyncpa [#allocation10], 1
    %3719 = vsyncpa [#allocation13], 1
    %3720 = vsyncpa [#allocation16], 1
    %3721 = vsyncpa [#allocation19], 1
    %3722 = vsyncpa [#allocation22], 1
    %3723 = vsyncpa [#allocation4], 1

</llo_original>
